<compile_context>
chip_gen: v7x
topology: tpu7x:2x2x1
jax: 0.10.0
libtpu: 0.0.40
codegen_flags: <defaults>
</compile_context>

<pallas_src>
import functools

import jax
import jax.numpy as jnp
from jax import lax
from jax.experimental import pallas as pl
from jax.experimental.pallas import tpu as pltpu

D_EMBEDDING = 512
D_HIDDEN = 2048
H_CHUNK = 512
N_H_CHUNKS = D_HIDDEN // H_CHUNK
LN_EPS = 1e-5


def ffn_kernel(x_ref, w1_ref, b1_ref, w2_ref, b2_ref, gamma_ref, beta_ref,
               o_ref, acc_ref):
    # x_ref: (TM, D) f32; w1_ref: (D, H) bf16; b1_ref: (1, H) f32;
    # w2_ref: (H, D) bf16; b2_ref/gamma_ref/beta_ref: (1, D) f32;
    # acc_ref: (TM, D) f32 VMEM scratch accumulator.
    x = x_ref[...]                                  # f32 residual copy
    x_bf16 = x.astype(jnp.bfloat16)

    # Hidden dim in 512-wide slabs: relu(x @ W1_slab + b1_slab) feeds straight
    # into a GEMM2 accumulation.  Static unroll (4 iters): slab slices are
    # static (free views), the acc_ref dependency chain bounds each slab's
    # live range, and the VPU bias/ReLU/cast work interleaves with later
    # vmatmul pushes instead of serializing between the two GEMMs.
    for j in range(N_H_CHUNKS):
        lo, hi = j * H_CHUNK, (j + 1) * H_CHUNK
        h = jnp.dot(x_bf16, w1_ref[:, lo:hi],
                    preferred_element_type=jnp.float32)
        h = jnp.maximum(h + b1_ref[:, lo:hi], 0.0)
        part = jnp.dot(h.astype(jnp.bfloat16), w2_ref[lo:hi, :],
                       preferred_element_type=jnp.float32)
        if j == 0:
            acc_ref[...] = part
        else:
            acc_ref[...] += part

    # bias + residual, then LayerNorm over the embedding axis (all f32).
    y = acc_ref[...] + b2_ref[...] + x

    mean = jnp.mean(y, axis=-1, keepdims=True)
    mean_sq = jnp.mean(y * y, axis=-1, keepdims=True)
    var = mean_sq - mean * mean                     # one-pass variance
    scale = gamma_ref[...] * lax.rsqrt(var + LN_EPS)
    o_ref[...] = ((y - mean) * scale + beta_ref[...]).astype(o_ref.dtype)


def prepare_ffn_params(w1, b1, w2, b2, gamma, beta):
    """One-time parameter prep (outside the per-call jit path): pre-transpose
    conv weights for row-major x @ W and cast them to bf16."""
    return (
        jnp.asarray(w1.T, jnp.bfloat16),                        # (D, H)
        jnp.asarray(b1, jnp.float32).reshape(1, D_HIDDEN),
        jnp.asarray(w2.T, jnp.bfloat16),                        # (H, D)
        jnp.asarray(b2, jnp.float32).reshape(1, D_EMBEDDING),
        jnp.asarray(gamma, jnp.float32).reshape(1, D_EMBEDDING),
        jnp.asarray(beta, jnp.float32).reshape(1, D_EMBEDDING),
    )


def _const_spec(shape):
    # Grid-invariant operand: constant index_map, single-buffered (weights
    # fetched once and kept resident, ~half the weight VMEM of double-buffer).
    return pl.BlockSpec(shape, lambda i: (0,) * len(shape),
                        pipeline_mode=pl.Buffered(1))


def _round_up(a, b):
    return (a + b - 1) // b * b


@functools.partial(jax.jit, static_argnames=("tm",))
def powise_ffn(x, w1_t, b1_r, w2_t, b2_r, gamma_r, beta_r, *, tm=512):
    """x: [B, S, D] -> [B, S, D].  Params must come from prepare_ffn_params."""
    B, S, D = x.shape
    assert D == D_EMBEDDING
    N = B * S
    x2 = x.reshape(N, D)

    # Shrink the row tile for tiny inputs (keep sublane-aligned); otherwise use
    # the full tm.  The last grid step may be a partial block: Pallas clips the
    # output DMA to the true array extent, so no padding / slicing copies.
    tm_eff = min(tm, _round_up(N, 8))
    grid = (pl.cdiv(N, tm_eff),)

    out = pl.pallas_call(
        ffn_kernel,
        out_shape=jax.ShapeDtypeStruct((N, D), x.dtype),
        grid_spec=pltpu.PrefetchScalarGridSpec(
            num_scalar_prefetch=0,
            grid=grid,
            in_specs=[
                pl.BlockSpec((tm_eff, D), lambda i: (i, 0)),  # x row tile f32
                _const_spec((D, D_HIDDEN)),                   # W1^T (bf16)
                _const_spec((1, D_HIDDEN)),                   # b1
                _const_spec((D_HIDDEN, D)),                   # W2^T (bf16)
                _const_spec((1, D)),                          # b2
                _const_spec((1, D)),                          # gamma
                _const_spec((1, D)),                          # beta
            ],
            out_specs=pl.BlockSpec((tm_eff, D), lambda i: (i, 0)),
            scratch_shapes=[pltpu.VMEM((tm_eff, D), jnp.float32)],
        ),
        compiler_params=pltpu.CompilerParams(
            dimension_semantics=("parallel",),
            # Explicit limit sized from the real per-step footprint
            # (~4 MiB resident weights + x/out double buffers + slab temps
            #  + f32 accumulator ~= 14 MiB at tm=512); 40 MiB leaves headroom
            # on every generation and lifts v5e's 16 MiB scoped default.
            vmem_limit_bytes=40 * 1024 * 1024,
        ),
    )(x2, w1_t, b1_r, w2_t, b2_r, gamma_r, beta_r)

    return out.reshape(B, S, D)


def reference_ffn(x, w1, b1, w2, b2, gamma, beta, matmul_dtype=jnp.float32):
    """Pure-JAX reference.  matmul_dtype=bf16 mirrors the kernel's MXU path."""
    h = jnp.einsum("bsd,hd->bsh", x.astype(matmul_dtype),
                   w1.astype(matmul_dtype),
                   preferred_element_type=jnp.float32) + b1
    h = jnp.maximum(h, 0.0)
    y = jnp.einsum("bsh,dh->bsd", h.astype(matmul_dtype),
                   w2.astype(matmul_dtype),
                   preferred_element_type=jnp.float32) + b2 + x
    mean = jnp.mean(y, axis=-1, keepdims=True)
    var = jnp.mean((y - mean) ** 2, axis=-1, keepdims=True)
    return (y - mean) / jnp.sqrt(var + LN_EPS) * gamma + beta


if __name__ == "__main__":
    key = jax.random.PRNGKey(0)
    k_x1, k_x2, k_w1, k_b1, k_w2, k_b2 = jax.random.split(key, 6)

    # Deterministic parameter init (shapes from nn.Conv1d / nn.LayerNorm).
    w1 = jax.random.normal(k_w1, (D_HIDDEN, D_EMBEDDING), jnp.float32) * 0.02
    b1 = jax.random.normal(k_b1, (D_HIDDEN,), jnp.float32) * 0.02
    w2 = jax.random.normal(k_w2, (D_EMBEDDING, D_HIDDEN), jnp.float32) * 0.02
    b2 = jax.random.normal(k_b2, (D_EMBEDDING,), jnp.float32) * 0.02
    gamma = jnp.ones((D_EMBEDDING,), jnp.float32)
    beta = jnp.zeros((D_EMBEDDING,), jnp.float32)

    params = prepare_ffn_params(w1, b1, w2, b2, gamma, beta)

    # Case 1: tiny shape (single small grid step, tm shrunk to 16).
    x_small = jax.random.normal(k_x1, (2, 8, D_EMBEDDING), jnp.float32)
    # Case 2: ragged multi-tile (N=600 -> 2 grid steps of tm=512, the second
    # one partial), exercising the in-kernel ragged-tail handling.
    x_big = jax.random.normal(k_x2, (3, 200, D_EMBEDDING), jnp.float32)

    for x in (x_small, x_big):
        out = jax.block_until_ready(powise_ffn(x, *params))
        assert out.shape == x.shape
        assert bool(jnp.all(jnp.isfinite(out)))

        # Check against a reference using the same bf16 MXU path.
        ref_bf16 = reference_ffn(x, w1, b1, w2, b2, gamma, beta,
                                 matmul_dtype=jnp.bfloat16)
        assert jnp.allclose(out, ref_bf16, atol=3e-3, rtol=3e-3), \
            "mismatch vs bf16-matched reference"

        # Sanity check against the full-f32 reference (bf16 quantization noise).
        ref_f32 = reference_ffn(x, w1, b1, w2, b2, gamma, beta,
                                matmul_dtype=jnp.float32)
        assert jnp.allclose(out, ref_f32, atol=5e-2, rtol=5e-2), \
            "mismatch vs f32 reference"

    print("KERNEL_OK")
</pallas_src>

<mosaic_0001>
module attributes {stable_mosaic.version = 11 : i64} {
  func.func @ffn_kernel(%arg0: i32, %arg1: memref<16x512xf32, #tpu.memory_space<vmem>>, %arg2: memref<512x2048xbf16, #tpu.memory_space<vmem>>, %arg3: memref<1x2048xf32, #tpu.memory_space<vmem>>, %arg4: memref<2048x512xbf16, #tpu.memory_space<vmem>>, %arg5: memref<1x512xf32, #tpu.memory_space<vmem>>, %arg6: memref<1x512xf32, #tpu.memory_space<vmem>>, %arg7: memref<1x512xf32, #tpu.memory_space<vmem>>, %arg8: memref<16x512xf32, #tpu.memory_space<vmem>>, %arg9: memref<16x512xf32, #tpu.memory_space<vmem>>) attributes {dimension_semantics = [#tpu.dimension_semantics<parallel>], iteration_bounds = array<i64: 1>, scalar_prefetch = 0 : i64, scratch_operands = 1 : i64, tpu.core_type = #tpu.core_type<tc>, window_params = [{transform_indices = @transform_0, window_bounds = array<i64: 16, 512>}, {pipeline_mode = #tpu.pipeline_mode<synchronous>, transform_indices = @transform_1, window_bounds = array<i64: 512, 2048>}, {pipeline_mode = #tpu.pipeline_mode<synchronous>, transform_indices = @transform_2, window_bounds = array<i64: 1, 2048>}, {pipeline_mode = #tpu.pipeline_mode<synchronous>, transform_indices = @transform_3, window_bounds = array<i64: 2048, 512>}, {pipeline_mode = #tpu.pipeline_mode<synchronous>, transform_indices = @transform_4, window_bounds = array<i64: 1, 512>}, {pipeline_mode = #tpu.pipeline_mode<synchronous>, transform_indices = @transform_5, window_bounds = array<i64: 1, 512>}, {pipeline_mode = #tpu.pipeline_mode<synchronous>, transform_indices = @transform_6, window_bounds = array<i64: 1, 512>}, {transform_indices = @transform_7, window_bounds = array<i64: 16, 512>}]} {
    %c0 = arith.constant 0 : index
    %c0_0 = arith.constant 0 : index
    %0 = vector.load %arg1[%c0, %c0_0] : memref<16x512xf32, #tpu.memory_space<vmem>>, vector<16x512xf32>
    %1 = arith.truncf %0 : vector<16x512xf32> to vector<16x512xbf16>
    %c0_1 = arith.constant 0 : index
    %c0_2 = arith.constant 0 : index
    %2 = vector.load %arg2[%c0_1, %c0_2] : memref<512x2048xbf16, #tpu.memory_space<vmem>>, vector<512x512xbf16>
    %cst = arith.constant dense<0.000000e+00> : vector<16x512xf32>
    %3 = tpu.matmul %1, %2, %cst {dimension_numbers = #tpu.dot_dimension_numbers<[1], [0], [0], [1], [0, 0, 1, 1], [], []>} : vector<16x512xbf16>, vector<512x512xbf16>, vector<16x512xf32> -> vector<16x512xf32>
    %c0_3 = arith.constant 0 : index
    %c0_4 = arith.constant 0 : index
    %4 = vector.load %arg3[%c0_3, %c0_4] : memref<1x2048xf32, #tpu.memory_space<vmem>>, vector<1x512xf32>
    %5 = vector.broadcast %4 : vector<1x512xf32> to vector<16x512xf32>
    %6 = arith.addf %3, %5 : vector<16x512xf32>
    %cst_5 = arith.constant 0.000000e+00 : f32
    %7 = vector.broadcast %cst_5 : f32 to vector<16x512xf32>
    %8 = arith.maximumf %6, %7 : vector<16x512xf32>
    %9 = arith.truncf %8 : vector<16x512xf32> to vector<16x512xbf16>
    %c0_6 = arith.constant 0 : index
    %c0_7 = arith.constant 0 : index
    %10 = vector.load %arg4[%c0_6, %c0_7] : memref<2048x512xbf16, #tpu.memory_space<vmem>>, vector<512x512xbf16>
    %cst_8 = arith.constant dense<0.000000e+00> : vector<16x512xf32>
    %11 = tpu.matmul %9, %10, %cst_8 {dimension_numbers = #tpu.dot_dimension_numbers<[1], [0], [0], [1], [0, 0, 1, 1], [], []>} : vector<16x512xbf16>, vector<512x512xbf16>, vector<16x512xf32> -> vector<16x512xf32>
    %c0_9 = arith.constant 0 : index
    %c0_10 = arith.constant 0 : index
    %12 = vector.load %arg9[%c0_9, %c0_10] : memref<16x512xf32, #tpu.memory_space<vmem>>, vector<16x512xf32>
    tpu.vector_store %arg9[%c0_9, %c0_10], %11 {strides = array<i32>} : memref<16x512xf32, #tpu.memory_space<vmem>>, vector<16x512xf32>,
    %c0_11 = arith.constant 0 : index
    %c512 = arith.constant 512 : index
    %13 = vector.load %arg2[%c0_11, %c512] : memref<512x2048xbf16, #tpu.memory_space<vmem>>, vector<512x512xbf16>
    %cst_12 = arith.constant dense<0.000000e+00> : vector<16x512xf32>
    %14 = tpu.matmul %1, %13, %cst_12 {dimension_numbers = #tpu.dot_dimension_numbers<[1], [0], [0], [1], [0, 0, 1, 1], [], []>} : vector<16x512xbf16>, vector<512x512xbf16>, vector<16x512xf32> -> vector<16x512xf32>
    %c0_13 = arith.constant 0 : index
    %c512_14 = arith.constant 512 : index
    %15 = vector.load %arg3[%c0_13, %c512_14] : memref<1x2048xf32, #tpu.memory_space<vmem>>, vector<1x512xf32>
    %16 = vector.broadcast %15 : vector<1x512xf32> to vector<16x512xf32>
    %17 = arith.addf %14, %16 : vector<16x512xf32>
    %cst_15 = arith.constant 0.000000e+00 : f32
    %18 = vector.broadcast %cst_15 : f32 to vector<16x512xf32>
    %19 = arith.maximumf %17, %18 : vector<16x512xf32>
    %20 = arith.truncf %19 : vector<16x512xf32> to vector<16x512xbf16>
    %c512_16 = arith.constant 512 : index
    %c0_17 = arith.constant 0 : index
    %21 = vector.load %arg4[%c512_16, %c0_17] : memref<2048x512xbf16, #tpu.memory_space<vmem>>, vector<512x512xbf16>
    %cst_18 = arith.constant dense<0.000000e+00> : vector<16x512xf32>
    %22 = tpu.matmul %20, %21, %cst_18 {dimension_numbers = #tpu.dot_dimension_numbers<[1], [0], [0], [1], [0, 0, 1, 1], [], []>} : vector<16x512xbf16>, vector<512x512xbf16>, vector<16x512xf32> -> vector<16x512xf32>
    %c0_19 = arith.constant 0 : index
    %c0_20 = arith.constant 0 : index
    %23 = vector.load %arg9[%c0_19, %c0_20] : memref<16x512xf32, #tpu.memory_space<vmem>>, vector<16x512xf32>
    %24 = arith.addf %23, %22 : vector<16x512xf32>
    %c0_21 = arith.constant 0 : index
    %c0_22 = arith.constant 0 : index
    %25 = vector.load %arg9[%c0_21, %c0_22] : memref<16x512xf32, #tpu.memory_space<vmem>>, vector<16x512xf32>
    tpu.vector_store %arg9[%c0_21, %c0_22], %24 {strides = array<i32>} : memref<16x512xf32, #tpu.memory_space<vmem>>, vector<16x512xf32>,
    %c0_23 = arith.constant 0 : index
    %c1024 = arith.constant 1024 : index
    %26 = vector.load %arg2[%c0_23, %c1024] : memref<512x2048xbf16, #tpu.memory_space<vmem>>, vector<512x512xbf16>
    %cst_24 = arith.constant dense<0.000000e+00> : vector<16x512xf32>
    %27 = tpu.matmul %1, %26, %cst_24 {dimension_numbers = #tpu.dot_dimension_numbers<[1], [0], [0], [1], [0, 0, 1, 1], [], []>} : vector<16x512xbf16>, vector<512x512xbf16>, vector<16x512xf32> -> vector<16x512xf32>
    %c0_25 = arith.constant 0 : index
    %c1024_26 = arith.constant 1024 : index
    %28 = vector.load %arg3[%c0_25, %c1024_26] : memref<1x2048xf32, #tpu.memory_space<vmem>>, vector<1x512xf32>
    %29 = vector.broadcast %28 : vector<1x512xf32> to vector<16x512xf32>
    %30 = arith.addf %27, %29 : vector<16x512xf32>
    %cst_27 = arith.constant 0.000000e+00 : f32
    %31 = vector.broadcast %cst_27 : f32 to vector<16x512xf32>
    %32 = arith.maximumf %30, %31 : vector<16x512xf32>
    %33 = arith.truncf %32 : vector<16x512xf32> to vector<16x512xbf16>
    %c1024_28 = arith.constant 1024 : index
    %c0_29 = arith.constant 0 : index
    %34 = vector.load %arg4[%c1024_28, %c0_29] : memref<2048x512xbf16, #tpu.memory_space<vmem>>, vector<512x512xbf16>
    %cst_30 = arith.constant dense<0.000000e+00> : vector<16x512xf32>
    %35 = tpu.matmul %33, %34, %cst_30 {dimension_numbers = #tpu.dot_dimension_numbers<[1], [0], [0], [1], [0, 0, 1, 1], [], []>} : vector<16x512xbf16>, vector<512x512xbf16>, vector<16x512xf32> -> vector<16x512xf32>
    %c0_31 = arith.constant 0 : index
    %c0_32 = arith.constant 0 : index
    %36 = vector.load %arg9[%c0_31, %c0_32] : memref<16x512xf32, #tpu.memory_space<vmem>>, vector<16x512xf32>
    %37 = arith.addf %36, %35 : vector<16x512xf32>
    %c0_33 = arith.constant 0 : index
    %c0_34 = arith.constant 0 : index
    %38 = vector.load %arg9[%c0_33, %c0_34] : memref<16x512xf32, #tpu.memory_space<vmem>>, vector<16x512xf32>
    tpu.vector_store %arg9[%c0_33, %c0_34], %37 {strides = array<i32>} : memref<16x512xf32, #tpu.memory_space<vmem>>, vector<16x512xf32>,
    %c0_35 = arith.constant 0 : index
    %c1536 = arith.constant 1536 : index
    %39 = vector.load %arg2[%c0_35, %c1536] : memref<512x2048xbf16, #tpu.memory_space<vmem>>, vector<512x512xbf16>
    %cst_36 = arith.constant dense<0.000000e+00> : vector<16x512xf32>
    %40 = tpu.matmul %1, %39, %cst_36 {dimension_numbers = #tpu.dot_dimension_numbers<[1], [0], [0], [1], [0, 0, 1, 1], [], []>} : vector<16x512xbf16>, vector<512x512xbf16>, vector<16x512xf32> -> vector<16x512xf32>
    %c0_37 = arith.constant 0 : index
    %c1536_38 = arith.constant 1536 : index
    %41 = vector.load %arg3[%c0_37, %c1536_38] : memref<1x2048xf32, #tpu.memory_space<vmem>>, vector<1x512xf32>
    %42 = vector.broadcast %41 : vector<1x512xf32> to vector<16x512xf32>
    %43 = arith.addf %40, %42 : vector<16x512xf32>
    %cst_39 = arith.constant 0.000000e+00 : f32
    %44 = vector.broadcast %cst_39 : f32 to vector<16x512xf32>
    %45 = arith.maximumf %43, %44 : vector<16x512xf32>
    %46 = arith.truncf %45 : vector<16x512xf32> to vector<16x512xbf16>
    %c1536_40 = arith.constant 1536 : index
    %c0_41 = arith.constant 0 : index
    %47 = vector.load %arg4[%c1536_40, %c0_41] : memref<2048x512xbf16, #tpu.memory_space<vmem>>, vector<512x512xbf16>
    %cst_42 = arith.constant dense<0.000000e+00> : vector<16x512xf32>
    %48 = tpu.matmul %46, %47, %cst_42 {dimension_numbers = #tpu.dot_dimension_numbers<[1], [0], [0], [1], [0, 0, 1, 1], [], []>} : vector<16x512xbf16>, vector<512x512xbf16>, vector<16x512xf32> -> vector<16x512xf32>
    %c0_43 = arith.constant 0 : index
    %c0_44 = arith.constant 0 : index
    %49 = vector.load %arg9[%c0_43, %c0_44] : memref<16x512xf32, #tpu.memory_space<vmem>>, vector<16x512xf32>
    %50 = arith.addf %49, %48 : vector<16x512xf32>
    %c0_45 = arith.constant 0 : index
    %c0_46 = arith.constant 0 : index
    %51 = vector.load %arg9[%c0_45, %c0_46] : memref<16x512xf32, #tpu.memory_space<vmem>>, vector<16x512xf32>
    tpu.vector_store %arg9[%c0_45, %c0_46], %50 {strides = array<i32>} : memref<16x512xf32, #tpu.memory_space<vmem>>, vector<16x512xf32>,
    %c0_47 = arith.constant 0 : index
    %c0_48 = arith.constant 0 : index
    %52 = vector.load %arg9[%c0_47, %c0_48] : memref<16x512xf32, #tpu.memory_space<vmem>>, vector<16x512xf32>
    %c0_49 = arith.constant 0 : index
    %c0_50 = arith.constant 0 : index
    %53 = vector.load %arg5[%c0_49, %c0_50] : memref<1x512xf32, #tpu.memory_space<vmem>>, vector<1x512xf32>
    %54 = vector.broadcast %53 : vector<1x512xf32> to vector<16x512xf32>
    %55 = arith.addf %52, %54 : vector<16x512xf32>
    %56 = arith.addf %55, %0 : vector<16x512xf32>
    %cst_51 = arith.constant dense<0.000000e+00> : vector<16xf32>
    %57 = vector.multi_reduction <add>, %56, %cst_51 [1] : vector<16x512xf32> to vector<16xf32>
    %58 = vector.shape_cast %57 : vector<16xf32> to vector<16x1xf32>
    %cst_52 = arith.constant 5.120000e+02 : f32
    %59 = vector.broadcast %cst_52 : f32 to vector<16x1xf32>
    %60 = arith.divf %58, %59 : vector<16x1xf32>
    %61 = arith.mulf %56, %56 : vector<16x512xf32>
    %cst_53 = arith.constant dense<0.000000e+00> : vector<16xf32>
    %62 = vector.multi_reduction <add>, %61, %cst_53 [1] : vector<16x512xf32> to vector<16xf32>
    %63 = vector.shape_cast %62 : vector<16xf32> to vector<16x1xf32>
    %cst_54 = arith.constant 5.120000e+02 : f32
    %64 = vector.broadcast %cst_54 : f32 to vector<16x1xf32>
    %65 = arith.divf %63, %64 : vector<16x1xf32>
    %66 = arith.mulf %60, %60 : vector<16x1xf32>
    %67 = arith.subf %65, %66 : vector<16x1xf32>
    %c0_55 = arith.constant 0 : index
    %c0_56 = arith.constant 0 : index
    %68 = vector.load %arg6[%c0_55, %c0_56] : memref<1x512xf32, #tpu.memory_space<vmem>>, vector<1x512xf32>
    %cst_57 = arith.constant 9.99999974E-6 : f32
    %69 = vector.broadcast %cst_57 : f32 to vector<16x1xf32>
    %70 = arith.addf %67, %69 : vector<16x1xf32>
    %71 = math.rsqrt %70 : vector<16x1xf32>
    %72 = vector.broadcast %68 : vector<1x512xf32> to vector<16x512xf32>
    %73 = vector.broadcast %71 : vector<16x1xf32> to vector<16x512xf32>
    %74 = arith.mulf %72, %73 : vector<16x512xf32>
    %75 = vector.broadcast %60 : vector<16x1xf32> to vector<16x512xf32>
    %76 = arith.subf %56, %75 : vector<16x512xf32>
    %77 = arith.mulf %76, %74 : vector<16x512xf32>
    %c0_58 = arith.constant 0 : index
    %c0_59 = arith.constant 0 : index
    %78 = vector.load %arg7[%c0_58, %c0_59] : memref<1x512xf32, #tpu.memory_space<vmem>>, vector<1x512xf32>
    %79 = vector.broadcast %78 : vector<1x512xf32> to vector<16x512xf32>
    %80 = arith.addf %77, %79 : vector<16x512xf32>
    %c0_60 = arith.constant 0 : index
    %c0_61 = arith.constant 0 : index
    %81 = vector.load %arg8[%c0_60, %c0_61] : memref<16x512xf32, #tpu.memory_space<vmem>>, vector<16x512xf32>
    tpu.vector_store %arg8[%c0_60, %c0_61], %80 {strides = array<i32>} : memref<16x512xf32, #tpu.memory_space<vmem>>, vector<16x512xf32>,
    return
  }
  func.func @transform_0(%arg0: i32) -> (i32, i32) {
    %c0_i32 = arith.constant 0 : i32
    %c0_i32_0 = arith.constant 0 : i32
    return %arg0, %c0_i32 : i32, i32
  }
  func.func @transform_1(%arg0: i32) -> (i32, i32) {
    %c0_i32 = arith.constant 0 : i32
    %c0_i32_0 = arith.constant 0 : i32
    %c0_i32_1 = arith.constant 0 : i32
    return %c0_i32, %c0_i32_0 : i32, i32
  }
  func.func @transform_2(%arg0: i32) -> (i32, i32) {
    %c0_i32 = arith.constant 0 : i32
    %c0_i32_0 = arith.constant 0 : i32
    %c0_i32_1 = arith.constant 0 : i32
    return %c0_i32, %c0_i32_0 : i32, i32
  }
  func.func @transform_3(%arg0: i32) -> (i32, i32) {
    %c0_i32 = arith.constant 0 : i32
    %c0_i32_0 = arith.constant 0 : i32
    %c0_i32_1 = arith.constant 0 : i32
    return %c0_i32, %c0_i32_0 : i32, i32
  }
  func.func @transform_4(%arg0: i32) -> (i32, i32) {
    %c0_i32 = arith.constant 0 : i32
    %c0_i32_0 = arith.constant 0 : i32
    %c0_i32_1 = arith.constant 0 : i32
    return %c0_i32, %c0_i32_0 : i32, i32
  }
  func.func @transform_5(%arg0: i32) -> (i32, i32) {
    %c0_i32 = arith.constant 0 : i32
    %c0_i32_0 = arith.constant 0 : i32
    %c0_i32_1 = arith.constant 0 : i32
    return %c0_i32, %c0_i32_0 : i32, i32
  }
  func.func @transform_6(%arg0: i32) -> (i32, i32) {
    %c0_i32 = arith.constant 0 : i32
    %c0_i32_0 = arith.constant 0 : i32
    %c0_i32_1 = arith.constant 0 : i32
    return %c0_i32, %c0_i32_0 : i32, i32
  }
  func.func @transform_7(%arg0: i32) -> (i32, i32) {
    %c0_i32 = arith.constant 0 : i32
    %c0_i32_0 = arith.constant 0 : i32
    return %arg0, %c0_i32 : i32, i32
  }
}

</mosaic_0001>

<llo_original>
// kernel: powise_ffn.1
$region0: #{powise_ffn.1}
  #allocation0 [shape = 'u32[]', space=smem, size = 0x4, offset = 0x4, fixed_abs, tag = 'smem constant byte address 0x4 - core index']
  #allocation1 [shape = 'u32[144,128]{1,0:T(1,128)}', space=vmem, size = 0x12000, scoped, tag = 'internal scratch']
  #allocation2 [shape = 'f32[16,512]{1,0:T(8,128)}', space=vmem, size = 0x8000, scoped, tag = 'scratch operand']
  %s0 = inlined_call_operand.hbm [shape: f32[16,512], index: 0, kind: input, shape index: {}]
  %s1 = inlined_call_operand.hbm [shape: bf16[512,2048], index: 1, kind: input, shape index: {}]
  %s2 = inlined_call_operand.hbm [shape: f32[1,2048], index: 2, kind: input, shape index: {}]
  %s3 = inlined_call_operand.hbm [shape: bf16[2048,512], index: 3, kind: input, shape index: {}]
  %s4 = inlined_call_operand.hbm [shape: f32[1,512], index: 4, kind: input, shape index: {}]
  %s5 = inlined_call_operand.hbm [shape: f32[1,512], index: 5, kind: input, shape index: {}]
  %s6 = inlined_call_operand.hbm [shape: f32[1,512], index: 6, kind: input, shape index: {}]
  %s7 = inlined_call_operand.hbm [shape: f32[16,512], index: 7, kind: output, shape index: {}]
  %s8 = sld [smem:[#allocation0]]
  $region66: #{powise_ffn.1} parent=0
    _
  %s10 = ssub.s32 1, %s8
  %s11 = scalar_select 0, %s10, %s8
  $region1: #{powise_ffn.1} parent=0
    #allocation3 [shape = 'u8[32768]{0}', space=vmem, size = 0x8000, scoped, tag = 'input window, operand 0, single buffered']
    #allocation4 [shape = 's32[1]{0}', space=sflag, size = 0x4, scoped, tag = 'scoped memory for powise_ffn.1']
    #allocation5 [shape = 's32[1]{0}', space=sflag, size = 0x4, scoped, tag = 'scoped memory for powise_ffn.1']
    #allocation6 [shape = 'u8[2097152]{0}', space=vmem, size = 0x200000, scoped, tag = 'input window, operand 1, single buffered']
    #allocation7 [shape = 's32[1]{0}', space=sflag, size = 0x4, scoped, tag = 'scoped memory for powise_ffn.1']
    #allocation8 [shape = 'u8[8192]{0}', space=vmem, size = 0x2000, scoped, tag = 'input window, operand 2, single buffered']
    #allocation9 [shape = 'u8[2097152]{0}', space=vmem, size = 0x200000, scoped, tag = 'input window, operand 3, single buffered']
    #allocation10 [shape = 's32[1]{0}', space=sflag, size = 0x4, scoped, tag = 'scoped memory for powise_ffn.1']
    #allocation11 [shape = 'u8[2048]{0}', space=vmem, size = 0x800, scoped, tag = 'input window, operand 4, single buffered']
    #allocation12 [shape = 'u8[2048]{0}', space=vmem, size = 0x800, scoped, tag = 'input window, operand 5, single buffered']
    #allocation13 [shape = 's32[1]{0}', space=sflag, size = 0x4, scoped, tag = 'scoped memory for powise_ffn.1']
    #allocation14 [shape = 'u8[2048]{0}', space=vmem, size = 0x800, scoped, tag = 'input window, operand 6, single buffered']
    #allocation15 [shape = 'u8[32768]{0}', space=vmem, size = 0x8000, scoped, tag = 'output window, operand 0, single buffered']
    %12 = vsyncpa [#allocation4], 0
    %13 = vsyncpa [#allocation7], 0
    %14 = vsyncpa [#allocation10], 0
    %15 = vsyncpa [#allocation13], 0
    %16 = vsyncpa [#allocation5], 0
    // Predicated region
    $region2: #{powise_ffn.1} parent=1 // pred_check
      _
    $region3: #{powise_ffn.1} parent=1 // pred_check_branch
      %18 = sbr.rel (0) target = $region5
    $region4: #{powise_ffn.1} parent=1 // pred_region
      %s20 = ssub.s32 1024, 1024
      %21 = vsyncadd [#allocation4], %s20
      %s22 = sshll.u32 [#allocation3], 4
      %s23 = int_to_ptr.vmem [resolvable:$true] %s22
      %28 = dma.hbm_to_vmem [thread:$0]  %s0, 1024, %s23, [#allocation4], 512, 512, 32
    $region5: #{powise_ffn.1} parent=1 // pred_fallthru
      _
    // Predicated region
    $region6: #{powise_ffn.1} parent=1 // pred_check
      _
    $region7: #{powise_ffn.1} parent=1 // pred_check_branch
      %30 = sbr.rel (0) target = $region9
    $region8: #{powise_ffn.1} parent=1 // pred_region
      %s32 = ssub.s32 65536, 65536
      %33 = vsyncadd [#allocation7], %s32
      %s34 = sshll.u32 [#allocation6], 4
      %s35 = int_to_ptr.vmem [resolvable:$true] %s34
      %40 = dma.hbm_to_vmem [thread:$0]  %s1, 65536, %s35, [#allocation7], 1024, 1024, 64
    $region9: #{powise_ffn.1} parent=1 // pred_fallthru
      _
    // Predicated region
    $region10: #{powise_ffn.1} parent=1 // pred_check
      _
    $region11: #{powise_ffn.1} parent=1 // pred_check_branch
      %42 = sbr.rel (0) target = $region13
    $region12: #{powise_ffn.1} parent=1 // pred_region
      %s44 = ssub.s32 256, 256
      %45 = vsyncadd [#allocation7], %s44
      %s47 = sshll.u32 [#allocation8], 4
      %s48 = int_to_ptr.vmem [resolvable:$true] %s47
      %50 = dma.hbm_to_vmem [thread:$0]  %s2, 256, %s48, [#allocation7]
    $region13: #{powise_ffn.1} parent=1 // pred_fallthru
      _
    // Predicated region
    $region14: #{powise_ffn.1} parent=1 // pred_check
      _
    $region15: #{powise_ffn.1} parent=1 // pred_check_branch
      %52 = sbr.rel (0) target = $region17
    $region16: #{powise_ffn.1} parent=1 // pred_region
      %s54 = ssub.s32 65536, 65536
      %55 = vsyncadd [#allocation10], %s54
      %s56 = sshll.u32 [#allocation9], 4
      %s57 = int_to_ptr.vmem [resolvable:$true] %s56
      %62 = dma.hbm_to_vmem [thread:$0]  %s3, 65536, %s57, [#allocation10], 256, 256, 16
    $region17: #{powise_ffn.1} parent=1 // pred_fallthru
      _
    // Predicated region
    $region18: #{powise_ffn.1} parent=1 // pred_check
      _
    $region19: #{powise_ffn.1} parent=1 // pred_check_branch
      %64 = sbr.rel (0) target = $region21
    $region20: #{powise_ffn.1} parent=1 // pred_region
      %s66 = ssub.s32 64, 64
      %67 = vsyncadd [#allocation10], %s66
      %s69 = sshll.u32 [#allocation11], 4
      %s70 = int_to_ptr.vmem [resolvable:$true] %s69
      %72 = dma.hbm_to_vmem [thread:$0]  %s4, 64, %s70, [#allocation10]
    $region21: #{powise_ffn.1} parent=1 // pred_fallthru
      _
    // Predicated region
    $region22: #{powise_ffn.1} parent=1 // pred_check
      _
    $region23: #{powise_ffn.1} parent=1 // pred_check_branch
      %74 = sbr.rel (0) target = $region25
    $region24: #{powise_ffn.1} parent=1 // pred_region
      %s76 = ssub.s32 64, 64
      %77 = vsyncadd [#allocation13], %s76
      %s79 = sshll.u32 [#allocation12], 4
      %s80 = int_to_ptr.vmem [resolvable:$true] %s79
      %82 = dma.hbm_to_vmem [thread:$0]  %s5, 64, %s80, [#allocation13]
    $region25: #{powise_ffn.1} parent=1 // pred_fallthru
      _
    // Predicated region
    $region26: #{powise_ffn.1} parent=1 // pred_check
      _
    $region27: #{powise_ffn.1} parent=1 // pred_check_branch
      %84 = sbr.rel (0) target = $region29
    $region28: #{powise_ffn.1} parent=1 // pred_region
      %s86 = ssub.s32 64, 64
      %87 = vsyncadd [#allocation13], %s86
      %s89 = sshll.u32 [#allocation14], 4
      %s90 = int_to_ptr.vmem [resolvable:$true] %s89
      %92 = dma.hbm_to_vmem [thread:$0]  %s6, 64, %s90, [#allocation13]
    $region29: #{powise_ffn.1} parent=1 // pred_fallthru
      _
    // Predicated region
    $region30: #{powise_ffn.1} parent=1 // pred_check
      _
    $region31: #{powise_ffn.1} parent=1 // pred_check_branch
      %94 = sbr.rel (0) target = $region33
    $region32: #{powise_ffn.1} parent=1 // pred_region
      %95 = dma.done [#allocation4], 1024
    $region33: #{powise_ffn.1} parent=1 // pred_fallthru
      _
    // Predicated region
    $region34: #{powise_ffn.1} parent=1 // pred_check
      _
    $region35: #{powise_ffn.1} parent=1 // pred_check_branch
      %97 = sbr.rel (0) target = $region37
    $region36: #{powise_ffn.1} parent=1 // pred_region
      %98 = dma.done [#allocation7], 65536
    $region37: #{powise_ffn.1} parent=1 // pred_fallthru
      _
    // Predicated region
    $region38: #{powise_ffn.1} parent=1 // pred_check
      _
    $region39: #{powise_ffn.1} parent=1 // pred_check_branch
      %100 = sbr.rel (0) target = $region41
    $region40: #{powise_ffn.1} parent=1 // pred_region
      %101 = dma.done [#allocation7], 256
    $region41: #{powise_ffn.1} parent=1 // pred_fallthru
      _
    // Predicated region
    $region42: #{powise_ffn.1} parent=1 // pred_check
      _
    $region43: #{powise_ffn.1} parent=1 // pred_check_branch
      %103 = sbr.rel (0) target = $region45
    $region44: #{powise_ffn.1} parent=1 // pred_region
      %104 = dma.done [#allocation10], 65536
    $region45: #{powise_ffn.1} parent=1 // pred_fallthru
      _
    // Predicated region
    $region46: #{powise_ffn.1} parent=1 // pred_check
      _
    $region47: #{powise_ffn.1} parent=1 // pred_check_branch
      %106 = sbr.rel (0) target = $region49
    $region48: #{powise_ffn.1} parent=1 // pred_region
      %107 = dma.done [#allocation10], 64
    $region49: #{powise_ffn.1} parent=1 // pred_fallthru
      _
    // Predicated region
    $region50: #{powise_ffn.1} parent=1 // pred_check
      _
    $region51: #{powise_ffn.1} parent=1 // pred_check_branch
      %109 = sbr.rel (0) target = $region53
    $region52: #{powise_ffn.1} parent=1 // pred_region
      %110 = dma.done [#allocation13], 64
    $region53: #{powise_ffn.1} parent=1 // pred_fallthru
      _
    // Predicated region
    $region54: #{powise_ffn.1} parent=1 // pred_check
      _
    $region55: #{powise_ffn.1} parent=1 // pred_check_branch
      %112 = sbr.rel (0) target = $region57
    $region56: #{powise_ffn.1} parent=1 // pred_region
      %113 = dma.done [#allocation13], 64
    $region57: #{powise_ffn.1} parent=1 // pred_fallthru
      _
    %v114 = vld [vmem:[#allocation3] sm:$0xff]
    %v115 = vld [vmem:[#allocation3 + $0x8] sm:$0xff]
    %v116 = vld [vmem:[#allocation3 + $0x10] sm:$0xff]
    %v117 = vld [vmem:[#allocation3 + $0x18] sm:$0xff]
    %v118 = vld [vmem:[#allocation3 + $0x20] sm:$0xff]
    %v119 = vld [vmem:[#allocation3 + $0x28] sm:$0xff]
    %v120 = vld [vmem:[#allocation3 + $0x30] sm:$0xff]
    %v121 = vld [vmem:[#allocation3 + $0x38] sm:$0xff]
    %v122 = vpack.c.bf16 %v118, %v114
    %v123 = vpack.c.bf16 %v119, %v115
    %v124 = vpack.c.bf16 %v120, %v116
    %v125 = vpack.c.bf16 %v121, %v117
    %v126 = vld [vmem:[#allocation6] sm:$0xff]
    %v127 = vld [vmem:[#allocation6 + $0x8] sm:$0xff]
    %v128 = vld [vmem:[#allocation6 + $0x40] sm:$0xff]
    %v129 = vld [vmem:[#allocation6 + $0x48] sm:$0xff]
    %v130 = vld [vmem:[#allocation6 + $0x80] sm:$0xff]
    %v131 = vld [vmem:[#allocation6 + $0x88] sm:$0xff]
    %v132 = vld [vmem:[#allocation6 + $0xc0] sm:$0xff]
    %v133 = vld [vmem:[#allocation6 + $0xc8] sm:$0xff]
    %v134 = vld [vmem:[#allocation6 + $0x100] sm:$0xff]
    %v135 = vld [vmem:[#allocation6 + $0x108] sm:$0xff]
    %v136 = vld [vmem:[#allocation6 + $0x140] sm:$0xff]
    %v137 = vld [vmem:[#allocation6 + $0x148] sm:$0xff]
    %v138 = vld [vmem:[#allocation6 + $0x180] sm:$0xff]
    %v139 = vld [vmem:[#allocation6 + $0x188] sm:$0xff]
    %v140 = vld [vmem:[#allocation6 + $0x1c0] sm:$0xff]
    %v141 = vld [vmem:[#allocation6 + $0x1c8] sm:$0xff]
    %v142 = vld [vmem:[#allocation6 + $0x200] sm:$0xff]
    %v143 = vld [vmem:[#allocation6 + $0x208] sm:$0xff]
    %v144 = vld [vmem:[#allocation6 + $0x240] sm:$0xff]
    %v145 = vld [vmem:[#allocation6 + $0x248] sm:$0xff]
    %v146 = vld [vmem:[#allocation6 + $0x280] sm:$0xff]
    %v147 = vld [vmem:[#allocation6 + $0x288] sm:$0xff]
    %v148 = vld [vmem:[#allocation6 + $0x2c0] sm:$0xff]
    %v149 = vld [vmem:[#allocation6 + $0x2c8] sm:$0xff]
    %v150 = vld [vmem:[#allocation6 + $0x300] sm:$0xff]
    %v151 = vld [vmem:[#allocation6 + $0x308] sm:$0xff]
    %v152 = vld [vmem:[#allocation6 + $0x340] sm:$0xff]
    %v153 = vld [vmem:[#allocation6 + $0x348] sm:$0xff]
    %v154 = vld [vmem:[#allocation6 + $0x380] sm:$0xff]
    %v155 = vld [vmem:[#allocation6 + $0x388] sm:$0xff]
    %v156 = vld [vmem:[#allocation6 + $0x3c0] sm:$0xff]
    %v157 = vld [vmem:[#allocation6 + $0x3c8] sm:$0xff]
    %v158 = vld [vmem:[#allocation6 + $0x400] sm:$0xff]
    %v159 = vld [vmem:[#allocation6 + $0x408] sm:$0xff]
    %v160 = vld [vmem:[#allocation6 + $0x440] sm:$0xff]
    %v161 = vld [vmem:[#allocation6 + $0x448] sm:$0xff]
    %v162 = vld [vmem:[#allocation6 + $0x480] sm:$0xff]
    %v163 = vld [vmem:[#allocation6 + $0x488] sm:$0xff]
    %v164 = vld [vmem:[#allocation6 + $0x4c0] sm:$0xff]
    %v165 = vld [vmem:[#allocation6 + $0x4c8] sm:$0xff]
    %v166 = vld [vmem:[#allocation6 + $0x500] sm:$0xff]
    %v167 = vld [vmem:[#allocation6 + $0x508] sm:$0xff]
    %v168 = vld [vmem:[#allocation6 + $0x540] sm:$0xff]
    %v169 = vld [vmem:[#allocation6 + $0x548] sm:$0xff]
    %v170 = vld [vmem:[#allocation6 + $0x580] sm:$0xff]
    %v171 = vld [vmem:[#allocation6 + $0x588] sm:$0xff]
    %v172 = vld [vmem:[#allocation6 + $0x5c0] sm:$0xff]
    %v173 = vld [vmem:[#allocation6 + $0x5c8] sm:$0xff]
    %v174 = vld [vmem:[#allocation6 + $0x600] sm:$0xff]
    %v175 = vld [vmem:[#allocation6 + $0x608] sm:$0xff]
    %v176 = vld [vmem:[#allocation6 + $0x640] sm:$0xff]
    %v177 = vld [vmem:[#allocation6 + $0x648] sm:$0xff]
    %v178 = vld [vmem:[#allocation6 + $0x680] sm:$0xff]
    %v179 = vld [vmem:[#allocation6 + $0x688] sm:$0xff]
    %v180 = vld [vmem:[#allocation6 + $0x6c0] sm:$0xff]
    %v181 = vld [vmem:[#allocation6 + $0x6c8] sm:$0xff]
    %v182 = vld [vmem:[#allocation6 + $0x700] sm:$0xff]
    %v183 = vld [vmem:[#allocation6 + $0x708] sm:$0xff]
    %v184 = vld [vmem:[#allocation6 + $0x740] sm:$0xff]
    %v185 = vld [vmem:[#allocation6 + $0x748] sm:$0xff]
    %v186 = vld [vmem:[#allocation6 + $0x780] sm:$0xff]
    %v187 = vld [vmem:[#allocation6 + $0x788] sm:$0xff]
    %v188 = vld [vmem:[#allocation6 + $0x7c0] sm:$0xff]
    %v189 = vld [vmem:[#allocation6 + $0x7c8] sm:$0xff]
    %v190 = vld [vmem:[#allocation6 + $0x800] sm:$0xff]
    %v191 = vld [vmem:[#allocation6 + $0x808] sm:$0xff]
    %v192 = vld [vmem:[#allocation6 + $0x840] sm:$0xff]
    %v193 = vld [vmem:[#allocation6 + $0x848] sm:$0xff]
    %v194 = vld [vmem:[#allocation6 + $0x880] sm:$0xff]
    %v195 = vld [vmem:[#allocation6 + $0x888] sm:$0xff]
    %v196 = vld [vmem:[#allocation6 + $0x8c0] sm:$0xff]
    %v197 = vld [vmem:[#allocation6 + $0x8c8] sm:$0xff]
    %v198 = vld [vmem:[#allocation6 + $0x900] sm:$0xff]
    %v199 = vld [vmem:[#allocation6 + $0x908] sm:$0xff]
    %v200 = vld [vmem:[#allocation6 + $0x940] sm:$0xff]
    %v201 = vld [vmem:[#allocation6 + $0x948] sm:$0xff]
    %v202 = vld [vmem:[#allocation6 + $0x980] sm:$0xff]
    %v203 = vld [vmem:[#allocation6 + $0x988] sm:$0xff]
    %v204 = vld [vmem:[#allocation6 + $0x9c0] sm:$0xff]
    %v205 = vld [vmem:[#allocation6 + $0x9c8] sm:$0xff]
    %v206 = vld [vmem:[#allocation6 + $0xa00] sm:$0xff]
    %v207 = vld [vmem:[#allocation6 + $0xa08] sm:$0xff]
    %v208 = vld [vmem:[#allocation6 + $0xa40] sm:$0xff]
    %v209 = vld [vmem:[#allocation6 + $0xa48] sm:$0xff]
    %v210 = vld [vmem:[#allocation6 + $0xa80] sm:$0xff]
    %v211 = vld [vmem:[#allocation6 + $0xa88] sm:$0xff]
    %v212 = vld [vmem:[#allocation6 + $0xac0] sm:$0xff]
    %v213 = vld [vmem:[#allocation6 + $0xac8] sm:$0xff]
    %v214 = vld [vmem:[#allocation6 + $0xb00] sm:$0xff]
    %v215 = vld [vmem:[#allocation6 + $0xb08] sm:$0xff]
    %v216 = vld [vmem:[#allocation6 + $0xb40] sm:$0xff]
    %v217 = vld [vmem:[#allocation6 + $0xb48] sm:$0xff]
    %v218 = vld [vmem:[#allocation6 + $0xb80] sm:$0xff]
    %v219 = vld [vmem:[#allocation6 + $0xb88] sm:$0xff]
    %v220 = vld [vmem:[#allocation6 + $0xbc0] sm:$0xff]
    %v221 = vld [vmem:[#allocation6 + $0xbc8] sm:$0xff]
    %v222 = vld [vmem:[#allocation6 + $0xc00] sm:$0xff]
    %v223 = vld [vmem:[#allocation6 + $0xc08] sm:$0xff]
    %v224 = vld [vmem:[#allocation6 + $0xc40] sm:$0xff]
    %v225 = vld [vmem:[#allocation6 + $0xc48] sm:$0xff]
    %v226 = vld [vmem:[#allocation6 + $0xc80] sm:$0xff]
    %v227 = vld [vmem:[#allocation6 + $0xc88] sm:$0xff]
    %v228 = vld [vmem:[#allocation6 + $0xcc0] sm:$0xff]
    %v229 = vld [vmem:[#allocation6 + $0xcc8] sm:$0xff]
    %v230 = vld [vmem:[#allocation6 + $0xd00] sm:$0xff]
    %v231 = vld [vmem:[#allocation6 + $0xd08] sm:$0xff]
    %v232 = vld [vmem:[#allocation6 + $0xd40] sm:$0xff]
    %v233 = vld [vmem:[#allocation6 + $0xd48] sm:$0xff]
    %v234 = vld [vmem:[#allocation6 + $0xd80] sm:$0xff]
    %v235 = vld [vmem:[#allocation6 + $0xd88] sm:$0xff]
    %v236 = vld [vmem:[#allocation6 + $0xdc0] sm:$0xff]
    %v237 = vld [vmem:[#allocation6 + $0xdc8] sm:$0xff]
    %v238 = vld [vmem:[#allocation6 + $0xe00] sm:$0xff]
    %v239 = vld [vmem:[#allocation6 + $0xe08] sm:$0xff]
    %v240 = vld [vmem:[#allocation6 + $0xe40] sm:$0xff]
    %v241 = vld [vmem:[#allocation6 + $0xe48] sm:$0xff]
    %v242 = vld [vmem:[#allocation6 + $0xe80] sm:$0xff]
    %v243 = vld [vmem:[#allocation6 + $0xe88] sm:$0xff]
    %v244 = vld [vmem:[#allocation6 + $0xec0] sm:$0xff]
    %v245 = vld [vmem:[#allocation6 + $0xec8] sm:$0xff]
    %v246 = vld [vmem:[#allocation6 + $0xf00] sm:$0xff]
    %v247 = vld [vmem:[#allocation6 + $0xf08] sm:$0xff]
    %v248 = vld [vmem:[#allocation6 + $0xf40] sm:$0xff]
    %v249 = vld [vmem:[#allocation6 + $0xf48] sm:$0xff]
    %v250 = vld [vmem:[#allocation6 + $0xf80] sm:$0xff]
    %v251 = vld [vmem:[#allocation6 + $0xf88] sm:$0xff]
    %v252 = vld [vmem:[#allocation6 + $0xfc0] sm:$0xff]
    %v253 = vld [vmem:[#allocation6 + $0xfc8] sm:$0xff]
    %v254 = vld [vmem:[#allocation8] sm:$0xf]
    %v256 = vlaneseq
    %v257 = vshrl.u32 %v256, 7
    %v258 = vsub.s32 0, %v257
    %v259 = vrot.slane %v254, %v258
    %v260 = vlaneseq
    %v261 = vshrl.u32 %v260, 7
    %v262 = vsub.s32 1, %v261
    %v263 = vrot.slane %v254, %v262
    %v264 = vlaneseq
    %v265 = vshrl.u32 %v264, 7
    %v266 = vsub.s32 2, %v265
    %v267 = vrot.slane %v254, %v266
    %v268 = vlaneseq
    %v269 = vshrl.u32 %v268, 7
    %v270 = vsub.s32 3, %v269
    %v271 = vrot.slane %v254, %v270
    %v404 = vunpack.c.l.b16 %v126
    %v405 = vunpack.c.h.b16 %v126
    %v406 = vunpack.c.l.b16 %v127
    %v407 = vunpack.c.h.b16 %v127
    %v408 = vunpack.c.l.b16 %v128
    %v409 = vunpack.c.h.b16 %v128
    %v410 = vunpack.c.l.b16 %v129
    %v411 = vunpack.c.h.b16 %v129
    %v412 = vunpack.c.l.b16 %v130
    %v413 = vunpack.c.h.b16 %v130
    %v414 = vunpack.c.l.b16 %v131
    %v415 = vunpack.c.h.b16 %v131
    %v416 = vunpack.c.l.b16 %v132
    %v417 = vunpack.c.h.b16 %v132
    %v418 = vunpack.c.l.b16 %v133
    %v419 = vunpack.c.h.b16 %v133
    %v420 = vunpack.c.l.b16 %v134
    %v421 = vunpack.c.h.b16 %v134
    %v422 = vunpack.c.l.b16 %v135
    %v423 = vunpack.c.h.b16 %v135
    %v424 = vunpack.c.l.b16 %v136
    %v425 = vunpack.c.h.b16 %v136
    %v426 = vunpack.c.l.b16 %v137
    %v427 = vunpack.c.h.b16 %v137
    %v428 = vunpack.c.l.b16 %v138
    %v429 = vunpack.c.h.b16 %v138
    %v430 = vunpack.c.l.b16 %v139
    %v431 = vunpack.c.h.b16 %v139
    %v432 = vunpack.c.l.b16 %v140
    %v433 = vunpack.c.h.b16 %v140
    %v434 = vunpack.c.l.b16 %v141
    %v435 = vunpack.c.h.b16 %v141
    %v436 = vunpack.c.l.b16 %v142
    %v437 = vunpack.c.h.b16 %v142
    %v438 = vunpack.c.l.b16 %v143
    %v439 = vunpack.c.h.b16 %v143
    %v440 = vunpack.c.l.b16 %v144
    %v441 = vunpack.c.h.b16 %v144
    %v442 = vunpack.c.l.b16 %v145
    %v443 = vunpack.c.h.b16 %v145
    %v444 = vunpack.c.l.b16 %v146
    %v445 = vunpack.c.h.b16 %v146
    %v446 = vunpack.c.l.b16 %v147
    %v447 = vunpack.c.h.b16 %v147
    %v448 = vunpack.c.l.b16 %v148
    %v449 = vunpack.c.h.b16 %v148
    %v450 = vunpack.c.l.b16 %v149
    %v451 = vunpack.c.h.b16 %v149
    %v452 = vunpack.c.l.b16 %v150
    %v453 = vunpack.c.h.b16 %v150
    %v454 = vunpack.c.l.b16 %v151
    %v455 = vunpack.c.h.b16 %v151
    %v456 = vunpack.c.l.b16 %v152
    %v457 = vunpack.c.h.b16 %v152
    %v458 = vunpack.c.l.b16 %v153
    %v459 = vunpack.c.h.b16 %v153
    %v460 = vunpack.c.l.b16 %v154
    %v461 = vunpack.c.h.b16 %v154
    %v462 = vunpack.c.l.b16 %v155
    %v463 = vunpack.c.h.b16 %v155
    %v464 = vunpack.c.l.b16 %v156
    %v465 = vunpack.c.h.b16 %v156
    %v466 = vunpack.c.l.b16 %v157
    %v467 = vunpack.c.h.b16 %v157
    %v468 = vunpack.c.l.b16 %v158
    %v469 = vunpack.c.h.b16 %v158
    %v470 = vunpack.c.l.b16 %v159
    %v471 = vunpack.c.h.b16 %v159
    %v472 = vunpack.c.l.b16 %v160
    %v473 = vunpack.c.h.b16 %v160
    %v474 = vunpack.c.l.b16 %v161
    %v475 = vunpack.c.h.b16 %v161
    %v476 = vunpack.c.l.b16 %v162
    %v477 = vunpack.c.h.b16 %v162
    %v478 = vunpack.c.l.b16 %v163
    %v479 = vunpack.c.h.b16 %v163
    %v480 = vunpack.c.l.b16 %v164
    %v481 = vunpack.c.h.b16 %v164
    %v482 = vunpack.c.l.b16 %v165
    %v483 = vunpack.c.h.b16 %v165
    %v484 = vunpack.c.l.b16 %v166
    %v485 = vunpack.c.h.b16 %v166
    %v486 = vunpack.c.l.b16 %v167
    %v487 = vunpack.c.h.b16 %v167
    %v488 = vunpack.c.l.b16 %v168
    %v489 = vunpack.c.h.b16 %v168
    %v490 = vunpack.c.l.b16 %v169
    %v491 = vunpack.c.h.b16 %v169
    %v492 = vunpack.c.l.b16 %v170
    %v493 = vunpack.c.h.b16 %v170
    %v494 = vunpack.c.l.b16 %v171
    %v495 = vunpack.c.h.b16 %v171
    %v496 = vunpack.c.l.b16 %v172
    %v497 = vunpack.c.h.b16 %v172
    %v498 = vunpack.c.l.b16 %v173
    %v499 = vunpack.c.h.b16 %v173
    %v500 = vunpack.c.l.b16 %v174
    %v501 = vunpack.c.h.b16 %v174
    %v502 = vunpack.c.l.b16 %v175
    %v503 = vunpack.c.h.b16 %v175
    %v504 = vunpack.c.l.b16 %v176
    %v505 = vunpack.c.h.b16 %v176
    %v506 = vunpack.c.l.b16 %v177
    %v507 = vunpack.c.h.b16 %v177
    %v508 = vunpack.c.l.b16 %v178
    %v509 = vunpack.c.h.b16 %v178
    %v510 = vunpack.c.l.b16 %v179
    %v511 = vunpack.c.h.b16 %v179
    %v512 = vunpack.c.l.b16 %v180
    %v513 = vunpack.c.h.b16 %v180
    %v514 = vunpack.c.l.b16 %v181
    %v515 = vunpack.c.h.b16 %v181
    %v516 = vunpack.c.l.b16 %v182
    %v517 = vunpack.c.h.b16 %v182
    %v518 = vunpack.c.l.b16 %v183
    %v519 = vunpack.c.h.b16 %v183
    %v520 = vunpack.c.l.b16 %v184
    %v521 = vunpack.c.h.b16 %v184
    %v522 = vunpack.c.l.b16 %v185
    %v523 = vunpack.c.h.b16 %v185
    %v524 = vunpack.c.l.b16 %v186
    %v525 = vunpack.c.h.b16 %v186
    %v526 = vunpack.c.l.b16 %v187
    %v527 = vunpack.c.h.b16 %v187
    %v528 = vunpack.c.l.b16 %v188
    %v529 = vunpack.c.h.b16 %v188
    %v530 = vunpack.c.l.b16 %v189
    %v531 = vunpack.c.h.b16 %v189
    %v532 = vunpack.c.l.b16 %v190
    %v533 = vunpack.c.h.b16 %v190
    %v534 = vunpack.c.l.b16 %v191
    %v535 = vunpack.c.h.b16 %v191
    %v536 = vunpack.c.l.b16 %v192
    %v537 = vunpack.c.h.b16 %v192
    %v538 = vunpack.c.l.b16 %v193
    %v539 = vunpack.c.h.b16 %v193
    %v540 = vunpack.c.l.b16 %v194
    %v541 = vunpack.c.h.b16 %v194
    %v542 = vunpack.c.l.b16 %v195
    %v543 = vunpack.c.h.b16 %v195
    %v544 = vunpack.c.l.b16 %v196
    %v545 = vunpack.c.h.b16 %v196
    %v546 = vunpack.c.l.b16 %v197
    %v547 = vunpack.c.h.b16 %v197
    %v548 = vunpack.c.l.b16 %v198
    %v549 = vunpack.c.h.b16 %v198
    %v550 = vunpack.c.l.b16 %v199
    %v551 = vunpack.c.h.b16 %v199
    %v552 = vunpack.c.l.b16 %v200
    %v553 = vunpack.c.h.b16 %v200
    %v554 = vunpack.c.l.b16 %v201
    %v555 = vunpack.c.h.b16 %v201
    %v556 = vunpack.c.l.b16 %v202
    %v557 = vunpack.c.h.b16 %v202
    %v558 = vunpack.c.l.b16 %v203
    %v559 = vunpack.c.h.b16 %v203
    %v560 = vunpack.c.l.b16 %v204
    %v561 = vunpack.c.h.b16 %v204
    %v562 = vunpack.c.l.b16 %v205
    %v563 = vunpack.c.h.b16 %v205
    %v564 = vunpack.c.l.b16 %v206
    %v565 = vunpack.c.h.b16 %v206
    %v566 = vunpack.c.l.b16 %v207
    %v567 = vunpack.c.h.b16 %v207
    %v568 = vunpack.c.l.b16 %v208
    %v569 = vunpack.c.h.b16 %v208
    %v570 = vunpack.c.l.b16 %v209
    %v571 = vunpack.c.h.b16 %v209
    %v572 = vunpack.c.l.b16 %v210
    %v573 = vunpack.c.h.b16 %v210
    %v574 = vunpack.c.l.b16 %v211
    %v575 = vunpack.c.h.b16 %v211
    %v576 = vunpack.c.l.b16 %v212
    %v577 = vunpack.c.h.b16 %v212
    %v578 = vunpack.c.l.b16 %v213
    %v579 = vunpack.c.h.b16 %v213
    %v580 = vunpack.c.l.b16 %v214
    %v581 = vunpack.c.h.b16 %v214
    %v582 = vunpack.c.l.b16 %v215
    %v583 = vunpack.c.h.b16 %v215
    %v584 = vunpack.c.l.b16 %v216
    %v585 = vunpack.c.h.b16 %v216
    %v586 = vunpack.c.l.b16 %v217
    %v587 = vunpack.c.h.b16 %v217
    %v588 = vunpack.c.l.b16 %v218
    %v589 = vunpack.c.h.b16 %v218
    %v590 = vunpack.c.l.b16 %v219
    %v591 = vunpack.c.h.b16 %v219
    %v592 = vunpack.c.l.b16 %v220
    %v593 = vunpack.c.h.b16 %v220
    %v594 = vunpack.c.l.b16 %v221
    %v595 = vunpack.c.h.b16 %v221
    %v596 = vunpack.c.l.b16 %v222
    %v597 = vunpack.c.h.b16 %v222
    %v598 = vunpack.c.l.b16 %v223
    %v599 = vunpack.c.h.b16 %v223
    %v600 = vunpack.c.l.b16 %v224
    %v601 = vunpack.c.h.b16 %v224
    %v602 = vunpack.c.l.b16 %v225
    %v603 = vunpack.c.h.b16 %v225
    %v604 = vunpack.c.l.b16 %v226
    %v605 = vunpack.c.h.b16 %v226
    %v606 = vunpack.c.l.b16 %v227
    %v607 = vunpack.c.h.b16 %v227
    %v608 = vunpack.c.l.b16 %v228
    %v609 = vunpack.c.h.b16 %v228
    %v610 = vunpack.c.l.b16 %v229
    %v611 = vunpack.c.h.b16 %v229
    %v612 = vunpack.c.l.b16 %v230
    %v613 = vunpack.c.h.b16 %v230
    %v614 = vunpack.c.l.b16 %v231
    %v615 = vunpack.c.h.b16 %v231
    %v616 = vunpack.c.l.b16 %v232
    %v617 = vunpack.c.h.b16 %v232
    %v618 = vunpack.c.l.b16 %v233
    %v619 = vunpack.c.h.b16 %v233
    %v620 = vunpack.c.l.b16 %v234
    %v621 = vunpack.c.h.b16 %v234
    %v622 = vunpack.c.l.b16 %v235
    %v623 = vunpack.c.h.b16 %v235
    %v624 = vunpack.c.l.b16 %v236
    %v625 = vunpack.c.h.b16 %v236
    %v626 = vunpack.c.l.b16 %v237
    %v627 = vunpack.c.h.b16 %v237
    %v628 = vunpack.c.l.b16 %v238
    %v629 = vunpack.c.h.b16 %v238
    %v630 = vunpack.c.l.b16 %v239
    %v631 = vunpack.c.h.b16 %v239
    %v632 = vunpack.c.l.b16 %v240
    %v633 = vunpack.c.h.b16 %v240
    %v634 = vunpack.c.l.b16 %v241
    %v635 = vunpack.c.h.b16 %v241
    %v636 = vunpack.c.l.b16 %v242
    %v637 = vunpack.c.h.b16 %v242
    %v638 = vunpack.c.l.b16 %v243
    %v639 = vunpack.c.h.b16 %v243
    %v640 = vunpack.c.l.b16 %v244
    %v641 = vunpack.c.h.b16 %v244
    %v642 = vunpack.c.l.b16 %v245
    %v643 = vunpack.c.h.b16 %v245
    %v644 = vunpack.c.l.b16 %v246
    %v645 = vunpack.c.h.b16 %v246
    %v646 = vunpack.c.l.b16 %v247
    %v647 = vunpack.c.h.b16 %v247
    %v648 = vunpack.c.l.b16 %v248
    %v649 = vunpack.c.h.b16 %v248
    %v650 = vunpack.c.l.b16 %v249
    %v651 = vunpack.c.h.b16 %v249
    %v652 = vunpack.c.l.b16 %v250
    %v653 = vunpack.c.h.b16 %v250
    %v654 = vunpack.c.l.b16 %v251
    %v655 = vunpack.c.h.b16 %v251
    %v656 = vunpack.c.l.b16 %v252
    %v657 = vunpack.c.h.b16 %v252
    %v658 = vunpack.c.l.b16 %v253
    %v659 = vunpack.c.h.b16 %v253
    %v660 = vpack.c.b16 %v408, %v404
    %v661 = vpack.c.b16 %v409, %v405
    %v662 = vpack.c.b16 %v410, %v406
    %v663 = vpack.c.b16 %v411, %v407
    %v664 = vpack.c.b16 %v416, %v412
    %v665 = vpack.c.b16 %v417, %v413
    %v666 = vpack.c.b16 %v418, %v414
    %v667 = vpack.c.b16 %v419, %v415
    %v668 = vpack.c.b16 %v424, %v420
    %v669 = vpack.c.b16 %v425, %v421
    %v670 = vpack.c.b16 %v426, %v422
    %v671 = vpack.c.b16 %v427, %v423
    %v672 = vpack.c.b16 %v432, %v428
    %v673 = vpack.c.b16 %v433, %v429
    %v674 = vpack.c.b16 %v434, %v430
    %v675 = vpack.c.b16 %v435, %v431
    %v676 = vpack.c.b16 %v440, %v436
    %v677 = vpack.c.b16 %v441, %v437
    %v678 = vpack.c.b16 %v442, %v438
    %v679 = vpack.c.b16 %v443, %v439
    %v680 = vpack.c.b16 %v448, %v444
    %v681 = vpack.c.b16 %v449, %v445
    %v682 = vpack.c.b16 %v450, %v446
    %v683 = vpack.c.b16 %v451, %v447
    %v684 = vpack.c.b16 %v456, %v452
    %v685 = vpack.c.b16 %v457, %v453
    %v686 = vpack.c.b16 %v458, %v454
    %v687 = vpack.c.b16 %v459, %v455
    %v688 = vpack.c.b16 %v464, %v460
    %v689 = vpack.c.b16 %v465, %v461
    %v690 = vpack.c.b16 %v466, %v462
    %v691 = vpack.c.b16 %v467, %v463
    %v692 = vpack.c.b16 %v472, %v468
    %v693 = vpack.c.b16 %v473, %v469
    %v694 = vpack.c.b16 %v474, %v470
    %v695 = vpack.c.b16 %v475, %v471
    %v696 = vpack.c.b16 %v480, %v476
    %v697 = vpack.c.b16 %v481, %v477
    %v698 = vpack.c.b16 %v482, %v478
    %v699 = vpack.c.b16 %v483, %v479
    %v700 = vpack.c.b16 %v488, %v484
    %v701 = vpack.c.b16 %v489, %v485
    %v702 = vpack.c.b16 %v490, %v486
    %v703 = vpack.c.b16 %v491, %v487
    %v704 = vpack.c.b16 %v496, %v492
    %v705 = vpack.c.b16 %v497, %v493
    %v706 = vpack.c.b16 %v498, %v494
    %v707 = vpack.c.b16 %v499, %v495
    %v708 = vpack.c.b16 %v504, %v500
    %v709 = vpack.c.b16 %v505, %v501
    %v710 = vpack.c.b16 %v506, %v502
    %v711 = vpack.c.b16 %v507, %v503
    %v712 = vpack.c.b16 %v512, %v508
    %v713 = vpack.c.b16 %v513, %v509
    %v714 = vpack.c.b16 %v514, %v510
    %v715 = vpack.c.b16 %v515, %v511
    %v716 = vpack.c.b16 %v520, %v516
    %v717 = vpack.c.b16 %v521, %v517
    %v718 = vpack.c.b16 %v522, %v518
    %v719 = vpack.c.b16 %v523, %v519
    %v720 = vpack.c.b16 %v528, %v524
    %v721 = vpack.c.b16 %v529, %v525
    %v722 = vpack.c.b16 %v530, %v526
    %v723 = vpack.c.b16 %v531, %v527
    %v724 = vpack.c.b16 %v536, %v532
    %v725 = vpack.c.b16 %v537, %v533
    %v726 = vpack.c.b16 %v538, %v534
    %v727 = vpack.c.b16 %v539, %v535
    %v728 = vpack.c.b16 %v544, %v540
    %v729 = vpack.c.b16 %v545, %v541
    %v730 = vpack.c.b16 %v546, %v542
    %v731 = vpack.c.b16 %v547, %v543
    %v732 = vpack.c.b16 %v552, %v548
    %v733 = vpack.c.b16 %v553, %v549
    %v734 = vpack.c.b16 %v554, %v550
    %v735 = vpack.c.b16 %v555, %v551
    %v736 = vpack.c.b16 %v560, %v556
    %v737 = vpack.c.b16 %v561, %v557
    %v738 = vpack.c.b16 %v562, %v558
    %v739 = vpack.c.b16 %v563, %v559
    %v740 = vpack.c.b16 %v568, %v564
    %v741 = vpack.c.b16 %v569, %v565
    %v742 = vpack.c.b16 %v570, %v566
    %v743 = vpack.c.b16 %v571, %v567
    %v744 = vpack.c.b16 %v576, %v572
    %v745 = vpack.c.b16 %v577, %v573
    %v746 = vpack.c.b16 %v578, %v574
    %v747 = vpack.c.b16 %v579, %v575
    %v748 = vpack.c.b16 %v584, %v580
    %v749 = vpack.c.b16 %v585, %v581
    %v750 = vpack.c.b16 %v586, %v582
    %v751 = vpack.c.b16 %v587, %v583
    %v752 = vpack.c.b16 %v592, %v588
    %v753 = vpack.c.b16 %v593, %v589
    %v754 = vpack.c.b16 %v594, %v590
    %v755 = vpack.c.b16 %v595, %v591
    %v756 = vpack.c.b16 %v600, %v596
    %v757 = vpack.c.b16 %v601, %v597
    %v758 = vpack.c.b16 %v602, %v598
    %v759 = vpack.c.b16 %v603, %v599
    %v760 = vpack.c.b16 %v608, %v604
    %v761 = vpack.c.b16 %v609, %v605
    %v762 = vpack.c.b16 %v610, %v606
    %v763 = vpack.c.b16 %v611, %v607
    %v764 = vpack.c.b16 %v616, %v612
    %v765 = vpack.c.b16 %v617, %v613
    %v766 = vpack.c.b16 %v618, %v614
    %v767 = vpack.c.b16 %v619, %v615
    %v768 = vpack.c.b16 %v624, %v620
    %v769 = vpack.c.b16 %v625, %v621
    %v770 = vpack.c.b16 %v626, %v622
    %v771 = vpack.c.b16 %v627, %v623
    %v772 = vpack.c.b16 %v632, %v628
    %v773 = vpack.c.b16 %v633, %v629
    %v774 = vpack.c.b16 %v634, %v630
    %v775 = vpack.c.b16 %v635, %v631
    %v776 = vpack.c.b16 %v640, %v636
    %v777 = vpack.c.b16 %v641, %v637
    %v778 = vpack.c.b16 %v642, %v638
    %v779 = vpack.c.b16 %v643, %v639
    %v780 = vpack.c.b16 %v648, %v644
    %v781 = vpack.c.b16 %v649, %v645
    %v782 = vpack.c.b16 %v650, %v646
    %v783 = vpack.c.b16 %v651, %v647
    %v784 = vpack.c.b16 %v656, %v652
    %v785 = vpack.c.b16 %v657, %v653
    %v786 = vpack.c.b16 %v658, %v654
    %v787 = vpack.c.b16 %v659, %v655
    %916 = vmatprep.subr.bf16.mxu0 %v661
    %917 = vmatpush1.bf16.msra.mxu0 %v660
    %918 = vmatprep.subr.bf16.mxu0 %v665
    %919 = vmatpush1.bf16.msra.mxu0 %v664
    %920 = vmatprep.subr.bf16.mxu0 %v669
    %921 = vmatpush1.bf16.msra.mxu0 %v668
    %922 = vmatprep.subr.bf16.mxu0 %v673
    %923 = vmatpush1.bf16.msra.mxu0 %v672
    %924 = vmatprep.subr.bf16.mxu0 %v677
    %925 = vmatpush1.bf16.msra.mxu0 %v676
    %926 = vmatprep.subr.bf16.mxu0 %v681
    %927 = vmatpush1.bf16.msra.mxu0 %v680
    %928 = vmatprep.subr.bf16.mxu0 %v685
    %929 = vmatpush1.bf16.msra.mxu0 %v684
    %930 = vmatprep.subr.bf16.mxu0 %v689
    %931 = vmatpush1.bf16.msra.mxu0 %v688
    %932 = vmatprep.subr.bf16.mxu0 %v693
    %933 = vmatpush1.bf16.msra.mxu0 %v692
    %934 = vmatprep.subr.bf16.mxu0 %v697
    %935 = vmatpush1.bf16.msra.mxu0 %v696
    %936 = vmatprep.subr.bf16.mxu0 %v701
    %937 = vmatpush1.bf16.msra.mxu0 %v700
    %938 = vmatprep.subr.bf16.mxu0 %v705
    %939 = vmatpush1.bf16.msra.mxu0 %v704
    %940 = vmatprep.subr.bf16.mxu0 %v709
    %941 = vmatpush1.bf16.msra.mxu0 %v708
    %942 = vmatprep.subr.bf16.mxu0 %v713
    %943 = vmatpush1.bf16.msra.mxu0 %v712
    %944 = vmatprep.subr.bf16.mxu0 %v717
    %945 = vmatpush1.bf16.msra.mxu0 %v716
    %946 = vmatprep.subr.bf16.mxu0 %v721
    %947 = vmatpush1.bf16.msra.mxu0 %v720
    %948 = vmatprep.mubr.bf16.mxu0 %v123
    %949 = vmatmul.mubr.bf16.gmra.mrb[0].mxu0 %v122
    %v950 = vpop.f32.mrb[0].mxu0
    %v951 = vadd.f32 %v259, %v950
    %v952 = vpop.f32.mrb[0].mxu0
    %v953 = vadd.f32 %v263, %v952
    %v954 = vpop.f32.mrb[0].mxu0
    %v955 = vadd.f32 %v259, %v954
    %v956 = vpop.f32.mrb[0].mxu0
    %v957 = vadd.f32 %v263, %v956
    %958 = vdwg.mxu0
    %959 = vmatprep.subr.bf16.mxu0 %v725
    %960 = vmatpush1.bf16.msra.mxu0 %v724
    %961 = vmatprep.subr.bf16.mxu0 %v729
    %962 = vmatpush1.bf16.msra.mxu0 %v728
    %963 = vmatprep.subr.bf16.mxu0 %v733
    %964 = vmatpush1.bf16.msra.mxu0 %v732
    %965 = vmatprep.subr.bf16.mxu0 %v737
    %966 = vmatpush1.bf16.msra.mxu0 %v736
    %967 = vmatprep.subr.bf16.mxu0 %v741
    %968 = vmatpush1.bf16.msra.mxu0 %v740
    %969 = vmatprep.subr.bf16.mxu0 %v745
    %970 = vmatpush1.bf16.msra.mxu0 %v744
    %971 = vmatprep.subr.bf16.mxu0 %v749
    %972 = vmatpush1.bf16.msra.mxu0 %v748
    %973 = vmatprep.subr.bf16.mxu0 %v753
    %974 = vmatpush1.bf16.msra.mxu0 %v752
    %975 = vmatprep.subr.bf16.mxu0 %v757
    %976 = vmatpush1.bf16.msra.mxu0 %v756
    %977 = vmatprep.subr.bf16.mxu0 %v761
    %978 = vmatpush1.bf16.msra.mxu0 %v760
    %979 = vmatprep.subr.bf16.mxu0 %v765
    %980 = vmatpush1.bf16.msra.mxu0 %v764
    %981 = vmatprep.subr.bf16.mxu0 %v769
    %982 = vmatpush1.bf16.msra.mxu0 %v768
    %983 = vmatprep.subr.bf16.mxu0 %v773
    %984 = vmatpush1.bf16.msra.mxu0 %v772
    %985 = vmatprep.subr.bf16.mxu0 %v777
    %986 = vmatpush1.bf16.msra.mxu0 %v776
    %987 = vmatprep.subr.bf16.mxu0 %v781
    %988 = vmatpush1.bf16.msra.mxu0 %v780
    %989 = vmatprep.subr.bf16.mxu0 %v785
    %990 = vmatpush1.bf16.msra.mxu0 %v784
    %991 = vmatprep.mubr.bf16.mxu0 %v125
    %992 = vmatmul.mubr.bf16.gmra.mrb[0].mxu0 %v124
    %v993 = vpop.f32.mrb[0].mxu0
    %v994 = vadd.f32 %v951, %v993
    %v995 = vpop.f32.mrb[0].mxu0
    %v996 = vadd.f32 %v953, %v995
    %v997 = vpop.f32.mrb[0].mxu0
    %v998 = vadd.f32 %v955, %v997
    %v999 = vpop.f32.mrb[0].mxu0
    %v1000 = vadd.f32 %v957, %v999
    %1001 = vdwg.mxu0
    %1002 = vmatprep.subr.bf16.mxu0 %v663
    %1003 = vmatpush1.bf16.msra.mxu0 %v662
    %1004 = vmatprep.subr.bf16.mxu0 %v667
    %1005 = vmatpush1.bf16.msra.mxu0 %v666
    %1006 = vmatprep.subr.bf16.mxu0 %v671
    %1007 = vmatpush1.bf16.msra.mxu0 %v670
    %1008 = vmatprep.subr.bf16.mxu0 %v675
    %1009 = vmatpush1.bf16.msra.mxu0 %v674
    %1010 = vmatprep.subr.bf16.mxu0 %v679
    %1011 = vmatpush1.bf16.msra.mxu0 %v678
    %1012 = vmatprep.subr.bf16.mxu0 %v683
    %1013 = vmatpush1.bf16.msra.mxu0 %v682
    %1014 = vmatprep.subr.bf16.mxu0 %v687
    %1015 = vmatpush1.bf16.msra.mxu0 %v686
    %1016 = vmatprep.subr.bf16.mxu0 %v691
    %1017 = vmatpush1.bf16.msra.mxu0 %v690
    %1018 = vmatprep.subr.bf16.mxu0 %v695
    %1019 = vmatpush1.bf16.msra.mxu0 %v694
    %1020 = vmatprep.subr.bf16.mxu0 %v699
    %1021 = vmatpush1.bf16.msra.mxu0 %v698
    %1022 = vmatprep.subr.bf16.mxu0 %v703
    %1023 = vmatpush1.bf16.msra.mxu0 %v702
    %1024 = vmatprep.subr.bf16.mxu0 %v707
    %1025 = vmatpush1.bf16.msra.mxu0 %v706
    %1026 = vmatprep.subr.bf16.mxu0 %v711
    %1027 = vmatpush1.bf16.msra.mxu0 %v710
    %1028 = vmatprep.subr.bf16.mxu0 %v715
    %1029 = vmatpush1.bf16.msra.mxu0 %v714
    %1030 = vmatprep.subr.bf16.mxu0 %v719
    %1031 = vmatpush1.bf16.msra.mxu0 %v718
    %1032 = vmatprep.subr.bf16.mxu0 %v723
    %1033 = vmatpush1.bf16.msra.mxu0 %v722
    %1034 = vmatprep.mubr.bf16.mxu0 %v123
    %1035 = vmatmul.mubr.bf16.gmra.mrb[0].mxu0 %v122
    %v1036 = vpop.f32.mrb[0].mxu0
    %v1037 = vadd.f32 %v267, %v1036
    %v1038 = vpop.f32.mrb[0].mxu0
    %v1039 = vadd.f32 %v271, %v1038
    %v1040 = vpop.f32.mrb[0].mxu0
    %v1041 = vadd.f32 %v267, %v1040
    %v1042 = vpop.f32.mrb[0].mxu0
    %v1043 = vadd.f32 %v271, %v1042
    %1044 = vdwg.mxu0
    %1045 = vmatprep.subr.bf16.mxu0 %v727
    %1046 = vmatpush1.bf16.msra.mxu0 %v726
    %1047 = vmatprep.subr.bf16.mxu0 %v731
    %1048 = vmatpush1.bf16.msra.mxu0 %v730
    %1049 = vmatprep.subr.bf16.mxu0 %v735
    %1050 = vmatpush1.bf16.msra.mxu0 %v734
    %1051 = vmatprep.subr.bf16.mxu0 %v739
    %1052 = vmatpush1.bf16.msra.mxu0 %v738
    %1053 = vmatprep.subr.bf16.mxu0 %v743
    %1054 = vmatpush1.bf16.msra.mxu0 %v742
    %1055 = vmatprep.subr.bf16.mxu0 %v747
    %1056 = vmatpush1.bf16.msra.mxu0 %v746
    %1057 = vmatprep.subr.bf16.mxu0 %v751
    %1058 = vmatpush1.bf16.msra.mxu0 %v750
    %1059 = vmatprep.subr.bf16.mxu0 %v755
    %1060 = vmatpush1.bf16.msra.mxu0 %v754
    %1061 = vmatprep.subr.bf16.mxu0 %v759
    %1062 = vmatpush1.bf16.msra.mxu0 %v758
    %1063 = vmatprep.subr.bf16.mxu0 %v763
    %1064 = vmatpush1.bf16.msra.mxu0 %v762
    %1065 = vmatprep.subr.bf16.mxu0 %v767
    %1066 = vmatpush1.bf16.msra.mxu0 %v766
    %1067 = vmatprep.subr.bf16.mxu0 %v771
    %1068 = vmatpush1.bf16.msra.mxu0 %v770
    %1069 = vmatprep.subr.bf16.mxu0 %v775
    %1070 = vmatpush1.bf16.msra.mxu0 %v774
    %1071 = vmatprep.subr.bf16.mxu0 %v779
    %1072 = vmatpush1.bf16.msra.mxu0 %v778
    %1073 = vmatprep.subr.bf16.mxu0 %v783
    %1074 = vmatpush1.bf16.msra.mxu0 %v782
    %1075 = vmatprep.subr.bf16.mxu0 %v787
    %1076 = vmatpush1.bf16.msra.mxu0 %v786
    %1077 = vmatprep.mubr.bf16.mxu0 %v125
    %1078 = vmatmul.mubr.bf16.gmra.mrb[0].mxu0 %v124
    %v1079 = vpop.f32.mrb[0].mxu0
    %v1080 = vadd.f32 %v1037, %v1079
    %v1081 = vpop.f32.mrb[0].mxu0
    %v1082 = vadd.f32 %v1039, %v1081
    %v1083 = vpop.f32.mrb[0].mxu0
    %v1084 = vadd.f32 %v1041, %v1083
    %v1085 = vpop.f32.mrb[0].mxu0
    %v1086 = vadd.f32 %v1043, %v1085
    %1087 = vdwg.mxu0
    %v1088 = vmax.f32 %v994, 0.0
    %v1089 = vmax.f32 %v996, 0.0
    %v1090 = vmax.f32 %v1080, 0.0
    %v1091 = vmax.f32 %v1082, 0.0
    %v1092 = vmax.f32 %v998, 0.0
    %v1093 = vmax.f32 %v1000, 0.0
    %v1094 = vmax.f32 %v1084, 0.0
    %v1095 = vmax.f32 %v1086, 0.0
    %v1096 = vpack.c.bf16 %v1092, %v1088
    %v1097 = vpack.c.bf16 %v1093, %v1089
    %v1098 = vpack.c.bf16 %v1094, %v1090
    %v1099 = vpack.c.bf16 %v1095, %v1091
    %v1100 = vld [vmem:[#allocation9] sm:$0xff]
    %v1101 = vld [vmem:[#allocation9 + $0x8] sm:$0xff]
    %v1102 = vld [vmem:[#allocation9 + $0x10] sm:$0xff]
    %v1103 = vld [vmem:[#allocation9 + $0x18] sm:$0xff]
    %v1104 = vld [vmem:[#allocation9 + $0x20] sm:$0xff]
    %v1105 = vld [vmem:[#allocation9 + $0x28] sm:$0xff]
    %v1106 = vld [vmem:[#allocation9 + $0x30] sm:$0xff]
    %v1107 = vld [vmem:[#allocation9 + $0x38] sm:$0xff]
    %v1108 = vld [vmem:[#allocation9 + $0x40] sm:$0xff]
    %v1109 = vld [vmem:[#allocation9 + $0x48] sm:$0xff]
    %v1110 = vld [vmem:[#allocation9 + $0x50] sm:$0xff]
    %v1111 = vld [vmem:[#allocation9 + $0x58] sm:$0xff]
    %v1112 = vld [vmem:[#allocation9 + $0x60] sm:$0xff]
    %v1113 = vld [vmem:[#allocation9 + $0x68] sm:$0xff]
    %v1114 = vld [vmem:[#allocation9 + $0x70] sm:$0xff]
    %v1115 = vld [vmem:[#allocation9 + $0x78] sm:$0xff]
    %v1116 = vld [vmem:[#allocation9 + $0x80] sm:$0xff]
    %v1117 = vld [vmem:[#allocation9 + $0x88] sm:$0xff]
    %v1118 = vld [vmem:[#allocation9 + $0x90] sm:$0xff]
    %v1119 = vld [vmem:[#allocation9 + $0x98] sm:$0xff]
    %v1120 = vld [vmem:[#allocation9 + $0xa0] sm:$0xff]
    %v1121 = vld [vmem:[#allocation9 + $0xa8] sm:$0xff]
    %v1122 = vld [vmem:[#allocation9 + $0xb0] sm:$0xff]
    %v1123 = vld [vmem:[#allocation9 + $0xb8] sm:$0xff]
    %v1124 = vld [vmem:[#allocation9 + $0xc0] sm:$0xff]
    %v1125 = vld [vmem:[#allocation9 + $0xc8] sm:$0xff]
    %v1126 = vld [vmem:[#allocation9 + $0xd0] sm:$0xff]
    %v1127 = vld [vmem:[#allocation9 + $0xd8] sm:$0xff]
    %v1128 = vld [vmem:[#allocation9 + $0xe0] sm:$0xff]
    %v1129 = vld [vmem:[#allocation9 + $0xe8] sm:$0xff]
    %v1130 = vld [vmem:[#allocation9 + $0xf0] sm:$0xff]
    %v1131 = vld [vmem:[#allocation9 + $0xf8] sm:$0xff]
    %v1132 = vld [vmem:[#allocation9 + $0x100] sm:$0xff]
    %v1133 = vld [vmem:[#allocation9 + $0x108] sm:$0xff]
    %v1134 = vld [vmem:[#allocation9 + $0x110] sm:$0xff]
    %v1135 = vld [vmem:[#allocation9 + $0x118] sm:$0xff]
    %v1136 = vld [vmem:[#allocation9 + $0x120] sm:$0xff]
    %v1137 = vld [vmem:[#allocation9 + $0x128] sm:$0xff]
    %v1138 = vld [vmem:[#allocation9 + $0x130] sm:$0xff]
    %v1139 = vld [vmem:[#allocation9 + $0x138] sm:$0xff]
    %v1140 = vld [vmem:[#allocation9 + $0x140] sm:$0xff]
    %v1141 = vld [vmem:[#allocation9 + $0x148] sm:$0xff]
    %v1142 = vld [vmem:[#allocation9 + $0x150] sm:$0xff]
    %v1143 = vld [vmem:[#allocation9 + $0x158] sm:$0xff]
    %v1144 = vld [vmem:[#allocation9 + $0x160] sm:$0xff]
    %v1145 = vld [vmem:[#allocation9 + $0x168] sm:$0xff]
    %v1146 = vld [vmem:[#allocation9 + $0x170] sm:$0xff]
    %v1147 = vld [vmem:[#allocation9 + $0x178] sm:$0xff]
    %v1148 = vld [vmem:[#allocation9 + $0x180] sm:$0xff]
    %v1149 = vld [vmem:[#allocation9 + $0x188] sm:$0xff]
    %v1150 = vld [vmem:[#allocation9 + $0x190] sm:$0xff]
    %v1151 = vld [vmem:[#allocation9 + $0x198] sm:$0xff]
    %v1152 = vld [vmem:[#allocation9 + $0x1a0] sm:$0xff]
    %v1153 = vld [vmem:[#allocation9 + $0x1a8] sm:$0xff]
    %v1154 = vld [vmem:[#allocation9 + $0x1b0] sm:$0xff]
    %v1155 = vld [vmem:[#allocation9 + $0x1b8] sm:$0xff]
    %v1156 = vld [vmem:[#allocation9 + $0x1c0] sm:$0xff]
    %v1157 = vld [vmem:[#allocation9 + $0x1c8] sm:$0xff]
    %v1158 = vld [vmem:[#allocation9 + $0x1d0] sm:$0xff]
    %v1159 = vld [vmem:[#allocation9 + $0x1d8] sm:$0xff]
    %v1160 = vld [vmem:[#allocation9 + $0x1e0] sm:$0xff]
    %v1161 = vld [vmem:[#allocation9 + $0x1e8] sm:$0xff]
    %v1162 = vld [vmem:[#allocation9 + $0x1f0] sm:$0xff]
    %v1163 = vld [vmem:[#allocation9 + $0x1f8] sm:$0xff]
    %v1164 = vld [vmem:[#allocation9 + $0x200] sm:$0xff]
    %v1165 = vld [vmem:[#allocation9 + $0x208] sm:$0xff]
    %v1166 = vld [vmem:[#allocation9 + $0x210] sm:$0xff]
    %v1167 = vld [vmem:[#allocation9 + $0x218] sm:$0xff]
    %v1168 = vld [vmem:[#allocation9 + $0x220] sm:$0xff]
    %v1169 = vld [vmem:[#allocation9 + $0x228] sm:$0xff]
    %v1170 = vld [vmem:[#allocation9 + $0x230] sm:$0xff]
    %v1171 = vld [vmem:[#allocation9 + $0x238] sm:$0xff]
    %v1172 = vld [vmem:[#allocation9 + $0x240] sm:$0xff]
    %v1173 = vld [vmem:[#allocation9 + $0x248] sm:$0xff]
    %v1174 = vld [vmem:[#allocation9 + $0x250] sm:$0xff]
    %v1175 = vld [vmem:[#allocation9 + $0x258] sm:$0xff]
    %v1176 = vld [vmem:[#allocation9 + $0x260] sm:$0xff]
    %v1177 = vld [vmem:[#allocation9 + $0x268] sm:$0xff]
    %v1178 = vld [vmem:[#allocation9 + $0x270] sm:$0xff]
    %v1179 = vld [vmem:[#allocation9 + $0x278] sm:$0xff]
    %v1180 = vld [vmem:[#allocation9 + $0x280] sm:$0xff]
    %v1181 = vld [vmem:[#allocation9 + $0x288] sm:$0xff]
    %v1182 = vld [vmem:[#allocation9 + $0x290] sm:$0xff]
    %v1183 = vld [vmem:[#allocation9 + $0x298] sm:$0xff]
    %v1184 = vld [vmem:[#allocation9 + $0x2a0] sm:$0xff]
    %v1185 = vld [vmem:[#allocation9 + $0x2a8] sm:$0xff]
    %v1186 = vld [vmem:[#allocation9 + $0x2b0] sm:$0xff]
    %v1187 = vld [vmem:[#allocation9 + $0x2b8] sm:$0xff]
    %v1188 = vld [vmem:[#allocation9 + $0x2c0] sm:$0xff]
    %v1189 = vld [vmem:[#allocation9 + $0x2c8] sm:$0xff]
    %v1190 = vld [vmem:[#allocation9 + $0x2d0] sm:$0xff]
    %v1191 = vld [vmem:[#allocation9 + $0x2d8] sm:$0xff]
    %v1192 = vld [vmem:[#allocation9 + $0x2e0] sm:$0xff]
    %v1193 = vld [vmem:[#allocation9 + $0x2e8] sm:$0xff]
    %v1194 = vld [vmem:[#allocation9 + $0x2f0] sm:$0xff]
    %v1195 = vld [vmem:[#allocation9 + $0x2f8] sm:$0xff]
    %v1196 = vld [vmem:[#allocation9 + $0x300] sm:$0xff]
    %v1197 = vld [vmem:[#allocation9 + $0x308] sm:$0xff]
    %v1198 = vld [vmem:[#allocation9 + $0x310] sm:$0xff]
    %v1199 = vld [vmem:[#allocation9 + $0x318] sm:$0xff]
    %v1200 = vld [vmem:[#allocation9 + $0x320] sm:$0xff]
    %v1201 = vld [vmem:[#allocation9 + $0x328] sm:$0xff]
    %v1202 = vld [vmem:[#allocation9 + $0x330] sm:$0xff]
    %v1203 = vld [vmem:[#allocation9 + $0x338] sm:$0xff]
    %v1204 = vld [vmem:[#allocation9 + $0x340] sm:$0xff]
    %v1205 = vld [vmem:[#allocation9 + $0x348] sm:$0xff]
    %v1206 = vld [vmem:[#allocation9 + $0x350] sm:$0xff]
    %v1207 = vld [vmem:[#allocation9 + $0x358] sm:$0xff]
    %v1208 = vld [vmem:[#allocation9 + $0x360] sm:$0xff]
    %v1209 = vld [vmem:[#allocation9 + $0x368] sm:$0xff]
    %v1210 = vld [vmem:[#allocation9 + $0x370] sm:$0xff]
    %v1211 = vld [vmem:[#allocation9 + $0x378] sm:$0xff]
    %v1212 = vld [vmem:[#allocation9 + $0x380] sm:$0xff]
    %v1213 = vld [vmem:[#allocation9 + $0x388] sm:$0xff]
    %v1214 = vld [vmem:[#allocation9 + $0x390] sm:$0xff]
    %v1215 = vld [vmem:[#allocation9 + $0x398] sm:$0xff]
    %v1216 = vld [vmem:[#allocation9 + $0x3a0] sm:$0xff]
    %v1217 = vld [vmem:[#allocation9 + $0x3a8] sm:$0xff]
    %v1218 = vld [vmem:[#allocation9 + $0x3b0] sm:$0xff]
    %v1219 = vld [vmem:[#allocation9 + $0x3b8] sm:$0xff]
    %v1220 = vld [vmem:[#allocation9 + $0x3c0] sm:$0xff]
    %v1221 = vld [vmem:[#allocation9 + $0x3c8] sm:$0xff]
    %v1222 = vld [vmem:[#allocation9 + $0x3d0] sm:$0xff]
    %v1223 = vld [vmem:[#allocation9 + $0x3d8] sm:$0xff]
    %v1224 = vld [vmem:[#allocation9 + $0x3e0] sm:$0xff]
    %v1225 = vld [vmem:[#allocation9 + $0x3e8] sm:$0xff]
    %v1226 = vld [vmem:[#allocation9 + $0x3f0] sm:$0xff]
    %v1227 = vld [vmem:[#allocation9 + $0x3f8] sm:$0xff]
    %v1356 = vunpack.c.l.b16 %v1100
    %v1357 = vunpack.c.h.b16 %v1100
    %v1358 = vunpack.c.l.b16 %v1101
    %v1359 = vunpack.c.h.b16 %v1101
    %v1360 = vunpack.c.l.b16 %v1102
    %v1361 = vunpack.c.h.b16 %v1102
    %v1362 = vunpack.c.l.b16 %v1103
    %v1363 = vunpack.c.h.b16 %v1103
    %v1364 = vunpack.c.l.b16 %v1104
    %v1365 = vunpack.c.h.b16 %v1104
    %v1366 = vunpack.c.l.b16 %v1105
    %v1367 = vunpack.c.h.b16 %v1105
    %v1368 = vunpack.c.l.b16 %v1106
    %v1369 = vunpack.c.h.b16 %v1106
    %v1370 = vunpack.c.l.b16 %v1107
    %v1371 = vunpack.c.h.b16 %v1107
    %v1372 = vunpack.c.l.b16 %v1108
    %v1373 = vunpack.c.h.b16 %v1108
    %v1374 = vunpack.c.l.b16 %v1109
    %v1375 = vunpack.c.h.b16 %v1109
    %v1376 = vunpack.c.l.b16 %v1110
    %v1377 = vunpack.c.h.b16 %v1110
    %v1378 = vunpack.c.l.b16 %v1111
    %v1379 = vunpack.c.h.b16 %v1111
    %v1380 = vunpack.c.l.b16 %v1112
    %v1381 = vunpack.c.h.b16 %v1112
    %v1382 = vunpack.c.l.b16 %v1113
    %v1383 = vunpack.c.h.b16 %v1113
    %v1384 = vunpack.c.l.b16 %v1114
    %v1385 = vunpack.c.h.b16 %v1114
    %v1386 = vunpack.c.l.b16 %v1115
    %v1387 = vunpack.c.h.b16 %v1115
    %v1388 = vunpack.c.l.b16 %v1116
    %v1389 = vunpack.c.h.b16 %v1116
    %v1390 = vunpack.c.l.b16 %v1117
    %v1391 = vunpack.c.h.b16 %v1117
    %v1392 = vunpack.c.l.b16 %v1118
    %v1393 = vunpack.c.h.b16 %v1118
    %v1394 = vunpack.c.l.b16 %v1119
    %v1395 = vunpack.c.h.b16 %v1119
    %v1396 = vunpack.c.l.b16 %v1120
    %v1397 = vunpack.c.h.b16 %v1120
    %v1398 = vunpack.c.l.b16 %v1121
    %v1399 = vunpack.c.h.b16 %v1121
    %v1400 = vunpack.c.l.b16 %v1122
    %v1401 = vunpack.c.h.b16 %v1122
    %v1402 = vunpack.c.l.b16 %v1123
    %v1403 = vunpack.c.h.b16 %v1123
    %v1404 = vunpack.c.l.b16 %v1124
    %v1405 = vunpack.c.h.b16 %v1124
    %v1406 = vunpack.c.l.b16 %v1125
    %v1407 = vunpack.c.h.b16 %v1125
    %v1408 = vunpack.c.l.b16 %v1126
    %v1409 = vunpack.c.h.b16 %v1126
    %v1410 = vunpack.c.l.b16 %v1127
    %v1411 = vunpack.c.h.b16 %v1127
    %v1412 = vunpack.c.l.b16 %v1128
    %v1413 = vunpack.c.h.b16 %v1128
    %v1414 = vunpack.c.l.b16 %v1129
    %v1415 = vunpack.c.h.b16 %v1129
    %v1416 = vunpack.c.l.b16 %v1130
    %v1417 = vunpack.c.h.b16 %v1130
    %v1418 = vunpack.c.l.b16 %v1131
    %v1419 = vunpack.c.h.b16 %v1131
    %v1420 = vunpack.c.l.b16 %v1132
    %v1421 = vunpack.c.h.b16 %v1132
    %v1422 = vunpack.c.l.b16 %v1133
    %v1423 = vunpack.c.h.b16 %v1133
    %v1424 = vunpack.c.l.b16 %v1134
    %v1425 = vunpack.c.h.b16 %v1134
    %v1426 = vunpack.c.l.b16 %v1135
    %v1427 = vunpack.c.h.b16 %v1135
    %v1428 = vunpack.c.l.b16 %v1136
    %v1429 = vunpack.c.h.b16 %v1136
    %v1430 = vunpack.c.l.b16 %v1137
    %v1431 = vunpack.c.h.b16 %v1137
    %v1432 = vunpack.c.l.b16 %v1138
    %v1433 = vunpack.c.h.b16 %v1138
    %v1434 = vunpack.c.l.b16 %v1139
    %v1435 = vunpack.c.h.b16 %v1139
    %v1436 = vunpack.c.l.b16 %v1140
    %v1437 = vunpack.c.h.b16 %v1140
    %v1438 = vunpack.c.l.b16 %v1141
    %v1439 = vunpack.c.h.b16 %v1141
    %v1440 = vunpack.c.l.b16 %v1142
    %v1441 = vunpack.c.h.b16 %v1142
    %v1442 = vunpack.c.l.b16 %v1143
    %v1443 = vunpack.c.h.b16 %v1143
    %v1444 = vunpack.c.l.b16 %v1144
    %v1445 = vunpack.c.h.b16 %v1144
    %v1446 = vunpack.c.l.b16 %v1145
    %v1447 = vunpack.c.h.b16 %v1145
    %v1448 = vunpack.c.l.b16 %v1146
    %v1449 = vunpack.c.h.b16 %v1146
    %v1450 = vunpack.c.l.b16 %v1147
    %v1451 = vunpack.c.h.b16 %v1147
    %v1452 = vunpack.c.l.b16 %v1148
    %v1453 = vunpack.c.h.b16 %v1148
    %v1454 = vunpack.c.l.b16 %v1149
    %v1455 = vunpack.c.h.b16 %v1149
    %v1456 = vunpack.c.l.b16 %v1150
    %v1457 = vunpack.c.h.b16 %v1150
    %v1458 = vunpack.c.l.b16 %v1151
    %v1459 = vunpack.c.h.b16 %v1151
    %v1460 = vunpack.c.l.b16 %v1152
    %v1461 = vunpack.c.h.b16 %v1152
    %v1462 = vunpack.c.l.b16 %v1153
    %v1463 = vunpack.c.h.b16 %v1153
    %v1464 = vunpack.c.l.b16 %v1154
    %v1465 = vunpack.c.h.b16 %v1154
    %v1466 = vunpack.c.l.b16 %v1155
    %v1467 = vunpack.c.h.b16 %v1155
    %v1468 = vunpack.c.l.b16 %v1156
    %v1469 = vunpack.c.h.b16 %v1156
    %v1470 = vunpack.c.l.b16 %v1157
    %v1471 = vunpack.c.h.b16 %v1157
    %v1472 = vunpack.c.l.b16 %v1158
    %v1473 = vunpack.c.h.b16 %v1158
    %v1474 = vunpack.c.l.b16 %v1159
    %v1475 = vunpack.c.h.b16 %v1159
    %v1476 = vunpack.c.l.b16 %v1160
    %v1477 = vunpack.c.h.b16 %v1160
    %v1478 = vunpack.c.l.b16 %v1161
    %v1479 = vunpack.c.h.b16 %v1161
    %v1480 = vunpack.c.l.b16 %v1162
    %v1481 = vunpack.c.h.b16 %v1162
    %v1482 = vunpack.c.l.b16 %v1163
    %v1483 = vunpack.c.h.b16 %v1163
    %v1484 = vunpack.c.l.b16 %v1164
    %v1485 = vunpack.c.h.b16 %v1164
    %v1486 = vunpack.c.l.b16 %v1165
    %v1487 = vunpack.c.h.b16 %v1165
    %v1488 = vunpack.c.l.b16 %v1166
    %v1489 = vunpack.c.h.b16 %v1166
    %v1490 = vunpack.c.l.b16 %v1167
    %v1491 = vunpack.c.h.b16 %v1167
    %v1492 = vunpack.c.l.b16 %v1168
    %v1493 = vunpack.c.h.b16 %v1168
    %v1494 = vunpack.c.l.b16 %v1169
    %v1495 = vunpack.c.h.b16 %v1169
    %v1496 = vunpack.c.l.b16 %v1170
    %v1497 = vunpack.c.h.b16 %v1170
    %v1498 = vunpack.c.l.b16 %v1171
    %v1499 = vunpack.c.h.b16 %v1171
    %v1500 = vunpack.c.l.b16 %v1172
    %v1501 = vunpack.c.h.b16 %v1172
    %v1502 = vunpack.c.l.b16 %v1173
    %v1503 = vunpack.c.h.b16 %v1173
    %v1504 = vunpack.c.l.b16 %v1174
    %v1505 = vunpack.c.h.b16 %v1174
    %v1506 = vunpack.c.l.b16 %v1175
    %v1507 = vunpack.c.h.b16 %v1175
    %v1508 = vunpack.c.l.b16 %v1176
    %v1509 = vunpack.c.h.b16 %v1176
    %v1510 = vunpack.c.l.b16 %v1177
    %v1511 = vunpack.c.h.b16 %v1177
    %v1512 = vunpack.c.l.b16 %v1178
    %v1513 = vunpack.c.h.b16 %v1178
    %v1514 = vunpack.c.l.b16 %v1179
    %v1515 = vunpack.c.h.b16 %v1179
    %v1516 = vunpack.c.l.b16 %v1180
    %v1517 = vunpack.c.h.b16 %v1180
    %v1518 = vunpack.c.l.b16 %v1181
    %v1519 = vunpack.c.h.b16 %v1181
    %v1520 = vunpack.c.l.b16 %v1182
    %v1521 = vunpack.c.h.b16 %v1182
    %v1522 = vunpack.c.l.b16 %v1183
    %v1523 = vunpack.c.h.b16 %v1183
    %v1524 = vunpack.c.l.b16 %v1184
    %v1525 = vunpack.c.h.b16 %v1184
    %v1526 = vunpack.c.l.b16 %v1185
    %v1527 = vunpack.c.h.b16 %v1185
    %v1528 = vunpack.c.l.b16 %v1186
    %v1529 = vunpack.c.h.b16 %v1186
    %v1530 = vunpack.c.l.b16 %v1187
    %v1531 = vunpack.c.h.b16 %v1187
    %v1532 = vunpack.c.l.b16 %v1188
    %v1533 = vunpack.c.h.b16 %v1188
    %v1534 = vunpack.c.l.b16 %v1189
    %v1535 = vunpack.c.h.b16 %v1189
    %v1536 = vunpack.c.l.b16 %v1190
    %v1537 = vunpack.c.h.b16 %v1190
    %v1538 = vunpack.c.l.b16 %v1191
    %v1539 = vunpack.c.h.b16 %v1191
    %v1540 = vunpack.c.l.b16 %v1192
    %v1541 = vunpack.c.h.b16 %v1192
    %v1542 = vunpack.c.l.b16 %v1193
    %v1543 = vunpack.c.h.b16 %v1193
    %v1544 = vunpack.c.l.b16 %v1194
    %v1545 = vunpack.c.h.b16 %v1194
    %v1546 = vunpack.c.l.b16 %v1195
    %v1547 = vunpack.c.h.b16 %v1195
    %v1548 = vunpack.c.l.b16 %v1196
    %v1549 = vunpack.c.h.b16 %v1196
    %v1550 = vunpack.c.l.b16 %v1197
    %v1551 = vunpack.c.h.b16 %v1197
    %v1552 = vunpack.c.l.b16 %v1198
    %v1553 = vunpack.c.h.b16 %v1198
    %v1554 = vunpack.c.l.b16 %v1199
    %v1555 = vunpack.c.h.b16 %v1199
    %v1556 = vunpack.c.l.b16 %v1200
    %v1557 = vunpack.c.h.b16 %v1200
    %v1558 = vunpack.c.l.b16 %v1201
    %v1559 = vunpack.c.h.b16 %v1201
    %v1560 = vunpack.c.l.b16 %v1202
    %v1561 = vunpack.c.h.b16 %v1202
    %v1562 = vunpack.c.l.b16 %v1203
    %v1563 = vunpack.c.h.b16 %v1203
    %v1564 = vunpack.c.l.b16 %v1204
    %v1565 = vunpack.c.h.b16 %v1204
    %v1566 = vunpack.c.l.b16 %v1205
    %v1567 = vunpack.c.h.b16 %v1205
    %v1568 = vunpack.c.l.b16 %v1206
    %v1569 = vunpack.c.h.b16 %v1206
    %v1570 = vunpack.c.l.b16 %v1207
    %v1571 = vunpack.c.h.b16 %v1207
    %v1572 = vunpack.c.l.b16 %v1208
    %v1573 = vunpack.c.h.b16 %v1208
    %v1574 = vunpack.c.l.b16 %v1209
    %v1575 = vunpack.c.h.b16 %v1209
    %v1576 = vunpack.c.l.b16 %v1210
    %v1577 = vunpack.c.h.b16 %v1210
    %v1578 = vunpack.c.l.b16 %v1211
    %v1579 = vunpack.c.h.b16 %v1211
    %v1580 = vunpack.c.l.b16 %v1212
    %v1581 = vunpack.c.h.b16 %v1212
    %v1582 = vunpack.c.l.b16 %v1213
    %v1583 = vunpack.c.h.b16 %v1213
    %v1584 = vunpack.c.l.b16 %v1214
    %v1585 = vunpack.c.h.b16 %v1214
    %v1586 = vunpack.c.l.b16 %v1215
    %v1587 = vunpack.c.h.b16 %v1215
    %v1588 = vunpack.c.l.b16 %v1216
    %v1589 = vunpack.c.h.b16 %v1216
    %v1590 = vunpack.c.l.b16 %v1217
    %v1591 = vunpack.c.h.b16 %v1217
    %v1592 = vunpack.c.l.b16 %v1218
    %v1593 = vunpack.c.h.b16 %v1218
    %v1594 = vunpack.c.l.b16 %v1219
    %v1595 = vunpack.c.h.b16 %v1219
    %v1596 = vunpack.c.l.b16 %v1220
    %v1597 = vunpack.c.h.b16 %v1220
    %v1598 = vunpack.c.l.b16 %v1221
    %v1599 = vunpack.c.h.b16 %v1221
    %v1600 = vunpack.c.l.b16 %v1222
    %v1601 = vunpack.c.h.b16 %v1222
    %v1602 = vunpack.c.l.b16 %v1223
    %v1603 = vunpack.c.h.b16 %v1223
    %v1604 = vunpack.c.l.b16 %v1224
    %v1605 = vunpack.c.h.b16 %v1224
    %v1606 = vunpack.c.l.b16 %v1225
    %v1607 = vunpack.c.h.b16 %v1225
    %v1608 = vunpack.c.l.b16 %v1226
    %v1609 = vunpack.c.h.b16 %v1226
    %v1610 = vunpack.c.l.b16 %v1227
    %v1611 = vunpack.c.h.b16 %v1227
    %v1612 = vpack.c.b16 %v1360, %v1356
    %v1613 = vpack.c.b16 %v1361, %v1357
    %v1614 = vpack.c.b16 %v1362, %v1358
    %v1615 = vpack.c.b16 %v1363, %v1359
    %v1616 = vpack.c.b16 %v1368, %v1364
    %v1617 = vpack.c.b16 %v1369, %v1365
    %v1618 = vpack.c.b16 %v1370, %v1366
    %v1619 = vpack.c.b16 %v1371, %v1367
    %v1620 = vpack.c.b16 %v1376, %v1372
    %v1621 = vpack.c.b16 %v1377, %v1373
    %v1622 = vpack.c.b16 %v1378, %v1374
    %v1623 = vpack.c.b16 %v1379, %v1375
    %v1624 = vpack.c.b16 %v1384, %v1380
    %v1625 = vpack.c.b16 %v1385, %v1381
    %v1626 = vpack.c.b16 %v1386, %v1382
    %v1627 = vpack.c.b16 %v1387, %v1383
    %v1628 = vpack.c.b16 %v1392, %v1388
    %v1629 = vpack.c.b16 %v1393, %v1389
    %v1630 = vpack.c.b16 %v1394, %v1390
    %v1631 = vpack.c.b16 %v1395, %v1391
    %v1632 = vpack.c.b16 %v1400, %v1396
    %v1633 = vpack.c.b16 %v1401, %v1397
    %v1634 = vpack.c.b16 %v1402, %v1398
    %v1635 = vpack.c.b16 %v1403, %v1399
    %v1636 = vpack.c.b16 %v1408, %v1404
    %v1637 = vpack.c.b16 %v1409, %v1405
    %v1638 = vpack.c.b16 %v1410, %v1406
    %v1639 = vpack.c.b16 %v1411, %v1407
    %v1640 = vpack.c.b16 %v1416, %v1412
    %v1641 = vpack.c.b16 %v1417, %v1413
    %v1642 = vpack.c.b16 %v1418, %v1414
    %v1643 = vpack.c.b16 %v1419, %v1415
    %v1644 = vpack.c.b16 %v1424, %v1420
    %v1645 = vpack.c.b16 %v1425, %v1421
    %v1646 = vpack.c.b16 %v1426, %v1422
    %v1647 = vpack.c.b16 %v1427, %v1423
    %v1648 = vpack.c.b16 %v1432, %v1428
    %v1649 = vpack.c.b16 %v1433, %v1429
    %v1650 = vpack.c.b16 %v1434, %v1430
    %v1651 = vpack.c.b16 %v1435, %v1431
    %v1652 = vpack.c.b16 %v1440, %v1436
    %v1653 = vpack.c.b16 %v1441, %v1437
    %v1654 = vpack.c.b16 %v1442, %v1438
    %v1655 = vpack.c.b16 %v1443, %v1439
    %v1656 = vpack.c.b16 %v1448, %v1444
    %v1657 = vpack.c.b16 %v1449, %v1445
    %v1658 = vpack.c.b16 %v1450, %v1446
    %v1659 = vpack.c.b16 %v1451, %v1447
    %v1660 = vpack.c.b16 %v1456, %v1452
    %v1661 = vpack.c.b16 %v1457, %v1453
    %v1662 = vpack.c.b16 %v1458, %v1454
    %v1663 = vpack.c.b16 %v1459, %v1455
    %v1664 = vpack.c.b16 %v1464, %v1460
    %v1665 = vpack.c.b16 %v1465, %v1461
    %v1666 = vpack.c.b16 %v1466, %v1462
    %v1667 = vpack.c.b16 %v1467, %v1463
    %v1668 = vpack.c.b16 %v1472, %v1468
    %v1669 = vpack.c.b16 %v1473, %v1469
    %v1670 = vpack.c.b16 %v1474, %v1470
    %v1671 = vpack.c.b16 %v1475, %v1471
    %v1672 = vpack.c.b16 %v1480, %v1476
    %v1673 = vpack.c.b16 %v1481, %v1477
    %v1674 = vpack.c.b16 %v1482, %v1478
    %v1675 = vpack.c.b16 %v1483, %v1479
    %v1676 = vpack.c.b16 %v1488, %v1484
    %v1677 = vpack.c.b16 %v1489, %v1485
    %v1678 = vpack.c.b16 %v1490, %v1486
    %v1679 = vpack.c.b16 %v1491, %v1487
    %v1680 = vpack.c.b16 %v1496, %v1492
    %v1681 = vpack.c.b16 %v1497, %v1493
    %v1682 = vpack.c.b16 %v1498, %v1494
    %v1683 = vpack.c.b16 %v1499, %v1495
    %v1684 = vpack.c.b16 %v1504, %v1500
    %v1685 = vpack.c.b16 %v1505, %v1501
    %v1686 = vpack.c.b16 %v1506, %v1502
    %v1687 = vpack.c.b16 %v1507, %v1503
    %v1688 = vpack.c.b16 %v1512, %v1508
    %v1689 = vpack.c.b16 %v1513, %v1509
    %v1690 = vpack.c.b16 %v1514, %v1510
    %v1691 = vpack.c.b16 %v1515, %v1511
    %v1692 = vpack.c.b16 %v1520, %v1516
    %v1693 = vpack.c.b16 %v1521, %v1517
    %v1694 = vpack.c.b16 %v1522, %v1518
    %v1695 = vpack.c.b16 %v1523, %v1519
    %v1696 = vpack.c.b16 %v1528, %v1524
    %v1697 = vpack.c.b16 %v1529, %v1525
    %v1698 = vpack.c.b16 %v1530, %v1526
    %v1699 = vpack.c.b16 %v1531, %v1527
    %v1700 = vpack.c.b16 %v1536, %v1532
    %v1701 = vpack.c.b16 %v1537, %v1533
    %v1702 = vpack.c.b16 %v1538, %v1534
    %v1703 = vpack.c.b16 %v1539, %v1535
    %v1704 = vpack.c.b16 %v1544, %v1540
    %v1705 = vpack.c.b16 %v1545, %v1541
    %v1706 = vpack.c.b16 %v1546, %v1542
    %v1707 = vpack.c.b16 %v1547, %v1543
    %v1708 = vpack.c.b16 %v1552, %v1548
    %v1709 = vpack.c.b16 %v1553, %v1549
    %v1710 = vpack.c.b16 %v1554, %v1550
    %v1711 = vpack.c.b16 %v1555, %v1551
    %v1712 = vpack.c.b16 %v1560, %v1556
    %v1713 = vpack.c.b16 %v1561, %v1557
    %v1714 = vpack.c.b16 %v1562, %v1558
    %v1715 = vpack.c.b16 %v1563, %v1559
    %v1716 = vpack.c.b16 %v1568, %v1564
    %v1717 = vpack.c.b16 %v1569, %v1565
    %v1718 = vpack.c.b16 %v1570, %v1566
    %v1719 = vpack.c.b16 %v1571, %v1567
    %v1720 = vpack.c.b16 %v1576, %v1572
    %v1721 = vpack.c.b16 %v1577, %v1573
    %v1722 = vpack.c.b16 %v1578, %v1574
    %v1723 = vpack.c.b16 %v1579, %v1575
    %v1724 = vpack.c.b16 %v1584, %v1580
    %v1725 = vpack.c.b16 %v1585, %v1581
    %v1726 = vpack.c.b16 %v1586, %v1582
    %v1727 = vpack.c.b16 %v1587, %v1583
    %v1728 = vpack.c.b16 %v1592, %v1588
    %v1729 = vpack.c.b16 %v1593, %v1589
    %v1730 = vpack.c.b16 %v1594, %v1590
    %v1731 = vpack.c.b16 %v1595, %v1591
    %v1732 = vpack.c.b16 %v1600, %v1596
    %v1733 = vpack.c.b16 %v1601, %v1597
    %v1734 = vpack.c.b16 %v1602, %v1598
    %v1735 = vpack.c.b16 %v1603, %v1599
    %v1736 = vpack.c.b16 %v1608, %v1604
    %v1737 = vpack.c.b16 %v1609, %v1605
    %v1738 = vpack.c.b16 %v1610, %v1606
    %v1739 = vpack.c.b16 %v1611, %v1607
    %1868 = vmatprep.subr.bf16.mxu0 %v1613
    %1869 = vmatpush1.bf16.msra.mxu0 %v1612
    %1870 = vmatprep.subr.bf16.mxu0 %v1617
    %1871 = vmatpush1.bf16.msra.mxu0 %v1616
    %1872 = vmatprep.subr.bf16.mxu0 %v1621
    %1873 = vmatpush1.bf16.msra.mxu0 %v1620
    %1874 = vmatprep.subr.bf16.mxu0 %v1625
    %1875 = vmatpush1.bf16.msra.mxu0 %v1624
    %1876 = vmatprep.subr.bf16.mxu0 %v1629
    %1877 = vmatpush1.bf16.msra.mxu0 %v1628
    %1878 = vmatprep.subr.bf16.mxu0 %v1633
    %1879 = vmatpush1.bf16.msra.mxu0 %v1632
    %1880 = vmatprep.subr.bf16.mxu0 %v1637
    %1881 = vmatpush1.bf16.msra.mxu0 %v1636
    %1882 = vmatprep.subr.bf16.mxu0 %v1641
    %1883 = vmatpush1.bf16.msra.mxu0 %v1640
    %1884 = vmatprep.subr.bf16.mxu0 %v1645
    %1885 = vmatpush1.bf16.msra.mxu0 %v1644
    %1886 = vmatprep.subr.bf16.mxu0 %v1649
    %1887 = vmatpush1.bf16.msra.mxu0 %v1648
    %1888 = vmatprep.subr.bf16.mxu0 %v1653
    %1889 = vmatpush1.bf16.msra.mxu0 %v1652
    %1890 = vmatprep.subr.bf16.mxu0 %v1657
    %1891 = vmatpush1.bf16.msra.mxu0 %v1656
    %1892 = vmatprep.subr.bf16.mxu0 %v1661
    %1893 = vmatpush1.bf16.msra.mxu0 %v1660
    %1894 = vmatprep.subr.bf16.mxu0 %v1665
    %1895 = vmatpush1.bf16.msra.mxu0 %v1664
    %1896 = vmatprep.subr.bf16.mxu0 %v1669
    %1897 = vmatpush1.bf16.msra.mxu0 %v1668
    %1898 = vmatprep.subr.bf16.mxu0 %v1673
    %1899 = vmatpush1.bf16.msra.mxu0 %v1672
    %1900 = vmatprep.mubr.bf16.mxu0 %v1097
    %1901 = vmatmul.mubr.bf16.gmra.mrb[0].mxu0 %v1096
    %v1902 = vpop.f32.mrb[0].mxu0
    %v1903 = vadd.f32 0.0, %v1902
    %v1904 = vpop.f32.mrb[0].mxu0
    %v1905 = vadd.f32 0.0, %v1904
    %v1906 = vpop.f32.mrb[0].mxu0
    %v1907 = vadd.f32 0.0, %v1906
    %v1908 = vpop.f32.mrb[0].mxu0
    %v1909 = vadd.f32 0.0, %v1908
    %1910 = vdwg.mxu0
    %1911 = vmatprep.subr.bf16.mxu0 %v1677
    %1912 = vmatpush1.bf16.msra.mxu0 %v1676
    %1913 = vmatprep.subr.bf16.mxu0 %v1681
    %1914 = vmatpush1.bf16.msra.mxu0 %v1680
    %1915 = vmatprep.subr.bf16.mxu0 %v1685
    %1916 = vmatpush1.bf16.msra.mxu0 %v1684
    %1917 = vmatprep.subr.bf16.mxu0 %v1689
    %1918 = vmatpush1.bf16.msra.mxu0 %v1688
    %1919 = vmatprep.subr.bf16.mxu0 %v1693
    %1920 = vmatpush1.bf16.msra.mxu0 %v1692
    %1921 = vmatprep.subr.bf16.mxu0 %v1697
    %1922 = vmatpush1.bf16.msra.mxu0 %v1696
    %1923 = vmatprep.subr.bf16.mxu0 %v1701
    %1924 = vmatpush1.bf16.msra.mxu0 %v1700
    %1925 = vmatprep.subr.bf16.mxu0 %v1705
    %1926 = vmatpush1.bf16.msra.mxu0 %v1704
    %1927 = vmatprep.subr.bf16.mxu0 %v1709
    %1928 = vmatpush1.bf16.msra.mxu0 %v1708
    %1929 = vmatprep.subr.bf16.mxu0 %v1713
    %1930 = vmatpush1.bf16.msra.mxu0 %v1712
    %1931 = vmatprep.subr.bf16.mxu0 %v1717
    %1932 = vmatpush1.bf16.msra.mxu0 %v1716
    %1933 = vmatprep.subr.bf16.mxu0 %v1721
    %1934 = vmatpush1.bf16.msra.mxu0 %v1720
    %1935 = vmatprep.subr.bf16.mxu0 %v1725
    %1936 = vmatpush1.bf16.msra.mxu0 %v1724
    %1937 = vmatprep.subr.bf16.mxu0 %v1729
    %1938 = vmatpush1.bf16.msra.mxu0 %v1728
    %1939 = vmatprep.subr.bf16.mxu0 %v1733
    %1940 = vmatpush1.bf16.msra.mxu0 %v1732
    %1941 = vmatprep.subr.bf16.mxu0 %v1737
    %1942 = vmatpush1.bf16.msra.mxu0 %v1736
    %1943 = vmatprep.mubr.bf16.mxu0 %v1099
    %1944 = vmatmul.mubr.bf16.gmra.mrb[0].mxu0 %v1098
    %v1945 = vpop.f32.mrb[0].mxu0
    %v1946 = vadd.f32 %v1903, %v1945
    %v1947 = vpop.f32.mrb[0].mxu0
    %v1948 = vadd.f32 %v1905, %v1947
    %v1949 = vpop.f32.mrb[0].mxu0
    %v1950 = vadd.f32 %v1907, %v1949
    %v1951 = vpop.f32.mrb[0].mxu0
    %v1952 = vadd.f32 %v1909, %v1951
    %1953 = vdwg.mxu0
    %1954 = vmatprep.subr.bf16.mxu0 %v1615
    %1955 = vmatpush1.bf16.msra.mxu0 %v1614
    %1956 = vmatprep.subr.bf16.mxu0 %v1619
    %1957 = vmatpush1.bf16.msra.mxu0 %v1618
    %1958 = vmatprep.subr.bf16.mxu0 %v1623
    %1959 = vmatpush1.bf16.msra.mxu0 %v1622
    %1960 = vmatprep.subr.bf16.mxu0 %v1627
    %1961 = vmatpush1.bf16.msra.mxu0 %v1626
    %1962 = vmatprep.subr.bf16.mxu0 %v1631
    %1963 = vmatpush1.bf16.msra.mxu0 %v1630
    %1964 = vmatprep.subr.bf16.mxu0 %v1635
    %1965 = vmatpush1.bf16.msra.mxu0 %v1634
    %1966 = vmatprep.subr.bf16.mxu0 %v1639
    %1967 = vmatpush1.bf16.msra.mxu0 %v1638
    %1968 = vmatprep.subr.bf16.mxu0 %v1643
    %1969 = vmatpush1.bf16.msra.mxu0 %v1642
    %1970 = vmatprep.subr.bf16.mxu0 %v1647
    %1971 = vmatpush1.bf16.msra.mxu0 %v1646
    %1972 = vmatprep.subr.bf16.mxu0 %v1651
    %1973 = vmatpush1.bf16.msra.mxu0 %v1650
    %1974 = vmatprep.subr.bf16.mxu0 %v1655
    %1975 = vmatpush1.bf16.msra.mxu0 %v1654
    %1976 = vmatprep.subr.bf16.mxu0 %v1659
    %1977 = vmatpush1.bf16.msra.mxu0 %v1658
    %1978 = vmatprep.subr.bf16.mxu0 %v1663
    %1979 = vmatpush1.bf16.msra.mxu0 %v1662
    %1980 = vmatprep.subr.bf16.mxu0 %v1667
    %1981 = vmatpush1.bf16.msra.mxu0 %v1666
    %1982 = vmatprep.subr.bf16.mxu0 %v1671
    %1983 = vmatpush1.bf16.msra.mxu0 %v1670
    %1984 = vmatprep.subr.bf16.mxu0 %v1675
    %1985 = vmatpush1.bf16.msra.mxu0 %v1674
    %1986 = vmatprep.mubr.bf16.mxu0 %v1097
    %1987 = vmatmul.mubr.bf16.gmra.mrb[0].mxu0 %v1096
    %v1988 = vpop.f32.mrb[0].mxu0
    %v1989 = vadd.f32 0.0, %v1988
    %v1990 = vpop.f32.mrb[0].mxu0
    %v1991 = vadd.f32 0.0, %v1990
    %v1992 = vpop.f32.mrb[0].mxu0
    %v1993 = vadd.f32 0.0, %v1992
    %v1994 = vpop.f32.mrb[0].mxu0
    %v1995 = vadd.f32 0.0, %v1994
    %1996 = vdwg.mxu0
    %1997 = vmatprep.subr.bf16.mxu0 %v1679
    %1998 = vmatpush1.bf16.msra.mxu0 %v1678
    %1999 = vmatprep.subr.bf16.mxu0 %v1683
    %2000 = vmatpush1.bf16.msra.mxu0 %v1682
    %2001 = vmatprep.subr.bf16.mxu0 %v1687
    %2002 = vmatpush1.bf16.msra.mxu0 %v1686
    %2003 = vmatprep.subr.bf16.mxu0 %v1691
    %2004 = vmatpush1.bf16.msra.mxu0 %v1690
    %2005 = vmatprep.subr.bf16.mxu0 %v1695
    %2006 = vmatpush1.bf16.msra.mxu0 %v1694
    %2007 = vmatprep.subr.bf16.mxu0 %v1699
    %2008 = vmatpush1.bf16.msra.mxu0 %v1698
    %2009 = vmatprep.subr.bf16.mxu0 %v1703
    %2010 = vmatpush1.bf16.msra.mxu0 %v1702
    %2011 = vmatprep.subr.bf16.mxu0 %v1707
    %2012 = vmatpush1.bf16.msra.mxu0 %v1706
    %2013 = vmatprep.subr.bf16.mxu0 %v1711
    %2014 = vmatpush1.bf16.msra.mxu0 %v1710
    %2015 = vmatprep.subr.bf16.mxu0 %v1715
    %2016 = vmatpush1.bf16.msra.mxu0 %v1714
    %2017 = vmatprep.subr.bf16.mxu0 %v1719
    %2018 = vmatpush1.bf16.msra.mxu0 %v1718
    %2019 = vmatprep.subr.bf16.mxu0 %v1723
    %2020 = vmatpush1.bf16.msra.mxu0 %v1722
    %2021 = vmatprep.subr.bf16.mxu0 %v1727
    %2022 = vmatpush1.bf16.msra.mxu0 %v1726
    %2023 = vmatprep.subr.bf16.mxu0 %v1731
    %2024 = vmatpush1.bf16.msra.mxu0 %v1730
    %2025 = vmatprep.subr.bf16.mxu0 %v1735
    %2026 = vmatpush1.bf16.msra.mxu0 %v1734
    %2027 = vmatprep.subr.bf16.mxu0 %v1739
    %2028 = vmatpush1.bf16.msra.mxu0 %v1738
    %2029 = vmatprep.mubr.bf16.mxu0 %v1099
    %2030 = vmatmul.mubr.bf16.gmra.mrb[0].mxu0 %v1098
    %v2031 = vpop.f32.mrb[0].mxu0
    %v2032 = vadd.f32 %v1989, %v2031
    %v2033 = vpop.f32.mrb[0].mxu0
    %v2034 = vadd.f32 %v1991, %v2033
    %v2035 = vpop.f32.mrb[0].mxu0
    %v2036 = vadd.f32 %v1993, %v2035
    %v2037 = vpop.f32.mrb[0].mxu0
    %v2038 = vadd.f32 %v1995, %v2037
    %2039 = vdwg.mxu0
    %2040 = vst [vmem:[#allocation2] sm:$0xff] %v1946
    %2041 = vst [vmem:[#allocation2 + $0x8] sm:$0xff] %v1948
    %2042 = vst [vmem:[#allocation2 + $0x10] sm:$0xff] %v2032
    %2043 = vst [vmem:[#allocation2 + $0x18] sm:$0xff] %v2034
    %2044 = vst [vmem:[#allocation2 + $0x20] sm:$0xff] %v1950
    %2045 = vst [vmem:[#allocation2 + $0x28] sm:$0xff] %v1952
    %2046 = vst [vmem:[#allocation2 + $0x30] sm:$0xff] %v2036
    %2047 = vst [vmem:[#allocation2 + $0x38] sm:$0xff] %v2038
    %v2048 = vld [vmem:[#allocation6 + $0x10] sm:$0xff]
    %v2049 = vld [vmem:[#allocation6 + $0x18] sm:$0xff]
    %v2050 = vld [vmem:[#allocation6 + $0x50] sm:$0xff]
    %v2051 = vld [vmem:[#allocation6 + $0x58] sm:$0xff]
    %v2052 = vld [vmem:[#allocation6 + $0x90] sm:$0xff]
    %v2053 = vld [vmem:[#allocation6 + $0x98] sm:$0xff]
    %v2054 = vld [vmem:[#allocation6 + $0xd0] sm:$0xff]
    %v2055 = vld [vmem:[#allocation6 + $0xd8] sm:$0xff]
    %v2056 = vld [vmem:[#allocation6 + $0x110] sm:$0xff]
    %v2057 = vld [vmem:[#allocation6 + $0x118] sm:$0xff]
    %v2058 = vld [vmem:[#allocation6 + $0x150] sm:$0xff]
    %v2059 = vld [vmem:[#allocation6 + $0x158] sm:$0xff]
    %v2060 = vld [vmem:[#allocation6 + $0x190] sm:$0xff]
    %v2061 = vld [vmem:[#allocation6 + $0x198] sm:$0xff]
    %v2062 = vld [vmem:[#allocation6 + $0x1d0] sm:$0xff]
    %v2063 = vld [vmem:[#allocation6 + $0x1d8] sm:$0xff]
    %v2064 = vld [vmem:[#allocation6 + $0x210] sm:$0xff]
    %v2065 = vld [vmem:[#allocation6 + $0x218] sm:$0xff]
    %v2066 = vld [vmem:[#allocation6 + $0x250] sm:$0xff]
    %v2067 = vld [vmem:[#allocation6 + $0x258] sm:$0xff]
    %v2068 = vld [vmem:[#allocation6 + $0x290] sm:$0xff]
    %v2069 = vld [vmem:[#allocation6 + $0x298] sm:$0xff]
    %v2070 = vld [vmem:[#allocation6 + $0x2d0] sm:$0xff]
    %v2071 = vld [vmem:[#allocation6 + $0x2d8] sm:$0xff]
    %v2072 = vld [vmem:[#allocation6 + $0x310] sm:$0xff]
    %v2073 = vld [vmem:[#allocation6 + $0x318] sm:$0xff]
    %v2074 = vld [vmem:[#allocation6 + $0x350] sm:$0xff]
    %v2075 = vld [vmem:[#allocation6 + $0x358] sm:$0xff]
    %v2076 = vld [vmem:[#allocation6 + $0x390] sm:$0xff]
    %v2077 = vld [vmem:[#allocation6 + $0x398] sm:$0xff]
    %v2078 = vld [vmem:[#allocation6 + $0x3d0] sm:$0xff]
    %v2079 = vld [vmem:[#allocation6 + $0x3d8] sm:$0xff]
    %v2080 = vld [vmem:[#allocation6 + $0x410] sm:$0xff]
    %v2081 = vld [vmem:[#allocation6 + $0x418] sm:$0xff]
    %v2082 = vld [vmem:[#allocation6 + $0x450] sm:$0xff]
    %v2083 = vld [vmem:[#allocation6 + $0x458] sm:$0xff]
    %v2084 = vld [vmem:[#allocation6 + $0x490] sm:$0xff]
    %v2085 = vld [vmem:[#allocation6 + $0x498] sm:$0xff]
    %v2086 = vld [vmem:[#allocation6 + $0x4d0] sm:$0xff]
    %v2087 = vld [vmem:[#allocation6 + $0x4d8] sm:$0xff]
    %v2088 = vld [vmem:[#allocation6 + $0x510] sm:$0xff]
    %v2089 = vld [vmem:[#allocation6 + $0x518] sm:$0xff]
    %v2090 = vld [vmem:[#allocation6 + $0x550] sm:$0xff]
    %v2091 = vld [vmem:[#allocation6 + $0x558] sm:$0xff]
    %v2092 = vld [vmem:[#allocation6 + $0x590] sm:$0xff]
    %v2093 = vld [vmem:[#allocation6 + $0x598] sm:$0xff]
    %v2094 = vld [vmem:[#allocation6 + $0x5d0] sm:$0xff]
    %v2095 = vld [vmem:[#allocation6 + $0x5d8] sm:$0xff]
    %v2096 = vld [vmem:[#allocation6 + $0x610] sm:$0xff]
    %v2097 = vld [vmem:[#allocation6 + $0x618] sm:$0xff]
    %v2098 = vld [vmem:[#allocation6 + $0x650] sm:$0xff]
    %v2099 = vld [vmem:[#allocation6 + $0x658] sm:$0xff]
    %v2100 = vld [vmem:[#allocation6 + $0x690] sm:$0xff]
    %v2101 = vld [vmem:[#allocation6 + $0x698] sm:$0xff]
    %v2102 = vld [vmem:[#allocation6 + $0x6d0] sm:$0xff]
    %v2103 = vld [vmem:[#allocation6 + $0x6d8] sm:$0xff]
    %v2104 = vld [vmem:[#allocation6 + $0x710] sm:$0xff]
    %v2105 = vld [vmem:[#allocation6 + $0x718] sm:$0xff]
    %v2106 = vld [vmem:[#allocation6 + $0x750] sm:$0xff]
    %v2107 = vld [vmem:[#allocation6 + $0x758] sm:$0xff]
    %v2108 = vld [vmem:[#allocation6 + $0x790] sm:$0xff]
    %v2109 = vld [vmem:[#allocation6 + $0x798] sm:$0xff]
    %v2110 = vld [vmem:[#allocation6 + $0x7d0] sm:$0xff]
    %v2111 = vld [vmem:[#allocation6 + $0x7d8] sm:$0xff]
    %v2112 = vld [vmem:[#allocation6 + $0x810] sm:$0xff]
    %v2113 = vld [vmem:[#allocation6 + $0x818] sm:$0xff]
    %v2114 = vld [vmem:[#allocation6 + $0x850] sm:$0xff]
    %v2115 = vld [vmem:[#allocation6 + $0x858] sm:$0xff]
    %v2116 = vld [vmem:[#allocation6 + $0x890] sm:$0xff]
    %v2117 = vld [vmem:[#allocation6 + $0x898] sm:$0xff]
    %v2118 = vld [vmem:[#allocation6 + $0x8d0] sm:$0xff]
    %v2119 = vld [vmem:[#allocation6 + $0x8d8] sm:$0xff]
    %v2120 = vld [vmem:[#allocation6 + $0x910] sm:$0xff]
    %v2121 = vld [vmem:[#allocation6 + $0x918] sm:$0xff]
    %v2122 = vld [vmem:[#allocation6 + $0x950] sm:$0xff]
    %v2123 = vld [vmem:[#allocation6 + $0x958] sm:$0xff]
    %v2124 = vld [vmem:[#allocation6 + $0x990] sm:$0xff]
    %v2125 = vld [vmem:[#allocation6 + $0x998] sm:$0xff]
    %v2126 = vld [vmem:[#allocation6 + $0x9d0] sm:$0xff]
    %v2127 = vld [vmem:[#allocation6 + $0x9d8] sm:$0xff]
    %v2128 = vld [vmem:[#allocation6 + $0xa10] sm:$0xff]
    %v2129 = vld [vmem:[#allocation6 + $0xa18] sm:$0xff]
    %v2130 = vld [vmem:[#allocation6 + $0xa50] sm:$0xff]
    %v2131 = vld [vmem:[#allocation6 + $0xa58] sm:$0xff]
    %v2132 = vld [vmem:[#allocation6 + $0xa90] sm:$0xff]
    %v2133 = vld [vmem:[#allocation6 + $0xa98] sm:$0xff]
    %v2134 = vld [vmem:[#allocation6 + $0xad0] sm:$0xff]
    %v2135 = vld [vmem:[#allocation6 + $0xad8] sm:$0xff]
    %v2136 = vld [vmem:[#allocation6 + $0xb10] sm:$0xff]
    %v2137 = vld [vmem:[#allocation6 + $0xb18] sm:$0xff]
    %v2138 = vld [vmem:[#allocation6 + $0xb50] sm:$0xff]
    %v2139 = vld [vmem:[#allocation6 + $0xb58] sm:$0xff]
    %v2140 = vld [vmem:[#allocation6 + $0xb90] sm:$0xff]
    %v2141 = vld [vmem:[#allocation6 + $0xb98] sm:$0xff]
    %v2142 = vld [vmem:[#allocation6 + $0xbd0] sm:$0xff]
    %v2143 = vld [vmem:[#allocation6 + $0xbd8] sm:$0xff]
    %v2144 = vld [vmem:[#allocation6 + $0xc10] sm:$0xff]
    %v2145 = vld [vmem:[#allocation6 + $0xc18] sm:$0xff]
    %v2146 = vld [vmem:[#allocation6 + $0xc50] sm:$0xff]
    %v2147 = vld [vmem:[#allocation6 + $0xc58] sm:$0xff]
    %v2148 = vld [vmem:[#allocation6 + $0xc90] sm:$0xff]
    %v2149 = vld [vmem:[#allocation6 + $0xc98] sm:$0xff]
    %v2150 = vld [vmem:[#allocation6 + $0xcd0] sm:$0xff]
    %v2151 = vld [vmem:[#allocation6 + $0xcd8] sm:$0xff]
    %v2152 = vld [vmem:[#allocation6 + $0xd10] sm:$0xff]
    %v2153 = vld [vmem:[#allocation6 + $0xd18] sm:$0xff]
    %v2154 = vld [vmem:[#allocation6 + $0xd50] sm:$0xff]
    %v2155 = vld [vmem:[#allocation6 + $0xd58] sm:$0xff]
    %v2156 = vld [vmem:[#allocation6 + $0xd90] sm:$0xff]
    %v2157 = vld [vmem:[#allocation6 + $0xd98] sm:$0xff]
    %v2158 = vld [vmem:[#allocation6 + $0xdd0] sm:$0xff]
    %v2159 = vld [vmem:[#allocation6 + $0xdd8] sm:$0xff]
    %v2160 = vld [vmem:[#allocation6 + $0xe10] sm:$0xff]
    %v2161 = vld [vmem:[#allocation6 + $0xe18] sm:$0xff]
    %v2162 = vld [vmem:[#allocation6 + $0xe50] sm:$0xff]
    %v2163 = vld [vmem:[#allocation6 + $0xe58] sm:$0xff]
    %v2164 = vld [vmem:[#allocation6 + $0xe90] sm:$0xff]
    %v2165 = vld [vmem:[#allocation6 + $0xe98] sm:$0xff]
    %v2166 = vld [vmem:[#allocation6 + $0xed0] sm:$0xff]
    %v2167 = vld [vmem:[#allocation6 + $0xed8] sm:$0xff]
    %v2168 = vld [vmem:[#allocation6 + $0xf10] sm:$0xff]
    %v2169 = vld [vmem:[#allocation6 + $0xf18] sm:$0xff]
    %v2170 = vld [vmem:[#allocation6 + $0xf50] sm:$0xff]
    %v2171 = vld [vmem:[#allocation6 + $0xf58] sm:$0xff]
    %v2172 = vld [vmem:[#allocation6 + $0xf90] sm:$0xff]
    %v2173 = vld [vmem:[#allocation6 + $0xf98] sm:$0xff]
    %v2174 = vld [vmem:[#allocation6 + $0xfd0] sm:$0xff]
    %v2175 = vld [vmem:[#allocation6 + $0xfd8] sm:$0xff]
    %v2176 = vld [vmem:[#allocation8 + $0x4] sm:$0xf]
    %v2178 = vlaneseq
    %v2179 = vshrl.u32 %v2178, 7
    %v2180 = vsub.s32 0, %v2179
    %v2181 = vrot.slane %v2176, %v2180
    %v2182 = vlaneseq
    %v2183 = vshrl.u32 %v2182, 7
    %v2184 = vsub.s32 1, %v2183
    %v2185 = vrot.slane %v2176, %v2184
    %v2186 = vlaneseq
    %v2187 = vshrl.u32 %v2186, 7
    %v2188 = vsub.s32 2, %v2187
    %v2189 = vrot.slane %v2176, %v2188
    %v2190 = vlaneseq
    %v2191 = vshrl.u32 %v2190, 7
    %v2192 = vsub.s32 3, %v2191
    %v2193 = vrot.slane %v2176, %v2192
    %v2326 = vunpack.c.l.b16 %v2048
    %v2327 = vunpack.c.h.b16 %v2048
    %v2328 = vunpack.c.l.b16 %v2049
    %v2329 = vunpack.c.h.b16 %v2049
    %v2330 = vunpack.c.l.b16 %v2050
    %v2331 = vunpack.c.h.b16 %v2050
    %v2332 = vunpack.c.l.b16 %v2051
    %v2333 = vunpack.c.h.b16 %v2051
    %v2334 = vunpack.c.l.b16 %v2052
    %v2335 = vunpack.c.h.b16 %v2052
    %v2336 = vunpack.c.l.b16 %v2053
    %v2337 = vunpack.c.h.b16 %v2053
    %v2338 = vunpack.c.l.b16 %v2054
    %v2339 = vunpack.c.h.b16 %v2054
    %v2340 = vunpack.c.l.b16 %v2055
    %v2341 = vunpack.c.h.b16 %v2055
    %v2342 = vunpack.c.l.b16 %v2056
    %v2343 = vunpack.c.h.b16 %v2056
    %v2344 = vunpack.c.l.b16 %v2057
    %v2345 = vunpack.c.h.b16 %v2057
    %v2346 = vunpack.c.l.b16 %v2058
    %v2347 = vunpack.c.h.b16 %v2058
    %v2348 = vunpack.c.l.b16 %v2059
    %v2349 = vunpack.c.h.b16 %v2059
    %v2350 = vunpack.c.l.b16 %v2060
    %v2351 = vunpack.c.h.b16 %v2060
    %v2352 = vunpack.c.l.b16 %v2061
    %v2353 = vunpack.c.h.b16 %v2061
    %v2354 = vunpack.c.l.b16 %v2062
    %v2355 = vunpack.c.h.b16 %v2062
    %v2356 = vunpack.c.l.b16 %v2063
    %v2357 = vunpack.c.h.b16 %v2063
    %v2358 = vunpack.c.l.b16 %v2064
    %v2359 = vunpack.c.h.b16 %v2064
    %v2360 = vunpack.c.l.b16 %v2065
    %v2361 = vunpack.c.h.b16 %v2065
    %v2362 = vunpack.c.l.b16 %v2066
    %v2363 = vunpack.c.h.b16 %v2066
    %v2364 = vunpack.c.l.b16 %v2067
    %v2365 = vunpack.c.h.b16 %v2067
    %v2366 = vunpack.c.l.b16 %v2068
    %v2367 = vunpack.c.h.b16 %v2068
    %v2368 = vunpack.c.l.b16 %v2069
    %v2369 = vunpack.c.h.b16 %v2069
    %v2370 = vunpack.c.l.b16 %v2070
    %v2371 = vunpack.c.h.b16 %v2070
    %v2372 = vunpack.c.l.b16 %v2071
    %v2373 = vunpack.c.h.b16 %v2071
    %v2374 = vunpack.c.l.b16 %v2072
    %v2375 = vunpack.c.h.b16 %v2072
    %v2376 = vunpack.c.l.b16 %v2073
    %v2377 = vunpack.c.h.b16 %v2073
    %v2378 = vunpack.c.l.b16 %v2074
    %v2379 = vunpack.c.h.b16 %v2074
    %v2380 = vunpack.c.l.b16 %v2075
    %v2381 = vunpack.c.h.b16 %v2075
    %v2382 = vunpack.c.l.b16 %v2076
    %v2383 = vunpack.c.h.b16 %v2076
    %v2384 = vunpack.c.l.b16 %v2077
    %v2385 = vunpack.c.h.b16 %v2077
    %v2386 = vunpack.c.l.b16 %v2078
    %v2387 = vunpack.c.h.b16 %v2078
    %v2388 = vunpack.c.l.b16 %v2079
    %v2389 = vunpack.c.h.b16 %v2079
    %v2390 = vunpack.c.l.b16 %v2080
    %v2391 = vunpack.c.h.b16 %v2080
    %v2392 = vunpack.c.l.b16 %v2081
    %v2393 = vunpack.c.h.b16 %v2081
    %v2394 = vunpack.c.l.b16 %v2082
    %v2395 = vunpack.c.h.b16 %v2082
    %v2396 = vunpack.c.l.b16 %v2083
    %v2397 = vunpack.c.h.b16 %v2083
    %v2398 = vunpack.c.l.b16 %v2084
    %v2399 = vunpack.c.h.b16 %v2084
    %v2400 = vunpack.c.l.b16 %v2085
    %v2401 = vunpack.c.h.b16 %v2085
    %v2402 = vunpack.c.l.b16 %v2086
    %v2403 = vunpack.c.h.b16 %v2086
    %v2404 = vunpack.c.l.b16 %v2087
    %v2405 = vunpack.c.h.b16 %v2087
    %v2406 = vunpack.c.l.b16 %v2088
    %v2407 = vunpack.c.h.b16 %v2088
    %v2408 = vunpack.c.l.b16 %v2089
    %v2409 = vunpack.c.h.b16 %v2089
    %v2410 = vunpack.c.l.b16 %v2090
    %v2411 = vunpack.c.h.b16 %v2090
    %v2412 = vunpack.c.l.b16 %v2091
    %v2413 = vunpack.c.h.b16 %v2091
    %v2414 = vunpack.c.l.b16 %v2092
    %v2415 = vunpack.c.h.b16 %v2092
    %v2416 = vunpack.c.l.b16 %v2093
    %v2417 = vunpack.c.h.b16 %v2093
    %v2418 = vunpack.c.l.b16 %v2094
    %v2419 = vunpack.c.h.b16 %v2094
    %v2420 = vunpack.c.l.b16 %v2095
    %v2421 = vunpack.c.h.b16 %v2095
    %v2422 = vunpack.c.l.b16 %v2096
    %v2423 = vunpack.c.h.b16 %v2096
    %v2424 = vunpack.c.l.b16 %v2097
    %v2425 = vunpack.c.h.b16 %v2097
    %v2426 = vunpack.c.l.b16 %v2098
    %v2427 = vunpack.c.h.b16 %v2098
    %v2428 = vunpack.c.l.b16 %v2099
    %v2429 = vunpack.c.h.b16 %v2099
    %v2430 = vunpack.c.l.b16 %v2100
    %v2431 = vunpack.c.h.b16 %v2100
    %v2432 = vunpack.c.l.b16 %v2101
    %v2433 = vunpack.c.h.b16 %v2101
    %v2434 = vunpack.c.l.b16 %v2102
    %v2435 = vunpack.c.h.b16 %v2102
    %v2436 = vunpack.c.l.b16 %v2103
    %v2437 = vunpack.c.h.b16 %v2103
    %v2438 = vunpack.c.l.b16 %v2104
    %v2439 = vunpack.c.h.b16 %v2104
    %v2440 = vunpack.c.l.b16 %v2105
    %v2441 = vunpack.c.h.b16 %v2105
    %v2442 = vunpack.c.l.b16 %v2106
    %v2443 = vunpack.c.h.b16 %v2106
    %v2444 = vunpack.c.l.b16 %v2107
    %v2445 = vunpack.c.h.b16 %v2107
    %v2446 = vunpack.c.l.b16 %v2108
    %v2447 = vunpack.c.h.b16 %v2108
    %v2448 = vunpack.c.l.b16 %v2109
    %v2449 = vunpack.c.h.b16 %v2109
    %v2450 = vunpack.c.l.b16 %v2110
    %v2451 = vunpack.c.h.b16 %v2110
    %v2452 = vunpack.c.l.b16 %v2111
    %v2453 = vunpack.c.h.b16 %v2111
    %v2454 = vunpack.c.l.b16 %v2112
    %v2455 = vunpack.c.h.b16 %v2112
    %v2456 = vunpack.c.l.b16 %v2113
    %v2457 = vunpack.c.h.b16 %v2113
    %v2458 = vunpack.c.l.b16 %v2114
    %v2459 = vunpack.c.h.b16 %v2114
    %v2460 = vunpack.c.l.b16 %v2115
    %v2461 = vunpack.c.h.b16 %v2115
    %v2462 = vunpack.c.l.b16 %v2116
    %v2463 = vunpack.c.h.b16 %v2116
    %v2464 = vunpack.c.l.b16 %v2117
    %v2465 = vunpack.c.h.b16 %v2117
    %v2466 = vunpack.c.l.b16 %v2118
    %v2467 = vunpack.c.h.b16 %v2118
    %v2468 = vunpack.c.l.b16 %v2119
    %v2469 = vunpack.c.h.b16 %v2119
    %v2470 = vunpack.c.l.b16 %v2120
    %v2471 = vunpack.c.h.b16 %v2120
    %v2472 = vunpack.c.l.b16 %v2121
    %v2473 = vunpack.c.h.b16 %v2121
    %v2474 = vunpack.c.l.b16 %v2122
    %v2475 = vunpack.c.h.b16 %v2122
    %v2476 = vunpack.c.l.b16 %v2123
    %v2477 = vunpack.c.h.b16 %v2123
    %v2478 = vunpack.c.l.b16 %v2124
    %v2479 = vunpack.c.h.b16 %v2124
    %v2480 = vunpack.c.l.b16 %v2125
    %v2481 = vunpack.c.h.b16 %v2125
    %v2482 = vunpack.c.l.b16 %v2126
    %v2483 = vunpack.c.h.b16 %v2126
    %v2484 = vunpack.c.l.b16 %v2127
    %v2485 = vunpack.c.h.b16 %v2127
    %v2486 = vunpack.c.l.b16 %v2128
    %v2487 = vunpack.c.h.b16 %v2128
    %v2488 = vunpack.c.l.b16 %v2129
    %v2489 = vunpack.c.h.b16 %v2129
    %v2490 = vunpack.c.l.b16 %v2130
    %v2491 = vunpack.c.h.b16 %v2130
    %v2492 = vunpack.c.l.b16 %v2131
    %v2493 = vunpack.c.h.b16 %v2131
    %v2494 = vunpack.c.l.b16 %v2132
    %v2495 = vunpack.c.h.b16 %v2132
    %v2496 = vunpack.c.l.b16 %v2133
    %v2497 = vunpack.c.h.b16 %v2133
    %v2498 = vunpack.c.l.b16 %v2134
    %v2499 = vunpack.c.h.b16 %v2134
    %v2500 = vunpack.c.l.b16 %v2135
    %v2501 = vunpack.c.h.b16 %v2135
    %v2502 = vunpack.c.l.b16 %v2136
    %v2503 = vunpack.c.h.b16 %v2136
    %v2504 = vunpack.c.l.b16 %v2137
    %v2505 = vunpack.c.h.b16 %v2137
    %v2506 = vunpack.c.l.b16 %v2138
    %v2507 = vunpack.c.h.b16 %v2138
    %v2508 = vunpack.c.l.b16 %v2139
    %v2509 = vunpack.c.h.b16 %v2139
    %v2510 = vunpack.c.l.b16 %v2140
    %v2511 = vunpack.c.h.b16 %v2140
    %v2512 = vunpack.c.l.b16 %v2141
    %v2513 = vunpack.c.h.b16 %v2141
    %v2514 = vunpack.c.l.b16 %v2142
    %v2515 = vunpack.c.h.b16 %v2142
    %v2516 = vunpack.c.l.b16 %v2143
    %v2517 = vunpack.c.h.b16 %v2143
    %v2518 = vunpack.c.l.b16 %v2144
    %v2519 = vunpack.c.h.b16 %v2144
    %v2520 = vunpack.c.l.b16 %v2145
    %v2521 = vunpack.c.h.b16 %v2145
    %v2522 = vunpack.c.l.b16 %v2146
    %v2523 = vunpack.c.h.b16 %v2146
    %v2524 = vunpack.c.l.b16 %v2147
    %v2525 = vunpack.c.h.b16 %v2147
    %v2526 = vunpack.c.l.b16 %v2148
    %v2527 = vunpack.c.h.b16 %v2148
    %v2528 = vunpack.c.l.b16 %v2149
    %v2529 = vunpack.c.h.b16 %v2149
    %v2530 = vunpack.c.l.b16 %v2150
    %v2531 = vunpack.c.h.b16 %v2150
    %v2532 = vunpack.c.l.b16 %v2151
    %v2533 = vunpack.c.h.b16 %v2151
    %v2534 = vunpack.c.l.b16 %v2152
    %v2535 = vunpack.c.h.b16 %v2152
    %v2536 = vunpack.c.l.b16 %v2153
    %v2537 = vunpack.c.h.b16 %v2153
    %v2538 = vunpack.c.l.b16 %v2154
    %v2539 = vunpack.c.h.b16 %v2154
    %v2540 = vunpack.c.l.b16 %v2155
    %v2541 = vunpack.c.h.b16 %v2155
    %v2542 = vunpack.c.l.b16 %v2156
    %v2543 = vunpack.c.h.b16 %v2156
    %v2544 = vunpack.c.l.b16 %v2157
    %v2545 = vunpack.c.h.b16 %v2157
    %v2546 = vunpack.c.l.b16 %v2158
    %v2547 = vunpack.c.h.b16 %v2158
    %v2548 = vunpack.c.l.b16 %v2159
    %v2549 = vunpack.c.h.b16 %v2159
    %v2550 = vunpack.c.l.b16 %v2160
    %v2551 = vunpack.c.h.b16 %v2160
    %v2552 = vunpack.c.l.b16 %v2161
    %v2553 = vunpack.c.h.b16 %v2161
    %v2554 = vunpack.c.l.b16 %v2162
    %v2555 = vunpack.c.h.b16 %v2162
    %v2556 = vunpack.c.l.b16 %v2163
    %v2557 = vunpack.c.h.b16 %v2163
    %v2558 = vunpack.c.l.b16 %v2164
    %v2559 = vunpack.c.h.b16 %v2164
    %v2560 = vunpack.c.l.b16 %v2165
    %v2561 = vunpack.c.h.b16 %v2165
    %v2562 = vunpack.c.l.b16 %v2166
    %v2563 = vunpack.c.h.b16 %v2166
    %v2564 = vunpack.c.l.b16 %v2167
    %v2565 = vunpack.c.h.b16 %v2167
    %v2566 = vunpack.c.l.b16 %v2168
    %v2567 = vunpack.c.h.b16 %v2168
    %v2568 = vunpack.c.l.b16 %v2169
    %v2569 = vunpack.c.h.b16 %v2169
    %v2570 = vunpack.c.l.b16 %v2170
    %v2571 = vunpack.c.h.b16 %v2170
    %v2572 = vunpack.c.l.b16 %v2171
    %v2573 = vunpack.c.h.b16 %v2171
    %v2574 = vunpack.c.l.b16 %v2172
    %v2575 = vunpack.c.h.b16 %v2172
    %v2576 = vunpack.c.l.b16 %v2173
    %v2577 = vunpack.c.h.b16 %v2173
    %v2578 = vunpack.c.l.b16 %v2174
    %v2579 = vunpack.c.h.b16 %v2174
    %v2580 = vunpack.c.l.b16 %v2175
    %v2581 = vunpack.c.h.b16 %v2175
    %v2582 = vpack.c.b16 %v2330, %v2326
    %v2583 = vpack.c.b16 %v2331, %v2327
    %v2584 = vpack.c.b16 %v2332, %v2328
    %v2585 = vpack.c.b16 %v2333, %v2329
    %v2586 = vpack.c.b16 %v2338, %v2334
    %v2587 = vpack.c.b16 %v2339, %v2335
    %v2588 = vpack.c.b16 %v2340, %v2336
    %v2589 = vpack.c.b16 %v2341, %v2337
    %v2590 = vpack.c.b16 %v2346, %v2342
    %v2591 = vpack.c.b16 %v2347, %v2343
    %v2592 = vpack.c.b16 %v2348, %v2344
    %v2593 = vpack.c.b16 %v2349, %v2345
    %v2594 = vpack.c.b16 %v2354, %v2350
    %v2595 = vpack.c.b16 %v2355, %v2351
    %v2596 = vpack.c.b16 %v2356, %v2352
    %v2597 = vpack.c.b16 %v2357, %v2353
    %v2598 = vpack.c.b16 %v2362, %v2358
    %v2599 = vpack.c.b16 %v2363, %v2359
    %v2600 = vpack.c.b16 %v2364, %v2360
    %v2601 = vpack.c.b16 %v2365, %v2361
    %v2602 = vpack.c.b16 %v2370, %v2366
    %v2603 = vpack.c.b16 %v2371, %v2367
    %v2604 = vpack.c.b16 %v2372, %v2368
    %v2605 = vpack.c.b16 %v2373, %v2369
    %v2606 = vpack.c.b16 %v2378, %v2374
    %v2607 = vpack.c.b16 %v2379, %v2375
    %v2608 = vpack.c.b16 %v2380, %v2376
    %v2609 = vpack.c.b16 %v2381, %v2377
    %v2610 = vpack.c.b16 %v2386, %v2382
    %v2611 = vpack.c.b16 %v2387, %v2383
    %v2612 = vpack.c.b16 %v2388, %v2384
    %v2613 = vpack.c.b16 %v2389, %v2385
    %v2614 = vpack.c.b16 %v2394, %v2390
    %v2615 = vpack.c.b16 %v2395, %v2391
    %v2616 = vpack.c.b16 %v2396, %v2392
    %v2617 = vpack.c.b16 %v2397, %v2393
    %v2618 = vpack.c.b16 %v2402, %v2398
    %v2619 = vpack.c.b16 %v2403, %v2399
    %v2620 = vpack.c.b16 %v2404, %v2400
    %v2621 = vpack.c.b16 %v2405, %v2401
    %v2622 = vpack.c.b16 %v2410, %v2406
    %v2623 = vpack.c.b16 %v2411, %v2407
    %v2624 = vpack.c.b16 %v2412, %v2408
    %v2625 = vpack.c.b16 %v2413, %v2409
    %v2626 = vpack.c.b16 %v2418, %v2414
    %v2627 = vpack.c.b16 %v2419, %v2415
    %v2628 = vpack.c.b16 %v2420, %v2416
    %v2629 = vpack.c.b16 %v2421, %v2417
    %v2630 = vpack.c.b16 %v2426, %v2422
    %v2631 = vpack.c.b16 %v2427, %v2423
    %v2632 = vpack.c.b16 %v2428, %v2424
    %v2633 = vpack.c.b16 %v2429, %v2425
    %v2634 = vpack.c.b16 %v2434, %v2430
    %v2635 = vpack.c.b16 %v2435, %v2431
    %v2636 = vpack.c.b16 %v2436, %v2432
    %v2637 = vpack.c.b16 %v2437, %v2433
    %v2638 = vpack.c.b16 %v2442, %v2438
    %v2639 = vpack.c.b16 %v2443, %v2439
    %v2640 = vpack.c.b16 %v2444, %v2440
    %v2641 = vpack.c.b16 %v2445, %v2441
    %v2642 = vpack.c.b16 %v2450, %v2446
    %v2643 = vpack.c.b16 %v2451, %v2447
    %v2644 = vpack.c.b16 %v2452, %v2448
    %v2645 = vpack.c.b16 %v2453, %v2449
    %v2646 = vpack.c.b16 %v2458, %v2454
    %v2647 = vpack.c.b16 %v2459, %v2455
    %v2648 = vpack.c.b16 %v2460, %v2456
    %v2649 = vpack.c.b16 %v2461, %v2457
    %v2650 = vpack.c.b16 %v2466, %v2462
    %v2651 = vpack.c.b16 %v2467, %v2463
    %v2652 = vpack.c.b16 %v2468, %v2464
    %v2653 = vpack.c.b16 %v2469, %v2465
    %v2654 = vpack.c.b16 %v2474, %v2470
    %v2655 = vpack.c.b16 %v2475, %v2471
    %v2656 = vpack.c.b16 %v2476, %v2472
    %v2657 = vpack.c.b16 %v2477, %v2473
    %v2658 = vpack.c.b16 %v2482, %v2478
    %v2659 = vpack.c.b16 %v2483, %v2479
    %v2660 = vpack.c.b16 %v2484, %v2480
    %v2661 = vpack.c.b16 %v2485, %v2481
    %v2662 = vpack.c.b16 %v2490, %v2486
    %v2663 = vpack.c.b16 %v2491, %v2487
    %v2664 = vpack.c.b16 %v2492, %v2488
    %v2665 = vpack.c.b16 %v2493, %v2489
    %v2666 = vpack.c.b16 %v2498, %v2494
    %v2667 = vpack.c.b16 %v2499, %v2495
    %v2668 = vpack.c.b16 %v2500, %v2496
    %v2669 = vpack.c.b16 %v2501, %v2497
    %v2670 = vpack.c.b16 %v2506, %v2502
    %v2671 = vpack.c.b16 %v2507, %v2503
    %v2672 = vpack.c.b16 %v2508, %v2504
    %v2673 = vpack.c.b16 %v2509, %v2505
    %v2674 = vpack.c.b16 %v2514, %v2510
    %v2675 = vpack.c.b16 %v2515, %v2511
    %v2676 = vpack.c.b16 %v2516, %v2512
    %v2677 = vpack.c.b16 %v2517, %v2513
    %v2678 = vpack.c.b16 %v2522, %v2518
    %v2679 = vpack.c.b16 %v2523, %v2519
    %v2680 = vpack.c.b16 %v2524, %v2520
    %v2681 = vpack.c.b16 %v2525, %v2521
    %v2682 = vpack.c.b16 %v2530, %v2526
    %v2683 = vpack.c.b16 %v2531, %v2527
    %v2684 = vpack.c.b16 %v2532, %v2528
    %v2685 = vpack.c.b16 %v2533, %v2529
    %v2686 = vpack.c.b16 %v2538, %v2534
    %v2687 = vpack.c.b16 %v2539, %v2535
    %v2688 = vpack.c.b16 %v2540, %v2536
    %v2689 = vpack.c.b16 %v2541, %v2537
    %v2690 = vpack.c.b16 %v2546, %v2542
    %v2691 = vpack.c.b16 %v2547, %v2543
    %v2692 = vpack.c.b16 %v2548, %v2544
    %v2693 = vpack.c.b16 %v2549, %v2545
    %v2694 = vpack.c.b16 %v2554, %v2550
    %v2695 = vpack.c.b16 %v2555, %v2551
    %v2696 = vpack.c.b16 %v2556, %v2552
    %v2697 = vpack.c.b16 %v2557, %v2553
    %v2698 = vpack.c.b16 %v2562, %v2558
    %v2699 = vpack.c.b16 %v2563, %v2559
    %v2700 = vpack.c.b16 %v2564, %v2560
    %v2701 = vpack.c.b16 %v2565, %v2561
    %v2702 = vpack.c.b16 %v2570, %v2566
    %v2703 = vpack.c.b16 %v2571, %v2567
    %v2704 = vpack.c.b16 %v2572, %v2568
    %v2705 = vpack.c.b16 %v2573, %v2569
    %v2706 = vpack.c.b16 %v2578, %v2574
    %v2707 = vpack.c.b16 %v2579, %v2575
    %v2708 = vpack.c.b16 %v2580, %v2576
    %v2709 = vpack.c.b16 %v2581, %v2577
    %2838 = vmatprep.subr.bf16.mxu0 %v2583
    %2839 = vmatpush1.bf16.msra.mxu0 %v2582
    %2840 = vmatprep.subr.bf16.mxu0 %v2587
    %2841 = vmatpush1.bf16.msra.mxu0 %v2586
    %2842 = vmatprep.subr.bf16.mxu0 %v2591
    %2843 = vmatpush1.bf16.msra.mxu0 %v2590
    %2844 = vmatprep.subr.bf16.mxu0 %v2595
    %2845 = vmatpush1.bf16.msra.mxu0 %v2594
    %2846 = vmatprep.subr.bf16.mxu0 %v2599
    %2847 = vmatpush1.bf16.msra.mxu0 %v2598
    %2848 = vmatprep.subr.bf16.mxu0 %v2603
    %2849 = vmatpush1.bf16.msra.mxu0 %v2602
    %2850 = vmatprep.subr.bf16.mxu0 %v2607
    %2851 = vmatpush1.bf16.msra.mxu0 %v2606
    %2852 = vmatprep.subr.bf16.mxu0 %v2611
    %2853 = vmatpush1.bf16.msra.mxu0 %v2610
    %2854 = vmatprep.subr.bf16.mxu0 %v2615
    %2855 = vmatpush1.bf16.msra.mxu0 %v2614
    %2856 = vmatprep.subr.bf16.mxu0 %v2619
    %2857 = vmatpush1.bf16.msra.mxu0 %v2618
    %2858 = vmatprep.subr.bf16.mxu0 %v2623
    %2859 = vmatpush1.bf16.msra.mxu0 %v2622
    %2860 = vmatprep.subr.bf16.mxu0 %v2627
    %2861 = vmatpush1.bf16.msra.mxu0 %v2626
    %2862 = vmatprep.subr.bf16.mxu0 %v2631
    %2863 = vmatpush1.bf16.msra.mxu0 %v2630
    %2864 = vmatprep.subr.bf16.mxu0 %v2635
    %2865 = vmatpush1.bf16.msra.mxu0 %v2634
    %2866 = vmatprep.subr.bf16.mxu0 %v2639
    %2867 = vmatpush1.bf16.msra.mxu0 %v2638
    %2868 = vmatprep.subr.bf16.mxu0 %v2643
    %2869 = vmatpush1.bf16.msra.mxu0 %v2642
    %2870 = vmatprep.mubr.bf16.mxu0 %v123
    %2871 = vmatmul.mubr.bf16.gmra.mrb[0].mxu0 %v122
    %v2872 = vpop.f32.mrb[0].mxu0
    %v2873 = vadd.f32 %v2181, %v2872
    %v2874 = vpop.f32.mrb[0].mxu0
    %v2875 = vadd.f32 %v2185, %v2874
    %v2876 = vpop.f32.mrb[0].mxu0
    %v2877 = vadd.f32 %v2181, %v2876
    %v2878 = vpop.f32.mrb[0].mxu0
    %v2879 = vadd.f32 %v2185, %v2878
    %2880 = vdwg.mxu0
    %2881 = vmatprep.subr.bf16.mxu0 %v2647
    %2882 = vmatpush1.bf16.msra.mxu0 %v2646
    %2883 = vmatprep.subr.bf16.mxu0 %v2651
    %2884 = vmatpush1.bf16.msra.mxu0 %v2650
    %2885 = vmatprep.subr.bf16.mxu0 %v2655
    %2886 = vmatpush1.bf16.msra.mxu0 %v2654
    %2887 = vmatprep.subr.bf16.mxu0 %v2659
    %2888 = vmatpush1.bf16.msra.mxu0 %v2658
    %2889 = vmatprep.subr.bf16.mxu0 %v2663
    %2890 = vmatpush1.bf16.msra.mxu0 %v2662
    %2891 = vmatprep.subr.bf16.mxu0 %v2667
    %2892 = vmatpush1.bf16.msra.mxu0 %v2666
    %2893 = vmatprep.subr.bf16.mxu0 %v2671
    %2894 = vmatpush1.bf16.msra.mxu0 %v2670
    %2895 = vmatprep.subr.bf16.mxu0 %v2675
    %2896 = vmatpush1.bf16.msra.mxu0 %v2674
    %2897 = vmatprep.subr.bf16.mxu0 %v2679
    %2898 = vmatpush1.bf16.msra.mxu0 %v2678
    %2899 = vmatprep.subr.bf16.mxu0 %v2683
    %2900 = vmatpush1.bf16.msra.mxu0 %v2682
    %2901 = vmatprep.subr.bf16.mxu0 %v2687
    %2902 = vmatpush1.bf16.msra.mxu0 %v2686
    %2903 = vmatprep.subr.bf16.mxu0 %v2691
    %2904 = vmatpush1.bf16.msra.mxu0 %v2690
    %2905 = vmatprep.subr.bf16.mxu0 %v2695
    %2906 = vmatpush1.bf16.msra.mxu0 %v2694
    %2907 = vmatprep.subr.bf16.mxu0 %v2699
    %2908 = vmatpush1.bf16.msra.mxu0 %v2698
    %2909 = vmatprep.subr.bf16.mxu0 %v2703
    %2910 = vmatpush1.bf16.msra.mxu0 %v2702
    %2911 = vmatprep.subr.bf16.mxu0 %v2707
    %2912 = vmatpush1.bf16.msra.mxu0 %v2706
    %2913 = vmatprep.mubr.bf16.mxu0 %v125
    %2914 = vmatmul.mubr.bf16.gmra.mrb[0].mxu0 %v124
    %v2915 = vpop.f32.mrb[0].mxu0
    %v2916 = vadd.f32 %v2873, %v2915
    %v2917 = vpop.f32.mrb[0].mxu0
    %v2918 = vadd.f32 %v2875, %v2917
    %v2919 = vpop.f32.mrb[0].mxu0
    %v2920 = vadd.f32 %v2877, %v2919
    %v2921 = vpop.f32.mrb[0].mxu0
    %v2922 = vadd.f32 %v2879, %v2921
    %2923 = vdwg.mxu0
    %2924 = vmatprep.subr.bf16.mxu0 %v2585
    %2925 = vmatpush1.bf16.msra.mxu0 %v2584
    %2926 = vmatprep.subr.bf16.mxu0 %v2589
    %2927 = vmatpush1.bf16.msra.mxu0 %v2588
    %2928 = vmatprep.subr.bf16.mxu0 %v2593
    %2929 = vmatpush1.bf16.msra.mxu0 %v2592
    %2930 = vmatprep.subr.bf16.mxu0 %v2597
    %2931 = vmatpush1.bf16.msra.mxu0 %v2596
    %2932 = vmatprep.subr.bf16.mxu0 %v2601
    %2933 = vmatpush1.bf16.msra.mxu0 %v2600
    %2934 = vmatprep.subr.bf16.mxu0 %v2605
    %2935 = vmatpush1.bf16.msra.mxu0 %v2604
    %2936 = vmatprep.subr.bf16.mxu0 %v2609
    %2937 = vmatpush1.bf16.msra.mxu0 %v2608
    %2938 = vmatprep.subr.bf16.mxu0 %v2613
    %2939 = vmatpush1.bf16.msra.mxu0 %v2612
    %2940 = vmatprep.subr.bf16.mxu0 %v2617
    %2941 = vmatpush1.bf16.msra.mxu0 %v2616
    %2942 = vmatprep.subr.bf16.mxu0 %v2621
    %2943 = vmatpush1.bf16.msra.mxu0 %v2620
    %2944 = vmatprep.subr.bf16.mxu0 %v2625
    %2945 = vmatpush1.bf16.msra.mxu0 %v2624
    %2946 = vmatprep.subr.bf16.mxu0 %v2629
    %2947 = vmatpush1.bf16.msra.mxu0 %v2628
    %2948 = vmatprep.subr.bf16.mxu0 %v2633
    %2949 = vmatpush1.bf16.msra.mxu0 %v2632
    %2950 = vmatprep.subr.bf16.mxu0 %v2637
    %2951 = vmatpush1.bf16.msra.mxu0 %v2636
    %2952 = vmatprep.subr.bf16.mxu0 %v2641
    %2953 = vmatpush1.bf16.msra.mxu0 %v2640
    %2954 = vmatprep.subr.bf16.mxu0 %v2645
    %2955 = vmatpush1.bf16.msra.mxu0 %v2644
    %2956 = vmatprep.mubr.bf16.mxu0 %v123
    %2957 = vmatmul.mubr.bf16.gmra.mrb[0].mxu0 %v122
    %v2958 = vpop.f32.mrb[0].mxu0
    %v2959 = vadd.f32 %v2189, %v2958
    %v2960 = vpop.f32.mrb[0].mxu0
    %v2961 = vadd.f32 %v2193, %v2960
    %v2962 = vpop.f32.mrb[0].mxu0
    %v2963 = vadd.f32 %v2189, %v2962
    %v2964 = vpop.f32.mrb[0].mxu0
    %v2965 = vadd.f32 %v2193, %v2964
    %2966 = vdwg.mxu0
    %2967 = vmatprep.subr.bf16.mxu0 %v2649
    %2968 = vmatpush1.bf16.msra.mxu0 %v2648
    %2969 = vmatprep.subr.bf16.mxu0 %v2653
    %2970 = vmatpush1.bf16.msra.mxu0 %v2652
    %2971 = vmatprep.subr.bf16.mxu0 %v2657
    %2972 = vmatpush1.bf16.msra.mxu0 %v2656
    %2973 = vmatprep.subr.bf16.mxu0 %v2661
    %2974 = vmatpush1.bf16.msra.mxu0 %v2660
    %2975 = vmatprep.subr.bf16.mxu0 %v2665
    %2976 = vmatpush1.bf16.msra.mxu0 %v2664
    %2977 = vmatprep.subr.bf16.mxu0 %v2669
    %2978 = vmatpush1.bf16.msra.mxu0 %v2668
    %2979 = vmatprep.subr.bf16.mxu0 %v2673
    %2980 = vmatpush1.bf16.msra.mxu0 %v2672
    %2981 = vmatprep.subr.bf16.mxu0 %v2677
    %2982 = vmatpush1.bf16.msra.mxu0 %v2676
    %2983 = vmatprep.subr.bf16.mxu0 %v2681
    %2984 = vmatpush1.bf16.msra.mxu0 %v2680
    %2985 = vmatprep.subr.bf16.mxu0 %v2685
    %2986 = vmatpush1.bf16.msra.mxu0 %v2684
    %2987 = vmatprep.subr.bf16.mxu0 %v2689
    %2988 = vmatpush1.bf16.msra.mxu0 %v2688
    %2989 = vmatprep.subr.bf16.mxu0 %v2693
    %2990 = vmatpush1.bf16.msra.mxu0 %v2692
    %2991 = vmatprep.subr.bf16.mxu0 %v2697
    %2992 = vmatpush1.bf16.msra.mxu0 %v2696
    %2993 = vmatprep.subr.bf16.mxu0 %v2701
    %2994 = vmatpush1.bf16.msra.mxu0 %v2700
    %2995 = vmatprep.subr.bf16.mxu0 %v2705
    %2996 = vmatpush1.bf16.msra.mxu0 %v2704
    %2997 = vmatprep.subr.bf16.mxu0 %v2709
    %2998 = vmatpush1.bf16.msra.mxu0 %v2708
    %2999 = vmatprep.mubr.bf16.mxu0 %v125
    %3000 = vmatmul.mubr.bf16.gmra.mrb[0].mxu0 %v124
    %v3001 = vpop.f32.mrb[0].mxu0
    %v3002 = vadd.f32 %v2959, %v3001
    %v3003 = vpop.f32.mrb[0].mxu0
    %v3004 = vadd.f32 %v2961, %v3003
    %v3005 = vpop.f32.mrb[0].mxu0
    %v3006 = vadd.f32 %v2963, %v3005
    %v3007 = vpop.f32.mrb[0].mxu0
    %v3008 = vadd.f32 %v2965, %v3007
    %3009 = vdwg.mxu0
    %v3010 = vmax.f32 %v2916, 0.0
    %v3011 = vmax.f32 %v2918, 0.0
    %v3012 = vmax.f32 %v3002, 0.0
    %v3013 = vmax.f32 %v3004, 0.0
    %v3014 = vmax.f32 %v2920, 0.0
    %v3015 = vmax.f32 %v2922, 0.0
    %v3016 = vmax.f32 %v3006, 0.0
    %v3017 = vmax.f32 %v3008, 0.0
    %v3018 = vpack.c.bf16 %v3014, %v3010
    %v3019 = vpack.c.bf16 %v3015, %v3011
    %v3020 = vpack.c.bf16 %v3016, %v3012
    %v3021 = vpack.c.bf16 %v3017, %v3013
    %v3022 = vld [vmem:[#allocation9 + $0x400] sm:$0xff]
    %v3023 = vld [vmem:[#allocation9 + $0x408] sm:$0xff]
    %v3024 = vld [vmem:[#allocation9 + $0x410] sm:$0xff]
    %v3025 = vld [vmem:[#allocation9 + $0x418] sm:$0xff]
    %v3026 = vld [vmem:[#allocation9 + $0x420] sm:$0xff]
    %v3027 = vld [vmem:[#allocation9 + $0x428] sm:$0xff]
    %v3028 = vld [vmem:[#allocation9 + $0x430] sm:$0xff]
    %v3029 = vld [vmem:[#allocation9 + $0x438] sm:$0xff]
    %v3030 = vld [vmem:[#allocation9 + $0x440] sm:$0xff]
    %v3031 = vld [vmem:[#allocation9 + $0x448] sm:$0xff]
    %v3032 = vld [vmem:[#allocation9 + $0x450] sm:$0xff]
    %v3033 = vld [vmem:[#allocation9 + $0x458] sm:$0xff]
    %v3034 = vld [vmem:[#allocation9 + $0x460] sm:$0xff]
    %v3035 = vld [vmem:[#allocation9 + $0x468] sm:$0xff]
    %v3036 = vld [vmem:[#allocation9 + $0x470] sm:$0xff]
    %v3037 = vld [vmem:[#allocation9 + $0x478] sm:$0xff]
    %v3038 = vld [vmem:[#allocation9 + $0x480] sm:$0xff]
    %v3039 = vld [vmem:[#allocation9 + $0x488] sm:$0xff]
    %v3040 = vld [vmem:[#allocation9 + $0x490] sm:$0xff]
    %v3041 = vld [vmem:[#allocation9 + $0x498] sm:$0xff]
    %v3042 = vld [vmem:[#allocation9 + $0x4a0] sm:$0xff]
    %v3043 = vld [vmem:[#allocation9 + $0x4a8] sm:$0xff]
    %v3044 = vld [vmem:[#allocation9 + $0x4b0] sm:$0xff]
    %v3045 = vld [vmem:[#allocation9 + $0x4b8] sm:$0xff]
    %v3046 = vld [vmem:[#allocation9 + $0x4c0] sm:$0xff]
    %v3047 = vld [vmem:[#allocation9 + $0x4c8] sm:$0xff]
    %v3048 = vld [vmem:[#allocation9 + $0x4d0] sm:$0xff]
    %v3049 = vld [vmem:[#allocation9 + $0x4d8] sm:$0xff]
    %v3050 = vld [vmem:[#allocation9 + $0x4e0] sm:$0xff]
    %v3051 = vld [vmem:[#allocation9 + $0x4e8] sm:$0xff]
    %v3052 = vld [vmem:[#allocation9 + $0x4f0] sm:$0xff]
    %v3053 = vld [vmem:[#allocation9 + $0x4f8] sm:$0xff]
    %v3054 = vld [vmem:[#allocation9 + $0x500] sm:$0xff]
    %v3055 = vld [vmem:[#allocation9 + $0x508] sm:$0xff]
    %v3056 = vld [vmem:[#allocation9 + $0x510] sm:$0xff]
    %v3057 = vld [vmem:[#allocation9 + $0x518] sm:$0xff]
    %v3058 = vld [vmem:[#allocation9 + $0x520] sm:$0xff]
    %v3059 = vld [vmem:[#allocation9 + $0x528] sm:$0xff]
    %v3060 = vld [vmem:[#allocation9 + $0x530] sm:$0xff]
    %v3061 = vld [vmem:[#allocation9 + $0x538] sm:$0xff]
    %v3062 = vld [vmem:[#allocation9 + $0x540] sm:$0xff]
    %v3063 = vld [vmem:[#allocation9 + $0x548] sm:$0xff]
    %v3064 = vld [vmem:[#allocation9 + $0x550] sm:$0xff]
    %v3065 = vld [vmem:[#allocation9 + $0x558] sm:$0xff]
    %v3066 = vld [vmem:[#allocation9 + $0x560] sm:$0xff]
    %v3067 = vld [vmem:[#allocation9 + $0x568] sm:$0xff]
    %v3068 = vld [vmem:[#allocation9 + $0x570] sm:$0xff]
    %v3069 = vld [vmem:[#allocation9 + $0x578] sm:$0xff]
    %v3070 = vld [vmem:[#allocation9 + $0x580] sm:$0xff]
    %v3071 = vld [vmem:[#allocation9 + $0x588] sm:$0xff]
    %v3072 = vld [vmem:[#allocation9 + $0x590] sm:$0xff]
    %v3073 = vld [vmem:[#allocation9 + $0x598] sm:$0xff]
    %v3074 = vld [vmem:[#allocation9 + $0x5a0] sm:$0xff]
    %v3075 = vld [vmem:[#allocation9 + $0x5a8] sm:$0xff]
    %v3076 = vld [vmem:[#allocation9 + $0x5b0] sm:$0xff]
    %v3077 = vld [vmem:[#allocation9 + $0x5b8] sm:$0xff]
    %v3078 = vld [vmem:[#allocation9 + $0x5c0] sm:$0xff]
    %v3079 = vld [vmem:[#allocation9 + $0x5c8] sm:$0xff]
    %v3080 = vld [vmem:[#allocation9 + $0x5d0] sm:$0xff]
    %v3081 = vld [vmem:[#allocation9 + $0x5d8] sm:$0xff]
    %v3082 = vld [vmem:[#allocation9 + $0x5e0] sm:$0xff]
    %v3083 = vld [vmem:[#allocation9 + $0x5e8] sm:$0xff]
    %v3084 = vld [vmem:[#allocation9 + $0x5f0] sm:$0xff]
    %v3085 = vld [vmem:[#allocation9 + $0x5f8] sm:$0xff]
    %v3086 = vld [vmem:[#allocation9 + $0x600] sm:$0xff]
    %v3087 = vld [vmem:[#allocation9 + $0x608] sm:$0xff]
    %v3088 = vld [vmem:[#allocation9 + $0x610] sm:$0xff]
    %v3089 = vld [vmem:[#allocation9 + $0x618] sm:$0xff]
    %v3090 = vld [vmem:[#allocation9 + $0x620] sm:$0xff]
    %v3091 = vld [vmem:[#allocation9 + $0x628] sm:$0xff]
    %v3092 = vld [vmem:[#allocation9 + $0x630] sm:$0xff]
    %v3093 = vld [vmem:[#allocation9 + $0x638] sm:$0xff]
    %v3094 = vld [vmem:[#allocation9 + $0x640] sm:$0xff]
    %v3095 = vld [vmem:[#allocation9 + $0x648] sm:$0xff]
    %v3096 = vld [vmem:[#allocation9 + $0x650] sm:$0xff]
    %v3097 = vld [vmem:[#allocation9 + $0x658] sm:$0xff]
    %v3098 = vld [vmem:[#allocation9 + $0x660] sm:$0xff]
    %v3099 = vld [vmem:[#allocation9 + $0x668] sm:$0xff]
    %v3100 = vld [vmem:[#allocation9 + $0x670] sm:$0xff]
    %v3101 = vld [vmem:[#allocation9 + $0x678] sm:$0xff]
    %v3102 = vld [vmem:[#allocation9 + $0x680] sm:$0xff]
    %v3103 = vld [vmem:[#allocation9 + $0x688] sm:$0xff]
    %v3104 = vld [vmem:[#allocation9 + $0x690] sm:$0xff]
    %v3105 = vld [vmem:[#allocation9 + $0x698] sm:$0xff]
    %v3106 = vld [vmem:[#allocation9 + $0x6a0] sm:$0xff]
    %v3107 = vld [vmem:[#allocation9 + $0x6a8] sm:$0xff]
    %v3108 = vld [vmem:[#allocation9 + $0x6b0] sm:$0xff]
    %v3109 = vld [vmem:[#allocation9 + $0x6b8] sm:$0xff]
    %v3110 = vld [vmem:[#allocation9 + $0x6c0] sm:$0xff]
    %v3111 = vld [vmem:[#allocation9 + $0x6c8] sm:$0xff]
    %v3112 = vld [vmem:[#allocation9 + $0x6d0] sm:$0xff]
    %v3113 = vld [vmem:[#allocation9 + $0x6d8] sm:$0xff]
    %v3114 = vld [vmem:[#allocation9 + $0x6e0] sm:$0xff]
    %v3115 = vld [vmem:[#allocation9 + $0x6e8] sm:$0xff]
    %v3116 = vld [vmem:[#allocation9 + $0x6f0] sm:$0xff]
    %v3117 = vld [vmem:[#allocation9 + $0x6f8] sm:$0xff]
    %v3118 = vld [vmem:[#allocation9 + $0x700] sm:$0xff]
    %v3119 = vld [vmem:[#allocation9 + $0x708] sm:$0xff]
    %v3120 = vld [vmem:[#allocation9 + $0x710] sm:$0xff]
    %v3121 = vld [vmem:[#allocation9 + $0x718] sm:$0xff]
    %v3122 = vld [vmem:[#allocation9 + $0x720] sm:$0xff]
    %v3123 = vld [vmem:[#allocation9 + $0x728] sm:$0xff]
    %v3124 = vld [vmem:[#allocation9 + $0x730] sm:$0xff]
    %v3125 = vld [vmem:[#allocation9 + $0x738] sm:$0xff]
    %v3126 = vld [vmem:[#allocation9 + $0x740] sm:$0xff]
    %v3127 = vld [vmem:[#allocation9 + $0x748] sm:$0xff]
    %v3128 = vld [vmem:[#allocation9 + $0x750] sm:$0xff]
    %v3129 = vld [vmem:[#allocation9 + $0x758] sm:$0xff]
    %v3130 = vld [vmem:[#allocation9 + $0x760] sm:$0xff]
    %v3131 = vld [vmem:[#allocation9 + $0x768] sm:$0xff]
    %v3132 = vld [vmem:[#allocation9 + $0x770] sm:$0xff]
    %v3133 = vld [vmem:[#allocation9 + $0x778] sm:$0xff]
    %v3134 = vld [vmem:[#allocation9 + $0x780] sm:$0xff]
    %v3135 = vld [vmem:[#allocation9 + $0x788] sm:$0xff]
    %v3136 = vld [vmem:[#allocation9 + $0x790] sm:$0xff]
    %v3137 = vld [vmem:[#allocation9 + $0x798] sm:$0xff]
    %v3138 = vld [vmem:[#allocation9 + $0x7a0] sm:$0xff]
    %v3139 = vld [vmem:[#allocation9 + $0x7a8] sm:$0xff]
    %v3140 = vld [vmem:[#allocation9 + $0x7b0] sm:$0xff]
    %v3141 = vld [vmem:[#allocation9 + $0x7b8] sm:$0xff]
    %v3142 = vld [vmem:[#allocation9 + $0x7c0] sm:$0xff]
    %v3143 = vld [vmem:[#allocation9 + $0x7c8] sm:$0xff]
    %v3144 = vld [vmem:[#allocation9 + $0x7d0] sm:$0xff]
    %v3145 = vld [vmem:[#allocation9 + $0x7d8] sm:$0xff]
    %v3146 = vld [vmem:[#allocation9 + $0x7e0] sm:$0xff]
    %v3147 = vld [vmem:[#allocation9 + $0x7e8] sm:$0xff]
    %v3148 = vld [vmem:[#allocation9 + $0x7f0] sm:$0xff]
    %v3149 = vld [vmem:[#allocation9 + $0x7f8] sm:$0xff]
    %v3278 = vunpack.c.l.b16 %v3022
    %v3279 = vunpack.c.h.b16 %v3022
    %v3280 = vunpack.c.l.b16 %v3023
    %v3281 = vunpack.c.h.b16 %v3023
    %v3282 = vunpack.c.l.b16 %v3024
    %v3283 = vunpack.c.h.b16 %v3024
    %v3284 = vunpack.c.l.b16 %v3025
    %v3285 = vunpack.c.h.b16 %v3025
    %v3286 = vunpack.c.l.b16 %v3026
    %v3287 = vunpack.c.h.b16 %v3026
    %v3288 = vunpack.c.l.b16 %v3027
    %v3289 = vunpack.c.h.b16 %v3027
    %v3290 = vunpack.c.l.b16 %v3028
    %v3291 = vunpack.c.h.b16 %v3028
    %v3292 = vunpack.c.l.b16 %v3029
    %v3293 = vunpack.c.h.b16 %v3029
    %v3294 = vunpack.c.l.b16 %v3030
    %v3295 = vunpack.c.h.b16 %v3030
    %v3296 = vunpack.c.l.b16 %v3031
    %v3297 = vunpack.c.h.b16 %v3031
    %v3298 = vunpack.c.l.b16 %v3032
    %v3299 = vunpack.c.h.b16 %v3032
    %v3300 = vunpack.c.l.b16 %v3033
    %v3301 = vunpack.c.h.b16 %v3033
    %v3302 = vunpack.c.l.b16 %v3034
    %v3303 = vunpack.c.h.b16 %v3034
    %v3304 = vunpack.c.l.b16 %v3035
    %v3305 = vunpack.c.h.b16 %v3035
    %v3306 = vunpack.c.l.b16 %v3036
    %v3307 = vunpack.c.h.b16 %v3036
    %v3308 = vunpack.c.l.b16 %v3037
    %v3309 = vunpack.c.h.b16 %v3037
    %v3310 = vunpack.c.l.b16 %v3038
    %v3311 = vunpack.c.h.b16 %v3038
    %v3312 = vunpack.c.l.b16 %v3039
    %v3313 = vunpack.c.h.b16 %v3039
    %v3314 = vunpack.c.l.b16 %v3040
    %v3315 = vunpack.c.h.b16 %v3040
    %v3316 = vunpack.c.l.b16 %v3041
    %v3317 = vunpack.c.h.b16 %v3041
    %v3318 = vunpack.c.l.b16 %v3042
    %v3319 = vunpack.c.h.b16 %v3042
    %v3320 = vunpack.c.l.b16 %v3043
    %v3321 = vunpack.c.h.b16 %v3043
    %v3322 = vunpack.c.l.b16 %v3044
    %v3323 = vunpack.c.h.b16 %v3044
    %v3324 = vunpack.c.l.b16 %v3045
    %v3325 = vunpack.c.h.b16 %v3045
    %v3326 = vunpack.c.l.b16 %v3046
    %v3327 = vunpack.c.h.b16 %v3046
    %v3328 = vunpack.c.l.b16 %v3047
    %v3329 = vunpack.c.h.b16 %v3047
    %v3330 = vunpack.c.l.b16 %v3048
    %v3331 = vunpack.c.h.b16 %v3048
    %v3332 = vunpack.c.l.b16 %v3049
    %v3333 = vunpack.c.h.b16 %v3049
    %v3334 = vunpack.c.l.b16 %v3050
    %v3335 = vunpack.c.h.b16 %v3050
    %v3336 = vunpack.c.l.b16 %v3051
    %v3337 = vunpack.c.h.b16 %v3051
    %v3338 = vunpack.c.l.b16 %v3052
    %v3339 = vunpack.c.h.b16 %v3052
    %v3340 = vunpack.c.l.b16 %v3053
    %v3341 = vunpack.c.h.b16 %v3053
    %v3342 = vunpack.c.l.b16 %v3054
    %v3343 = vunpack.c.h.b16 %v3054
    %v3344 = vunpack.c.l.b16 %v3055
    %v3345 = vunpack.c.h.b16 %v3055
    %v3346 = vunpack.c.l.b16 %v3056
    %v3347 = vunpack.c.h.b16 %v3056
    %v3348 = vunpack.c.l.b16 %v3057
    %v3349 = vunpack.c.h.b16 %v3057
    %v3350 = vunpack.c.l.b16 %v3058
    %v3351 = vunpack.c.h.b16 %v3058
    %v3352 = vunpack.c.l.b16 %v3059
    %v3353 = vunpack.c.h.b16 %v3059
    %v3354 = vunpack.c.l.b16 %v3060
    %v3355 = vunpack.c.h.b16 %v3060
    %v3356 = vunpack.c.l.b16 %v3061
    %v3357 = vunpack.c.h.b16 %v3061
    %v3358 = vunpack.c.l.b16 %v3062
    %v3359 = vunpack.c.h.b16 %v3062
    %v3360 = vunpack.c.l.b16 %v3063
    %v3361 = vunpack.c.h.b16 %v3063
    %v3362 = vunpack.c.l.b16 %v3064
    %v3363 = vunpack.c.h.b16 %v3064
    %v3364 = vunpack.c.l.b16 %v3065
    %v3365 = vunpack.c.h.b16 %v3065
    %v3366 = vunpack.c.l.b16 %v3066
    %v3367 = vunpack.c.h.b16 %v3066
    %v3368 = vunpack.c.l.b16 %v3067
    %v3369 = vunpack.c.h.b16 %v3067
    %v3370 = vunpack.c.l.b16 %v3068
    %v3371 = vunpack.c.h.b16 %v3068
    %v3372 = vunpack.c.l.b16 %v3069
    %v3373 = vunpack.c.h.b16 %v3069
    %v3374 = vunpack.c.l.b16 %v3070
    %v3375 = vunpack.c.h.b16 %v3070
    %v3376 = vunpack.c.l.b16 %v3071
    %v3377 = vunpack.c.h.b16 %v3071
    %v3378 = vunpack.c.l.b16 %v3072
    %v3379 = vunpack.c.h.b16 %v3072
    %v3380 = vunpack.c.l.b16 %v3073
    %v3381 = vunpack.c.h.b16 %v3073
    %v3382 = vunpack.c.l.b16 %v3074
    %v3383 = vunpack.c.h.b16 %v3074
    %v3384 = vunpack.c.l.b16 %v3075
    %v3385 = vunpack.c.h.b16 %v3075
    %v3386 = vunpack.c.l.b16 %v3076
    %v3387 = vunpack.c.h.b16 %v3076
    %v3388 = vunpack.c.l.b16 %v3077
    %v3389 = vunpack.c.h.b16 %v3077
    %v3390 = vunpack.c.l.b16 %v3078
    %v3391 = vunpack.c.h.b16 %v3078
    %v3392 = vunpack.c.l.b16 %v3079
    %v3393 = vunpack.c.h.b16 %v3079
    %v3394 = vunpack.c.l.b16 %v3080
    %v3395 = vunpack.c.h.b16 %v3080
    %v3396 = vunpack.c.l.b16 %v3081
    %v3397 = vunpack.c.h.b16 %v3081
    %v3398 = vunpack.c.l.b16 %v3082
    %v3399 = vunpack.c.h.b16 %v3082
    %v3400 = vunpack.c.l.b16 %v3083
    %v3401 = vunpack.c.h.b16 %v3083
    %v3402 = vunpack.c.l.b16 %v3084
    %v3403 = vunpack.c.h.b16 %v3084
    %v3404 = vunpack.c.l.b16 %v3085
    %v3405 = vunpack.c.h.b16 %v3085
    %v3406 = vunpack.c.l.b16 %v3086
    %v3407 = vunpack.c.h.b16 %v3086
    %v3408 = vunpack.c.l.b16 %v3087
    %v3409 = vunpack.c.h.b16 %v3087
    %v3410 = vunpack.c.l.b16 %v3088
    %v3411 = vunpack.c.h.b16 %v3088
    %v3412 = vunpack.c.l.b16 %v3089
    %v3413 = vunpack.c.h.b16 %v3089
    %v3414 = vunpack.c.l.b16 %v3090
    %v3415 = vunpack.c.h.b16 %v3090
    %v3416 = vunpack.c.l.b16 %v3091
    %v3417 = vunpack.c.h.b16 %v3091
    %v3418 = vunpack.c.l.b16 %v3092
    %v3419 = vunpack.c.h.b16 %v3092
    %v3420 = vunpack.c.l.b16 %v3093
    %v3421 = vunpack.c.h.b16 %v3093
    %v3422 = vunpack.c.l.b16 %v3094
    %v3423 = vunpack.c.h.b16 %v3094
    %v3424 = vunpack.c.l.b16 %v3095
    %v3425 = vunpack.c.h.b16 %v3095
    %v3426 = vunpack.c.l.b16 %v3096
    %v3427 = vunpack.c.h.b16 %v3096
    %v3428 = vunpack.c.l.b16 %v3097
    %v3429 = vunpack.c.h.b16 %v3097
    %v3430 = vunpack.c.l.b16 %v3098
    %v3431 = vunpack.c.h.b16 %v3098
    %v3432 = vunpack.c.l.b16 %v3099
    %v3433 = vunpack.c.h.b16 %v3099
    %v3434 = vunpack.c.l.b16 %v3100
    %v3435 = vunpack.c.h.b16 %v3100
    %v3436 = vunpack.c.l.b16 %v3101
    %v3437 = vunpack.c.h.b16 %v3101
    %v3438 = vunpack.c.l.b16 %v3102
    %v3439 = vunpack.c.h.b16 %v3102
    %v3440 = vunpack.c.l.b16 %v3103
    %v3441 = vunpack.c.h.b16 %v3103
    %v3442 = vunpack.c.l.b16 %v3104
    %v3443 = vunpack.c.h.b16 %v3104
    %v3444 = vunpack.c.l.b16 %v3105
    %v3445 = vunpack.c.h.b16 %v3105
    %v3446 = vunpack.c.l.b16 %v3106
    %v3447 = vunpack.c.h.b16 %v3106
    %v3448 = vunpack.c.l.b16 %v3107
    %v3449 = vunpack.c.h.b16 %v3107
    %v3450 = vunpack.c.l.b16 %v3108
    %v3451 = vunpack.c.h.b16 %v3108
    %v3452 = vunpack.c.l.b16 %v3109
    %v3453 = vunpack.c.h.b16 %v3109
    %v3454 = vunpack.c.l.b16 %v3110
    %v3455 = vunpack.c.h.b16 %v3110
    %v3456 = vunpack.c.l.b16 %v3111
    %v3457 = vunpack.c.h.b16 %v3111
    %v3458 = vunpack.c.l.b16 %v3112
    %v3459 = vunpack.c.h.b16 %v3112
    %v3460 = vunpack.c.l.b16 %v3113
    %v3461 = vunpack.c.h.b16 %v3113
    %v3462 = vunpack.c.l.b16 %v3114
    %v3463 = vunpack.c.h.b16 %v3114
    %v3464 = vunpack.c.l.b16 %v3115
    %v3465 = vunpack.c.h.b16 %v3115
    %v3466 = vunpack.c.l.b16 %v3116
    %v3467 = vunpack.c.h.b16 %v3116
    %v3468 = vunpack.c.l.b16 %v3117
    %v3469 = vunpack.c.h.b16 %v3117
    %v3470 = vunpack.c.l.b16 %v3118
    %v3471 = vunpack.c.h.b16 %v3118
    %v3472 = vunpack.c.l.b16 %v3119
    %v3473 = vunpack.c.h.b16 %v3119
    %v3474 = vunpack.c.l.b16 %v3120
    %v3475 = vunpack.c.h.b16 %v3120
    %v3476 = vunpack.c.l.b16 %v3121
    %v3477 = vunpack.c.h.b16 %v3121
    %v3478 = vunpack.c.l.b16 %v3122
    %v3479 = vunpack.c.h.b16 %v3122
    %v3480 = vunpack.c.l.b16 %v3123
    %v3481 = vunpack.c.h.b16 %v3123
    %v3482 = vunpack.c.l.b16 %v3124
    %v3483 = vunpack.c.h.b16 %v3124
    %v3484 = vunpack.c.l.b16 %v3125
    %v3485 = vunpack.c.h.b16 %v3125
    %v3486 = vunpack.c.l.b16 %v3126
    %v3487 = vunpack.c.h.b16 %v3126
    %v3488 = vunpack.c.l.b16 %v3127
    %v3489 = vunpack.c.h.b16 %v3127
    %v3490 = vunpack.c.l.b16 %v3128
    %v3491 = vunpack.c.h.b16 %v3128
    %v3492 = vunpack.c.l.b16 %v3129
    %v3493 = vunpack.c.h.b16 %v3129
    %v3494 = vunpack.c.l.b16 %v3130
    %v3495 = vunpack.c.h.b16 %v3130
    %v3496 = vunpack.c.l.b16 %v3131
    %v3497 = vunpack.c.h.b16 %v3131
    %v3498 = vunpack.c.l.b16 %v3132
    %v3499 = vunpack.c.h.b16 %v3132
    %v3500 = vunpack.c.l.b16 %v3133
    %v3501 = vunpack.c.h.b16 %v3133
    %v3502 = vunpack.c.l.b16 %v3134
    %v3503 = vunpack.c.h.b16 %v3134
    %v3504 = vunpack.c.l.b16 %v3135
    %v3505 = vunpack.c.h.b16 %v3135
    %v3506 = vunpack.c.l.b16 %v3136
    %v3507 = vunpack.c.h.b16 %v3136
    %v3508 = vunpack.c.l.b16 %v3137
    %v3509 = vunpack.c.h.b16 %v3137
    %v3510 = vunpack.c.l.b16 %v3138
    %v3511 = vunpack.c.h.b16 %v3138
    %v3512 = vunpack.c.l.b16 %v3139
    %v3513 = vunpack.c.h.b16 %v3139
    %v3514 = vunpack.c.l.b16 %v3140
    %v3515 = vunpack.c.h.b16 %v3140
    %v3516 = vunpack.c.l.b16 %v3141
    %v3517 = vunpack.c.h.b16 %v3141
    %v3518 = vunpack.c.l.b16 %v3142
    %v3519 = vunpack.c.h.b16 %v3142
    %v3520 = vunpack.c.l.b16 %v3143
    %v3521 = vunpack.c.h.b16 %v3143
    %v3522 = vunpack.c.l.b16 %v3144
    %v3523 = vunpack.c.h.b16 %v3144
    %v3524 = vunpack.c.l.b16 %v3145
    %v3525 = vunpack.c.h.b16 %v3145
    %v3526 = vunpack.c.l.b16 %v3146
    %v3527 = vunpack.c.h.b16 %v3146
    %v3528 = vunpack.c.l.b16 %v3147
    %v3529 = vunpack.c.h.b16 %v3147
    %v3530 = vunpack.c.l.b16 %v3148
    %v3531 = vunpack.c.h.b16 %v3148
    %v3532 = vunpack.c.l.b16 %v3149
    %v3533 = vunpack.c.h.b16 %v3149
    %v3534 = vpack.c.b16 %v3282, %v3278
    %v3535 = vpack.c.b16 %v3283, %v3279
    %v3536 = vpack.c.b16 %v3284, %v3280
    %v3537 = vpack.c.b16 %v3285, %v3281
    %v3538 = vpack.c.b16 %v3290, %v3286
    %v3539 = vpack.c.b16 %v3291, %v3287
    %v3540 = vpack.c.b16 %v3292, %v3288
    %v3541 = vpack.c.b16 %v3293, %v3289
    %v3542 = vpack.c.b16 %v3298, %v3294
    %v3543 = vpack.c.b16 %v3299, %v3295
    %v3544 = vpack.c.b16 %v3300, %v3296
    %v3545 = vpack.c.b16 %v3301, %v3297
    %v3546 = vpack.c.b16 %v3306, %v3302
    %v3547 = vpack.c.b16 %v3307, %v3303
    %v3548 = vpack.c.b16 %v3308, %v3304
    %v3549 = vpack.c.b16 %v3309, %v3305
    %v3550 = vpack.c.b16 %v3314, %v3310
    %v3551 = vpack.c.b16 %v3315, %v3311
    %v3552 = vpack.c.b16 %v3316, %v3312
    %v3553 = vpack.c.b16 %v3317, %v3313
    %v3554 = vpack.c.b16 %v3322, %v3318
    %v3555 = vpack.c.b16 %v3323, %v3319
    %v3556 = vpack.c.b16 %v3324, %v3320
    %v3557 = vpack.c.b16 %v3325, %v3321
    %v3558 = vpack.c.b16 %v3330, %v3326
    %v3559 = vpack.c.b16 %v3331, %v3327
    %v3560 = vpack.c.b16 %v3332, %v3328
    %v3561 = vpack.c.b16 %v3333, %v3329
    %v3562 = vpack.c.b16 %v3338, %v3334
    %v3563 = vpack.c.b16 %v3339, %v3335
    %v3564 = vpack.c.b16 %v3340, %v3336
    %v3565 = vpack.c.b16 %v3341, %v3337
    %v3566 = vpack.c.b16 %v3346, %v3342
    %v3567 = vpack.c.b16 %v3347, %v3343
    %v3568 = vpack.c.b16 %v3348, %v3344
    %v3569 = vpack.c.b16 %v3349, %v3345
    %v3570 = vpack.c.b16 %v3354, %v3350
    %v3571 = vpack.c.b16 %v3355, %v3351
    %v3572 = vpack.c.b16 %v3356, %v3352
    %v3573 = vpack.c.b16 %v3357, %v3353
    %v3574 = vpack.c.b16 %v3362, %v3358
    %v3575 = vpack.c.b16 %v3363, %v3359
    %v3576 = vpack.c.b16 %v3364, %v3360
    %v3577 = vpack.c.b16 %v3365, %v3361
    %v3578 = vpack.c.b16 %v3370, %v3366
    %v3579 = vpack.c.b16 %v3371, %v3367
    %v3580 = vpack.c.b16 %v3372, %v3368
    %v3581 = vpack.c.b16 %v3373, %v3369
    %v3582 = vpack.c.b16 %v3378, %v3374
    %v3583 = vpack.c.b16 %v3379, %v3375
    %v3584 = vpack.c.b16 %v3380, %v3376
    %v3585 = vpack.c.b16 %v3381, %v3377
    %v3586 = vpack.c.b16 %v3386, %v3382
    %v3587 = vpack.c.b16 %v3387, %v3383
    %v3588 = vpack.c.b16 %v3388, %v3384
    %v3589 = vpack.c.b16 %v3389, %v3385
    %v3590 = vpack.c.b16 %v3394, %v3390
    %v3591 = vpack.c.b16 %v3395, %v3391
    %v3592 = vpack.c.b16 %v3396, %v3392
    %v3593 = vpack.c.b16 %v3397, %v3393
    %v3594 = vpack.c.b16 %v3402, %v3398
    %v3595 = vpack.c.b16 %v3403, %v3399
    %v3596 = vpack.c.b16 %v3404, %v3400
    %v3597 = vpack.c.b16 %v3405, %v3401
    %v3598 = vpack.c.b16 %v3410, %v3406
    %v3599 = vpack.c.b16 %v3411, %v3407
    %v3600 = vpack.c.b16 %v3412, %v3408
    %v3601 = vpack.c.b16 %v3413, %v3409
    %v3602 = vpack.c.b16 %v3418, %v3414
    %v3603 = vpack.c.b16 %v3419, %v3415
    %v3604 = vpack.c.b16 %v3420, %v3416
    %v3605 = vpack.c.b16 %v3421, %v3417
    %v3606 = vpack.c.b16 %v3426, %v3422
    %v3607 = vpack.c.b16 %v3427, %v3423
    %v3608 = vpack.c.b16 %v3428, %v3424
    %v3609 = vpack.c.b16 %v3429, %v3425
    %v3610 = vpack.c.b16 %v3434, %v3430
    %v3611 = vpack.c.b16 %v3435, %v3431
    %v3612 = vpack.c.b16 %v3436, %v3432
    %v3613 = vpack.c.b16 %v3437, %v3433
    %v3614 = vpack.c.b16 %v3442, %v3438
    %v3615 = vpack.c.b16 %v3443, %v3439
    %v3616 = vpack.c.b16 %v3444, %v3440
    %v3617 = vpack.c.b16 %v3445, %v3441
    %v3618 = vpack.c.b16 %v3450, %v3446
    %v3619 = vpack.c.b16 %v3451, %v3447
    %v3620 = vpack.c.b16 %v3452, %v3448
    %v3621 = vpack.c.b16 %v3453, %v3449
    %v3622 = vpack.c.b16 %v3458, %v3454
    %v3623 = vpack.c.b16 %v3459, %v3455
    %v3624 = vpack.c.b16 %v3460, %v3456
    %v3625 = vpack.c.b16 %v3461, %v3457
    %v3626 = vpack.c.b16 %v3466, %v3462
    %v3627 = vpack.c.b16 %v3467, %v3463
    %v3628 = vpack.c.b16 %v3468, %v3464
    %v3629 = vpack.c.b16 %v3469, %v3465
    %v3630 = vpack.c.b16 %v3474, %v3470
    %v3631 = vpack.c.b16 %v3475, %v3471
    %v3632 = vpack.c.b16 %v3476, %v3472
    %v3633 = vpack.c.b16 %v3477, %v3473
    %v3634 = vpack.c.b16 %v3482, %v3478
    %v3635 = vpack.c.b16 %v3483, %v3479
    %v3636 = vpack.c.b16 %v3484, %v3480
    %v3637 = vpack.c.b16 %v3485, %v3481
    %v3638 = vpack.c.b16 %v3490, %v3486
    %v3639 = vpack.c.b16 %v3491, %v3487
    %v3640 = vpack.c.b16 %v3492, %v3488
    %v3641 = vpack.c.b16 %v3493, %v3489
    %v3642 = vpack.c.b16 %v3498, %v3494
    %v3643 = vpack.c.b16 %v3499, %v3495
    %v3644 = vpack.c.b16 %v3500, %v3496
    %v3645 = vpack.c.b16 %v3501, %v3497
    %v3646 = vpack.c.b16 %v3506, %v3502
    %v3647 = vpack.c.b16 %v3507, %v3503
    %v3648 = vpack.c.b16 %v3508, %v3504
    %v3649 = vpack.c.b16 %v3509, %v3505
    %v3650 = vpack.c.b16 %v3514, %v3510
    %v3651 = vpack.c.b16 %v3515, %v3511
    %v3652 = vpack.c.b16 %v3516, %v3512
    %v3653 = vpack.c.b16 %v3517, %v3513
    %v3654 = vpack.c.b16 %v3522, %v3518
    %v3655 = vpack.c.b16 %v3523, %v3519
    %v3656 = vpack.c.b16 %v3524, %v3520
    %v3657 = vpack.c.b16 %v3525, %v3521
    %v3658 = vpack.c.b16 %v3530, %v3526
    %v3659 = vpack.c.b16 %v3531, %v3527
    %v3660 = vpack.c.b16 %v3532, %v3528
    %v3661 = vpack.c.b16 %v3533, %v3529
    %3790 = vmatprep.subr.bf16.mxu0 %v3535
    %3791 = vmatpush1.bf16.msra.mxu0 %v3534
    %3792 = vmatprep.subr.bf16.mxu0 %v3539
    %3793 = vmatpush1.bf16.msra.mxu0 %v3538
    %3794 = vmatprep.subr.bf16.mxu0 %v3543
    %3795 = vmatpush1.bf16.msra.mxu0 %v3542
    %3796 = vmatprep.subr.bf16.mxu0 %v3547
    %3797 = vmatpush1.bf16.msra.mxu0 %v3546
    %3798 = vmatprep.subr.bf16.mxu0 %v3551
    %3799 = vmatpush1.bf16.msra.mxu0 %v3550
    %3800 = vmatprep.subr.bf16.mxu0 %v3555
    %3801 = vmatpush1.bf16.msra.mxu0 %v3554
    %3802 = vmatprep.subr.bf16.mxu0 %v3559
    %3803 = vmatpush1.bf16.msra.mxu0 %v3558
    %3804 = vmatprep.subr.bf16.mxu0 %v3563
    %3805 = vmatpush1.bf16.msra.mxu0 %v3562
    %3806 = vmatprep.subr.bf16.mxu0 %v3567
    %3807 = vmatpush1.bf16.msra.mxu0 %v3566
    %3808 = vmatprep.subr.bf16.mxu0 %v3571
    %3809 = vmatpush1.bf16.msra.mxu0 %v3570
    %3810 = vmatprep.subr.bf16.mxu0 %v3575
    %3811 = vmatpush1.bf16.msra.mxu0 %v3574
    %3812 = vmatprep.subr.bf16.mxu0 %v3579
    %3813 = vmatpush1.bf16.msra.mxu0 %v3578
    %3814 = vmatprep.subr.bf16.mxu0 %v3583
    %3815 = vmatpush1.bf16.msra.mxu0 %v3582
    %3816 = vmatprep.subr.bf16.mxu0 %v3587
    %3817 = vmatpush1.bf16.msra.mxu0 %v3586
    %3818 = vmatprep.subr.bf16.mxu0 %v3591
    %3819 = vmatpush1.bf16.msra.mxu0 %v3590
    %3820 = vmatprep.subr.bf16.mxu0 %v3595
    %3821 = vmatpush1.bf16.msra.mxu0 %v3594
    %3822 = vmatprep.mubr.bf16.mxu0 %v3019
    %3823 = vmatmul.mubr.bf16.gmra.mrb[0].mxu0 %v3018
    %v3824 = vpop.f32.mrb[0].mxu0
    %v3825 = vadd.f32 0.0, %v3824
    %v3826 = vpop.f32.mrb[0].mxu0
    %v3827 = vadd.f32 0.0, %v3826
    %v3828 = vpop.f32.mrb[0].mxu0
    %v3829 = vadd.f32 0.0, %v3828
    %v3830 = vpop.f32.mrb[0].mxu0
    %v3831 = vadd.f32 0.0, %v3830
    %3832 = vdwg.mxu0
    %3833 = vmatprep.subr.bf16.mxu0 %v3599
    %3834 = vmatpush1.bf16.msra.mxu0 %v3598
    %3835 = vmatprep.subr.bf16.mxu0 %v3603
    %3836 = vmatpush1.bf16.msra.mxu0 %v3602
    %3837 = vmatprep.subr.bf16.mxu0 %v3607
    %3838 = vmatpush1.bf16.msra.mxu0 %v3606
    %3839 = vmatprep.subr.bf16.mxu0 %v3611
    %3840 = vmatpush1.bf16.msra.mxu0 %v3610
    %3841 = vmatprep.subr.bf16.mxu0 %v3615
    %3842 = vmatpush1.bf16.msra.mxu0 %v3614
    %3843 = vmatprep.subr.bf16.mxu0 %v3619
    %3844 = vmatpush1.bf16.msra.mxu0 %v3618
    %3845 = vmatprep.subr.bf16.mxu0 %v3623
    %3846 = vmatpush1.bf16.msra.mxu0 %v3622
    %3847 = vmatprep.subr.bf16.mxu0 %v3627
    %3848 = vmatpush1.bf16.msra.mxu0 %v3626
    %3849 = vmatprep.subr.bf16.mxu0 %v3631
    %3850 = vmatpush1.bf16.msra.mxu0 %v3630
    %3851 = vmatprep.subr.bf16.mxu0 %v3635
    %3852 = vmatpush1.bf16.msra.mxu0 %v3634
    %3853 = vmatprep.subr.bf16.mxu0 %v3639
    %3854 = vmatpush1.bf16.msra.mxu0 %v3638
    %3855 = vmatprep.subr.bf16.mxu0 %v3643
    %3856 = vmatpush1.bf16.msra.mxu0 %v3642
    %3857 = vmatprep.subr.bf16.mxu0 %v3647
    %3858 = vmatpush1.bf16.msra.mxu0 %v3646
    %3859 = vmatprep.subr.bf16.mxu0 %v3651
    %3860 = vmatpush1.bf16.msra.mxu0 %v3650
    %3861 = vmatprep.subr.bf16.mxu0 %v3655
    %3862 = vmatpush1.bf16.msra.mxu0 %v3654
    %3863 = vmatprep.subr.bf16.mxu0 %v3659
    %3864 = vmatpush1.bf16.msra.mxu0 %v3658
    %3865 = vmatprep.mubr.bf16.mxu0 %v3021
    %3866 = vmatmul.mubr.bf16.gmra.mrb[0].mxu0 %v3020
    %v3867 = vpop.f32.mrb[0].mxu0
    %v3868 = vadd.f32 %v3825, %v3867
    %v3869 = vpop.f32.mrb[0].mxu0
    %v3870 = vadd.f32 %v3827, %v3869
    %v3871 = vpop.f32.mrb[0].mxu0
    %v3872 = vadd.f32 %v3829, %v3871
    %v3873 = vpop.f32.mrb[0].mxu0
    %v3874 = vadd.f32 %v3831, %v3873
    %3875 = vdwg.mxu0
    %3876 = vmatprep.subr.bf16.mxu0 %v3537
    %3877 = vmatpush1.bf16.msra.mxu0 %v3536
    %3878 = vmatprep.subr.bf16.mxu0 %v3541
    %3879 = vmatpush1.bf16.msra.mxu0 %v3540
    %3880 = vmatprep.subr.bf16.mxu0 %v3545
    %3881 = vmatpush1.bf16.msra.mxu0 %v3544
    %3882 = vmatprep.subr.bf16.mxu0 %v3549
    %3883 = vmatpush1.bf16.msra.mxu0 %v3548
    %3884 = vmatprep.subr.bf16.mxu0 %v3553
    %3885 = vmatpush1.bf16.msra.mxu0 %v3552
    %3886 = vmatprep.subr.bf16.mxu0 %v3557
    %3887 = vmatpush1.bf16.msra.mxu0 %v3556
    %3888 = vmatprep.subr.bf16.mxu0 %v3561
    %3889 = vmatpush1.bf16.msra.mxu0 %v3560
    %3890 = vmatprep.subr.bf16.mxu0 %v3565
    %3891 = vmatpush1.bf16.msra.mxu0 %v3564
    %3892 = vmatprep.subr.bf16.mxu0 %v3569
    %3893 = vmatpush1.bf16.msra.mxu0 %v3568
    %3894 = vmatprep.subr.bf16.mxu0 %v3573
    %3895 = vmatpush1.bf16.msra.mxu0 %v3572
    %3896 = vmatprep.subr.bf16.mxu0 %v3577
    %3897 = vmatpush1.bf16.msra.mxu0 %v3576
    %3898 = vmatprep.subr.bf16.mxu0 %v3581
    %3899 = vmatpush1.bf16.msra.mxu0 %v3580
    %3900 = vmatprep.subr.bf16.mxu0 %v3585
    %3901 = vmatpush1.bf16.msra.mxu0 %v3584
    %3902 = vmatprep.subr.bf16.mxu0 %v3589
    %3903 = vmatpush1.bf16.msra.mxu0 %v3588
    %3904 = vmatprep.subr.bf16.mxu0 %v3593
    %3905 = vmatpush1.bf16.msra.mxu0 %v3592
    %3906 = vmatprep.subr.bf16.mxu0 %v3597
    %3907 = vmatpush1.bf16.msra.mxu0 %v3596
    %3908 = vmatprep.mubr.bf16.mxu0 %v3019
    %3909 = vmatmul.mubr.bf16.gmra.mrb[0].mxu0 %v3018
    %v3910 = vpop.f32.mrb[0].mxu0
    %v3911 = vadd.f32 0.0, %v3910
    %v3912 = vpop.f32.mrb[0].mxu0
    %v3913 = vadd.f32 0.0, %v3912
    %v3914 = vpop.f32.mrb[0].mxu0
    %v3915 = vadd.f32 0.0, %v3914
    %v3916 = vpop.f32.mrb[0].mxu0
    %v3917 = vadd.f32 0.0, %v3916
    %3918 = vdwg.mxu0
    %3919 = vmatprep.subr.bf16.mxu0 %v3601
    %3920 = vmatpush1.bf16.msra.mxu0 %v3600
    %3921 = vmatprep.subr.bf16.mxu0 %v3605
    %3922 = vmatpush1.bf16.msra.mxu0 %v3604
    %3923 = vmatprep.subr.bf16.mxu0 %v3609
    %3924 = vmatpush1.bf16.msra.mxu0 %v3608
    %3925 = vmatprep.subr.bf16.mxu0 %v3613
    %3926 = vmatpush1.bf16.msra.mxu0 %v3612
    %3927 = vmatprep.subr.bf16.mxu0 %v3617
    %3928 = vmatpush1.bf16.msra.mxu0 %v3616
    %3929 = vmatprep.subr.bf16.mxu0 %v3621
    %3930 = vmatpush1.bf16.msra.mxu0 %v3620
    %3931 = vmatprep.subr.bf16.mxu0 %v3625
    %3932 = vmatpush1.bf16.msra.mxu0 %v3624
    %3933 = vmatprep.subr.bf16.mxu0 %v3629
    %3934 = vmatpush1.bf16.msra.mxu0 %v3628
    %3935 = vmatprep.subr.bf16.mxu0 %v3633
    %3936 = vmatpush1.bf16.msra.mxu0 %v3632
    %3937 = vmatprep.subr.bf16.mxu0 %v3637
    %3938 = vmatpush1.bf16.msra.mxu0 %v3636
    %3939 = vmatprep.subr.bf16.mxu0 %v3641
    %3940 = vmatpush1.bf16.msra.mxu0 %v3640
    %3941 = vmatprep.subr.bf16.mxu0 %v3645
    %3942 = vmatpush1.bf16.msra.mxu0 %v3644
    %3943 = vmatprep.subr.bf16.mxu0 %v3649
    %3944 = vmatpush1.bf16.msra.mxu0 %v3648
    %3945 = vmatprep.subr.bf16.mxu0 %v3653
    %3946 = vmatpush1.bf16.msra.mxu0 %v3652
    %3947 = vmatprep.subr.bf16.mxu0 %v3657
    %3948 = vmatpush1.bf16.msra.mxu0 %v3656
    %3949 = vmatprep.subr.bf16.mxu0 %v3661
    %3950 = vmatpush1.bf16.msra.mxu0 %v3660
    %3951 = vmatprep.mubr.bf16.mxu0 %v3021
    %3952 = vmatmul.mubr.bf16.gmra.mrb[0].mxu0 %v3020
    %v3953 = vpop.f32.mrb[0].mxu0
    %v3954 = vadd.f32 %v3911, %v3953
    %v3955 = vpop.f32.mrb[0].mxu0
    %v3956 = vadd.f32 %v3913, %v3955
    %v3957 = vpop.f32.mrb[0].mxu0
    %v3958 = vadd.f32 %v3915, %v3957
    %v3959 = vpop.f32.mrb[0].mxu0
    %v3960 = vadd.f32 %v3917, %v3959
    %3961 = vdwg.mxu0
    %v3962 = vld [vmem:[#allocation2] sm:$0xff]
    %v3963 = vld [vmem:[#allocation2 + $0x8] sm:$0xff]
    %v3964 = vld [vmem:[#allocation2 + $0x10] sm:$0xff]
    %v3965 = vld [vmem:[#allocation2 + $0x18] sm:$0xff]
    %v3966 = vld [vmem:[#allocation2 + $0x20] sm:$0xff]
    %v3967 = vld [vmem:[#allocation2 + $0x28] sm:$0xff]
    %v3968 = vld [vmem:[#allocation2 + $0x30] sm:$0xff]
    %v3969 = vld [vmem:[#allocation2 + $0x38] sm:$0xff]
    %v3970 = vadd.f32 %v3962, %v3868
    %v3971 = vadd.f32 %v3963, %v3870
    %v3972 = vadd.f32 %v3964, %v3954
    %v3973 = vadd.f32 %v3965, %v3956
    %v3974 = vadd.f32 %v3966, %v3872
    %v3975 = vadd.f32 %v3967, %v3874
    %v3976 = vadd.f32 %v3968, %v3958
    %v3977 = vadd.f32 %v3969, %v3960
    %3978 = vst [vmem:[#allocation2] sm:$0xff] %v3970
    %3979 = vst [vmem:[#allocation2 + $0x8] sm:$0xff] %v3971
    %3980 = vst [vmem:[#allocation2 + $0x10] sm:$0xff] %v3972
    %3981 = vst [vmem:[#allocation2 + $0x18] sm:$0xff] %v3973
    %3982 = vst [vmem:[#allocation2 + $0x20] sm:$0xff] %v3974
    %3983 = vst [vmem:[#allocation2 + $0x28] sm:$0xff] %v3975
    %3984 = vst [vmem:[#allocation2 + $0x30] sm:$0xff] %v3976
    %3985 = vst [vmem:[#allocation2 + $0x38] sm:$0xff] %v3977
    %v3986 = vld [vmem:[#allocation6 + $0x20] sm:$0xff]
    %v3987 = vld [vmem:[#allocation6 + $0x28] sm:$0xff]
    %v3988 = vld [vmem:[#allocation6 + $0x60] sm:$0xff]
    %v3989 = vld [vmem:[#allocation6 + $0x68] sm:$0xff]
    %v3990 = vld [vmem:[#allocation6 + $0xa0] sm:$0xff]
    %v3991 = vld [vmem:[#allocation6 + $0xa8] sm:$0xff]
    %v3992 = vld [vmem:[#allocation6 + $0xe0] sm:$0xff]
    %v3993 = vld [vmem:[#allocation6 + $0xe8] sm:$0xff]
    %v3994 = vld [vmem:[#allocation6 + $0x120] sm:$0xff]
    %v3995 = vld [vmem:[#allocation6 + $0x128] sm:$0xff]
    %v3996 = vld [vmem:[#allocation6 + $0x160] sm:$0xff]
    %v3997 = vld [vmem:[#allocation6 + $0x168] sm:$0xff]
    %v3998 = vld [vmem:[#allocation6 + $0x1a0] sm:$0xff]
    %v3999 = vld [vmem:[#allocation6 + $0x1a8] sm:$0xff]
    %v4000 = vld [vmem:[#allocation6 + $0x1e0] sm:$0xff]
    %v4001 = vld [vmem:[#allocation6 + $0x1e8] sm:$0xff]
    %v4002 = vld [vmem:[#allocation6 + $0x220] sm:$0xff]
    %v4003 = vld [vmem:[#allocation6 + $0x228] sm:$0xff]
    %v4004 = vld [vmem:[#allocation6 + $0x260] sm:$0xff]
    %v4005 = vld [vmem:[#allocation6 + $0x268] sm:$0xff]
    %v4006 = vld [vmem:[#allocation6 + $0x2a0] sm:$0xff]
    %v4007 = vld [vmem:[#allocation6 + $0x2a8] sm:$0xff]
    %v4008 = vld [vmem:[#allocation6 + $0x2e0] sm:$0xff]
    %v4009 = vld [vmem:[#allocation6 + $0x2e8] sm:$0xff]
    %v4010 = vld [vmem:[#allocation6 + $0x320] sm:$0xff]
    %v4011 = vld [vmem:[#allocation6 + $0x328] sm:$0xff]
    %v4012 = vld [vmem:[#allocation6 + $0x360] sm:$0xff]
    %v4013 = vld [vmem:[#allocation6 + $0x368] sm:$0xff]
    %v4014 = vld [vmem:[#allocation6 + $0x3a0] sm:$0xff]
    %v4015 = vld [vmem:[#allocation6 + $0x3a8] sm:$0xff]
    %v4016 = vld [vmem:[#allocation6 + $0x3e0] sm:$0xff]
    %v4017 = vld [vmem:[#allocation6 + $0x3e8] sm:$0xff]
    %v4018 = vld [vmem:[#allocation6 + $0x420] sm:$0xff]
    %v4019 = vld [vmem:[#allocation6 + $0x428] sm:$0xff]
    %v4020 = vld [vmem:[#allocation6 + $0x460] sm:$0xff]
    %v4021 = vld [vmem:[#allocation6 + $0x468] sm:$0xff]
    %v4022 = vld [vmem:[#allocation6 + $0x4a0] sm:$0xff]
    %v4023 = vld [vmem:[#allocation6 + $0x4a8] sm:$0xff]
    %v4024 = vld [vmem:[#allocation6 + $0x4e0] sm:$0xff]
    %v4025 = vld [vmem:[#allocation6 + $0x4e8] sm:$0xff]
    %v4026 = vld [vmem:[#allocation6 + $0x520] sm:$0xff]
    %v4027 = vld [vmem:[#allocation6 + $0x528] sm:$0xff]
    %v4028 = vld [vmem:[#allocation6 + $0x560] sm:$0xff]
    %v4029 = vld [vmem:[#allocation6 + $0x568] sm:$0xff]
    %v4030 = vld [vmem:[#allocation6 + $0x5a0] sm:$0xff]
    %v4031 = vld [vmem:[#allocation6 + $0x5a8] sm:$0xff]
    %v4032 = vld [vmem:[#allocation6 + $0x5e0] sm:$0xff]
    %v4033 = vld [vmem:[#allocation6 + $0x5e8] sm:$0xff]
    %v4034 = vld [vmem:[#allocation6 + $0x620] sm:$0xff]
    %v4035 = vld [vmem:[#allocation6 + $0x628] sm:$0xff]
    %v4036 = vld [vmem:[#allocation6 + $0x660] sm:$0xff]
    %v4037 = vld [vmem:[#allocation6 + $0x668] sm:$0xff]
    %v4038 = vld [vmem:[#allocation6 + $0x6a0] sm:$0xff]
    %v4039 = vld [vmem:[#allocation6 + $0x6a8] sm:$0xff]
    %v4040 = vld [vmem:[#allocation6 + $0x6e0] sm:$0xff]
    %v4041 = vld [vmem:[#allocation6 + $0x6e8] sm:$0xff]
    %v4042 = vld [vmem:[#allocation6 + $0x720] sm:$0xff]
    %v4043 = vld [vmem:[#allocation6 + $0x728] sm:$0xff]
    %v4044 = vld [vmem:[#allocation6 + $0x760] sm:$0xff]
    %v4045 = vld [vmem:[#allocation6 + $0x768] sm:$0xff]
    %v4046 = vld [vmem:[#allocation6 + $0x7a0] sm:$0xff]
    %v4047 = vld [vmem:[#allocation6 + $0x7a8] sm:$0xff]
    %v4048 = vld [vmem:[#allocation6 + $0x7e0] sm:$0xff]
    %v4049 = vld [vmem:[#allocation6 + $0x7e8] sm:$0xff]
    %v4050 = vld [vmem:[#allocation6 + $0x820] sm:$0xff]
    %v4051 = vld [vmem:[#allocation6 + $0x828] sm:$0xff]
    %v4052 = vld [vmem:[#allocation6 + $0x860] sm:$0xff]
    %v4053 = vld [vmem:[#allocation6 + $0x868] sm:$0xff]
    %v4054 = vld [vmem:[#allocation6 + $0x8a0] sm:$0xff]
    %v4055 = vld [vmem:[#allocation6 + $0x8a8] sm:$0xff]
    %v4056 = vld [vmem:[#allocation6 + $0x8e0] sm:$0xff]
    %v4057 = vld [vmem:[#allocation6 + $0x8e8] sm:$0xff]
    %v4058 = vld [vmem:[#allocation6 + $0x920] sm:$0xff]
    %v4059 = vld [vmem:[#allocation6 + $0x928] sm:$0xff]
    %v4060 = vld [vmem:[#allocation6 + $0x960] sm:$0xff]
    %v4061 = vld [vmem:[#allocation6 + $0x968] sm:$0xff]
    %v4062 = vld [vmem:[#allocation6 + $0x9a0] sm:$0xff]
    %v4063 = vld [vmem:[#allocation6 + $0x9a8] sm:$0xff]
    %v4064 = vld [vmem:[#allocation6 + $0x9e0] sm:$0xff]
    %v4065 = vld [vmem:[#allocation6 + $0x9e8] sm:$0xff]
    %v4066 = vld [vmem:[#allocation6 + $0xa20] sm:$0xff]
    %v4067 = vld [vmem:[#allocation6 + $0xa28] sm:$0xff]
    %v4068 = vld [vmem:[#allocation6 + $0xa60] sm:$0xff]
    %v4069 = vld [vmem:[#allocation6 + $0xa68] sm:$0xff]
    %v4070 = vld [vmem:[#allocation6 + $0xaa0] sm:$0xff]
    %v4071 = vld [vmem:[#allocation6 + $0xaa8] sm:$0xff]
    %v4072 = vld [vmem:[#allocation6 + $0xae0] sm:$0xff]
    %v4073 = vld [vmem:[#allocation6 + $0xae8] sm:$0xff]
    %v4074 = vld [vmem:[#allocation6 + $0xb20] sm:$0xff]
    %v4075 = vld [vmem:[#allocation6 + $0xb28] sm:$0xff]
    %v4076 = vld [vmem:[#allocation6 + $0xb60] sm:$0xff]
    %v4077 = vld [vmem:[#allocation6 + $0xb68] sm:$0xff]
    %v4078 = vld [vmem:[#allocation6 + $0xba0] sm:$0xff]
    %v4079 = vld [vmem:[#allocation6 + $0xba8] sm:$0xff]
    %v4080 = vld [vmem:[#allocation6 + $0xbe0] sm:$0xff]
    %v4081 = vld [vmem:[#allocation6 + $0xbe8] sm:$0xff]
    %v4082 = vld [vmem:[#allocation6 + $0xc20] sm:$0xff]
    %v4083 = vld [vmem:[#allocation6 + $0xc28] sm:$0xff]
    %v4084 = vld [vmem:[#allocation6 + $0xc60] sm:$0xff]
    %v4085 = vld [vmem:[#allocation6 + $0xc68] sm:$0xff]
    %v4086 = vld [vmem:[#allocation6 + $0xca0] sm:$0xff]
    %v4087 = vld [vmem:[#allocation6 + $0xca8] sm:$0xff]
    %v4088 = vld [vmem:[#allocation6 + $0xce0] sm:$0xff]
    %v4089 = vld [vmem:[#allocation6 + $0xce8] sm:$0xff]
    %v4090 = vld [vmem:[#allocation6 + $0xd20] sm:$0xff]
    %v4091 = vld [vmem:[#allocation6 + $0xd28] sm:$0xff]
    %v4092 = vld [vmem:[#allocation6 + $0xd60] sm:$0xff]
    %v4093 = vld [vmem:[#allocation6 + $0xd68] sm:$0xff]
    %v4094 = vld [vmem:[#allocation6 + $0xda0] sm:$0xff]
    %v4095 = vld [vmem:[#allocation6 + $0xda8] sm:$0xff]
    %v4096 = vld [vmem:[#allocation6 + $0xde0] sm:$0xff]
    %v4097 = vld [vmem:[#allocation6 + $0xde8] sm:$0xff]
    %v4098 = vld [vmem:[#allocation6 + $0xe20] sm:$0xff]
    %v4099 = vld [vmem:[#allocation6 + $0xe28] sm:$0xff]
    %v4100 = vld [vmem:[#allocation6 + $0xe60] sm:$0xff]
    %v4101 = vld [vmem:[#allocation6 + $0xe68] sm:$0xff]
    %v4102 = vld [vmem:[#allocation6 + $0xea0] sm:$0xff]
    %v4103 = vld [vmem:[#allocation6 + $0xea8] sm:$0xff]
    %v4104 = vld [vmem:[#allocation6 + $0xee0] sm:$0xff]
    %v4105 = vld [vmem:[#allocation6 + $0xee8] sm:$0xff]
    %v4106 = vld [vmem:[#allocation6 + $0xf20] sm:$0xff]
    %v4107 = vld [vmem:[#allocation6 + $0xf28] sm:$0xff]
    %v4108 = vld [vmem:[#allocation6 + $0xf60] sm:$0xff]
    %v4109 = vld [vmem:[#allocation6 + $0xf68] sm:$0xff]
    %v4110 = vld [vmem:[#allocation6 + $0xfa0] sm:$0xff]
    %v4111 = vld [vmem:[#allocation6 + $0xfa8] sm:$0xff]
    %v4112 = vld [vmem:[#allocation6 + $0xfe0] sm:$0xff]
    %v4113 = vld [vmem:[#allocation6 + $0xfe8] sm:$0xff]
    %v4114 = vld [vmem:[#allocation8 + $0x8] sm:$0xf]
    %v4116 = vlaneseq
    %v4117 = vshrl.u32 %v4116, 7
    %v4118 = vsub.s32 0, %v4117
    %v4119 = vrot.slane %v4114, %v4118
    %v4120 = vlaneseq
    %v4121 = vshrl.u32 %v4120, 7
    %v4122 = vsub.s32 1, %v4121
    %v4123 = vrot.slane %v4114, %v4122
    %v4124 = vlaneseq
    %v4125 = vshrl.u32 %v4124, 7
    %v4126 = vsub.s32 2, %v4125
    %v4127 = vrot.slane %v4114, %v4126
    %v4128 = vlaneseq
    %v4129 = vshrl.u32 %v4128, 7
    %v4130 = vsub.s32 3, %v4129
    %v4131 = vrot.slane %v4114, %v4130
    %v4264 = vunpack.c.l.b16 %v3986
    %v4265 = vunpack.c.h.b16 %v3986
    %v4266 = vunpack.c.l.b16 %v3987
    %v4267 = vunpack.c.h.b16 %v3987
    %v4268 = vunpack.c.l.b16 %v3988
    %v4269 = vunpack.c.h.b16 %v3988
    %v4270 = vunpack.c.l.b16 %v3989
    %v4271 = vunpack.c.h.b16 %v3989
    %v4272 = vunpack.c.l.b16 %v3990
    %v4273 = vunpack.c.h.b16 %v3990
    %v4274 = vunpack.c.l.b16 %v3991
    %v4275 = vunpack.c.h.b16 %v3991
    %v4276 = vunpack.c.l.b16 %v3992
    %v4277 = vunpack.c.h.b16 %v3992
    %v4278 = vunpack.c.l.b16 %v3993
    %v4279 = vunpack.c.h.b16 %v3993
    %v4280 = vunpack.c.l.b16 %v3994
    %v4281 = vunpack.c.h.b16 %v3994
    %v4282 = vunpack.c.l.b16 %v3995
    %v4283 = vunpack.c.h.b16 %v3995
    %v4284 = vunpack.c.l.b16 %v3996
    %v4285 = vunpack.c.h.b16 %v3996
    %v4286 = vunpack.c.l.b16 %v3997
    %v4287 = vunpack.c.h.b16 %v3997
    %v4288 = vunpack.c.l.b16 %v3998
    %v4289 = vunpack.c.h.b16 %v3998
    %v4290 = vunpack.c.l.b16 %v3999
    %v4291 = vunpack.c.h.b16 %v3999
    %v4292 = vunpack.c.l.b16 %v4000
    %v4293 = vunpack.c.h.b16 %v4000
    %v4294 = vunpack.c.l.b16 %v4001
    %v4295 = vunpack.c.h.b16 %v4001
    %v4296 = vunpack.c.l.b16 %v4002
    %v4297 = vunpack.c.h.b16 %v4002
    %v4298 = vunpack.c.l.b16 %v4003
    %v4299 = vunpack.c.h.b16 %v4003
    %v4300 = vunpack.c.l.b16 %v4004
    %v4301 = vunpack.c.h.b16 %v4004
    %v4302 = vunpack.c.l.b16 %v4005
    %v4303 = vunpack.c.h.b16 %v4005
    %v4304 = vunpack.c.l.b16 %v4006
    %v4305 = vunpack.c.h.b16 %v4006
    %v4306 = vunpack.c.l.b16 %v4007
    %v4307 = vunpack.c.h.b16 %v4007
    %v4308 = vunpack.c.l.b16 %v4008
    %v4309 = vunpack.c.h.b16 %v4008
    %v4310 = vunpack.c.l.b16 %v4009
    %v4311 = vunpack.c.h.b16 %v4009
    %v4312 = vunpack.c.l.b16 %v4010
    %v4313 = vunpack.c.h.b16 %v4010
    %v4314 = vunpack.c.l.b16 %v4011
    %v4315 = vunpack.c.h.b16 %v4011
    %v4316 = vunpack.c.l.b16 %v4012
    %v4317 = vunpack.c.h.b16 %v4012
    %v4318 = vunpack.c.l.b16 %v4013
    %v4319 = vunpack.c.h.b16 %v4013
    %v4320 = vunpack.c.l.b16 %v4014
    %v4321 = vunpack.c.h.b16 %v4014
    %v4322 = vunpack.c.l.b16 %v4015
    %v4323 = vunpack.c.h.b16 %v4015
    %v4324 = vunpack.c.l.b16 %v4016
    %v4325 = vunpack.c.h.b16 %v4016
    %v4326 = vunpack.c.l.b16 %v4017
    %v4327 = vunpack.c.h.b16 %v4017
    %v4328 = vunpack.c.l.b16 %v4018
    %v4329 = vunpack.c.h.b16 %v4018
    %v4330 = vunpack.c.l.b16 %v4019
    %v4331 = vunpack.c.h.b16 %v4019
    %v4332 = vunpack.c.l.b16 %v4020
    %v4333 = vunpack.c.h.b16 %v4020
    %v4334 = vunpack.c.l.b16 %v4021
    %v4335 = vunpack.c.h.b16 %v4021
    %v4336 = vunpack.c.l.b16 %v4022
    %v4337 = vunpack.c.h.b16 %v4022
    %v4338 = vunpack.c.l.b16 %v4023
    %v4339 = vunpack.c.h.b16 %v4023
    %v4340 = vunpack.c.l.b16 %v4024
    %v4341 = vunpack.c.h.b16 %v4024
    %v4342 = vunpack.c.l.b16 %v4025
    %v4343 = vunpack.c.h.b16 %v4025
    %v4344 = vunpack.c.l.b16 %v4026
    %v4345 = vunpack.c.h.b16 %v4026
    %v4346 = vunpack.c.l.b16 %v4027
    %v4347 = vunpack.c.h.b16 %v4027
    %v4348 = vunpack.c.l.b16 %v4028
    %v4349 = vunpack.c.h.b16 %v4028
    %v4350 = vunpack.c.l.b16 %v4029
    %v4351 = vunpack.c.h.b16 %v4029
    %v4352 = vunpack.c.l.b16 %v4030
    %v4353 = vunpack.c.h.b16 %v4030
    %v4354 = vunpack.c.l.b16 %v4031
    %v4355 = vunpack.c.h.b16 %v4031
    %v4356 = vunpack.c.l.b16 %v4032
    %v4357 = vunpack.c.h.b16 %v4032
    %v4358 = vunpack.c.l.b16 %v4033
    %v4359 = vunpack.c.h.b16 %v4033
    %v4360 = vunpack.c.l.b16 %v4034
    %v4361 = vunpack.c.h.b16 %v4034
    %v4362 = vunpack.c.l.b16 %v4035
    %v4363 = vunpack.c.h.b16 %v4035
    %v4364 = vunpack.c.l.b16 %v4036
    %v4365 = vunpack.c.h.b16 %v4036
    %v4366 = vunpack.c.l.b16 %v4037
    %v4367 = vunpack.c.h.b16 %v4037
    %v4368 = vunpack.c.l.b16 %v4038
    %v4369 = vunpack.c.h.b16 %v4038
    %v4370 = vunpack.c.l.b16 %v4039
    %v4371 = vunpack.c.h.b16 %v4039
    %v4372 = vunpack.c.l.b16 %v4040
    %v4373 = vunpack.c.h.b16 %v4040
    %v4374 = vunpack.c.l.b16 %v4041
    %v4375 = vunpack.c.h.b16 %v4041
    %v4376 = vunpack.c.l.b16 %v4042
    %v4377 = vunpack.c.h.b16 %v4042
    %v4378 = vunpack.c.l.b16 %v4043
    %v4379 = vunpack.c.h.b16 %v4043
    %v4380 = vunpack.c.l.b16 %v4044
    %v4381 = vunpack.c.h.b16 %v4044
    %v4382 = vunpack.c.l.b16 %v4045
    %v4383 = vunpack.c.h.b16 %v4045
    %v4384 = vunpack.c.l.b16 %v4046
    %v4385 = vunpack.c.h.b16 %v4046
    %v4386 = vunpack.c.l.b16 %v4047
    %v4387 = vunpack.c.h.b16 %v4047
    %v4388 = vunpack.c.l.b16 %v4048
    %v4389 = vunpack.c.h.b16 %v4048
    %v4390 = vunpack.c.l.b16 %v4049
    %v4391 = vunpack.c.h.b16 %v4049
    %v4392 = vunpack.c.l.b16 %v4050
    %v4393 = vunpack.c.h.b16 %v4050
    %v4394 = vunpack.c.l.b16 %v4051
    %v4395 = vunpack.c.h.b16 %v4051
    %v4396 = vunpack.c.l.b16 %v4052
    %v4397 = vunpack.c.h.b16 %v4052
    %v4398 = vunpack.c.l.b16 %v4053
    %v4399 = vunpack.c.h.b16 %v4053
    %v4400 = vunpack.c.l.b16 %v4054
    %v4401 = vunpack.c.h.b16 %v4054
    %v4402 = vunpack.c.l.b16 %v4055
    %v4403 = vunpack.c.h.b16 %v4055
    %v4404 = vunpack.c.l.b16 %v4056
    %v4405 = vunpack.c.h.b16 %v4056
    %v4406 = vunpack.c.l.b16 %v4057
    %v4407 = vunpack.c.h.b16 %v4057
    %v4408 = vunpack.c.l.b16 %v4058
    %v4409 = vunpack.c.h.b16 %v4058
    %v4410 = vunpack.c.l.b16 %v4059
    %v4411 = vunpack.c.h.b16 %v4059
    %v4412 = vunpack.c.l.b16 %v4060
    %v4413 = vunpack.c.h.b16 %v4060
    %v4414 = vunpack.c.l.b16 %v4061
    %v4415 = vunpack.c.h.b16 %v4061
    %v4416 = vunpack.c.l.b16 %v4062
    %v4417 = vunpack.c.h.b16 %v4062
    %v4418 = vunpack.c.l.b16 %v4063
    %v4419 = vunpack.c.h.b16 %v4063
    %v4420 = vunpack.c.l.b16 %v4064
    %v4421 = vunpack.c.h.b16 %v4064
    %v4422 = vunpack.c.l.b16 %v4065
    %v4423 = vunpack.c.h.b16 %v4065
    %v4424 = vunpack.c.l.b16 %v4066
    %v4425 = vunpack.c.h.b16 %v4066
    %v4426 = vunpack.c.l.b16 %v4067
    %v4427 = vunpack.c.h.b16 %v4067
    %v4428 = vunpack.c.l.b16 %v4068
    %v4429 = vunpack.c.h.b16 %v4068
    %v4430 = vunpack.c.l.b16 %v4069
    %v4431 = vunpack.c.h.b16 %v4069
    %v4432 = vunpack.c.l.b16 %v4070
    %v4433 = vunpack.c.h.b16 %v4070
    %v4434 = vunpack.c.l.b16 %v4071
    %v4435 = vunpack.c.h.b16 %v4071
    %v4436 = vunpack.c.l.b16 %v4072
    %v4437 = vunpack.c.h.b16 %v4072
    %v4438 = vunpack.c.l.b16 %v4073
    %v4439 = vunpack.c.h.b16 %v4073
    %v4440 = vunpack.c.l.b16 %v4074
    %v4441 = vunpack.c.h.b16 %v4074
    %v4442 = vunpack.c.l.b16 %v4075
    %v4443 = vunpack.c.h.b16 %v4075
    %v4444 = vunpack.c.l.b16 %v4076
    %v4445 = vunpack.c.h.b16 %v4076
    %v4446 = vunpack.c.l.b16 %v4077
    %v4447 = vunpack.c.h.b16 %v4077
    %v4448 = vunpack.c.l.b16 %v4078
    %v4449 = vunpack.c.h.b16 %v4078
    %v4450 = vunpack.c.l.b16 %v4079
    %v4451 = vunpack.c.h.b16 %v4079
    %v4452 = vunpack.c.l.b16 %v4080
    %v4453 = vunpack.c.h.b16 %v4080
    %v4454 = vunpack.c.l.b16 %v4081
    %v4455 = vunpack.c.h.b16 %v4081
    %v4456 = vunpack.c.l.b16 %v4082
    %v4457 = vunpack.c.h.b16 %v4082
    %v4458 = vunpack.c.l.b16 %v4083
    %v4459 = vunpack.c.h.b16 %v4083
    %v4460 = vunpack.c.l.b16 %v4084
    %v4461 = vunpack.c.h.b16 %v4084
    %v4462 = vunpack.c.l.b16 %v4085
    %v4463 = vunpack.c.h.b16 %v4085
    %v4464 = vunpack.c.l.b16 %v4086
    %v4465 = vunpack.c.h.b16 %v4086
    %v4466 = vunpack.c.l.b16 %v4087
    %v4467 = vunpack.c.h.b16 %v4087
    %v4468 = vunpack.c.l.b16 %v4088
    %v4469 = vunpack.c.h.b16 %v4088
    %v4470 = vunpack.c.l.b16 %v4089
    %v4471 = vunpack.c.h.b16 %v4089
    %v4472 = vunpack.c.l.b16 %v4090
    %v4473 = vunpack.c.h.b16 %v4090
    %v4474 = vunpack.c.l.b16 %v4091
    %v4475 = vunpack.c.h.b16 %v4091
    %v4476 = vunpack.c.l.b16 %v4092
    %v4477 = vunpack.c.h.b16 %v4092
    %v4478 = vunpack.c.l.b16 %v4093
    %v4479 = vunpack.c.h.b16 %v4093
    %v4480 = vunpack.c.l.b16 %v4094
    %v4481 = vunpack.c.h.b16 %v4094
    %v4482 = vunpack.c.l.b16 %v4095
    %v4483 = vunpack.c.h.b16 %v4095
    %v4484 = vunpack.c.l.b16 %v4096
    %v4485 = vunpack.c.h.b16 %v4096
    %v4486 = vunpack.c.l.b16 %v4097
    %v4487 = vunpack.c.h.b16 %v4097
    %v4488 = vunpack.c.l.b16 %v4098
    %v4489 = vunpack.c.h.b16 %v4098
    %v4490 = vunpack.c.l.b16 %v4099
    %v4491 = vunpack.c.h.b16 %v4099
    %v4492 = vunpack.c.l.b16 %v4100
    %v4493 = vunpack.c.h.b16 %v4100
    %v4494 = vunpack.c.l.b16 %v4101
    %v4495 = vunpack.c.h.b16 %v4101
    %v4496 = vunpack.c.l.b16 %v4102
    %v4497 = vunpack.c.h.b16 %v4102
    %v4498 = vunpack.c.l.b16 %v4103
    %v4499 = vunpack.c.h.b16 %v4103
    %v4500 = vunpack.c.l.b16 %v4104
    %v4501 = vunpack.c.h.b16 %v4104
    %v4502 = vunpack.c.l.b16 %v4105
    %v4503 = vunpack.c.h.b16 %v4105
    %v4504 = vunpack.c.l.b16 %v4106
    %v4505 = vunpack.c.h.b16 %v4106
    %v4506 = vunpack.c.l.b16 %v4107
    %v4507 = vunpack.c.h.b16 %v4107
    %v4508 = vunpack.c.l.b16 %v4108
    %v4509 = vunpack.c.h.b16 %v4108
    %v4510 = vunpack.c.l.b16 %v4109
    %v4511 = vunpack.c.h.b16 %v4109
    %v4512 = vunpack.c.l.b16 %v4110
    %v4513 = vunpack.c.h.b16 %v4110
    %v4514 = vunpack.c.l.b16 %v4111
    %v4515 = vunpack.c.h.b16 %v4111
    %v4516 = vunpack.c.l.b16 %v4112
    %v4517 = vunpack.c.h.b16 %v4112
    %v4518 = vunpack.c.l.b16 %v4113
    %v4519 = vunpack.c.h.b16 %v4113
    %v4520 = vpack.c.b16 %v4268, %v4264
    %v4521 = vpack.c.b16 %v4269, %v4265
    %v4522 = vpack.c.b16 %v4270, %v4266
    %v4523 = vpack.c.b16 %v4271, %v4267
    %v4524 = vpack.c.b16 %v4276, %v4272
    %v4525 = vpack.c.b16 %v4277, %v4273
    %v4526 = vpack.c.b16 %v4278, %v4274
    %v4527 = vpack.c.b16 %v4279, %v4275
    %v4528 = vpack.c.b16 %v4284, %v4280
    %v4529 = vpack.c.b16 %v4285, %v4281
    %v4530 = vpack.c.b16 %v4286, %v4282
    %v4531 = vpack.c.b16 %v4287, %v4283
    %v4532 = vpack.c.b16 %v4292, %v4288
    %v4533 = vpack.c.b16 %v4293, %v4289
    %v4534 = vpack.c.b16 %v4294, %v4290
    %v4535 = vpack.c.b16 %v4295, %v4291
    %v4536 = vpack.c.b16 %v4300, %v4296
    %v4537 = vpack.c.b16 %v4301, %v4297
    %v4538 = vpack.c.b16 %v4302, %v4298
    %v4539 = vpack.c.b16 %v4303, %v4299
    %v4540 = vpack.c.b16 %v4308, %v4304
    %v4541 = vpack.c.b16 %v4309, %v4305
    %v4542 = vpack.c.b16 %v4310, %v4306
    %v4543 = vpack.c.b16 %v4311, %v4307
    %v4544 = vpack.c.b16 %v4316, %v4312
    %v4545 = vpack.c.b16 %v4317, %v4313
    %v4546 = vpack.c.b16 %v4318, %v4314
    %v4547 = vpack.c.b16 %v4319, %v4315
    %v4548 = vpack.c.b16 %v4324, %v4320
    %v4549 = vpack.c.b16 %v4325, %v4321
    %v4550 = vpack.c.b16 %v4326, %v4322
    %v4551 = vpack.c.b16 %v4327, %v4323
    %v4552 = vpack.c.b16 %v4332, %v4328
    %v4553 = vpack.c.b16 %v4333, %v4329
    %v4554 = vpack.c.b16 %v4334, %v4330
    %v4555 = vpack.c.b16 %v4335, %v4331
    %v4556 = vpack.c.b16 %v4340, %v4336
    %v4557 = vpack.c.b16 %v4341, %v4337
    %v4558 = vpack.c.b16 %v4342, %v4338
    %v4559 = vpack.c.b16 %v4343, %v4339
    %v4560 = vpack.c.b16 %v4348, %v4344
    %v4561 = vpack.c.b16 %v4349, %v4345
    %v4562 = vpack.c.b16 %v4350, %v4346
    %v4563 = vpack.c.b16 %v4351, %v4347
    %v4564 = vpack.c.b16 %v4356, %v4352
    %v4565 = vpack.c.b16 %v4357, %v4353
    %v4566 = vpack.c.b16 %v4358, %v4354
    %v4567 = vpack.c.b16 %v4359, %v4355
    %v4568 = vpack.c.b16 %v4364, %v4360
    %v4569 = vpack.c.b16 %v4365, %v4361
    %v4570 = vpack.c.b16 %v4366, %v4362
    %v4571 = vpack.c.b16 %v4367, %v4363
    %v4572 = vpack.c.b16 %v4372, %v4368
    %v4573 = vpack.c.b16 %v4373, %v4369
    %v4574 = vpack.c.b16 %v4374, %v4370
    %v4575 = vpack.c.b16 %v4375, %v4371
    %v4576 = vpack.c.b16 %v4380, %v4376
    %v4577 = vpack.c.b16 %v4381, %v4377
    %v4578 = vpack.c.b16 %v4382, %v4378
    %v4579 = vpack.c.b16 %v4383, %v4379
    %v4580 = vpack.c.b16 %v4388, %v4384
    %v4581 = vpack.c.b16 %v4389, %v4385
    %v4582 = vpack.c.b16 %v4390, %v4386
    %v4583 = vpack.c.b16 %v4391, %v4387
    %v4584 = vpack.c.b16 %v4396, %v4392
    %v4585 = vpack.c.b16 %v4397, %v4393
    %v4586 = vpack.c.b16 %v4398, %v4394
    %v4587 = vpack.c.b16 %v4399, %v4395
    %v4588 = vpack.c.b16 %v4404, %v4400
    %v4589 = vpack.c.b16 %v4405, %v4401
    %v4590 = vpack.c.b16 %v4406, %v4402
    %v4591 = vpack.c.b16 %v4407, %v4403
    %v4592 = vpack.c.b16 %v4412, %v4408
    %v4593 = vpack.c.b16 %v4413, %v4409
    %v4594 = vpack.c.b16 %v4414, %v4410
    %v4595 = vpack.c.b16 %v4415, %v4411
    %v4596 = vpack.c.b16 %v4420, %v4416
    %v4597 = vpack.c.b16 %v4421, %v4417
    %v4598 = vpack.c.b16 %v4422, %v4418
    %v4599 = vpack.c.b16 %v4423, %v4419
    %v4600 = vpack.c.b16 %v4428, %v4424
    %v4601 = vpack.c.b16 %v4429, %v4425
    %v4602 = vpack.c.b16 %v4430, %v4426
    %v4603 = vpack.c.b16 %v4431, %v4427
    %v4604 = vpack.c.b16 %v4436, %v4432
    %v4605 = vpack.c.b16 %v4437, %v4433
    %v4606 = vpack.c.b16 %v4438, %v4434
    %v4607 = vpack.c.b16 %v4439, %v4435
    %v4608 = vpack.c.b16 %v4444, %v4440
    %v4609 = vpack.c.b16 %v4445, %v4441
    %v4610 = vpack.c.b16 %v4446, %v4442
    %v4611 = vpack.c.b16 %v4447, %v4443
    %v4612 = vpack.c.b16 %v4452, %v4448
    %v4613 = vpack.c.b16 %v4453, %v4449
    %v4614 = vpack.c.b16 %v4454, %v4450
    %v4615 = vpack.c.b16 %v4455, %v4451
    %v4616 = vpack.c.b16 %v4460, %v4456
    %v4617 = vpack.c.b16 %v4461, %v4457
    %v4618 = vpack.c.b16 %v4462, %v4458
    %v4619 = vpack.c.b16 %v4463, %v4459
    %v4620 = vpack.c.b16 %v4468, %v4464
    %v4621 = vpack.c.b16 %v4469, %v4465
    %v4622 = vpack.c.b16 %v4470, %v4466
    %v4623 = vpack.c.b16 %v4471, %v4467
    %v4624 = vpack.c.b16 %v4476, %v4472
    %v4625 = vpack.c.b16 %v4477, %v4473
    %v4626 = vpack.c.b16 %v4478, %v4474
    %v4627 = vpack.c.b16 %v4479, %v4475
    %v4628 = vpack.c.b16 %v4484, %v4480
    %v4629 = vpack.c.b16 %v4485, %v4481
    %v4630 = vpack.c.b16 %v4486, %v4482
    %v4631 = vpack.c.b16 %v4487, %v4483
    %v4632 = vpack.c.b16 %v4492, %v4488
    %v4633 = vpack.c.b16 %v4493, %v4489
    %v4634 = vpack.c.b16 %v4494, %v4490
    %v4635 = vpack.c.b16 %v4495, %v4491
    %v4636 = vpack.c.b16 %v4500, %v4496
    %v4637 = vpack.c.b16 %v4501, %v4497
    %v4638 = vpack.c.b16 %v4502, %v4498
    %v4639 = vpack.c.b16 %v4503, %v4499
    %v4640 = vpack.c.b16 %v4508, %v4504
    %v4641 = vpack.c.b16 %v4509, %v4505
    %v4642 = vpack.c.b16 %v4510, %v4506
    %v4643 = vpack.c.b16 %v4511, %v4507
    %v4644 = vpack.c.b16 %v4516, %v4512
    %v4645 = vpack.c.b16 %v4517, %v4513
    %v4646 = vpack.c.b16 %v4518, %v4514
    %v4647 = vpack.c.b16 %v4519, %v4515
    %4776 = vmatprep.subr.bf16.mxu0 %v4521
    %4777 = vmatpush1.bf16.msra.mxu0 %v4520
    %4778 = vmatprep.subr.bf16.mxu0 %v4525
    %4779 = vmatpush1.bf16.msra.mxu0 %v4524
    %4780 = vmatprep.subr.bf16.mxu0 %v4529
    %4781 = vmatpush1.bf16.msra.mxu0 %v4528
    %4782 = vmatprep.subr.bf16.mxu0 %v4533
    %4783 = vmatpush1.bf16.msra.mxu0 %v4532
    %4784 = vmatprep.subr.bf16.mxu0 %v4537
    %4785 = vmatpush1.bf16.msra.mxu0 %v4536
    %4786 = vmatprep.subr.bf16.mxu0 %v4541
    %4787 = vmatpush1.bf16.msra.mxu0 %v4540
    %4788 = vmatprep.subr.bf16.mxu0 %v4545
    %4789 = vmatpush1.bf16.msra.mxu0 %v4544
    %4790 = vmatprep.subr.bf16.mxu0 %v4549
    %4791 = vmatpush1.bf16.msra.mxu0 %v4548
    %4792 = vmatprep.subr.bf16.mxu0 %v4553
    %4793 = vmatpush1.bf16.msra.mxu0 %v4552
    %4794 = vmatprep.subr.bf16.mxu0 %v4557
    %4795 = vmatpush1.bf16.msra.mxu0 %v4556
    %4796 = vmatprep.subr.bf16.mxu0 %v4561
    %4797 = vmatpush1.bf16.msra.mxu0 %v4560
    %4798 = vmatprep.subr.bf16.mxu0 %v4565
    %4799 = vmatpush1.bf16.msra.mxu0 %v4564
    %4800 = vmatprep.subr.bf16.mxu0 %v4569
    %4801 = vmatpush1.bf16.msra.mxu0 %v4568
    %4802 = vmatprep.subr.bf16.mxu0 %v4573
    %4803 = vmatpush1.bf16.msra.mxu0 %v4572
    %4804 = vmatprep.subr.bf16.mxu0 %v4577
    %4805 = vmatpush1.bf16.msra.mxu0 %v4576
    %4806 = vmatprep.subr.bf16.mxu0 %v4581
    %4807 = vmatpush1.bf16.msra.mxu0 %v4580
    %4808 = vmatprep.mubr.bf16.mxu0 %v123
    %4809 = vmatmul.mubr.bf16.gmra.mrb[0].mxu0 %v122
    %v4810 = vpop.f32.mrb[0].mxu0
    %v4811 = vadd.f32 %v4119, %v4810
    %v4812 = vpop.f32.mrb[0].mxu0
    %v4813 = vadd.f32 %v4123, %v4812
    %v4814 = vpop.f32.mrb[0].mxu0
    %v4815 = vadd.f32 %v4119, %v4814
    %v4816 = vpop.f32.mrb[0].mxu0
    %v4817 = vadd.f32 %v4123, %v4816
    %4818 = vdwg.mxu0
    %4819 = vmatprep.subr.bf16.mxu0 %v4585
    %4820 = vmatpush1.bf16.msra.mxu0 %v4584
    %4821 = vmatprep.subr.bf16.mxu0 %v4589
    %4822 = vmatpush1.bf16.msra.mxu0 %v4588
    %4823 = vmatprep.subr.bf16.mxu0 %v4593
    %4824 = vmatpush1.bf16.msra.mxu0 %v4592
    %4825 = vmatprep.subr.bf16.mxu0 %v4597
    %4826 = vmatpush1.bf16.msra.mxu0 %v4596
    %4827 = vmatprep.subr.bf16.mxu0 %v4601
    %4828 = vmatpush1.bf16.msra.mxu0 %v4600
    %4829 = vmatprep.subr.bf16.mxu0 %v4605
    %4830 = vmatpush1.bf16.msra.mxu0 %v4604
    %4831 = vmatprep.subr.bf16.mxu0 %v4609
    %4832 = vmatpush1.bf16.msra.mxu0 %v4608
    %4833 = vmatprep.subr.bf16.mxu0 %v4613
    %4834 = vmatpush1.bf16.msra.mxu0 %v4612
    %4835 = vmatprep.subr.bf16.mxu0 %v4617
    %4836 = vmatpush1.bf16.msra.mxu0 %v4616
    %4837 = vmatprep.subr.bf16.mxu0 %v4621
    %4838 = vmatpush1.bf16.msra.mxu0 %v4620
    %4839 = vmatprep.subr.bf16.mxu0 %v4625
    %4840 = vmatpush1.bf16.msra.mxu0 %v4624
    %4841 = vmatprep.subr.bf16.mxu0 %v4629
    %4842 = vmatpush1.bf16.msra.mxu0 %v4628
    %4843 = vmatprep.subr.bf16.mxu0 %v4633
    %4844 = vmatpush1.bf16.msra.mxu0 %v4632
    %4845 = vmatprep.subr.bf16.mxu0 %v4637
    %4846 = vmatpush1.bf16.msra.mxu0 %v4636
    %4847 = vmatprep.subr.bf16.mxu0 %v4641
    %4848 = vmatpush1.bf16.msra.mxu0 %v4640
    %4849 = vmatprep.subr.bf16.mxu0 %v4645
    %4850 = vmatpush1.bf16.msra.mxu0 %v4644
    %4851 = vmatprep.mubr.bf16.mxu0 %v125
    %4852 = vmatmul.mubr.bf16.gmra.mrb[0].mxu0 %v124
    %v4853 = vpop.f32.mrb[0].mxu0
    %v4854 = vadd.f32 %v4811, %v4853
    %v4855 = vpop.f32.mrb[0].mxu0
    %v4856 = vadd.f32 %v4813, %v4855
    %v4857 = vpop.f32.mrb[0].mxu0
    %v4858 = vadd.f32 %v4815, %v4857
    %v4859 = vpop.f32.mrb[0].mxu0
    %v4860 = vadd.f32 %v4817, %v4859
    %4861 = vdwg.mxu0
    %4862 = vmatprep.subr.bf16.mxu0 %v4523
    %4863 = vmatpush1.bf16.msra.mxu0 %v4522
    %4864 = vmatprep.subr.bf16.mxu0 %v4527
    %4865 = vmatpush1.bf16.msra.mxu0 %v4526
    %4866 = vmatprep.subr.bf16.mxu0 %v4531
    %4867 = vmatpush1.bf16.msra.mxu0 %v4530
    %4868 = vmatprep.subr.bf16.mxu0 %v4535
    %4869 = vmatpush1.bf16.msra.mxu0 %v4534
    %4870 = vmatprep.subr.bf16.mxu0 %v4539
    %4871 = vmatpush1.bf16.msra.mxu0 %v4538
    %4872 = vmatprep.subr.bf16.mxu0 %v4543
    %4873 = vmatpush1.bf16.msra.mxu0 %v4542
    %4874 = vmatprep.subr.bf16.mxu0 %v4547
    %4875 = vmatpush1.bf16.msra.mxu0 %v4546
    %4876 = vmatprep.subr.bf16.mxu0 %v4551
    %4877 = vmatpush1.bf16.msra.mxu0 %v4550
    %4878 = vmatprep.subr.bf16.mxu0 %v4555
    %4879 = vmatpush1.bf16.msra.mxu0 %v4554
    %4880 = vmatprep.subr.bf16.mxu0 %v4559
    %4881 = vmatpush1.bf16.msra.mxu0 %v4558
    %4882 = vmatprep.subr.bf16.mxu0 %v4563
    %4883 = vmatpush1.bf16.msra.mxu0 %v4562
    %4884 = vmatprep.subr.bf16.mxu0 %v4567
    %4885 = vmatpush1.bf16.msra.mxu0 %v4566
    %4886 = vmatprep.subr.bf16.mxu0 %v4571
    %4887 = vmatpush1.bf16.msra.mxu0 %v4570
    %4888 = vmatprep.subr.bf16.mxu0 %v4575
    %4889 = vmatpush1.bf16.msra.mxu0 %v4574
    %4890 = vmatprep.subr.bf16.mxu0 %v4579
    %4891 = vmatpush1.bf16.msra.mxu0 %v4578
    %4892 = vmatprep.subr.bf16.mxu0 %v4583
    %4893 = vmatpush1.bf16.msra.mxu0 %v4582
    %4894 = vmatprep.mubr.bf16.mxu0 %v123
    %4895 = vmatmul.mubr.bf16.gmra.mrb[0].mxu0 %v122
    %v4896 = vpop.f32.mrb[0].mxu0
    %v4897 = vadd.f32 %v4127, %v4896
    %v4898 = vpop.f32.mrb[0].mxu0
    %v4899 = vadd.f32 %v4131, %v4898
    %v4900 = vpop.f32.mrb[0].mxu0
    %v4901 = vadd.f32 %v4127, %v4900
    %v4902 = vpop.f32.mrb[0].mxu0
    %v4903 = vadd.f32 %v4131, %v4902
    %4904 = vdwg.mxu0
    %4905 = vmatprep.subr.bf16.mxu0 %v4587
    %4906 = vmatpush1.bf16.msra.mxu0 %v4586
    %4907 = vmatprep.subr.bf16.mxu0 %v4591
    %4908 = vmatpush1.bf16.msra.mxu0 %v4590
    %4909 = vmatprep.subr.bf16.mxu0 %v4595
    %4910 = vmatpush1.bf16.msra.mxu0 %v4594
    %4911 = vmatprep.subr.bf16.mxu0 %v4599
    %4912 = vmatpush1.bf16.msra.mxu0 %v4598
    %4913 = vmatprep.subr.bf16.mxu0 %v4603
    %4914 = vmatpush1.bf16.msra.mxu0 %v4602
    %4915 = vmatprep.subr.bf16.mxu0 %v4607
    %4916 = vmatpush1.bf16.msra.mxu0 %v4606
    %4917 = vmatprep.subr.bf16.mxu0 %v4611
    %4918 = vmatpush1.bf16.msra.mxu0 %v4610
    %4919 = vmatprep.subr.bf16.mxu0 %v4615
    %4920 = vmatpush1.bf16.msra.mxu0 %v4614
    %4921 = vmatprep.subr.bf16.mxu0 %v4619
    %4922 = vmatpush1.bf16.msra.mxu0 %v4618
    %4923 = vmatprep.subr.bf16.mxu0 %v4623
    %4924 = vmatpush1.bf16.msra.mxu0 %v4622
    %4925 = vmatprep.subr.bf16.mxu0 %v4627
    %4926 = vmatpush1.bf16.msra.mxu0 %v4626
    %4927 = vmatprep.subr.bf16.mxu0 %v4631
    %4928 = vmatpush1.bf16.msra.mxu0 %v4630
    %4929 = vmatprep.subr.bf16.mxu0 %v4635
    %4930 = vmatpush1.bf16.msra.mxu0 %v4634
    %4931 = vmatprep.subr.bf16.mxu0 %v4639
    %4932 = vmatpush1.bf16.msra.mxu0 %v4638
    %4933 = vmatprep.subr.bf16.mxu0 %v4643
    %4934 = vmatpush1.bf16.msra.mxu0 %v4642
    %4935 = vmatprep.subr.bf16.mxu0 %v4647
    %4936 = vmatpush1.bf16.msra.mxu0 %v4646
    %4937 = vmatprep.mubr.bf16.mxu0 %v125
    %4938 = vmatmul.mubr.bf16.gmra.mrb[0].mxu0 %v124
    %v4939 = vpop.f32.mrb[0].mxu0
    %v4940 = vadd.f32 %v4897, %v4939
    %v4941 = vpop.f32.mrb[0].mxu0
    %v4942 = vadd.f32 %v4899, %v4941
    %v4943 = vpop.f32.mrb[0].mxu0
    %v4944 = vadd.f32 %v4901, %v4943
    %v4945 = vpop.f32.mrb[0].mxu0
    %v4946 = vadd.f32 %v4903, %v4945
    %4947 = vdwg.mxu0
    %v4948 = vmax.f32 %v4854, 0.0
    %v4949 = vmax.f32 %v4856, 0.0
    %v4950 = vmax.f32 %v4940, 0.0
    %v4951 = vmax.f32 %v4942, 0.0
    %v4952 = vmax.f32 %v4858, 0.0
    %v4953 = vmax.f32 %v4860, 0.0
    %v4954 = vmax.f32 %v4944, 0.0
    %v4955 = vmax.f32 %v4946, 0.0
    %v4956 = vpack.c.bf16 %v4952, %v4948
    %v4957 = vpack.c.bf16 %v4953, %v4949
    %v4958 = vpack.c.bf16 %v4954, %v4950
    %v4959 = vpack.c.bf16 %v4955, %v4951
    %v4960 = vld [vmem:[#allocation9 + $0x800] sm:$0xff]
    %v4961 = vld [vmem:[#allocation9 + $0x808] sm:$0xff]
    %v4962 = vld [vmem:[#allocation9 + $0x810] sm:$0xff]
    %v4963 = vld [vmem:[#allocation9 + $0x818] sm:$0xff]
    %v4964 = vld [vmem:[#allocation9 + $0x820] sm:$0xff]
    %v4965 = vld [vmem:[#allocation9 + $0x828] sm:$0xff]
    %v4966 = vld [vmem:[#allocation9 + $0x830] sm:$0xff]
    %v4967 = vld [vmem:[#allocation9 + $0x838] sm:$0xff]
    %v4968 = vld [vmem:[#allocation9 + $0x840] sm:$0xff]
    %v4969 = vld [vmem:[#allocation9 + $0x848] sm:$0xff]
    %v4970 = vld [vmem:[#allocation9 + $0x850] sm:$0xff]
    %v4971 = vld [vmem:[#allocation9 + $0x858] sm:$0xff]
    %v4972 = vld [vmem:[#allocation9 + $0x860] sm:$0xff]
    %v4973 = vld [vmem:[#allocation9 + $0x868] sm:$0xff]
    %v4974 = vld [vmem:[#allocation9 + $0x870] sm:$0xff]
    %v4975 = vld [vmem:[#allocation9 + $0x878] sm:$0xff]
    %v4976 = vld [vmem:[#allocation9 + $0x880] sm:$0xff]
    %v4977 = vld [vmem:[#allocation9 + $0x888] sm:$0xff]
    %v4978 = vld [vmem:[#allocation9 + $0x890] sm:$0xff]
    %v4979 = vld [vmem:[#allocation9 + $0x898] sm:$0xff]
    %v4980 = vld [vmem:[#allocation9 + $0x8a0] sm:$0xff]
    %v4981 = vld [vmem:[#allocation9 + $0x8a8] sm:$0xff]
    %v4982 = vld [vmem:[#allocation9 + $0x8b0] sm:$0xff]
    %v4983 = vld [vmem:[#allocation9 + $0x8b8] sm:$0xff]
    %v4984 = vld [vmem:[#allocation9 + $0x8c0] sm:$0xff]
    %v4985 = vld [vmem:[#allocation9 + $0x8c8] sm:$0xff]
    %v4986 = vld [vmem:[#allocation9 + $0x8d0] sm:$0xff]
    %v4987 = vld [vmem:[#allocation9 + $0x8d8] sm:$0xff]
    %v4988 = vld [vmem:[#allocation9 + $0x8e0] sm:$0xff]
    %v4989 = vld [vmem:[#allocation9 + $0x8e8] sm:$0xff]
    %v4990 = vld [vmem:[#allocation9 + $0x8f0] sm:$0xff]
    %v4991 = vld [vmem:[#allocation9 + $0x8f8] sm:$0xff]
    %v4992 = vld [vmem:[#allocation9 + $0x900] sm:$0xff]
    %v4993 = vld [vmem:[#allocation9 + $0x908] sm:$0xff]
    %v4994 = vld [vmem:[#allocation9 + $0x910] sm:$0xff]
    %v4995 = vld [vmem:[#allocation9 + $0x918] sm:$0xff]
    %v4996 = vld [vmem:[#allocation9 + $0x920] sm:$0xff]
    %v4997 = vld [vmem:[#allocation9 + $0x928] sm:$0xff]
    %v4998 = vld [vmem:[#allocation9 + $0x930] sm:$0xff]
    %v4999 = vld [vmem:[#allocation9 + $0x938] sm:$0xff]
    %v5000 = vld [vmem:[#allocation9 + $0x940] sm:$0xff]
    %v5001 = vld [vmem:[#allocation9 + $0x948] sm:$0xff]
    %v5002 = vld [vmem:[#allocation9 + $0x950] sm:$0xff]
    %v5003 = vld [vmem:[#allocation9 + $0x958] sm:$0xff]
    %v5004 = vld [vmem:[#allocation9 + $0x960] sm:$0xff]
    %v5005 = vld [vmem:[#allocation9 + $0x968] sm:$0xff]
    %v5006 = vld [vmem:[#allocation9 + $0x970] sm:$0xff]
    %v5007 = vld [vmem:[#allocation9 + $0x978] sm:$0xff]
    %v5008 = vld [vmem:[#allocation9 + $0x980] sm:$0xff]
    %v5009 = vld [vmem:[#allocation9 + $0x988] sm:$0xff]
    %v5010 = vld [vmem:[#allocation9 + $0x990] sm:$0xff]
    %v5011 = vld [vmem:[#allocation9 + $0x998] sm:$0xff]
    %v5012 = vld [vmem:[#allocation9 + $0x9a0] sm:$0xff]
    %v5013 = vld [vmem:[#allocation9 + $0x9a8] sm:$0xff]
    %v5014 = vld [vmem:[#allocation9 + $0x9b0] sm:$0xff]
    %v5015 = vld [vmem:[#allocation9 + $0x9b8] sm:$0xff]
    %v5016 = vld [vmem:[#allocation9 + $0x9c0] sm:$0xff]
    %v5017 = vld [vmem:[#allocation9 + $0x9c8] sm:$0xff]
    %v5018 = vld [vmem:[#allocation9 + $0x9d0] sm:$0xff]
    %v5019 = vld [vmem:[#allocation9 + $0x9d8] sm:$0xff]
    %v5020 = vld [vmem:[#allocation9 + $0x9e0] sm:$0xff]
    %v5021 = vld [vmem:[#allocation9 + $0x9e8] sm:$0xff]
    %v5022 = vld [vmem:[#allocation9 + $0x9f0] sm:$0xff]
    %v5023 = vld [vmem:[#allocation9 + $0x9f8] sm:$0xff]
    %v5024 = vld [vmem:[#allocation9 + $0xa00] sm:$0xff]
    %v5025 = vld [vmem:[#allocation9 + $0xa08] sm:$0xff]
    %v5026 = vld [vmem:[#allocation9 + $0xa10] sm:$0xff]
    %v5027 = vld [vmem:[#allocation9 + $0xa18] sm:$0xff]
    %v5028 = vld [vmem:[#allocation9 + $0xa20] sm:$0xff]
    %v5029 = vld [vmem:[#allocation9 + $0xa28] sm:$0xff]
    %v5030 = vld [vmem:[#allocation9 + $0xa30] sm:$0xff]
    %v5031 = vld [vmem:[#allocation9 + $0xa38] sm:$0xff]
    %v5032 = vld [vmem:[#allocation9 + $0xa40] sm:$0xff]
    %v5033 = vld [vmem:[#allocation9 + $0xa48] sm:$0xff]
    %v5034 = vld [vmem:[#allocation9 + $0xa50] sm:$0xff]
    %v5035 = vld [vmem:[#allocation9 + $0xa58] sm:$0xff]
    %v5036 = vld [vmem:[#allocation9 + $0xa60] sm:$0xff]
    %v5037 = vld [vmem:[#allocation9 + $0xa68] sm:$0xff]
    %v5038 = vld [vmem:[#allocation9 + $0xa70] sm:$0xff]
    %v5039 = vld [vmem:[#allocation9 + $0xa78] sm:$0xff]
    %v5040 = vld [vmem:[#allocation9 + $0xa80] sm:$0xff]
    %v5041 = vld [vmem:[#allocation9 + $0xa88] sm:$0xff]
    %v5042 = vld [vmem:[#allocation9 + $0xa90] sm:$0xff]
    %v5043 = vld [vmem:[#allocation9 + $0xa98] sm:$0xff]
    %v5044 = vld [vmem:[#allocation9 + $0xaa0] sm:$0xff]
    %v5045 = vld [vmem:[#allocation9 + $0xaa8] sm:$0xff]
    %v5046 = vld [vmem:[#allocation9 + $0xab0] sm:$0xff]
    %v5047 = vld [vmem:[#allocation9 + $0xab8] sm:$0xff]
    %v5048 = vld [vmem:[#allocation9 + $0xac0] sm:$0xff]
    %v5049 = vld [vmem:[#allocation9 + $0xac8] sm:$0xff]
    %v5050 = vld [vmem:[#allocation9 + $0xad0] sm:$0xff]
    %v5051 = vld [vmem:[#allocation9 + $0xad8] sm:$0xff]
    %v5052 = vld [vmem:[#allocation9 + $0xae0] sm:$0xff]
    %v5053 = vld [vmem:[#allocation9 + $0xae8] sm:$0xff]
    %v5054 = vld [vmem:[#allocation9 + $0xaf0] sm:$0xff]
    %v5055 = vld [vmem:[#allocation9 + $0xaf8] sm:$0xff]
    %v5056 = vld [vmem:[#allocation9 + $0xb00] sm:$0xff]
    %v5057 = vld [vmem:[#allocation9 + $0xb08] sm:$0xff]
    %v5058 = vld [vmem:[#allocation9 + $0xb10] sm:$0xff]
    %v5059 = vld [vmem:[#allocation9 + $0xb18] sm:$0xff]
    %v5060 = vld [vmem:[#allocation9 + $0xb20] sm:$0xff]
    %v5061 = vld [vmem:[#allocation9 + $0xb28] sm:$0xff]
    %v5062 = vld [vmem:[#allocation9 + $0xb30] sm:$0xff]
    %v5063 = vld [vmem:[#allocation9 + $0xb38] sm:$0xff]
    %v5064 = vld [vmem:[#allocation9 + $0xb40] sm:$0xff]
    %v5065 = vld [vmem:[#allocation9 + $0xb48] sm:$0xff]
    %v5066 = vld [vmem:[#allocation9 + $0xb50] sm:$0xff]
    %v5067 = vld [vmem:[#allocation9 + $0xb58] sm:$0xff]
    %v5068 = vld [vmem:[#allocation9 + $0xb60] sm:$0xff]
    %v5069 = vld [vmem:[#allocation9 + $0xb68] sm:$0xff]
    %v5070 = vld [vmem:[#allocation9 + $0xb70] sm:$0xff]
    %v5071 = vld [vmem:[#allocation9 + $0xb78] sm:$0xff]
    %v5072 = vld [vmem:[#allocation9 + $0xb80] sm:$0xff]
    %v5073 = vld [vmem:[#allocation9 + $0xb88] sm:$0xff]
    %v5074 = vld [vmem:[#allocation9 + $0xb90] sm:$0xff]
    %v5075 = vld [vmem:[#allocation9 + $0xb98] sm:$0xff]
    %v5076 = vld [vmem:[#allocation9 + $0xba0] sm:$0xff]
    %v5077 = vld [vmem:[#allocation9 + $0xba8] sm:$0xff]
    %v5078 = vld [vmem:[#allocation9 + $0xbb0] sm:$0xff]
    %v5079 = vld [vmem:[#allocation9 + $0xbb8] sm:$0xff]
    %v5080 = vld [vmem:[#allocation9 + $0xbc0] sm:$0xff]
    %v5081 = vld [vmem:[#allocation9 + $0xbc8] sm:$0xff]
    %v5082 = vld [vmem:[#allocation9 + $0xbd0] sm:$0xff]
    %v5083 = vld [vmem:[#allocation9 + $0xbd8] sm:$0xff]
    %v5084 = vld [vmem:[#allocation9 + $0xbe0] sm:$0xff]
    %v5085 = vld [vmem:[#allocation9 + $0xbe8] sm:$0xff]
    %v5086 = vld [vmem:[#allocation9 + $0xbf0] sm:$0xff]
    %v5087 = vld [vmem:[#allocation9 + $0xbf8] sm:$0xff]
    %v5216 = vunpack.c.l.b16 %v4960
    %v5217 = vunpack.c.h.b16 %v4960
    %v5218 = vunpack.c.l.b16 %v4961
    %v5219 = vunpack.c.h.b16 %v4961
    %v5220 = vunpack.c.l.b16 %v4962
    %v5221 = vunpack.c.h.b16 %v4962
    %v5222 = vunpack.c.l.b16 %v4963
    %v5223 = vunpack.c.h.b16 %v4963
    %v5224 = vunpack.c.l.b16 %v4964
    %v5225 = vunpack.c.h.b16 %v4964
    %v5226 = vunpack.c.l.b16 %v4965
    %v5227 = vunpack.c.h.b16 %v4965
    %v5228 = vunpack.c.l.b16 %v4966
    %v5229 = vunpack.c.h.b16 %v4966
    %v5230 = vunpack.c.l.b16 %v4967
    %v5231 = vunpack.c.h.b16 %v4967
    %v5232 = vunpack.c.l.b16 %v4968
    %v5233 = vunpack.c.h.b16 %v4968
    %v5234 = vunpack.c.l.b16 %v4969
    %v5235 = vunpack.c.h.b16 %v4969
    %v5236 = vunpack.c.l.b16 %v4970
    %v5237 = vunpack.c.h.b16 %v4970
    %v5238 = vunpack.c.l.b16 %v4971
    %v5239 = vunpack.c.h.b16 %v4971
    %v5240 = vunpack.c.l.b16 %v4972
    %v5241 = vunpack.c.h.b16 %v4972
    %v5242 = vunpack.c.l.b16 %v4973
    %v5243 = vunpack.c.h.b16 %v4973
    %v5244 = vunpack.c.l.b16 %v4974
    %v5245 = vunpack.c.h.b16 %v4974
    %v5246 = vunpack.c.l.b16 %v4975
    %v5247 = vunpack.c.h.b16 %v4975
    %v5248 = vunpack.c.l.b16 %v4976
    %v5249 = vunpack.c.h.b16 %v4976
    %v5250 = vunpack.c.l.b16 %v4977
    %v5251 = vunpack.c.h.b16 %v4977
    %v5252 = vunpack.c.l.b16 %v4978
    %v5253 = vunpack.c.h.b16 %v4978
    %v5254 = vunpack.c.l.b16 %v4979
    %v5255 = vunpack.c.h.b16 %v4979
    %v5256 = vunpack.c.l.b16 %v4980
    %v5257 = vunpack.c.h.b16 %v4980
    %v5258 = vunpack.c.l.b16 %v4981
    %v5259 = vunpack.c.h.b16 %v4981
    %v5260 = vunpack.c.l.b16 %v4982
    %v5261 = vunpack.c.h.b16 %v4982
    %v5262 = vunpack.c.l.b16 %v4983
    %v5263 = vunpack.c.h.b16 %v4983
    %v5264 = vunpack.c.l.b16 %v4984
    %v5265 = vunpack.c.h.b16 %v4984
    %v5266 = vunpack.c.l.b16 %v4985
    %v5267 = vunpack.c.h.b16 %v4985
    %v5268 = vunpack.c.l.b16 %v4986
    %v5269 = vunpack.c.h.b16 %v4986
    %v5270 = vunpack.c.l.b16 %v4987
    %v5271 = vunpack.c.h.b16 %v4987
    %v5272 = vunpack.c.l.b16 %v4988
    %v5273 = vunpack.c.h.b16 %v4988
    %v5274 = vunpack.c.l.b16 %v4989
    %v5275 = vunpack.c.h.b16 %v4989
    %v5276 = vunpack.c.l.b16 %v4990
    %v5277 = vunpack.c.h.b16 %v4990
    %v5278 = vunpack.c.l.b16 %v4991
    %v5279 = vunpack.c.h.b16 %v4991
    %v5280 = vunpack.c.l.b16 %v4992
    %v5281 = vunpack.c.h.b16 %v4992
    %v5282 = vunpack.c.l.b16 %v4993
    %v5283 = vunpack.c.h.b16 %v4993
    %v5284 = vunpack.c.l.b16 %v4994
    %v5285 = vunpack.c.h.b16 %v4994
    %v5286 = vunpack.c.l.b16 %v4995
    %v5287 = vunpack.c.h.b16 %v4995
    %v5288 = vunpack.c.l.b16 %v4996
    %v5289 = vunpack.c.h.b16 %v4996
    %v5290 = vunpack.c.l.b16 %v4997
    %v5291 = vunpack.c.h.b16 %v4997
    %v5292 = vunpack.c.l.b16 %v4998
    %v5293 = vunpack.c.h.b16 %v4998
    %v5294 = vunpack.c.l.b16 %v4999
    %v5295 = vunpack.c.h.b16 %v4999
    %v5296 = vunpack.c.l.b16 %v5000
    %v5297 = vunpack.c.h.b16 %v5000
    %v5298 = vunpack.c.l.b16 %v5001
    %v5299 = vunpack.c.h.b16 %v5001
    %v5300 = vunpack.c.l.b16 %v5002
    %v5301 = vunpack.c.h.b16 %v5002
    %v5302 = vunpack.c.l.b16 %v5003
    %v5303 = vunpack.c.h.b16 %v5003
    %v5304 = vunpack.c.l.b16 %v5004
    %v5305 = vunpack.c.h.b16 %v5004
    %v5306 = vunpack.c.l.b16 %v5005
    %v5307 = vunpack.c.h.b16 %v5005
    %v5308 = vunpack.c.l.b16 %v5006
    %v5309 = vunpack.c.h.b16 %v5006
    %v5310 = vunpack.c.l.b16 %v5007
    %v5311 = vunpack.c.h.b16 %v5007
    %v5312 = vunpack.c.l.b16 %v5008
    %v5313 = vunpack.c.h.b16 %v5008
    %v5314 = vunpack.c.l.b16 %v5009
    %v5315 = vunpack.c.h.b16 %v5009
    %v5316 = vunpack.c.l.b16 %v5010
    %v5317 = vunpack.c.h.b16 %v5010
    %v5318 = vunpack.c.l.b16 %v5011
    %v5319 = vunpack.c.h.b16 %v5011
    %v5320 = vunpack.c.l.b16 %v5012
    %v5321 = vunpack.c.h.b16 %v5012
    %v5322 = vunpack.c.l.b16 %v5013
    %v5323 = vunpack.c.h.b16 %v5013
    %v5324 = vunpack.c.l.b16 %v5014
    %v5325 = vunpack.c.h.b16 %v5014
    %v5326 = vunpack.c.l.b16 %v5015
    %v5327 = vunpack.c.h.b16 %v5015
    %v5328 = vunpack.c.l.b16 %v5016
    %v5329 = vunpack.c.h.b16 %v5016
    %v5330 = vunpack.c.l.b16 %v5017
    %v5331 = vunpack.c.h.b16 %v5017
    %v5332 = vunpack.c.l.b16 %v5018
    %v5333 = vunpack.c.h.b16 %v5018
    %v5334 = vunpack.c.l.b16 %v5019
    %v5335 = vunpack.c.h.b16 %v5019
    %v5336 = vunpack.c.l.b16 %v5020
    %v5337 = vunpack.c.h.b16 %v5020
    %v5338 = vunpack.c.l.b16 %v5021
    %v5339 = vunpack.c.h.b16 %v5021
    %v5340 = vunpack.c.l.b16 %v5022
    %v5341 = vunpack.c.h.b16 %v5022
    %v5342 = vunpack.c.l.b16 %v5023
    %v5343 = vunpack.c.h.b16 %v5023
    %v5344 = vunpack.c.l.b16 %v5024
    %v5345 = vunpack.c.h.b16 %v5024
    %v5346 = vunpack.c.l.b16 %v5025
    %v5347 = vunpack.c.h.b16 %v5025
    %v5348 = vunpack.c.l.b16 %v5026
    %v5349 = vunpack.c.h.b16 %v5026
    %v5350 = vunpack.c.l.b16 %v5027
    %v5351 = vunpack.c.h.b16 %v5027
    %v5352 = vunpack.c.l.b16 %v5028
    %v5353 = vunpack.c.h.b16 %v5028
    %v5354 = vunpack.c.l.b16 %v5029
    %v5355 = vunpack.c.h.b16 %v5029
    %v5356 = vunpack.c.l.b16 %v5030
    %v5357 = vunpack.c.h.b16 %v5030
    %v5358 = vunpack.c.l.b16 %v5031
    %v5359 = vunpack.c.h.b16 %v5031
    %v5360 = vunpack.c.l.b16 %v5032
    %v5361 = vunpack.c.h.b16 %v5032
    %v5362 = vunpack.c.l.b16 %v5033
    %v5363 = vunpack.c.h.b16 %v5033
    %v5364 = vunpack.c.l.b16 %v5034
    %v5365 = vunpack.c.h.b16 %v5034
    %v5366 = vunpack.c.l.b16 %v5035
    %v5367 = vunpack.c.h.b16 %v5035
    %v5368 = vunpack.c.l.b16 %v5036
    %v5369 = vunpack.c.h.b16 %v5036
    %v5370 = vunpack.c.l.b16 %v5037
    %v5371 = vunpack.c.h.b16 %v5037
    %v5372 = vunpack.c.l.b16 %v5038
    %v5373 = vunpack.c.h.b16 %v5038
    %v5374 = vunpack.c.l.b16 %v5039
    %v5375 = vunpack.c.h.b16 %v5039
    %v5376 = vunpack.c.l.b16 %v5040
    %v5377 = vunpack.c.h.b16 %v5040
    %v5378 = vunpack.c.l.b16 %v5041
    %v5379 = vunpack.c.h.b16 %v5041
    %v5380 = vunpack.c.l.b16 %v5042
    %v5381 = vunpack.c.h.b16 %v5042
    %v5382 = vunpack.c.l.b16 %v5043
    %v5383 = vunpack.c.h.b16 %v5043
    %v5384 = vunpack.c.l.b16 %v5044
    %v5385 = vunpack.c.h.b16 %v5044
    %v5386 = vunpack.c.l.b16 %v5045
    %v5387 = vunpack.c.h.b16 %v5045
    %v5388 = vunpack.c.l.b16 %v5046
    %v5389 = vunpack.c.h.b16 %v5046
    %v5390 = vunpack.c.l.b16 %v5047
    %v5391 = vunpack.c.h.b16 %v5047
    %v5392 = vunpack.c.l.b16 %v5048
    %v5393 = vunpack.c.h.b16 %v5048
    %v5394 = vunpack.c.l.b16 %v5049
    %v5395 = vunpack.c.h.b16 %v5049
    %v5396 = vunpack.c.l.b16 %v5050
    %v5397 = vunpack.c.h.b16 %v5050
    %v5398 = vunpack.c.l.b16 %v5051
    %v5399 = vunpack.c.h.b16 %v5051
    %v5400 = vunpack.c.l.b16 %v5052
    %v5401 = vunpack.c.h.b16 %v5052
    %v5402 = vunpack.c.l.b16 %v5053
    %v5403 = vunpack.c.h.b16 %v5053
    %v5404 = vunpack.c.l.b16 %v5054
    %v5405 = vunpack.c.h.b16 %v5054
    %v5406 = vunpack.c.l.b16 %v5055
    %v5407 = vunpack.c.h.b16 %v5055
    %v5408 = vunpack.c.l.b16 %v5056
    %v5409 = vunpack.c.h.b16 %v5056
    %v5410 = vunpack.c.l.b16 %v5057
    %v5411 = vunpack.c.h.b16 %v5057
    %v5412 = vunpack.c.l.b16 %v5058
    %v5413 = vunpack.c.h.b16 %v5058
    %v5414 = vunpack.c.l.b16 %v5059
    %v5415 = vunpack.c.h.b16 %v5059
    %v5416 = vunpack.c.l.b16 %v5060
    %v5417 = vunpack.c.h.b16 %v5060
    %v5418 = vunpack.c.l.b16 %v5061
    %v5419 = vunpack.c.h.b16 %v5061
    %v5420 = vunpack.c.l.b16 %v5062
    %v5421 = vunpack.c.h.b16 %v5062
    %v5422 = vunpack.c.l.b16 %v5063
    %v5423 = vunpack.c.h.b16 %v5063
    %v5424 = vunpack.c.l.b16 %v5064
    %v5425 = vunpack.c.h.b16 %v5064
    %v5426 = vunpack.c.l.b16 %v5065
    %v5427 = vunpack.c.h.b16 %v5065
    %v5428 = vunpack.c.l.b16 %v5066
    %v5429 = vunpack.c.h.b16 %v5066
    %v5430 = vunpack.c.l.b16 %v5067
    %v5431 = vunpack.c.h.b16 %v5067
    %v5432 = vunpack.c.l.b16 %v5068
    %v5433 = vunpack.c.h.b16 %v5068
    %v5434 = vunpack.c.l.b16 %v5069
    %v5435 = vunpack.c.h.b16 %v5069
    %v5436 = vunpack.c.l.b16 %v5070
    %v5437 = vunpack.c.h.b16 %v5070
    %v5438 = vunpack.c.l.b16 %v5071
    %v5439 = vunpack.c.h.b16 %v5071
    %v5440 = vunpack.c.l.b16 %v5072
    %v5441 = vunpack.c.h.b16 %v5072
    %v5442 = vunpack.c.l.b16 %v5073
    %v5443 = vunpack.c.h.b16 %v5073
    %v5444 = vunpack.c.l.b16 %v5074
    %v5445 = vunpack.c.h.b16 %v5074
    %v5446 = vunpack.c.l.b16 %v5075
    %v5447 = vunpack.c.h.b16 %v5075
    %v5448 = vunpack.c.l.b16 %v5076
    %v5449 = vunpack.c.h.b16 %v5076
    %v5450 = vunpack.c.l.b16 %v5077
    %v5451 = vunpack.c.h.b16 %v5077
    %v5452 = vunpack.c.l.b16 %v5078
    %v5453 = vunpack.c.h.b16 %v5078
    %v5454 = vunpack.c.l.b16 %v5079
    %v5455 = vunpack.c.h.b16 %v5079
    %v5456 = vunpack.c.l.b16 %v5080
    %v5457 = vunpack.c.h.b16 %v5080
    %v5458 = vunpack.c.l.b16 %v5081
    %v5459 = vunpack.c.h.b16 %v5081
    %v5460 = vunpack.c.l.b16 %v5082
    %v5461 = vunpack.c.h.b16 %v5082
    %v5462 = vunpack.c.l.b16 %v5083
    %v5463 = vunpack.c.h.b16 %v5083
    %v5464 = vunpack.c.l.b16 %v5084
    %v5465 = vunpack.c.h.b16 %v5084
    %v5466 = vunpack.c.l.b16 %v5085
    %v5467 = vunpack.c.h.b16 %v5085
    %v5468 = vunpack.c.l.b16 %v5086
    %v5469 = vunpack.c.h.b16 %v5086
    %v5470 = vunpack.c.l.b16 %v5087
    %v5471 = vunpack.c.h.b16 %v5087
    %v5472 = vpack.c.b16 %v5220, %v5216
    %v5473 = vpack.c.b16 %v5221, %v5217
    %v5474 = vpack.c.b16 %v5222, %v5218
    %v5475 = vpack.c.b16 %v5223, %v5219
    %v5476 = vpack.c.b16 %v5228, %v5224
    %v5477 = vpack.c.b16 %v5229, %v5225
    %v5478 = vpack.c.b16 %v5230, %v5226
    %v5479 = vpack.c.b16 %v5231, %v5227
    %v5480 = vpack.c.b16 %v5236, %v5232
    %v5481 = vpack.c.b16 %v5237, %v5233
    %v5482 = vpack.c.b16 %v5238, %v5234
    %v5483 = vpack.c.b16 %v5239, %v5235
    %v5484 = vpack.c.b16 %v5244, %v5240
    %v5485 = vpack.c.b16 %v5245, %v5241
    %v5486 = vpack.c.b16 %v5246, %v5242
    %v5487 = vpack.c.b16 %v5247, %v5243
    %v5488 = vpack.c.b16 %v5252, %v5248
    %v5489 = vpack.c.b16 %v5253, %v5249
    %v5490 = vpack.c.b16 %v5254, %v5250
    %v5491 = vpack.c.b16 %v5255, %v5251
    %v5492 = vpack.c.b16 %v5260, %v5256
    %v5493 = vpack.c.b16 %v5261, %v5257
    %v5494 = vpack.c.b16 %v5262, %v5258
    %v5495 = vpack.c.b16 %v5263, %v5259
    %v5496 = vpack.c.b16 %v5268, %v5264
    %v5497 = vpack.c.b16 %v5269, %v5265
    %v5498 = vpack.c.b16 %v5270, %v5266
    %v5499 = vpack.c.b16 %v5271, %v5267
    %v5500 = vpack.c.b16 %v5276, %v5272
    %v5501 = vpack.c.b16 %v5277, %v5273
    %v5502 = vpack.c.b16 %v5278, %v5274
    %v5503 = vpack.c.b16 %v5279, %v5275
    %v5504 = vpack.c.b16 %v5284, %v5280
    %v5505 = vpack.c.b16 %v5285, %v5281
    %v5506 = vpack.c.b16 %v5286, %v5282
    %v5507 = vpack.c.b16 %v5287, %v5283
    %v5508 = vpack.c.b16 %v5292, %v5288
    %v5509 = vpack.c.b16 %v5293, %v5289
    %v5510 = vpack.c.b16 %v5294, %v5290
    %v5511 = vpack.c.b16 %v5295, %v5291
    %v5512 = vpack.c.b16 %v5300, %v5296
    %v5513 = vpack.c.b16 %v5301, %v5297
    %v5514 = vpack.c.b16 %v5302, %v5298
    %v5515 = vpack.c.b16 %v5303, %v5299
    %v5516 = vpack.c.b16 %v5308, %v5304
    %v5517 = vpack.c.b16 %v5309, %v5305
    %v5518 = vpack.c.b16 %v5310, %v5306
    %v5519 = vpack.c.b16 %v5311, %v5307
    %v5520 = vpack.c.b16 %v5316, %v5312
    %v5521 = vpack.c.b16 %v5317, %v5313
    %v5522 = vpack.c.b16 %v5318, %v5314
    %v5523 = vpack.c.b16 %v5319, %v5315
    %v5524 = vpack.c.b16 %v5324, %v5320
    %v5525 = vpack.c.b16 %v5325, %v5321
    %v5526 = vpack.c.b16 %v5326, %v5322
    %v5527 = vpack.c.b16 %v5327, %v5323
    %v5528 = vpack.c.b16 %v5332, %v5328
    %v5529 = vpack.c.b16 %v5333, %v5329
    %v5530 = vpack.c.b16 %v5334, %v5330
    %v5531 = vpack.c.b16 %v5335, %v5331
    %v5532 = vpack.c.b16 %v5340, %v5336
    %v5533 = vpack.c.b16 %v5341, %v5337
    %v5534 = vpack.c.b16 %v5342, %v5338
    %v5535 = vpack.c.b16 %v5343, %v5339
    %v5536 = vpack.c.b16 %v5348, %v5344
    %v5537 = vpack.c.b16 %v5349, %v5345
    %v5538 = vpack.c.b16 %v5350, %v5346
    %v5539 = vpack.c.b16 %v5351, %v5347
    %v5540 = vpack.c.b16 %v5356, %v5352
    %v5541 = vpack.c.b16 %v5357, %v5353
    %v5542 = vpack.c.b16 %v5358, %v5354
    %v5543 = vpack.c.b16 %v5359, %v5355
    %v5544 = vpack.c.b16 %v5364, %v5360
    %v5545 = vpack.c.b16 %v5365, %v5361
    %v5546 = vpack.c.b16 %v5366, %v5362
    %v5547 = vpack.c.b16 %v5367, %v5363
    %v5548 = vpack.c.b16 %v5372, %v5368
    %v5549 = vpack.c.b16 %v5373, %v5369
    %v5550 = vpack.c.b16 %v5374, %v5370
    %v5551 = vpack.c.b16 %v5375, %v5371
    %v5552 = vpack.c.b16 %v5380, %v5376
    %v5553 = vpack.c.b16 %v5381, %v5377
    %v5554 = vpack.c.b16 %v5382, %v5378
    %v5555 = vpack.c.b16 %v5383, %v5379
    %v5556 = vpack.c.b16 %v5388, %v5384
    %v5557 = vpack.c.b16 %v5389, %v5385
    %v5558 = vpack.c.b16 %v5390, %v5386
    %v5559 = vpack.c.b16 %v5391, %v5387
    %v5560 = vpack.c.b16 %v5396, %v5392
    %v5561 = vpack.c.b16 %v5397, %v5393
    %v5562 = vpack.c.b16 %v5398, %v5394
    %v5563 = vpack.c.b16 %v5399, %v5395
    %v5564 = vpack.c.b16 %v5404, %v5400
    %v5565 = vpack.c.b16 %v5405, %v5401
    %v5566 = vpack.c.b16 %v5406, %v5402
    %v5567 = vpack.c.b16 %v5407, %v5403
    %v5568 = vpack.c.b16 %v5412, %v5408
    %v5569 = vpack.c.b16 %v5413, %v5409
    %v5570 = vpack.c.b16 %v5414, %v5410
    %v5571 = vpack.c.b16 %v5415, %v5411
    %v5572 = vpack.c.b16 %v5420, %v5416
    %v5573 = vpack.c.b16 %v5421, %v5417
    %v5574 = vpack.c.b16 %v5422, %v5418
    %v5575 = vpack.c.b16 %v5423, %v5419
    %v5576 = vpack.c.b16 %v5428, %v5424
    %v5577 = vpack.c.b16 %v5429, %v5425
    %v5578 = vpack.c.b16 %v5430, %v5426
    %v5579 = vpack.c.b16 %v5431, %v5427
    %v5580 = vpack.c.b16 %v5436, %v5432
    %v5581 = vpack.c.b16 %v5437, %v5433
    %v5582 = vpack.c.b16 %v5438, %v5434
    %v5583 = vpack.c.b16 %v5439, %v5435
    %v5584 = vpack.c.b16 %v5444, %v5440
    %v5585 = vpack.c.b16 %v5445, %v5441
    %v5586 = vpack.c.b16 %v5446, %v5442
    %v5587 = vpack.c.b16 %v5447, %v5443
    %v5588 = vpack.c.b16 %v5452, %v5448
    %v5589 = vpack.c.b16 %v5453, %v5449
    %v5590 = vpack.c.b16 %v5454, %v5450
    %v5591 = vpack.c.b16 %v5455, %v5451
    %v5592 = vpack.c.b16 %v5460, %v5456
    %v5593 = vpack.c.b16 %v5461, %v5457
    %v5594 = vpack.c.b16 %v5462, %v5458
    %v5595 = vpack.c.b16 %v5463, %v5459
    %v5596 = vpack.c.b16 %v5468, %v5464
    %v5597 = vpack.c.b16 %v5469, %v5465
    %v5598 = vpack.c.b16 %v5470, %v5466
    %v5599 = vpack.c.b16 %v5471, %v5467
    %5728 = vmatprep.subr.bf16.mxu0 %v5473
    %5729 = vmatpush1.bf16.msra.mxu0 %v5472
    %5730 = vmatprep.subr.bf16.mxu0 %v5477
    %5731 = vmatpush1.bf16.msra.mxu0 %v5476
    %5732 = vmatprep.subr.bf16.mxu0 %v5481
    %5733 = vmatpush1.bf16.msra.mxu0 %v5480
    %5734 = vmatprep.subr.bf16.mxu0 %v5485
    %5735 = vmatpush1.bf16.msra.mxu0 %v5484
    %5736 = vmatprep.subr.bf16.mxu0 %v5489
    %5737 = vmatpush1.bf16.msra.mxu0 %v5488
    %5738 = vmatprep.subr.bf16.mxu0 %v5493
    %5739 = vmatpush1.bf16.msra.mxu0 %v5492
    %5740 = vmatprep.subr.bf16.mxu0 %v5497
    %5741 = vmatpush1.bf16.msra.mxu0 %v5496
    %5742 = vmatprep.subr.bf16.mxu0 %v5501
    %5743 = vmatpush1.bf16.msra.mxu0 %v5500
    %5744 = vmatprep.subr.bf16.mxu0 %v5505
    %5745 = vmatpush1.bf16.msra.mxu0 %v5504
    %5746 = vmatprep.subr.bf16.mxu0 %v5509
    %5747 = vmatpush1.bf16.msra.mxu0 %v5508
    %5748 = vmatprep.subr.bf16.mxu0 %v5513
    %5749 = vmatpush1.bf16.msra.mxu0 %v5512
    %5750 = vmatprep.subr.bf16.mxu0 %v5517
    %5751 = vmatpush1.bf16.msra.mxu0 %v5516
    %5752 = vmatprep.subr.bf16.mxu0 %v5521
    %5753 = vmatpush1.bf16.msra.mxu0 %v5520
    %5754 = vmatprep.subr.bf16.mxu0 %v5525
    %5755 = vmatpush1.bf16.msra.mxu0 %v5524
    %5756 = vmatprep.subr.bf16.mxu0 %v5529
    %5757 = vmatpush1.bf16.msra.mxu0 %v5528
    %5758 = vmatprep.subr.bf16.mxu0 %v5533
    %5759 = vmatpush1.bf16.msra.mxu0 %v5532
    %5760 = vmatprep.mubr.bf16.mxu0 %v4957
    %5761 = vmatmul.mubr.bf16.gmra.mrb[0].mxu0 %v4956
    %v5762 = vpop.f32.mrb[0].mxu0
    %v5763 = vadd.f32 0.0, %v5762
    %v5764 = vpop.f32.mrb[0].mxu0
    %v5765 = vadd.f32 0.0, %v5764
    %v5766 = vpop.f32.mrb[0].mxu0
    %v5767 = vadd.f32 0.0, %v5766
    %v5768 = vpop.f32.mrb[0].mxu0
    %v5769 = vadd.f32 0.0, %v5768
    %5770 = vdwg.mxu0
    %5771 = vmatprep.subr.bf16.mxu0 %v5537
    %5772 = vmatpush1.bf16.msra.mxu0 %v5536
    %5773 = vmatprep.subr.bf16.mxu0 %v5541
    %5774 = vmatpush1.bf16.msra.mxu0 %v5540
    %5775 = vmatprep.subr.bf16.mxu0 %v5545
    %5776 = vmatpush1.bf16.msra.mxu0 %v5544
    %5777 = vmatprep.subr.bf16.mxu0 %v5549
    %5778 = vmatpush1.bf16.msra.mxu0 %v5548
    %5779 = vmatprep.subr.bf16.mxu0 %v5553
    %5780 = vmatpush1.bf16.msra.mxu0 %v5552
    %5781 = vmatprep.subr.bf16.mxu0 %v5557
    %5782 = vmatpush1.bf16.msra.mxu0 %v5556
    %5783 = vmatprep.subr.bf16.mxu0 %v5561
    %5784 = vmatpush1.bf16.msra.mxu0 %v5560
    %5785 = vmatprep.subr.bf16.mxu0 %v5565
    %5786 = vmatpush1.bf16.msra.mxu0 %v5564
    %5787 = vmatprep.subr.bf16.mxu0 %v5569
    %5788 = vmatpush1.bf16.msra.mxu0 %v5568
    %5789 = vmatprep.subr.bf16.mxu0 %v5573
    %5790 = vmatpush1.bf16.msra.mxu0 %v5572
    %5791 = vmatprep.subr.bf16.mxu0 %v5577
    %5792 = vmatpush1.bf16.msra.mxu0 %v5576
    %5793 = vmatprep.subr.bf16.mxu0 %v5581
    %5794 = vmatpush1.bf16.msra.mxu0 %v5580
    %5795 = vmatprep.subr.bf16.mxu0 %v5585
    %5796 = vmatpush1.bf16.msra.mxu0 %v5584
    %5797 = vmatprep.subr.bf16.mxu0 %v5589
    %5798 = vmatpush1.bf16.msra.mxu0 %v5588
    %5799 = vmatprep.subr.bf16.mxu0 %v5593
    %5800 = vmatpush1.bf16.msra.mxu0 %v5592
    %5801 = vmatprep.subr.bf16.mxu0 %v5597
    %5802 = vmatpush1.bf16.msra.mxu0 %v5596
    %5803 = vmatprep.mubr.bf16.mxu0 %v4959
    %5804 = vmatmul.mubr.bf16.gmra.mrb[0].mxu0 %v4958
    %v5805 = vpop.f32.mrb[0].mxu0
    %v5806 = vadd.f32 %v5763, %v5805
    %v5807 = vpop.f32.mrb[0].mxu0
    %v5808 = vadd.f32 %v5765, %v5807
    %v5809 = vpop.f32.mrb[0].mxu0
    %v5810 = vadd.f32 %v5767, %v5809
    %v5811 = vpop.f32.mrb[0].mxu0
    %v5812 = vadd.f32 %v5769, %v5811
    %5813 = vdwg.mxu0
    %5814 = vmatprep.subr.bf16.mxu0 %v5475
    %5815 = vmatpush1.bf16.msra.mxu0 %v5474
    %5816 = vmatprep.subr.bf16.mxu0 %v5479
    %5817 = vmatpush1.bf16.msra.mxu0 %v5478
    %5818 = vmatprep.subr.bf16.mxu0 %v5483
    %5819 = vmatpush1.bf16.msra.mxu0 %v5482
    %5820 = vmatprep.subr.bf16.mxu0 %v5487
    %5821 = vmatpush1.bf16.msra.mxu0 %v5486
    %5822 = vmatprep.subr.bf16.mxu0 %v5491
    %5823 = vmatpush1.bf16.msra.mxu0 %v5490
    %5824 = vmatprep.subr.bf16.mxu0 %v5495
    %5825 = vmatpush1.bf16.msra.mxu0 %v5494
    %5826 = vmatprep.subr.bf16.mxu0 %v5499
    %5827 = vmatpush1.bf16.msra.mxu0 %v5498
    %5828 = vmatprep.subr.bf16.mxu0 %v5503
    %5829 = vmatpush1.bf16.msra.mxu0 %v5502
    %5830 = vmatprep.subr.bf16.mxu0 %v5507
    %5831 = vmatpush1.bf16.msra.mxu0 %v5506
    %5832 = vmatprep.subr.bf16.mxu0 %v5511
    %5833 = vmatpush1.bf16.msra.mxu0 %v5510
    %5834 = vmatprep.subr.bf16.mxu0 %v5515
    %5835 = vmatpush1.bf16.msra.mxu0 %v5514
    %5836 = vmatprep.subr.bf16.mxu0 %v5519
    %5837 = vmatpush1.bf16.msra.mxu0 %v5518
    %5838 = vmatprep.subr.bf16.mxu0 %v5523
    %5839 = vmatpush1.bf16.msra.mxu0 %v5522
    %5840 = vmatprep.subr.bf16.mxu0 %v5527
    %5841 = vmatpush1.bf16.msra.mxu0 %v5526
    %5842 = vmatprep.subr.bf16.mxu0 %v5531
    %5843 = vmatpush1.bf16.msra.mxu0 %v5530
    %5844 = vmatprep.subr.bf16.mxu0 %v5535
    %5845 = vmatpush1.bf16.msra.mxu0 %v5534
    %5846 = vmatprep.mubr.bf16.mxu0 %v4957
    %5847 = vmatmul.mubr.bf16.gmra.mrb[0].mxu0 %v4956
    %v5848 = vpop.f32.mrb[0].mxu0
    %v5849 = vadd.f32 0.0, %v5848
    %v5850 = vpop.f32.mrb[0].mxu0
    %v5851 = vadd.f32 0.0, %v5850
    %v5852 = vpop.f32.mrb[0].mxu0
    %v5853 = vadd.f32 0.0, %v5852
    %v5854 = vpop.f32.mrb[0].mxu0
    %v5855 = vadd.f32 0.0, %v5854
    %5856 = vdwg.mxu0
    %5857 = vmatprep.subr.bf16.mxu0 %v5539
    %5858 = vmatpush1.bf16.msra.mxu0 %v5538
    %5859 = vmatprep.subr.bf16.mxu0 %v5543
    %5860 = vmatpush1.bf16.msra.mxu0 %v5542
    %5861 = vmatprep.subr.bf16.mxu0 %v5547
    %5862 = vmatpush1.bf16.msra.mxu0 %v5546
    %5863 = vmatprep.subr.bf16.mxu0 %v5551
    %5864 = vmatpush1.bf16.msra.mxu0 %v5550
    %5865 = vmatprep.subr.bf16.mxu0 %v5555
    %5866 = vmatpush1.bf16.msra.mxu0 %v5554
    %5867 = vmatprep.subr.bf16.mxu0 %v5559
    %5868 = vmatpush1.bf16.msra.mxu0 %v5558
    %5869 = vmatprep.subr.bf16.mxu0 %v5563
    %5870 = vmatpush1.bf16.msra.mxu0 %v5562
    %5871 = vmatprep.subr.bf16.mxu0 %v5567
    %5872 = vmatpush1.bf16.msra.mxu0 %v5566
    %5873 = vmatprep.subr.bf16.mxu0 %v5571
    %5874 = vmatpush1.bf16.msra.mxu0 %v5570
    %5875 = vmatprep.subr.bf16.mxu0 %v5575
    %5876 = vmatpush1.bf16.msra.mxu0 %v5574
    %5877 = vmatprep.subr.bf16.mxu0 %v5579
    %5878 = vmatpush1.bf16.msra.mxu0 %v5578
    %5879 = vmatprep.subr.bf16.mxu0 %v5583
    %5880 = vmatpush1.bf16.msra.mxu0 %v5582
    %5881 = vmatprep.subr.bf16.mxu0 %v5587
    %5882 = vmatpush1.bf16.msra.mxu0 %v5586
    %5883 = vmatprep.subr.bf16.mxu0 %v5591
    %5884 = vmatpush1.bf16.msra.mxu0 %v5590
    %5885 = vmatprep.subr.bf16.mxu0 %v5595
    %5886 = vmatpush1.bf16.msra.mxu0 %v5594
    %5887 = vmatprep.subr.bf16.mxu0 %v5599
    %5888 = vmatpush1.bf16.msra.mxu0 %v5598
    %5889 = vmatprep.mubr.bf16.mxu0 %v4959
    %5890 = vmatmul.mubr.bf16.gmra.mrb[0].mxu0 %v4958
    %v5891 = vpop.f32.mrb[0].mxu0
    %v5892 = vadd.f32 %v5849, %v5891
    %v5893 = vpop.f32.mrb[0].mxu0
    %v5894 = vadd.f32 %v5851, %v5893
    %v5895 = vpop.f32.mrb[0].mxu0
    %v5896 = vadd.f32 %v5853, %v5895
    %v5897 = vpop.f32.mrb[0].mxu0
    %v5898 = vadd.f32 %v5855, %v5897
    %5899 = vdwg.mxu0
    %v5900 = vld [vmem:[#allocation2] sm:$0xff]
    %v5901 = vld [vmem:[#allocation2 + $0x8] sm:$0xff]
    %v5902 = vld [vmem:[#allocation2 + $0x10] sm:$0xff]
    %v5903 = vld [vmem:[#allocation2 + $0x18] sm:$0xff]
    %v5904 = vld [vmem:[#allocation2 + $0x20] sm:$0xff]
    %v5905 = vld [vmem:[#allocation2 + $0x28] sm:$0xff]
    %v5906 = vld [vmem:[#allocation2 + $0x30] sm:$0xff]
    %v5907 = vld [vmem:[#allocation2 + $0x38] sm:$0xff]
    %v5908 = vadd.f32 %v5900, %v5806
    %v5909 = vadd.f32 %v5901, %v5808
    %v5910 = vadd.f32 %v5902, %v5892
    %v5911 = vadd.f32 %v5903, %v5894
    %v5912 = vadd.f32 %v5904, %v5810
    %v5913 = vadd.f32 %v5905, %v5812
    %v5914 = vadd.f32 %v5906, %v5896
    %v5915 = vadd.f32 %v5907, %v5898
    %5916 = vst [vmem:[#allocation2] sm:$0xff] %v5908
    %5917 = vst [vmem:[#allocation2 + $0x8] sm:$0xff] %v5909
    %5918 = vst [vmem:[#allocation2 + $0x10] sm:$0xff] %v5910
    %5919 = vst [vmem:[#allocation2 + $0x18] sm:$0xff] %v5911
    %5920 = vst [vmem:[#allocation2 + $0x20] sm:$0xff] %v5912
    %5921 = vst [vmem:[#allocation2 + $0x28] sm:$0xff] %v5913
    %5922 = vst [vmem:[#allocation2 + $0x30] sm:$0xff] %v5914
    %5923 = vst [vmem:[#allocation2 + $0x38] sm:$0xff] %v5915
    %v5924 = vld [vmem:[#allocation6 + $0x30] sm:$0xff]
    %v5925 = vld [vmem:[#allocation6 + $0x38] sm:$0xff]
    %v5926 = vld [vmem:[#allocation6 + $0x70] sm:$0xff]
    %v5927 = vld [vmem:[#allocation6 + $0x78] sm:$0xff]
    %v5928 = vld [vmem:[#allocation6 + $0xb0] sm:$0xff]
    %v5929 = vld [vmem:[#allocation6 + $0xb8] sm:$0xff]
    %v5930 = vld [vmem:[#allocation6 + $0xf0] sm:$0xff]
    %v5931 = vld [vmem:[#allocation6 + $0xf8] sm:$0xff]
    %v5932 = vld [vmem:[#allocation6 + $0x130] sm:$0xff]
    %v5933 = vld [vmem:[#allocation6 + $0x138] sm:$0xff]
    %v5934 = vld [vmem:[#allocation6 + $0x170] sm:$0xff]
    %v5935 = vld [vmem:[#allocation6 + $0x178] sm:$0xff]
    %v5936 = vld [vmem:[#allocation6 + $0x1b0] sm:$0xff]
    %v5937 = vld [vmem:[#allocation6 + $0x1b8] sm:$0xff]
    %v5938 = vld [vmem:[#allocation6 + $0x1f0] sm:$0xff]
    %v5939 = vld [vmem:[#allocation6 + $0x1f8] sm:$0xff]
    %v5940 = vld [vmem:[#allocation6 + $0x230] sm:$0xff]
    %v5941 = vld [vmem:[#allocation6 + $0x238] sm:$0xff]
    %v5942 = vld [vmem:[#allocation6 + $0x270] sm:$0xff]
    %v5943 = vld [vmem:[#allocation6 + $0x278] sm:$0xff]
    %v5944 = vld [vmem:[#allocation6 + $0x2b0] sm:$0xff]
    %v5945 = vld [vmem:[#allocation6 + $0x2b8] sm:$0xff]
    %v5946 = vld [vmem:[#allocation6 + $0x2f0] sm:$0xff]
    %v5947 = vld [vmem:[#allocation6 + $0x2f8] sm:$0xff]
    %v5948 = vld [vmem:[#allocation6 + $0x330] sm:$0xff]
    %v5949 = vld [vmem:[#allocation6 + $0x338] sm:$0xff]
    %v5950 = vld [vmem:[#allocation6 + $0x370] sm:$0xff]
    %v5951 = vld [vmem:[#allocation6 + $0x378] sm:$0xff]
    %v5952 = vld [vmem:[#allocation6 + $0x3b0] sm:$0xff]
    %v5953 = vld [vmem:[#allocation6 + $0x3b8] sm:$0xff]
    %v5954 = vld [vmem:[#allocation6 + $0x3f0] sm:$0xff]
    %v5955 = vld [vmem:[#allocation6 + $0x3f8] sm:$0xff]
    %v5956 = vld [vmem:[#allocation6 + $0x430] sm:$0xff]
    %v5957 = vld [vmem:[#allocation6 + $0x438] sm:$0xff]
    %v5958 = vld [vmem:[#allocation6 + $0x470] sm:$0xff]
    %v5959 = vld [vmem:[#allocation6 + $0x478] sm:$0xff]
    %v5960 = vld [vmem:[#allocation6 + $0x4b0] sm:$0xff]
    %v5961 = vld [vmem:[#allocation6 + $0x4b8] sm:$0xff]
    %v5962 = vld [vmem:[#allocation6 + $0x4f0] sm:$0xff]
    %v5963 = vld [vmem:[#allocation6 + $0x4f8] sm:$0xff]
    %v5964 = vld [vmem:[#allocation6 + $0x530] sm:$0xff]
    %v5965 = vld [vmem:[#allocation6 + $0x538] sm:$0xff]
    %v5966 = vld [vmem:[#allocation6 + $0x570] sm:$0xff]
    %v5967 = vld [vmem:[#allocation6 + $0x578] sm:$0xff]
    %v5968 = vld [vmem:[#allocation6 + $0x5b0] sm:$0xff]
    %v5969 = vld [vmem:[#allocation6 + $0x5b8] sm:$0xff]
    %v5970 = vld [vmem:[#allocation6 + $0x5f0] sm:$0xff]
    %v5971 = vld [vmem:[#allocation6 + $0x5f8] sm:$0xff]
    %v5972 = vld [vmem:[#allocation6 + $0x630] sm:$0xff]
    %v5973 = vld [vmem:[#allocation6 + $0x638] sm:$0xff]
    %v5974 = vld [vmem:[#allocation6 + $0x670] sm:$0xff]
    %v5975 = vld [vmem:[#allocation6 + $0x678] sm:$0xff]
    %v5976 = vld [vmem:[#allocation6 + $0x6b0] sm:$0xff]
    %v5977 = vld [vmem:[#allocation6 + $0x6b8] sm:$0xff]
    %v5978 = vld [vmem:[#allocation6 + $0x6f0] sm:$0xff]
    %v5979 = vld [vmem:[#allocation6 + $0x6f8] sm:$0xff]
    %v5980 = vld [vmem:[#allocation6 + $0x730] sm:$0xff]
    %v5981 = vld [vmem:[#allocation6 + $0x738] sm:$0xff]
    %v5982 = vld [vmem:[#allocation6 + $0x770] sm:$0xff]
    %v5983 = vld [vmem:[#allocation6 + $0x778] sm:$0xff]
    %v5984 = vld [vmem:[#allocation6 + $0x7b0] sm:$0xff]
    %v5985 = vld [vmem:[#allocation6 + $0x7b8] sm:$0xff]
    %v5986 = vld [vmem:[#allocation6 + $0x7f0] sm:$0xff]
    %v5987 = vld [vmem:[#allocation6 + $0x7f8] sm:$0xff]
    %v5988 = vld [vmem:[#allocation6 + $0x830] sm:$0xff]
    %v5989 = vld [vmem:[#allocation6 + $0x838] sm:$0xff]
    %v5990 = vld [vmem:[#allocation6 + $0x870] sm:$0xff]
    %v5991 = vld [vmem:[#allocation6 + $0x878] sm:$0xff]
    %v5992 = vld [vmem:[#allocation6 + $0x8b0] sm:$0xff]
    %v5993 = vld [vmem:[#allocation6 + $0x8b8] sm:$0xff]
    %v5994 = vld [vmem:[#allocation6 + $0x8f0] sm:$0xff]
    %v5995 = vld [vmem:[#allocation6 + $0x8f8] sm:$0xff]
    %v5996 = vld [vmem:[#allocation6 + $0x930] sm:$0xff]
    %v5997 = vld [vmem:[#allocation6 + $0x938] sm:$0xff]
    %v5998 = vld [vmem:[#allocation6 + $0x970] sm:$0xff]
    %v5999 = vld [vmem:[#allocation6 + $0x978] sm:$0xff]
    %v6000 = vld [vmem:[#allocation6 + $0x9b0] sm:$0xff]
    %v6001 = vld [vmem:[#allocation6 + $0x9b8] sm:$0xff]
    %v6002 = vld [vmem:[#allocation6 + $0x9f0] sm:$0xff]
    %v6003 = vld [vmem:[#allocation6 + $0x9f8] sm:$0xff]
    %v6004 = vld [vmem:[#allocation6 + $0xa30] sm:$0xff]
    %v6005 = vld [vmem:[#allocation6 + $0xa38] sm:$0xff]
    %v6006 = vld [vmem:[#allocation6 + $0xa70] sm:$0xff]
    %v6007 = vld [vmem:[#allocation6 + $0xa78] sm:$0xff]
    %v6008 = vld [vmem:[#allocation6 + $0xab0] sm:$0xff]
    %v6009 = vld [vmem:[#allocation6 + $0xab8] sm:$0xff]
    %v6010 = vld [vmem:[#allocation6 + $0xaf0] sm:$0xff]
    %v6011 = vld [vmem:[#allocation6 + $0xaf8] sm:$0xff]
    %v6012 = vld [vmem:[#allocation6 + $0xb30] sm:$0xff]
    %v6013 = vld [vmem:[#allocation6 + $0xb38] sm:$0xff]
    %v6014 = vld [vmem:[#allocation6 + $0xb70] sm:$0xff]
    %v6015 = vld [vmem:[#allocation6 + $0xb78] sm:$0xff]
    %v6016 = vld [vmem:[#allocation6 + $0xbb0] sm:$0xff]
    %v6017 = vld [vmem:[#allocation6 + $0xbb8] sm:$0xff]
    %v6018 = vld [vmem:[#allocation6 + $0xbf0] sm:$0xff]
    %v6019 = vld [vmem:[#allocation6 + $0xbf8] sm:$0xff]
    %v6020 = vld [vmem:[#allocation6 + $0xc30] sm:$0xff]
    %v6021 = vld [vmem:[#allocation6 + $0xc38] sm:$0xff]
    %v6022 = vld [vmem:[#allocation6 + $0xc70] sm:$0xff]
    %v6023 = vld [vmem:[#allocation6 + $0xc78] sm:$0xff]
    %v6024 = vld [vmem:[#allocation6 + $0xcb0] sm:$0xff]
    %v6025 = vld [vmem:[#allocation6 + $0xcb8] sm:$0xff]
    %v6026 = vld [vmem:[#allocation6 + $0xcf0] sm:$0xff]
    %v6027 = vld [vmem:[#allocation6 + $0xcf8] sm:$0xff]
    %v6028 = vld [vmem:[#allocation6 + $0xd30] sm:$0xff]
    %v6029 = vld [vmem:[#allocation6 + $0xd38] sm:$0xff]
    %v6030 = vld [vmem:[#allocation6 + $0xd70] sm:$0xff]
    %v6031 = vld [vmem:[#allocation6 + $0xd78] sm:$0xff]
    %v6032 = vld [vmem:[#allocation6 + $0xdb0] sm:$0xff]
    %v6033 = vld [vmem:[#allocation6 + $0xdb8] sm:$0xff]
    %v6034 = vld [vmem:[#allocation6 + $0xdf0] sm:$0xff]
    %v6035 = vld [vmem:[#allocation6 + $0xdf8] sm:$0xff]
    %v6036 = vld [vmem:[#allocation6 + $0xe30] sm:$0xff]
    %v6037 = vld [vmem:[#allocation6 + $0xe38] sm:$0xff]
    %v6038 = vld [vmem:[#allocation6 + $0xe70] sm:$0xff]
    %v6039 = vld [vmem:[#allocation6 + $0xe78] sm:$0xff]
    %v6040 = vld [vmem:[#allocation6 + $0xeb0] sm:$0xff]
    %v6041 = vld [vmem:[#allocation6 + $0xeb8] sm:$0xff]
    %v6042 = vld [vmem:[#allocation6 + $0xef0] sm:$0xff]
    %v6043 = vld [vmem:[#allocation6 + $0xef8] sm:$0xff]
    %v6044 = vld [vmem:[#allocation6 + $0xf30] sm:$0xff]
    %v6045 = vld [vmem:[#allocation6 + $0xf38] sm:$0xff]
    %v6046 = vld [vmem:[#allocation6 + $0xf70] sm:$0xff]
    %v6047 = vld [vmem:[#allocation6 + $0xf78] sm:$0xff]
    %v6048 = vld [vmem:[#allocation6 + $0xfb0] sm:$0xff]
    %v6049 = vld [vmem:[#allocation6 + $0xfb8] sm:$0xff]
    %v6050 = vld [vmem:[#allocation6 + $0xff0] sm:$0xff]
    %v6051 = vld [vmem:[#allocation6 + $0xff8] sm:$0xff]
    %v6052 = vld [vmem:[#allocation8 + $0xc] sm:$0xf]
    %v6054 = vlaneseq
    %v6055 = vshrl.u32 %v6054, 7
    %v6056 = vsub.s32 0, %v6055
    %v6057 = vrot.slane %v6052, %v6056
    %v6058 = vlaneseq
    %v6059 = vshrl.u32 %v6058, 7
    %v6060 = vsub.s32 1, %v6059
    %v6061 = vrot.slane %v6052, %v6060
    %v6062 = vlaneseq
    %v6063 = vshrl.u32 %v6062, 7
    %v6064 = vsub.s32 2, %v6063
    %v6065 = vrot.slane %v6052, %v6064
    %v6066 = vlaneseq
    %v6067 = vshrl.u32 %v6066, 7
    %v6068 = vsub.s32 3, %v6067
    %v6069 = vrot.slane %v6052, %v6068
    %v6202 = vunpack.c.l.b16 %v5924
    %v6203 = vunpack.c.h.b16 %v5924
    %v6204 = vunpack.c.l.b16 %v5925
    %v6205 = vunpack.c.h.b16 %v5925
    %v6206 = vunpack.c.l.b16 %v5926
    %v6207 = vunpack.c.h.b16 %v5926
    %v6208 = vunpack.c.l.b16 %v5927
    %v6209 = vunpack.c.h.b16 %v5927
    %v6210 = vunpack.c.l.b16 %v5928
    %v6211 = vunpack.c.h.b16 %v5928
    %v6212 = vunpack.c.l.b16 %v5929
    %v6213 = vunpack.c.h.b16 %v5929
    %v6214 = vunpack.c.l.b16 %v5930
    %v6215 = vunpack.c.h.b16 %v5930
    %v6216 = vunpack.c.l.b16 %v5931
    %v6217 = vunpack.c.h.b16 %v5931
    %v6218 = vunpack.c.l.b16 %v5932
    %v6219 = vunpack.c.h.b16 %v5932
    %v6220 = vunpack.c.l.b16 %v5933
    %v6221 = vunpack.c.h.b16 %v5933
    %v6222 = vunpack.c.l.b16 %v5934
    %v6223 = vunpack.c.h.b16 %v5934
    %v6224 = vunpack.c.l.b16 %v5935
    %v6225 = vunpack.c.h.b16 %v5935
    %v6226 = vunpack.c.l.b16 %v5936
    %v6227 = vunpack.c.h.b16 %v5936
    %v6228 = vunpack.c.l.b16 %v5937
    %v6229 = vunpack.c.h.b16 %v5937
    %v6230 = vunpack.c.l.b16 %v5938
    %v6231 = vunpack.c.h.b16 %v5938
    %v6232 = vunpack.c.l.b16 %v5939
    %v6233 = vunpack.c.h.b16 %v5939
    %v6234 = vunpack.c.l.b16 %v5940
    %v6235 = vunpack.c.h.b16 %v5940
    %v6236 = vunpack.c.l.b16 %v5941
    %v6237 = vunpack.c.h.b16 %v5941
    %v6238 = vunpack.c.l.b16 %v5942
    %v6239 = vunpack.c.h.b16 %v5942
    %v6240 = vunpack.c.l.b16 %v5943
    %v6241 = vunpack.c.h.b16 %v5943
    %v6242 = vunpack.c.l.b16 %v5944
    %v6243 = vunpack.c.h.b16 %v5944
    %v6244 = vunpack.c.l.b16 %v5945
    %v6245 = vunpack.c.h.b16 %v5945
    %v6246 = vunpack.c.l.b16 %v5946
    %v6247 = vunpack.c.h.b16 %v5946
    %v6248 = vunpack.c.l.b16 %v5947
    %v6249 = vunpack.c.h.b16 %v5947
    %v6250 = vunpack.c.l.b16 %v5948
    %v6251 = vunpack.c.h.b16 %v5948
    %v6252 = vunpack.c.l.b16 %v5949
    %v6253 = vunpack.c.h.b16 %v5949
    %v6254 = vunpack.c.l.b16 %v5950
    %v6255 = vunpack.c.h.b16 %v5950
    %v6256 = vunpack.c.l.b16 %v5951
    %v6257 = vunpack.c.h.b16 %v5951
    %v6258 = vunpack.c.l.b16 %v5952
    %v6259 = vunpack.c.h.b16 %v5952
    %v6260 = vunpack.c.l.b16 %v5953
    %v6261 = vunpack.c.h.b16 %v5953
    %v6262 = vunpack.c.l.b16 %v5954
    %v6263 = vunpack.c.h.b16 %v5954
    %v6264 = vunpack.c.l.b16 %v5955
    %v6265 = vunpack.c.h.b16 %v5955
    %v6266 = vunpack.c.l.b16 %v5956
    %v6267 = vunpack.c.h.b16 %v5956
    %v6268 = vunpack.c.l.b16 %v5957
    %v6269 = vunpack.c.h.b16 %v5957
    %v6270 = vunpack.c.l.b16 %v5958
    %v6271 = vunpack.c.h.b16 %v5958
    %v6272 = vunpack.c.l.b16 %v5959
    %v6273 = vunpack.c.h.b16 %v5959
    %v6274 = vunpack.c.l.b16 %v5960
    %v6275 = vunpack.c.h.b16 %v5960
    %v6276 = vunpack.c.l.b16 %v5961
    %v6277 = vunpack.c.h.b16 %v5961
    %v6278 = vunpack.c.l.b16 %v5962
    %v6279 = vunpack.c.h.b16 %v5962
    %v6280 = vunpack.c.l.b16 %v5963
    %v6281 = vunpack.c.h.b16 %v5963
    %v6282 = vunpack.c.l.b16 %v5964
    %v6283 = vunpack.c.h.b16 %v5964
    %v6284 = vunpack.c.l.b16 %v5965
    %v6285 = vunpack.c.h.b16 %v5965
    %v6286 = vunpack.c.l.b16 %v5966
    %v6287 = vunpack.c.h.b16 %v5966
    %v6288 = vunpack.c.l.b16 %v5967
    %v6289 = vunpack.c.h.b16 %v5967
    %v6290 = vunpack.c.l.b16 %v5968
    %v6291 = vunpack.c.h.b16 %v5968
    %v6292 = vunpack.c.l.b16 %v5969
    %v6293 = vunpack.c.h.b16 %v5969
    %v6294 = vunpack.c.l.b16 %v5970
    %v6295 = vunpack.c.h.b16 %v5970
    %v6296 = vunpack.c.l.b16 %v5971
    %v6297 = vunpack.c.h.b16 %v5971
    %v6298 = vunpack.c.l.b16 %v5972
    %v6299 = vunpack.c.h.b16 %v5972
    %v6300 = vunpack.c.l.b16 %v5973
    %v6301 = vunpack.c.h.b16 %v5973
    %v6302 = vunpack.c.l.b16 %v5974
    %v6303 = vunpack.c.h.b16 %v5974
    %v6304 = vunpack.c.l.b16 %v5975
    %v6305 = vunpack.c.h.b16 %v5975
    %v6306 = vunpack.c.l.b16 %v5976
    %v6307 = vunpack.c.h.b16 %v5976
    %v6308 = vunpack.c.l.b16 %v5977
    %v6309 = vunpack.c.h.b16 %v5977
    %v6310 = vunpack.c.l.b16 %v5978
    %v6311 = vunpack.c.h.b16 %v5978
    %v6312 = vunpack.c.l.b16 %v5979
    %v6313 = vunpack.c.h.b16 %v5979
    %v6314 = vunpack.c.l.b16 %v5980
    %v6315 = vunpack.c.h.b16 %v5980
    %v6316 = vunpack.c.l.b16 %v5981
    %v6317 = vunpack.c.h.b16 %v5981
    %v6318 = vunpack.c.l.b16 %v5982
    %v6319 = vunpack.c.h.b16 %v5982
    %v6320 = vunpack.c.l.b16 %v5983
    %v6321 = vunpack.c.h.b16 %v5983
    %v6322 = vunpack.c.l.b16 %v5984
    %v6323 = vunpack.c.h.b16 %v5984
    %v6324 = vunpack.c.l.b16 %v5985
    %v6325 = vunpack.c.h.b16 %v5985
    %v6326 = vunpack.c.l.b16 %v5986
    %v6327 = vunpack.c.h.b16 %v5986
    %v6328 = vunpack.c.l.b16 %v5987
    %v6329 = vunpack.c.h.b16 %v5987
    %v6330 = vunpack.c.l.b16 %v5988
    %v6331 = vunpack.c.h.b16 %v5988
    %v6332 = vunpack.c.l.b16 %v5989
    %v6333 = vunpack.c.h.b16 %v5989
    %v6334 = vunpack.c.l.b16 %v5990
    %v6335 = vunpack.c.h.b16 %v5990
    %v6336 = vunpack.c.l.b16 %v5991
    %v6337 = vunpack.c.h.b16 %v5991
    %v6338 = vunpack.c.l.b16 %v5992
    %v6339 = vunpack.c.h.b16 %v5992
    %v6340 = vunpack.c.l.b16 %v5993
    %v6341 = vunpack.c.h.b16 %v5993
    %v6342 = vunpack.c.l.b16 %v5994
    %v6343 = vunpack.c.h.b16 %v5994
    %v6344 = vunpack.c.l.b16 %v5995
    %v6345 = vunpack.c.h.b16 %v5995
    %v6346 = vunpack.c.l.b16 %v5996
    %v6347 = vunpack.c.h.b16 %v5996
    %v6348 = vunpack.c.l.b16 %v5997
    %v6349 = vunpack.c.h.b16 %v5997
    %v6350 = vunpack.c.l.b16 %v5998
    %v6351 = vunpack.c.h.b16 %v5998
    %v6352 = vunpack.c.l.b16 %v5999
    %v6353 = vunpack.c.h.b16 %v5999
    %v6354 = vunpack.c.l.b16 %v6000
    %v6355 = vunpack.c.h.b16 %v6000
    %v6356 = vunpack.c.l.b16 %v6001
    %v6357 = vunpack.c.h.b16 %v6001
    %v6358 = vunpack.c.l.b16 %v6002
    %v6359 = vunpack.c.h.b16 %v6002
    %v6360 = vunpack.c.l.b16 %v6003
    %v6361 = vunpack.c.h.b16 %v6003
    %v6362 = vunpack.c.l.b16 %v6004
    %v6363 = vunpack.c.h.b16 %v6004
    %v6364 = vunpack.c.l.b16 %v6005
    %v6365 = vunpack.c.h.b16 %v6005
    %v6366 = vunpack.c.l.b16 %v6006
    %v6367 = vunpack.c.h.b16 %v6006
    %v6368 = vunpack.c.l.b16 %v6007
    %v6369 = vunpack.c.h.b16 %v6007
    %v6370 = vunpack.c.l.b16 %v6008
    %v6371 = vunpack.c.h.b16 %v6008
    %v6372 = vunpack.c.l.b16 %v6009
    %v6373 = vunpack.c.h.b16 %v6009
    %v6374 = vunpack.c.l.b16 %v6010
    %v6375 = vunpack.c.h.b16 %v6010
    %v6376 = vunpack.c.l.b16 %v6011
    %v6377 = vunpack.c.h.b16 %v6011
    %v6378 = vunpack.c.l.b16 %v6012
    %v6379 = vunpack.c.h.b16 %v6012
    %v6380 = vunpack.c.l.b16 %v6013
    %v6381 = vunpack.c.h.b16 %v6013
    %v6382 = vunpack.c.l.b16 %v6014
    %v6383 = vunpack.c.h.b16 %v6014
    %v6384 = vunpack.c.l.b16 %v6015
    %v6385 = vunpack.c.h.b16 %v6015
    %v6386 = vunpack.c.l.b16 %v6016
    %v6387 = vunpack.c.h.b16 %v6016
    %v6388 = vunpack.c.l.b16 %v6017
    %v6389 = vunpack.c.h.b16 %v6017
    %v6390 = vunpack.c.l.b16 %v6018
    %v6391 = vunpack.c.h.b16 %v6018
    %v6392 = vunpack.c.l.b16 %v6019
    %v6393 = vunpack.c.h.b16 %v6019
    %v6394 = vunpack.c.l.b16 %v6020
    %v6395 = vunpack.c.h.b16 %v6020
    %v6396 = vunpack.c.l.b16 %v6021
    %v6397 = vunpack.c.h.b16 %v6021
    %v6398 = vunpack.c.l.b16 %v6022
    %v6399 = vunpack.c.h.b16 %v6022
    %v6400 = vunpack.c.l.b16 %v6023
    %v6401 = vunpack.c.h.b16 %v6023
    %v6402 = vunpack.c.l.b16 %v6024
    %v6403 = vunpack.c.h.b16 %v6024
    %v6404 = vunpack.c.l.b16 %v6025
    %v6405 = vunpack.c.h.b16 %v6025
    %v6406 = vunpack.c.l.b16 %v6026
    %v6407 = vunpack.c.h.b16 %v6026
    %v6408 = vunpack.c.l.b16 %v6027
    %v6409 = vunpack.c.h.b16 %v6027
    %v6410 = vunpack.c.l.b16 %v6028
    %v6411 = vunpack.c.h.b16 %v6028
    %v6412 = vunpack.c.l.b16 %v6029
    %v6413 = vunpack.c.h.b16 %v6029
    %v6414 = vunpack.c.l.b16 %v6030
    %v6415 = vunpack.c.h.b16 %v6030
    %v6416 = vunpack.c.l.b16 %v6031
    %v6417 = vunpack.c.h.b16 %v6031
    %v6418 = vunpack.c.l.b16 %v6032
    %v6419 = vunpack.c.h.b16 %v6032
    %v6420 = vunpack.c.l.b16 %v6033
    %v6421 = vunpack.c.h.b16 %v6033
    %v6422 = vunpack.c.l.b16 %v6034
    %v6423 = vunpack.c.h.b16 %v6034
    %v6424 = vunpack.c.l.b16 %v6035
    %v6425 = vunpack.c.h.b16 %v6035
    %v6426 = vunpack.c.l.b16 %v6036
    %v6427 = vunpack.c.h.b16 %v6036
    %v6428 = vunpack.c.l.b16 %v6037
    %v6429 = vunpack.c.h.b16 %v6037
    %v6430 = vunpack.c.l.b16 %v6038
    %v6431 = vunpack.c.h.b16 %v6038
    %v6432 = vunpack.c.l.b16 %v6039
    %v6433 = vunpack.c.h.b16 %v6039
    %v6434 = vunpack.c.l.b16 %v6040
    %v6435 = vunpack.c.h.b16 %v6040
    %v6436 = vunpack.c.l.b16 %v6041
    %v6437 = vunpack.c.h.b16 %v6041
    %v6438 = vunpack.c.l.b16 %v6042
    %v6439 = vunpack.c.h.b16 %v6042
    %v6440 = vunpack.c.l.b16 %v6043
    %v6441 = vunpack.c.h.b16 %v6043
    %v6442 = vunpack.c.l.b16 %v6044
    %v6443 = vunpack.c.h.b16 %v6044
    %v6444 = vunpack.c.l.b16 %v6045
    %v6445 = vunpack.c.h.b16 %v6045
    %v6446 = vunpack.c.l.b16 %v6046
    %v6447 = vunpack.c.h.b16 %v6046
    %v6448 = vunpack.c.l.b16 %v6047
    %v6449 = vunpack.c.h.b16 %v6047
    %v6450 = vunpack.c.l.b16 %v6048
    %v6451 = vunpack.c.h.b16 %v6048
    %v6452 = vunpack.c.l.b16 %v6049
    %v6453 = vunpack.c.h.b16 %v6049
    %v6454 = vunpack.c.l.b16 %v6050
    %v6455 = vunpack.c.h.b16 %v6050
    %v6456 = vunpack.c.l.b16 %v6051
    %v6457 = vunpack.c.h.b16 %v6051
    %v6458 = vpack.c.b16 %v6206, %v6202
    %v6459 = vpack.c.b16 %v6207, %v6203
    %v6460 = vpack.c.b16 %v6208, %v6204
    %v6461 = vpack.c.b16 %v6209, %v6205
    %v6462 = vpack.c.b16 %v6214, %v6210
    %v6463 = vpack.c.b16 %v6215, %v6211
    %v6464 = vpack.c.b16 %v6216, %v6212
    %v6465 = vpack.c.b16 %v6217, %v6213
    %v6466 = vpack.c.b16 %v6222, %v6218
    %v6467 = vpack.c.b16 %v6223, %v6219
    %v6468 = vpack.c.b16 %v6224, %v6220
    %v6469 = vpack.c.b16 %v6225, %v6221
    %v6470 = vpack.c.b16 %v6230, %v6226
    %v6471 = vpack.c.b16 %v6231, %v6227
    %v6472 = vpack.c.b16 %v6232, %v6228
    %v6473 = vpack.c.b16 %v6233, %v6229
    %v6474 = vpack.c.b16 %v6238, %v6234
    %v6475 = vpack.c.b16 %v6239, %v6235
    %v6476 = vpack.c.b16 %v6240, %v6236
    %v6477 = vpack.c.b16 %v6241, %v6237
    %v6478 = vpack.c.b16 %v6246, %v6242
    %v6479 = vpack.c.b16 %v6247, %v6243
    %v6480 = vpack.c.b16 %v6248, %v6244
    %v6481 = vpack.c.b16 %v6249, %v6245
    %v6482 = vpack.c.b16 %v6254, %v6250
    %v6483 = vpack.c.b16 %v6255, %v6251
    %v6484 = vpack.c.b16 %v6256, %v6252
    %v6485 = vpack.c.b16 %v6257, %v6253
    %v6486 = vpack.c.b16 %v6262, %v6258
    %v6487 = vpack.c.b16 %v6263, %v6259
    %v6488 = vpack.c.b16 %v6264, %v6260
    %v6489 = vpack.c.b16 %v6265, %v6261
    %v6490 = vpack.c.b16 %v6270, %v6266
    %v6491 = vpack.c.b16 %v6271, %v6267
    %v6492 = vpack.c.b16 %v6272, %v6268
    %v6493 = vpack.c.b16 %v6273, %v6269
    %v6494 = vpack.c.b16 %v6278, %v6274
    %v6495 = vpack.c.b16 %v6279, %v6275
    %v6496 = vpack.c.b16 %v6280, %v6276
    %v6497 = vpack.c.b16 %v6281, %v6277
    %v6498 = vpack.c.b16 %v6286, %v6282
    %v6499 = vpack.c.b16 %v6287, %v6283
    %v6500 = vpack.c.b16 %v6288, %v6284
    %v6501 = vpack.c.b16 %v6289, %v6285
    %v6502 = vpack.c.b16 %v6294, %v6290
    %v6503 = vpack.c.b16 %v6295, %v6291
    %v6504 = vpack.c.b16 %v6296, %v6292
    %v6505 = vpack.c.b16 %v6297, %v6293
    %v6506 = vpack.c.b16 %v6302, %v6298
    %v6507 = vpack.c.b16 %v6303, %v6299
    %v6508 = vpack.c.b16 %v6304, %v6300
    %v6509 = vpack.c.b16 %v6305, %v6301
    %v6510 = vpack.c.b16 %v6310, %v6306
    %v6511 = vpack.c.b16 %v6311, %v6307
    %v6512 = vpack.c.b16 %v6312, %v6308
    %v6513 = vpack.c.b16 %v6313, %v6309
    %v6514 = vpack.c.b16 %v6318, %v6314
    %v6515 = vpack.c.b16 %v6319, %v6315
    %v6516 = vpack.c.b16 %v6320, %v6316
    %v6517 = vpack.c.b16 %v6321, %v6317
    %v6518 = vpack.c.b16 %v6326, %v6322
    %v6519 = vpack.c.b16 %v6327, %v6323
    %v6520 = vpack.c.b16 %v6328, %v6324
    %v6521 = vpack.c.b16 %v6329, %v6325
    %v6522 = vpack.c.b16 %v6334, %v6330
    %v6523 = vpack.c.b16 %v6335, %v6331
    %v6524 = vpack.c.b16 %v6336, %v6332
    %v6525 = vpack.c.b16 %v6337, %v6333
    %v6526 = vpack.c.b16 %v6342, %v6338
    %v6527 = vpack.c.b16 %v6343, %v6339
    %v6528 = vpack.c.b16 %v6344, %v6340
    %v6529 = vpack.c.b16 %v6345, %v6341
    %v6530 = vpack.c.b16 %v6350, %v6346
    %v6531 = vpack.c.b16 %v6351, %v6347
    %v6532 = vpack.c.b16 %v6352, %v6348
    %v6533 = vpack.c.b16 %v6353, %v6349
    %v6534 = vpack.c.b16 %v6358, %v6354
    %v6535 = vpack.c.b16 %v6359, %v6355
    %v6536 = vpack.c.b16 %v6360, %v6356
    %v6537 = vpack.c.b16 %v6361, %v6357
    %v6538 = vpack.c.b16 %v6366, %v6362
    %v6539 = vpack.c.b16 %v6367, %v6363
    %v6540 = vpack.c.b16 %v6368, %v6364
    %v6541 = vpack.c.b16 %v6369, %v6365
    %v6542 = vpack.c.b16 %v6374, %v6370
    %v6543 = vpack.c.b16 %v6375, %v6371
    %v6544 = vpack.c.b16 %v6376, %v6372
    %v6545 = vpack.c.b16 %v6377, %v6373
    %v6546 = vpack.c.b16 %v6382, %v6378
    %v6547 = vpack.c.b16 %v6383, %v6379
    %v6548 = vpack.c.b16 %v6384, %v6380
    %v6549 = vpack.c.b16 %v6385, %v6381
    %v6550 = vpack.c.b16 %v6390, %v6386
    %v6551 = vpack.c.b16 %v6391, %v6387
    %v6552 = vpack.c.b16 %v6392, %v6388
    %v6553 = vpack.c.b16 %v6393, %v6389
    %v6554 = vpack.c.b16 %v6398, %v6394
    %v6555 = vpack.c.b16 %v6399, %v6395
    %v6556 = vpack.c.b16 %v6400, %v6396
    %v6557 = vpack.c.b16 %v6401, %v6397
    %v6558 = vpack.c.b16 %v6406, %v6402
    %v6559 = vpack.c.b16 %v6407, %v6403
    %v6560 = vpack.c.b16 %v6408, %v6404
    %v6561 = vpack.c.b16 %v6409, %v6405
    %v6562 = vpack.c.b16 %v6414, %v6410
    %v6563 = vpack.c.b16 %v6415, %v6411
    %v6564 = vpack.c.b16 %v6416, %v6412
    %v6565 = vpack.c.b16 %v6417, %v6413
    %v6566 = vpack.c.b16 %v6422, %v6418
    %v6567 = vpack.c.b16 %v6423, %v6419
    %v6568 = vpack.c.b16 %v6424, %v6420
    %v6569 = vpack.c.b16 %v6425, %v6421
    %v6570 = vpack.c.b16 %v6430, %v6426
    %v6571 = vpack.c.b16 %v6431, %v6427
    %v6572 = vpack.c.b16 %v6432, %v6428
    %v6573 = vpack.c.b16 %v6433, %v6429
    %v6574 = vpack.c.b16 %v6438, %v6434
    %v6575 = vpack.c.b16 %v6439, %v6435
    %v6576 = vpack.c.b16 %v6440, %v6436
    %v6577 = vpack.c.b16 %v6441, %v6437
    %v6578 = vpack.c.b16 %v6446, %v6442
    %v6579 = vpack.c.b16 %v6447, %v6443
    %v6580 = vpack.c.b16 %v6448, %v6444
    %v6581 = vpack.c.b16 %v6449, %v6445
    %v6582 = vpack.c.b16 %v6454, %v6450
    %v6583 = vpack.c.b16 %v6455, %v6451
    %v6584 = vpack.c.b16 %v6456, %v6452
    %v6585 = vpack.c.b16 %v6457, %v6453
    %6714 = vmatprep.subr.bf16.mxu0 %v6459
    %6715 = vmatpush1.bf16.msra.mxu0 %v6458
    %6716 = vmatprep.subr.bf16.mxu0 %v6463
    %6717 = vmatpush1.bf16.msra.mxu0 %v6462
    %6718 = vmatprep.subr.bf16.mxu0 %v6467
    %6719 = vmatpush1.bf16.msra.mxu0 %v6466
    %6720 = vmatprep.subr.bf16.mxu0 %v6471
    %6721 = vmatpush1.bf16.msra.mxu0 %v6470
    %6722 = vmatprep.subr.bf16.mxu0 %v6475
    %6723 = vmatpush1.bf16.msra.mxu0 %v6474
    %6724 = vmatprep.subr.bf16.mxu0 %v6479
    %6725 = vmatpush1.bf16.msra.mxu0 %v6478
    %6726 = vmatprep.subr.bf16.mxu0 %v6483
    %6727 = vmatpush1.bf16.msra.mxu0 %v6482
    %6728 = vmatprep.subr.bf16.mxu0 %v6487
    %6729 = vmatpush1.bf16.msra.mxu0 %v6486
    %6730 = vmatprep.subr.bf16.mxu0 %v6491
    %6731 = vmatpush1.bf16.msra.mxu0 %v6490
    %6732 = vmatprep.subr.bf16.mxu0 %v6495
    %6733 = vmatpush1.bf16.msra.mxu0 %v6494
    %6734 = vmatprep.subr.bf16.mxu0 %v6499
    %6735 = vmatpush1.bf16.msra.mxu0 %v6498
    %6736 = vmatprep.subr.bf16.mxu0 %v6503
    %6737 = vmatpush1.bf16.msra.mxu0 %v6502
    %6738 = vmatprep.subr.bf16.mxu0 %v6507
    %6739 = vmatpush1.bf16.msra.mxu0 %v6506
    %6740 = vmatprep.subr.bf16.mxu0 %v6511
    %6741 = vmatpush1.bf16.msra.mxu0 %v6510
    %6742 = vmatprep.subr.bf16.mxu0 %v6515
    %6743 = vmatpush1.bf16.msra.mxu0 %v6514
    %6744 = vmatprep.subr.bf16.mxu0 %v6519
    %6745 = vmatpush1.bf16.msra.mxu0 %v6518
    %6746 = vmatprep.mubr.bf16.mxu0 %v123
    %6747 = vmatmul.mubr.bf16.gmra.mrb[0].mxu0 %v122
    %v6748 = vpop.f32.mrb[0].mxu0
    %v6749 = vadd.f32 %v6057, %v6748
    %v6750 = vpop.f32.mrb[0].mxu0
    %v6751 = vadd.f32 %v6061, %v6750
    %v6752 = vpop.f32.mrb[0].mxu0
    %v6753 = vadd.f32 %v6057, %v6752
    %v6754 = vpop.f32.mrb[0].mxu0
    %v6755 = vadd.f32 %v6061, %v6754
    %6756 = vdwg.mxu0
    %6757 = vmatprep.subr.bf16.mxu0 %v6523
    %6758 = vmatpush1.bf16.msra.mxu0 %v6522
    %6759 = vmatprep.subr.bf16.mxu0 %v6527
    %6760 = vmatpush1.bf16.msra.mxu0 %v6526
    %6761 = vmatprep.subr.bf16.mxu0 %v6531
    %6762 = vmatpush1.bf16.msra.mxu0 %v6530
    %6763 = vmatprep.subr.bf16.mxu0 %v6535
    %6764 = vmatpush1.bf16.msra.mxu0 %v6534
    %6765 = vmatprep.subr.bf16.mxu0 %v6539
    %6766 = vmatpush1.bf16.msra.mxu0 %v6538
    %6767 = vmatprep.subr.bf16.mxu0 %v6543
    %6768 = vmatpush1.bf16.msra.mxu0 %v6542
    %6769 = vmatprep.subr.bf16.mxu0 %v6547
    %6770 = vmatpush1.bf16.msra.mxu0 %v6546
    %6771 = vmatprep.subr.bf16.mxu0 %v6551
    %6772 = vmatpush1.bf16.msra.mxu0 %v6550
    %6773 = vmatprep.subr.bf16.mxu0 %v6555
    %6774 = vmatpush1.bf16.msra.mxu0 %v6554
    %6775 = vmatprep.subr.bf16.mxu0 %v6559
    %6776 = vmatpush1.bf16.msra.mxu0 %v6558
    %6777 = vmatprep.subr.bf16.mxu0 %v6563
    %6778 = vmatpush1.bf16.msra.mxu0 %v6562
    %6779 = vmatprep.subr.bf16.mxu0 %v6567
    %6780 = vmatpush1.bf16.msra.mxu0 %v6566
    %6781 = vmatprep.subr.bf16.mxu0 %v6571
    %6782 = vmatpush1.bf16.msra.mxu0 %v6570
    %6783 = vmatprep.subr.bf16.mxu0 %v6575
    %6784 = vmatpush1.bf16.msra.mxu0 %v6574
    %6785 = vmatprep.subr.bf16.mxu0 %v6579
    %6786 = vmatpush1.bf16.msra.mxu0 %v6578
    %6787 = vmatprep.subr.bf16.mxu0 %v6583
    %6788 = vmatpush1.bf16.msra.mxu0 %v6582
    %6789 = vmatprep.mubr.bf16.mxu0 %v125
    %6790 = vmatmul.mubr.bf16.gmra.mrb[0].mxu0 %v124
    %v6791 = vpop.f32.mrb[0].mxu0
    %v6792 = vadd.f32 %v6749, %v6791
    %v6793 = vpop.f32.mrb[0].mxu0
    %v6794 = vadd.f32 %v6751, %v6793
    %v6795 = vpop.f32.mrb[0].mxu0
    %v6796 = vadd.f32 %v6753, %v6795
    %v6797 = vpop.f32.mrb[0].mxu0
    %v6798 = vadd.f32 %v6755, %v6797
    %6799 = vdwg.mxu0
    %6800 = vmatprep.subr.bf16.mxu0 %v6461
    %6801 = vmatpush1.bf16.msra.mxu0 %v6460
    %6802 = vmatprep.subr.bf16.mxu0 %v6465
    %6803 = vmatpush1.bf16.msra.mxu0 %v6464
    %6804 = vmatprep.subr.bf16.mxu0 %v6469
    %6805 = vmatpush1.bf16.msra.mxu0 %v6468
    %6806 = vmatprep.subr.bf16.mxu0 %v6473
    %6807 = vmatpush1.bf16.msra.mxu0 %v6472
    %6808 = vmatprep.subr.bf16.mxu0 %v6477
    %6809 = vmatpush1.bf16.msra.mxu0 %v6476
    %6810 = vmatprep.subr.bf16.mxu0 %v6481
    %6811 = vmatpush1.bf16.msra.mxu0 %v6480
    %6812 = vmatprep.subr.bf16.mxu0 %v6485
    %6813 = vmatpush1.bf16.msra.mxu0 %v6484
    %6814 = vmatprep.subr.bf16.mxu0 %v6489
    %6815 = vmatpush1.bf16.msra.mxu0 %v6488
    %6816 = vmatprep.subr.bf16.mxu0 %v6493
    %6817 = vmatpush1.bf16.msra.mxu0 %v6492
    %6818 = vmatprep.subr.bf16.mxu0 %v6497
    %6819 = vmatpush1.bf16.msra.mxu0 %v6496
    %6820 = vmatprep.subr.bf16.mxu0 %v6501
    %6821 = vmatpush1.bf16.msra.mxu0 %v6500
    %6822 = vmatprep.subr.bf16.mxu0 %v6505
    %6823 = vmatpush1.bf16.msra.mxu0 %v6504
    %6824 = vmatprep.subr.bf16.mxu0 %v6509
    %6825 = vmatpush1.bf16.msra.mxu0 %v6508
    %6826 = vmatprep.subr.bf16.mxu0 %v6513
    %6827 = vmatpush1.bf16.msra.mxu0 %v6512
    %6828 = vmatprep.subr.bf16.mxu0 %v6517
    %6829 = vmatpush1.bf16.msra.mxu0 %v6516
    %6830 = vmatprep.subr.bf16.mxu0 %v6521
    %6831 = vmatpush1.bf16.msra.mxu0 %v6520
    %6832 = vmatprep.mubr.bf16.mxu0 %v123
    %6833 = vmatmul.mubr.bf16.gmra.mrb[0].mxu0 %v122
    %v6834 = vpop.f32.mrb[0].mxu0
    %v6835 = vadd.f32 %v6065, %v6834
    %v6836 = vpop.f32.mrb[0].mxu0
    %v6837 = vadd.f32 %v6069, %v6836
    %v6838 = vpop.f32.mrb[0].mxu0
    %v6839 = vadd.f32 %v6065, %v6838
    %v6840 = vpop.f32.mrb[0].mxu0
    %v6841 = vadd.f32 %v6069, %v6840
    %6842 = vdwg.mxu0
    %6843 = vmatprep.subr.bf16.mxu0 %v6525
    %6844 = vmatpush1.bf16.msra.mxu0 %v6524
    %6845 = vmatprep.subr.bf16.mxu0 %v6529
    %6846 = vmatpush1.bf16.msra.mxu0 %v6528
    %6847 = vmatprep.subr.bf16.mxu0 %v6533
    %6848 = vmatpush1.bf16.msra.mxu0 %v6532
    %6849 = vmatprep.subr.bf16.mxu0 %v6537
    %6850 = vmatpush1.bf16.msra.mxu0 %v6536
    %6851 = vmatprep.subr.bf16.mxu0 %v6541
    %6852 = vmatpush1.bf16.msra.mxu0 %v6540
    %6853 = vmatprep.subr.bf16.mxu0 %v6545
    %6854 = vmatpush1.bf16.msra.mxu0 %v6544
    %6855 = vmatprep.subr.bf16.mxu0 %v6549
    %6856 = vmatpush1.bf16.msra.mxu0 %v6548
    %6857 = vmatprep.subr.bf16.mxu0 %v6553
    %6858 = vmatpush1.bf16.msra.mxu0 %v6552
    %6859 = vmatprep.subr.bf16.mxu0 %v6557
    %6860 = vmatpush1.bf16.msra.mxu0 %v6556
    %6861 = vmatprep.subr.bf16.mxu0 %v6561
    %6862 = vmatpush1.bf16.msra.mxu0 %v6560
    %6863 = vmatprep.subr.bf16.mxu0 %v6565
    %6864 = vmatpush1.bf16.msra.mxu0 %v6564
    %6865 = vmatprep.subr.bf16.mxu0 %v6569
    %6866 = vmatpush1.bf16.msra.mxu0 %v6568
    %6867 = vmatprep.subr.bf16.mxu0 %v6573
    %6868 = vmatpush1.bf16.msra.mxu0 %v6572
    %6869 = vmatprep.subr.bf16.mxu0 %v6577
    %6870 = vmatpush1.bf16.msra.mxu0 %v6576
    %6871 = vmatprep.subr.bf16.mxu0 %v6581
    %6872 = vmatpush1.bf16.msra.mxu0 %v6580
    %6873 = vmatprep.subr.bf16.mxu0 %v6585
    %6874 = vmatpush1.bf16.msra.mxu0 %v6584
    %6875 = vmatprep.mubr.bf16.mxu0 %v125
    %6876 = vmatmul.mubr.bf16.gmra.mrb[0].mxu0 %v124
    %v6877 = vpop.f32.mrb[0].mxu0
    %v6878 = vadd.f32 %v6835, %v6877
    %v6879 = vpop.f32.mrb[0].mxu0
    %v6880 = vadd.f32 %v6837, %v6879
    %v6881 = vpop.f32.mrb[0].mxu0
    %v6882 = vadd.f32 %v6839, %v6881
    %v6883 = vpop.f32.mrb[0].mxu0
    %v6884 = vadd.f32 %v6841, %v6883
    %6885 = vdwg.mxu0
    %v6886 = vmax.f32 %v6792, 0.0
    %v6887 = vmax.f32 %v6794, 0.0
    %v6888 = vmax.f32 %v6878, 0.0
    %v6889 = vmax.f32 %v6880, 0.0
    %v6890 = vmax.f32 %v6796, 0.0
    %v6891 = vmax.f32 %v6798, 0.0
    %v6892 = vmax.f32 %v6882, 0.0
    %v6893 = vmax.f32 %v6884, 0.0
    %v6894 = vpack.c.bf16 %v6890, %v6886
    %v6895 = vpack.c.bf16 %v6891, %v6887
    %v6896 = vpack.c.bf16 %v6892, %v6888
    %v6897 = vpack.c.bf16 %v6893, %v6889
    %v6898 = vld [vmem:[#allocation9 + $0xc00] sm:$0xff]
    %v6899 = vld [vmem:[#allocation9 + $0xc08] sm:$0xff]
    %v6900 = vld [vmem:[#allocation9 + $0xc10] sm:$0xff]
    %v6901 = vld [vmem:[#allocation9 + $0xc18] sm:$0xff]
    %v6902 = vld [vmem:[#allocation9 + $0xc20] sm:$0xff]
    %v6903 = vld [vmem:[#allocation9 + $0xc28] sm:$0xff]
    %v6904 = vld [vmem:[#allocation9 + $0xc30] sm:$0xff]
    %v6905 = vld [vmem:[#allocation9 + $0xc38] sm:$0xff]
    %v6906 = vld [vmem:[#allocation9 + $0xc40] sm:$0xff]
    %v6907 = vld [vmem:[#allocation9 + $0xc48] sm:$0xff]
    %v6908 = vld [vmem:[#allocation9 + $0xc50] sm:$0xff]
    %v6909 = vld [vmem:[#allocation9 + $0xc58] sm:$0xff]
    %v6910 = vld [vmem:[#allocation9 + $0xc60] sm:$0xff]
    %v6911 = vld [vmem:[#allocation9 + $0xc68] sm:$0xff]
    %v6912 = vld [vmem:[#allocation9 + $0xc70] sm:$0xff]
    %v6913 = vld [vmem:[#allocation9 + $0xc78] sm:$0xff]
    %v6914 = vld [vmem:[#allocation9 + $0xc80] sm:$0xff]
    %v6915 = vld [vmem:[#allocation9 + $0xc88] sm:$0xff]
    %v6916 = vld [vmem:[#allocation9 + $0xc90] sm:$0xff]
    %v6917 = vld [vmem:[#allocation9 + $0xc98] sm:$0xff]
    %v6918 = vld [vmem:[#allocation9 + $0xca0] sm:$0xff]
    %v6919 = vld [vmem:[#allocation9 + $0xca8] sm:$0xff]
    %v6920 = vld [vmem:[#allocation9 + $0xcb0] sm:$0xff]
    %v6921 = vld [vmem:[#allocation9 + $0xcb8] sm:$0xff]
    %v6922 = vld [vmem:[#allocation9 + $0xcc0] sm:$0xff]
    %v6923 = vld [vmem:[#allocation9 + $0xcc8] sm:$0xff]
    %v6924 = vld [vmem:[#allocation9 + $0xcd0] sm:$0xff]
    %v6925 = vld [vmem:[#allocation9 + $0xcd8] sm:$0xff]
    %v6926 = vld [vmem:[#allocation9 + $0xce0] sm:$0xff]
    %v6927 = vld [vmem:[#allocation9 + $0xce8] sm:$0xff]
    %v6928 = vld [vmem:[#allocation9 + $0xcf0] sm:$0xff]
    %v6929 = vld [vmem:[#allocation9 + $0xcf8] sm:$0xff]
    %v6930 = vld [vmem:[#allocation9 + $0xd00] sm:$0xff]
    %v6931 = vld [vmem:[#allocation9 + $0xd08] sm:$0xff]
    %v6932 = vld [vmem:[#allocation9 + $0xd10] sm:$0xff]
    %v6933 = vld [vmem:[#allocation9 + $0xd18] sm:$0xff]
    %v6934 = vld [vmem:[#allocation9 + $0xd20] sm:$0xff]
    %v6935 = vld [vmem:[#allocation9 + $0xd28] sm:$0xff]
    %v6936 = vld [vmem:[#allocation9 + $0xd30] sm:$0xff]
    %v6937 = vld [vmem:[#allocation9 + $0xd38] sm:$0xff]
    %v6938 = vld [vmem:[#allocation9 + $0xd40] sm:$0xff]
    %v6939 = vld [vmem:[#allocation9 + $0xd48] sm:$0xff]
    %v6940 = vld [vmem:[#allocation9 + $0xd50] sm:$0xff]
    %v6941 = vld [vmem:[#allocation9 + $0xd58] sm:$0xff]
    %v6942 = vld [vmem:[#allocation9 + $0xd60] sm:$0xff]
    %v6943 = vld [vmem:[#allocation9 + $0xd68] sm:$0xff]
    %v6944 = vld [vmem:[#allocation9 + $0xd70] sm:$0xff]
    %v6945 = vld [vmem:[#allocation9 + $0xd78] sm:$0xff]
    %v6946 = vld [vmem:[#allocation9 + $0xd80] sm:$0xff]
    %v6947 = vld [vmem:[#allocation9 + $0xd88] sm:$0xff]
    %v6948 = vld [vmem:[#allocation9 + $0xd90] sm:$0xff]
    %v6949 = vld [vmem:[#allocation9 + $0xd98] sm:$0xff]
    %v6950 = vld [vmem:[#allocation9 + $0xda0] sm:$0xff]
    %v6951 = vld [vmem:[#allocation9 + $0xda8] sm:$0xff]
    %v6952 = vld [vmem:[#allocation9 + $0xdb0] sm:$0xff]
    %v6953 = vld [vmem:[#allocation9 + $0xdb8] sm:$0xff]
    %v6954 = vld [vmem:[#allocation9 + $0xdc0] sm:$0xff]
    %v6955 = vld [vmem:[#allocation9 + $0xdc8] sm:$0xff]
    %v6956 = vld [vmem:[#allocation9 + $0xdd0] sm:$0xff]
    %v6957 = vld [vmem:[#allocation9 + $0xdd8] sm:$0xff]
    %v6958 = vld [vmem:[#allocation9 + $0xde0] sm:$0xff]
    %v6959 = vld [vmem:[#allocation9 + $0xde8] sm:$0xff]
    %v6960 = vld [vmem:[#allocation9 + $0xdf0] sm:$0xff]
    %v6961 = vld [vmem:[#allocation9 + $0xdf8] sm:$0xff]
    %v6962 = vld [vmem:[#allocation9 + $0xe00] sm:$0xff]
    %v6963 = vld [vmem:[#allocation9 + $0xe08] sm:$0xff]
    %v6964 = vld [vmem:[#allocation9 + $0xe10] sm:$0xff]
    %v6965 = vld [vmem:[#allocation9 + $0xe18] sm:$0xff]
    %v6966 = vld [vmem:[#allocation9 + $0xe20] sm:$0xff]
    %v6967 = vld [vmem:[#allocation9 + $0xe28] sm:$0xff]
    %v6968 = vld [vmem:[#allocation9 + $0xe30] sm:$0xff]
    %v6969 = vld [vmem:[#allocation9 + $0xe38] sm:$0xff]
    %v6970 = vld [vmem:[#allocation9 + $0xe40] sm:$0xff]
    %v6971 = vld [vmem:[#allocation9 + $0xe48] sm:$0xff]
    %v6972 = vld [vmem:[#allocation9 + $0xe50] sm:$0xff]
    %v6973 = vld [vmem:[#allocation9 + $0xe58] sm:$0xff]
    %v6974 = vld [vmem:[#allocation9 + $0xe60] sm:$0xff]
    %v6975 = vld [vmem:[#allocation9 + $0xe68] sm:$0xff]
    %v6976 = vld [vmem:[#allocation9 + $0xe70] sm:$0xff]
    %v6977 = vld [vmem:[#allocation9 + $0xe78] sm:$0xff]
    %v6978 = vld [vmem:[#allocation9 + $0xe80] sm:$0xff]
    %v6979 = vld [vmem:[#allocation9 + $0xe88] sm:$0xff]
    %v6980 = vld [vmem:[#allocation9 + $0xe90] sm:$0xff]
    %v6981 = vld [vmem:[#allocation9 + $0xe98] sm:$0xff]
    %v6982 = vld [vmem:[#allocation9 + $0xea0] sm:$0xff]
    %v6983 = vld [vmem:[#allocation9 + $0xea8] sm:$0xff]
    %v6984 = vld [vmem:[#allocation9 + $0xeb0] sm:$0xff]
    %v6985 = vld [vmem:[#allocation9 + $0xeb8] sm:$0xff]
    %v6986 = vld [vmem:[#allocation9 + $0xec0] sm:$0xff]
    %v6987 = vld [vmem:[#allocation9 + $0xec8] sm:$0xff]
    %v6988 = vld [vmem:[#allocation9 + $0xed0] sm:$0xff]
    %v6989 = vld [vmem:[#allocation9 + $0xed8] sm:$0xff]
    %v6990 = vld [vmem:[#allocation9 + $0xee0] sm:$0xff]
    %v6991 = vld [vmem:[#allocation9 + $0xee8] sm:$0xff]
    %v6992 = vld [vmem:[#allocation9 + $0xef0] sm:$0xff]
    %v6993 = vld [vmem:[#allocation9 + $0xef8] sm:$0xff]
    %v6994 = vld [vmem:[#allocation9 + $0xf00] sm:$0xff]
    %v6995 = vld [vmem:[#allocation9 + $0xf08] sm:$0xff]
    %v6996 = vld [vmem:[#allocation9 + $0xf10] sm:$0xff]
    %v6997 = vld [vmem:[#allocation9 + $0xf18] sm:$0xff]
    %v6998 = vld [vmem:[#allocation9 + $0xf20] sm:$0xff]
    %v6999 = vld [vmem:[#allocation9 + $0xf28] sm:$0xff]
    %v7000 = vld [vmem:[#allocation9 + $0xf30] sm:$0xff]
    %v7001 = vld [vmem:[#allocation9 + $0xf38] sm:$0xff]
    %v7002 = vld [vmem:[#allocation9 + $0xf40] sm:$0xff]
    %v7003 = vld [vmem:[#allocation9 + $0xf48] sm:$0xff]
    %v7004 = vld [vmem:[#allocation9 + $0xf50] sm:$0xff]
    %v7005 = vld [vmem:[#allocation9 + $0xf58] sm:$0xff]
    %v7006 = vld [vmem:[#allocation9 + $0xf60] sm:$0xff]
    %v7007 = vld [vmem:[#allocation9 + $0xf68] sm:$0xff]
    %v7008 = vld [vmem:[#allocation9 + $0xf70] sm:$0xff]
    %v7009 = vld [vmem:[#allocation9 + $0xf78] sm:$0xff]
    %v7010 = vld [vmem:[#allocation9 + $0xf80] sm:$0xff]
    %v7011 = vld [vmem:[#allocation9 + $0xf88] sm:$0xff]
    %v7012 = vld [vmem:[#allocation9 + $0xf90] sm:$0xff]
    %v7013 = vld [vmem:[#allocation9 + $0xf98] sm:$0xff]
    %v7014 = vld [vmem:[#allocation9 + $0xfa0] sm:$0xff]
    %v7015 = vld [vmem:[#allocation9 + $0xfa8] sm:$0xff]
    %v7016 = vld [vmem:[#allocation9 + $0xfb0] sm:$0xff]
    %v7017 = vld [vmem:[#allocation9 + $0xfb8] sm:$0xff]
    %v7018 = vld [vmem:[#allocation9 + $0xfc0] sm:$0xff]
    %v7019 = vld [vmem:[#allocation9 + $0xfc8] sm:$0xff]
    %v7020 = vld [vmem:[#allocation9 + $0xfd0] sm:$0xff]
    %v7021 = vld [vmem:[#allocation9 + $0xfd8] sm:$0xff]
    %v7022 = vld [vmem:[#allocation9 + $0xfe0] sm:$0xff]
    %v7023 = vld [vmem:[#allocation9 + $0xfe8] sm:$0xff]
    %v7024 = vld [vmem:[#allocation9 + $0xff0] sm:$0xff]
    %v7025 = vld [vmem:[#allocation9 + $0xff8] sm:$0xff]
    %v7154 = vunpack.c.l.b16 %v6898
    %v7155 = vunpack.c.h.b16 %v6898
    %v7156 = vunpack.c.l.b16 %v6899
    %v7157 = vunpack.c.h.b16 %v6899
    %v7158 = vunpack.c.l.b16 %v6900
    %v7159 = vunpack.c.h.b16 %v6900
    %v7160 = vunpack.c.l.b16 %v6901
    %v7161 = vunpack.c.h.b16 %v6901
    %v7162 = vunpack.c.l.b16 %v6902
    %v7163 = vunpack.c.h.b16 %v6902
    %v7164 = vunpack.c.l.b16 %v6903
    %v7165 = vunpack.c.h.b16 %v6903
    %v7166 = vunpack.c.l.b16 %v6904
    %v7167 = vunpack.c.h.b16 %v6904
    %v7168 = vunpack.c.l.b16 %v6905
    %v7169 = vunpack.c.h.b16 %v6905
    %v7170 = vunpack.c.l.b16 %v6906
    %v7171 = vunpack.c.h.b16 %v6906
    %v7172 = vunpack.c.l.b16 %v6907
    %v7173 = vunpack.c.h.b16 %v6907
    %v7174 = vunpack.c.l.b16 %v6908
    %v7175 = vunpack.c.h.b16 %v6908
    %v7176 = vunpack.c.l.b16 %v6909
    %v7177 = vunpack.c.h.b16 %v6909
    %v7178 = vunpack.c.l.b16 %v6910
    %v7179 = vunpack.c.h.b16 %v6910
    %v7180 = vunpack.c.l.b16 %v6911
    %v7181 = vunpack.c.h.b16 %v6911
    %v7182 = vunpack.c.l.b16 %v6912
    %v7183 = vunpack.c.h.b16 %v6912
    %v7184 = vunpack.c.l.b16 %v6913
    %v7185 = vunpack.c.h.b16 %v6913
    %v7186 = vunpack.c.l.b16 %v6914
    %v7187 = vunpack.c.h.b16 %v6914
    %v7188 = vunpack.c.l.b16 %v6915
    %v7189 = vunpack.c.h.b16 %v6915
    %v7190 = vunpack.c.l.b16 %v6916
    %v7191 = vunpack.c.h.b16 %v6916
    %v7192 = vunpack.c.l.b16 %v6917
    %v7193 = vunpack.c.h.b16 %v6917
    %v7194 = vunpack.c.l.b16 %v6918
    %v7195 = vunpack.c.h.b16 %v6918
    %v7196 = vunpack.c.l.b16 %v6919
    %v7197 = vunpack.c.h.b16 %v6919
    %v7198 = vunpack.c.l.b16 %v6920
    %v7199 = vunpack.c.h.b16 %v6920
    %v7200 = vunpack.c.l.b16 %v6921
    %v7201 = vunpack.c.h.b16 %v6921
    %v7202 = vunpack.c.l.b16 %v6922
    %v7203 = vunpack.c.h.b16 %v6922
    %v7204 = vunpack.c.l.b16 %v6923
    %v7205 = vunpack.c.h.b16 %v6923
    %v7206 = vunpack.c.l.b16 %v6924
    %v7207 = vunpack.c.h.b16 %v6924
    %v7208 = vunpack.c.l.b16 %v6925
    %v7209 = vunpack.c.h.b16 %v6925
    %v7210 = vunpack.c.l.b16 %v6926
    %v7211 = vunpack.c.h.b16 %v6926
    %v7212 = vunpack.c.l.b16 %v6927
    %v7213 = vunpack.c.h.b16 %v6927
    %v7214 = vunpack.c.l.b16 %v6928
    %v7215 = vunpack.c.h.b16 %v6928
    %v7216 = vunpack.c.l.b16 %v6929
    %v7217 = vunpack.c.h.b16 %v6929
    %v7218 = vunpack.c.l.b16 %v6930
    %v7219 = vunpack.c.h.b16 %v6930
    %v7220 = vunpack.c.l.b16 %v6931
    %v7221 = vunpack.c.h.b16 %v6931
    %v7222 = vunpack.c.l.b16 %v6932
    %v7223 = vunpack.c.h.b16 %v6932
    %v7224 = vunpack.c.l.b16 %v6933
    %v7225 = vunpack.c.h.b16 %v6933
    %v7226 = vunpack.c.l.b16 %v6934
    %v7227 = vunpack.c.h.b16 %v6934
    %v7228 = vunpack.c.l.b16 %v6935
    %v7229 = vunpack.c.h.b16 %v6935
    %v7230 = vunpack.c.l.b16 %v6936
    %v7231 = vunpack.c.h.b16 %v6936
    %v7232 = vunpack.c.l.b16 %v6937
    %v7233 = vunpack.c.h.b16 %v6937
    %v7234 = vunpack.c.l.b16 %v6938
    %v7235 = vunpack.c.h.b16 %v6938
    %v7236 = vunpack.c.l.b16 %v6939
    %v7237 = vunpack.c.h.b16 %v6939
    %v7238 = vunpack.c.l.b16 %v6940
    %v7239 = vunpack.c.h.b16 %v6940
    %v7240 = vunpack.c.l.b16 %v6941
    %v7241 = vunpack.c.h.b16 %v6941
    %v7242 = vunpack.c.l.b16 %v6942
    %v7243 = vunpack.c.h.b16 %v6942
    %v7244 = vunpack.c.l.b16 %v6943
    %v7245 = vunpack.c.h.b16 %v6943
    %v7246 = vunpack.c.l.b16 %v6944
    %v7247 = vunpack.c.h.b16 %v6944
    %v7248 = vunpack.c.l.b16 %v6945
    %v7249 = vunpack.c.h.b16 %v6945
    %v7250 = vunpack.c.l.b16 %v6946
    %v7251 = vunpack.c.h.b16 %v6946
    %v7252 = vunpack.c.l.b16 %v6947
    %v7253 = vunpack.c.h.b16 %v6947
    %v7254 = vunpack.c.l.b16 %v6948
    %v7255 = vunpack.c.h.b16 %v6948
    %v7256 = vunpack.c.l.b16 %v6949
    %v7257 = vunpack.c.h.b16 %v6949
    %v7258 = vunpack.c.l.b16 %v6950
    %v7259 = vunpack.c.h.b16 %v6950
    %v7260 = vunpack.c.l.b16 %v6951
    %v7261 = vunpack.c.h.b16 %v6951
    %v7262 = vunpack.c.l.b16 %v6952
    %v7263 = vunpack.c.h.b16 %v6952
    %v7264 = vunpack.c.l.b16 %v6953
    %v7265 = vunpack.c.h.b16 %v6953
    %v7266 = vunpack.c.l.b16 %v6954
    %v7267 = vunpack.c.h.b16 %v6954
    %v7268 = vunpack.c.l.b16 %v6955
    %v7269 = vunpack.c.h.b16 %v6955
    %v7270 = vunpack.c.l.b16 %v6956
    %v7271 = vunpack.c.h.b16 %v6956
    %v7272 = vunpack.c.l.b16 %v6957
    %v7273 = vunpack.c.h.b16 %v6957
    %v7274 = vunpack.c.l.b16 %v6958
    %v7275 = vunpack.c.h.b16 %v6958
    %v7276 = vunpack.c.l.b16 %v6959
    %v7277 = vunpack.c.h.b16 %v6959
    %v7278 = vunpack.c.l.b16 %v6960
    %v7279 = vunpack.c.h.b16 %v6960
    %v7280 = vunpack.c.l.b16 %v6961
    %v7281 = vunpack.c.h.b16 %v6961
    %v7282 = vunpack.c.l.b16 %v6962
    %v7283 = vunpack.c.h.b16 %v6962
    %v7284 = vunpack.c.l.b16 %v6963
    %v7285 = vunpack.c.h.b16 %v6963
    %v7286 = vunpack.c.l.b16 %v6964
    %v7287 = vunpack.c.h.b16 %v6964
    %v7288 = vunpack.c.l.b16 %v6965
    %v7289 = vunpack.c.h.b16 %v6965
    %v7290 = vunpack.c.l.b16 %v6966
    %v7291 = vunpack.c.h.b16 %v6966
    %v7292 = vunpack.c.l.b16 %v6967
    %v7293 = vunpack.c.h.b16 %v6967
    %v7294 = vunpack.c.l.b16 %v6968
    %v7295 = vunpack.c.h.b16 %v6968
    %v7296 = vunpack.c.l.b16 %v6969
    %v7297 = vunpack.c.h.b16 %v6969
    %v7298 = vunpack.c.l.b16 %v6970
    %v7299 = vunpack.c.h.b16 %v6970
    %v7300 = vunpack.c.l.b16 %v6971
    %v7301 = vunpack.c.h.b16 %v6971
    %v7302 = vunpack.c.l.b16 %v6972
    %v7303 = vunpack.c.h.b16 %v6972
    %v7304 = vunpack.c.l.b16 %v6973
    %v7305 = vunpack.c.h.b16 %v6973
    %v7306 = vunpack.c.l.b16 %v6974
    %v7307 = vunpack.c.h.b16 %v6974
    %v7308 = vunpack.c.l.b16 %v6975
    %v7309 = vunpack.c.h.b16 %v6975
    %v7310 = vunpack.c.l.b16 %v6976
    %v7311 = vunpack.c.h.b16 %v6976
    %v7312 = vunpack.c.l.b16 %v6977
    %v7313 = vunpack.c.h.b16 %v6977
    %v7314 = vunpack.c.l.b16 %v6978
    %v7315 = vunpack.c.h.b16 %v6978
    %v7316 = vunpack.c.l.b16 %v6979
    %v7317 = vunpack.c.h.b16 %v6979
    %v7318 = vunpack.c.l.b16 %v6980
    %v7319 = vunpack.c.h.b16 %v6980
    %v7320 = vunpack.c.l.b16 %v6981
    %v7321 = vunpack.c.h.b16 %v6981
    %v7322 = vunpack.c.l.b16 %v6982
    %v7323 = vunpack.c.h.b16 %v6982
    %v7324 = vunpack.c.l.b16 %v6983
    %v7325 = vunpack.c.h.b16 %v6983
    %v7326 = vunpack.c.l.b16 %v6984
    %v7327 = vunpack.c.h.b16 %v6984
    %v7328 = vunpack.c.l.b16 %v6985
    %v7329 = vunpack.c.h.b16 %v6985
    %v7330 = vunpack.c.l.b16 %v6986
    %v7331 = vunpack.c.h.b16 %v6986
    %v7332 = vunpack.c.l.b16 %v6987
    %v7333 = vunpack.c.h.b16 %v6987
    %v7334 = vunpack.c.l.b16 %v6988
    %v7335 = vunpack.c.h.b16 %v6988
    %v7336 = vunpack.c.l.b16 %v6989
    %v7337 = vunpack.c.h.b16 %v6989
    %v7338 = vunpack.c.l.b16 %v6990
    %v7339 = vunpack.c.h.b16 %v6990
    %v7340 = vunpack.c.l.b16 %v6991
    %v7341 = vunpack.c.h.b16 %v6991
    %v7342 = vunpack.c.l.b16 %v6992
    %v7343 = vunpack.c.h.b16 %v6992
    %v7344 = vunpack.c.l.b16 %v6993
    %v7345 = vunpack.c.h.b16 %v6993
    %v7346 = vunpack.c.l.b16 %v6994
    %v7347 = vunpack.c.h.b16 %v6994
    %v7348 = vunpack.c.l.b16 %v6995
    %v7349 = vunpack.c.h.b16 %v6995
    %v7350 = vunpack.c.l.b16 %v6996
    %v7351 = vunpack.c.h.b16 %v6996
    %v7352 = vunpack.c.l.b16 %v6997
    %v7353 = vunpack.c.h.b16 %v6997
    %v7354 = vunpack.c.l.b16 %v6998
    %v7355 = vunpack.c.h.b16 %v6998
    %v7356 = vunpack.c.l.b16 %v6999
    %v7357 = vunpack.c.h.b16 %v6999
    %v7358 = vunpack.c.l.b16 %v7000
    %v7359 = vunpack.c.h.b16 %v7000
    %v7360 = vunpack.c.l.b16 %v7001
    %v7361 = vunpack.c.h.b16 %v7001
    %v7362 = vunpack.c.l.b16 %v7002
    %v7363 = vunpack.c.h.b16 %v7002
    %v7364 = vunpack.c.l.b16 %v7003
    %v7365 = vunpack.c.h.b16 %v7003
    %v7366 = vunpack.c.l.b16 %v7004
    %v7367 = vunpack.c.h.b16 %v7004
    %v7368 = vunpack.c.l.b16 %v7005
    %v7369 = vunpack.c.h.b16 %v7005
    %v7370 = vunpack.c.l.b16 %v7006
    %v7371 = vunpack.c.h.b16 %v7006
    %v7372 = vunpack.c.l.b16 %v7007
    %v7373 = vunpack.c.h.b16 %v7007
    %v7374 = vunpack.c.l.b16 %v7008
    %v7375 = vunpack.c.h.b16 %v7008
    %v7376 = vunpack.c.l.b16 %v7009
    %v7377 = vunpack.c.h.b16 %v7009
    %v7378 = vunpack.c.l.b16 %v7010
    %v7379 = vunpack.c.h.b16 %v7010
    %v7380 = vunpack.c.l.b16 %v7011
    %v7381 = vunpack.c.h.b16 %v7011
    %v7382 = vunpack.c.l.b16 %v7012
    %v7383 = vunpack.c.h.b16 %v7012
    %v7384 = vunpack.c.l.b16 %v7013
    %v7385 = vunpack.c.h.b16 %v7013
    %v7386 = vunpack.c.l.b16 %v7014
    %v7387 = vunpack.c.h.b16 %v7014
    %v7388 = vunpack.c.l.b16 %v7015
    %v7389 = vunpack.c.h.b16 %v7015
    %v7390 = vunpack.c.l.b16 %v7016
    %v7391 = vunpack.c.h.b16 %v7016
    %v7392 = vunpack.c.l.b16 %v7017
    %v7393 = vunpack.c.h.b16 %v7017
    %v7394 = vunpack.c.l.b16 %v7018
    %v7395 = vunpack.c.h.b16 %v7018
    %v7396 = vunpack.c.l.b16 %v7019
    %v7397 = vunpack.c.h.b16 %v7019
    %v7398 = vunpack.c.l.b16 %v7020
    %v7399 = vunpack.c.h.b16 %v7020
    %v7400 = vunpack.c.l.b16 %v7021
    %v7401 = vunpack.c.h.b16 %v7021
    %v7402 = vunpack.c.l.b16 %v7022
    %v7403 = vunpack.c.h.b16 %v7022
    %v7404 = vunpack.c.l.b16 %v7023
    %v7405 = vunpack.c.h.b16 %v7023
    %v7406 = vunpack.c.l.b16 %v7024
    %v7407 = vunpack.c.h.b16 %v7024
    %v7408 = vunpack.c.l.b16 %v7025
    %v7409 = vunpack.c.h.b16 %v7025
    %v7410 = vpack.c.b16 %v7158, %v7154
    %v7411 = vpack.c.b16 %v7159, %v7155
    %v7412 = vpack.c.b16 %v7160, %v7156
    %v7413 = vpack.c.b16 %v7161, %v7157
    %v7414 = vpack.c.b16 %v7166, %v7162
    %v7415 = vpack.c.b16 %v7167, %v7163
    %v7416 = vpack.c.b16 %v7168, %v7164
    %v7417 = vpack.c.b16 %v7169, %v7165
    %v7418 = vpack.c.b16 %v7174, %v7170
    %v7419 = vpack.c.b16 %v7175, %v7171
    %v7420 = vpack.c.b16 %v7176, %v7172
    %v7421 = vpack.c.b16 %v7177, %v7173
    %v7422 = vpack.c.b16 %v7182, %v7178
    %v7423 = vpack.c.b16 %v7183, %v7179
    %v7424 = vpack.c.b16 %v7184, %v7180
    %v7425 = vpack.c.b16 %v7185, %v7181
    %v7426 = vpack.c.b16 %v7190, %v7186
    %v7427 = vpack.c.b16 %v7191, %v7187
    %v7428 = vpack.c.b16 %v7192, %v7188
    %v7429 = vpack.c.b16 %v7193, %v7189
    %v7430 = vpack.c.b16 %v7198, %v7194
    %v7431 = vpack.c.b16 %v7199, %v7195
    %v7432 = vpack.c.b16 %v7200, %v7196
    %v7433 = vpack.c.b16 %v7201, %v7197
    %v7434 = vpack.c.b16 %v7206, %v7202
    %v7435 = vpack.c.b16 %v7207, %v7203
    %v7436 = vpack.c.b16 %v7208, %v7204
    %v7437 = vpack.c.b16 %v7209, %v7205
    %v7438 = vpack.c.b16 %v7214, %v7210
    %v7439 = vpack.c.b16 %v7215, %v7211
    %v7440 = vpack.c.b16 %v7216, %v7212
    %v7441 = vpack.c.b16 %v7217, %v7213
    %v7442 = vpack.c.b16 %v7222, %v7218
    %v7443 = vpack.c.b16 %v7223, %v7219
    %v7444 = vpack.c.b16 %v7224, %v7220
    %v7445 = vpack.c.b16 %v7225, %v7221
    %v7446 = vpack.c.b16 %v7230, %v7226
    %v7447 = vpack.c.b16 %v7231, %v7227
    %v7448 = vpack.c.b16 %v7232, %v7228
    %v7449 = vpack.c.b16 %v7233, %v7229
    %v7450 = vpack.c.b16 %v7238, %v7234
    %v7451 = vpack.c.b16 %v7239, %v7235
    %v7452 = vpack.c.b16 %v7240, %v7236
    %v7453 = vpack.c.b16 %v7241, %v7237
    %v7454 = vpack.c.b16 %v7246, %v7242
    %v7455 = vpack.c.b16 %v7247, %v7243
    %v7456 = vpack.c.b16 %v7248, %v7244
    %v7457 = vpack.c.b16 %v7249, %v7245
    %v7458 = vpack.c.b16 %v7254, %v7250
    %v7459 = vpack.c.b16 %v7255, %v7251
    %v7460 = vpack.c.b16 %v7256, %v7252
    %v7461 = vpack.c.b16 %v7257, %v7253
    %v7462 = vpack.c.b16 %v7262, %v7258
    %v7463 = vpack.c.b16 %v7263, %v7259
    %v7464 = vpack.c.b16 %v7264, %v7260
    %v7465 = vpack.c.b16 %v7265, %v7261
    %v7466 = vpack.c.b16 %v7270, %v7266
    %v7467 = vpack.c.b16 %v7271, %v7267
    %v7468 = vpack.c.b16 %v7272, %v7268
    %v7469 = vpack.c.b16 %v7273, %v7269
    %v7470 = vpack.c.b16 %v7278, %v7274
    %v7471 = vpack.c.b16 %v7279, %v7275
    %v7472 = vpack.c.b16 %v7280, %v7276
    %v7473 = vpack.c.b16 %v7281, %v7277
    %v7474 = vpack.c.b16 %v7286, %v7282
    %v7475 = vpack.c.b16 %v7287, %v7283
    %v7476 = vpack.c.b16 %v7288, %v7284
    %v7477 = vpack.c.b16 %v7289, %v7285
    %v7478 = vpack.c.b16 %v7294, %v7290
    %v7479 = vpack.c.b16 %v7295, %v7291
    %v7480 = vpack.c.b16 %v7296, %v7292
    %v7481 = vpack.c.b16 %v7297, %v7293
    %v7482 = vpack.c.b16 %v7302, %v7298
    %v7483 = vpack.c.b16 %v7303, %v7299
    %v7484 = vpack.c.b16 %v7304, %v7300
    %v7485 = vpack.c.b16 %v7305, %v7301
    %v7486 = vpack.c.b16 %v7310, %v7306
    %v7487 = vpack.c.b16 %v7311, %v7307
    %v7488 = vpack.c.b16 %v7312, %v7308
    %v7489 = vpack.c.b16 %v7313, %v7309
    %v7490 = vpack.c.b16 %v7318, %v7314
    %v7491 = vpack.c.b16 %v7319, %v7315
    %v7492 = vpack.c.b16 %v7320, %v7316
    %v7493 = vpack.c.b16 %v7321, %v7317
    %v7494 = vpack.c.b16 %v7326, %v7322
    %v7495 = vpack.c.b16 %v7327, %v7323
    %v7496 = vpack.c.b16 %v7328, %v7324
    %v7497 = vpack.c.b16 %v7329, %v7325
    %v7498 = vpack.c.b16 %v7334, %v7330
    %v7499 = vpack.c.b16 %v7335, %v7331
    %v7500 = vpack.c.b16 %v7336, %v7332
    %v7501 = vpack.c.b16 %v7337, %v7333
    %v7502 = vpack.c.b16 %v7342, %v7338
    %v7503 = vpack.c.b16 %v7343, %v7339
    %v7504 = vpack.c.b16 %v7344, %v7340
    %v7505 = vpack.c.b16 %v7345, %v7341
    %v7506 = vpack.c.b16 %v7350, %v7346
    %v7507 = vpack.c.b16 %v7351, %v7347
    %v7508 = vpack.c.b16 %v7352, %v7348
    %v7509 = vpack.c.b16 %v7353, %v7349
    %v7510 = vpack.c.b16 %v7358, %v7354
    %v7511 = vpack.c.b16 %v7359, %v7355
    %v7512 = vpack.c.b16 %v7360, %v7356
    %v7513 = vpack.c.b16 %v7361, %v7357
    %v7514 = vpack.c.b16 %v7366, %v7362
    %v7515 = vpack.c.b16 %v7367, %v7363
    %v7516 = vpack.c.b16 %v7368, %v7364
    %v7517 = vpack.c.b16 %v7369, %v7365
    %v7518 = vpack.c.b16 %v7374, %v7370
    %v7519 = vpack.c.b16 %v7375, %v7371
    %v7520 = vpack.c.b16 %v7376, %v7372
    %v7521 = vpack.c.b16 %v7377, %v7373
    %v7522 = vpack.c.b16 %v7382, %v7378
    %v7523 = vpack.c.b16 %v7383, %v7379
    %v7524 = vpack.c.b16 %v7384, %v7380
    %v7525 = vpack.c.b16 %v7385, %v7381
    %v7526 = vpack.c.b16 %v7390, %v7386
    %v7527 = vpack.c.b16 %v7391, %v7387
    %v7528 = vpack.c.b16 %v7392, %v7388
    %v7529 = vpack.c.b16 %v7393, %v7389
    %v7530 = vpack.c.b16 %v7398, %v7394
    %v7531 = vpack.c.b16 %v7399, %v7395
    %v7532 = vpack.c.b16 %v7400, %v7396
    %v7533 = vpack.c.b16 %v7401, %v7397
    %v7534 = vpack.c.b16 %v7406, %v7402
    %v7535 = vpack.c.b16 %v7407, %v7403
    %v7536 = vpack.c.b16 %v7408, %v7404
    %v7537 = vpack.c.b16 %v7409, %v7405
    %7666 = vmatprep.subr.bf16.mxu0 %v7411
    %7667 = vmatpush1.bf16.msra.mxu0 %v7410
    %7668 = vmatprep.subr.bf16.mxu0 %v7415
    %7669 = vmatpush1.bf16.msra.mxu0 %v7414
    %7670 = vmatprep.subr.bf16.mxu0 %v7419
    %7671 = vmatpush1.bf16.msra.mxu0 %v7418
    %7672 = vmatprep.subr.bf16.mxu0 %v7423
    %7673 = vmatpush1.bf16.msra.mxu0 %v7422
    %7674 = vmatprep.subr.bf16.mxu0 %v7427
    %7675 = vmatpush1.bf16.msra.mxu0 %v7426
    %7676 = vmatprep.subr.bf16.mxu0 %v7431
    %7677 = vmatpush1.bf16.msra.mxu0 %v7430
    %7678 = vmatprep.subr.bf16.mxu0 %v7435
    %7679 = vmatpush1.bf16.msra.mxu0 %v7434
    %7680 = vmatprep.subr.bf16.mxu0 %v7439
    %7681 = vmatpush1.bf16.msra.mxu0 %v7438
    %7682 = vmatprep.subr.bf16.mxu0 %v7443
    %7683 = vmatpush1.bf16.msra.mxu0 %v7442
    %7684 = vmatprep.subr.bf16.mxu0 %v7447
    %7685 = vmatpush1.bf16.msra.mxu0 %v7446
    %7686 = vmatprep.subr.bf16.mxu0 %v7451
    %7687 = vmatpush1.bf16.msra.mxu0 %v7450
    %7688 = vmatprep.subr.bf16.mxu0 %v7455
    %7689 = vmatpush1.bf16.msra.mxu0 %v7454
    %7690 = vmatprep.subr.bf16.mxu0 %v7459
    %7691 = vmatpush1.bf16.msra.mxu0 %v7458
    %7692 = vmatprep.subr.bf16.mxu0 %v7463
    %7693 = vmatpush1.bf16.msra.mxu0 %v7462
    %7694 = vmatprep.subr.bf16.mxu0 %v7467
    %7695 = vmatpush1.bf16.msra.mxu0 %v7466
    %7696 = vmatprep.subr.bf16.mxu0 %v7471
    %7697 = vmatpush1.bf16.msra.mxu0 %v7470
    %7698 = vmatprep.mubr.bf16.mxu0 %v6895
    %7699 = vmatmul.mubr.bf16.gmra.mrb[0].mxu0 %v6894
    %v7700 = vpop.f32.mrb[0].mxu0
    %v7701 = vadd.f32 0.0, %v7700
    %v7702 = vpop.f32.mrb[0].mxu0
    %v7703 = vadd.f32 0.0, %v7702
    %v7704 = vpop.f32.mrb[0].mxu0
    %v7705 = vadd.f32 0.0, %v7704
    %v7706 = vpop.f32.mrb[0].mxu0
    %v7707 = vadd.f32 0.0, %v7706
    %7708 = vdwg.mxu0
    %7709 = vmatprep.subr.bf16.mxu0 %v7475
    %7710 = vmatpush1.bf16.msra.mxu0 %v7474
    %7711 = vmatprep.subr.bf16.mxu0 %v7479
    %7712 = vmatpush1.bf16.msra.mxu0 %v7478
    %7713 = vmatprep.subr.bf16.mxu0 %v7483
    %7714 = vmatpush1.bf16.msra.mxu0 %v7482
    %7715 = vmatprep.subr.bf16.mxu0 %v7487
    %7716 = vmatpush1.bf16.msra.mxu0 %v7486
    %7717 = vmatprep.subr.bf16.mxu0 %v7491
    %7718 = vmatpush1.bf16.msra.mxu0 %v7490
    %7719 = vmatprep.subr.bf16.mxu0 %v7495
    %7720 = vmatpush1.bf16.msra.mxu0 %v7494
    %7721 = vmatprep.subr.bf16.mxu0 %v7499
    %7722 = vmatpush1.bf16.msra.mxu0 %v7498
    %7723 = vmatprep.subr.bf16.mxu0 %v7503
    %7724 = vmatpush1.bf16.msra.mxu0 %v7502
    %7725 = vmatprep.subr.bf16.mxu0 %v7507
    %7726 = vmatpush1.bf16.msra.mxu0 %v7506
    %7727 = vmatprep.subr.bf16.mxu0 %v7511
    %7728 = vmatpush1.bf16.msra.mxu0 %v7510
    %7729 = vmatprep.subr.bf16.mxu0 %v7515
    %7730 = vmatpush1.bf16.msra.mxu0 %v7514
    %7731 = vmatprep.subr.bf16.mxu0 %v7519
    %7732 = vmatpush1.bf16.msra.mxu0 %v7518
    %7733 = vmatprep.subr.bf16.mxu0 %v7523
    %7734 = vmatpush1.bf16.msra.mxu0 %v7522
    %7735 = vmatprep.subr.bf16.mxu0 %v7527
    %7736 = vmatpush1.bf16.msra.mxu0 %v7526
    %7737 = vmatprep.subr.bf16.mxu0 %v7531
    %7738 = vmatpush1.bf16.msra.mxu0 %v7530
    %7739 = vmatprep.subr.bf16.mxu0 %v7535
    %7740 = vmatpush1.bf16.msra.mxu0 %v7534
    %7741 = vmatprep.mubr.bf16.mxu0 %v6897
    %7742 = vmatmul.mubr.bf16.gmra.mrb[0].mxu0 %v6896
    %v7743 = vpop.f32.mrb[0].mxu0
    %v7744 = vadd.f32 %v7701, %v7743
    %v7745 = vpop.f32.mrb[0].mxu0
    %v7746 = vadd.f32 %v7703, %v7745
    %v7747 = vpop.f32.mrb[0].mxu0
    %v7748 = vadd.f32 %v7705, %v7747
    %v7749 = vpop.f32.mrb[0].mxu0
    %v7750 = vadd.f32 %v7707, %v7749
    %7751 = vdwg.mxu0
    %7752 = vmatprep.subr.bf16.mxu0 %v7413
    %7753 = vmatpush1.bf16.msra.mxu0 %v7412
    %7754 = vmatprep.subr.bf16.mxu0 %v7417
    %7755 = vmatpush1.bf16.msra.mxu0 %v7416
    %7756 = vmatprep.subr.bf16.mxu0 %v7421
    %7757 = vmatpush1.bf16.msra.mxu0 %v7420
    %7758 = vmatprep.subr.bf16.mxu0 %v7425
    %7759 = vmatpush1.bf16.msra.mxu0 %v7424
    %7760 = vmatprep.subr.bf16.mxu0 %v7429
    %7761 = vmatpush1.bf16.msra.mxu0 %v7428
    %7762 = vmatprep.subr.bf16.mxu0 %v7433
    %7763 = vmatpush1.bf16.msra.mxu0 %v7432
    %7764 = vmatprep.subr.bf16.mxu0 %v7437
    %7765 = vmatpush1.bf16.msra.mxu0 %v7436
    %7766 = vmatprep.subr.bf16.mxu0 %v7441
    %7767 = vmatpush1.bf16.msra.mxu0 %v7440
    %7768 = vmatprep.subr.bf16.mxu0 %v7445
    %7769 = vmatpush1.bf16.msra.mxu0 %v7444
    %7770 = vmatprep.subr.bf16.mxu0 %v7449
    %7771 = vmatpush1.bf16.msra.mxu0 %v7448
    %7772 = vmatprep.subr.bf16.mxu0 %v7453
    %7773 = vmatpush1.bf16.msra.mxu0 %v7452
    %7774 = vmatprep.subr.bf16.mxu0 %v7457
    %7775 = vmatpush1.bf16.msra.mxu0 %v7456
    %7776 = vmatprep.subr.bf16.mxu0 %v7461
    %7777 = vmatpush1.bf16.msra.mxu0 %v7460
    %7778 = vmatprep.subr.bf16.mxu0 %v7465
    %7779 = vmatpush1.bf16.msra.mxu0 %v7464
    %7780 = vmatprep.subr.bf16.mxu0 %v7469
    %7781 = vmatpush1.bf16.msra.mxu0 %v7468
    %7782 = vmatprep.subr.bf16.mxu0 %v7473
    %7783 = vmatpush1.bf16.msra.mxu0 %v7472
    %7784 = vmatprep.mubr.bf16.mxu0 %v6895
    %7785 = vmatmul.mubr.bf16.gmra.mrb[0].mxu0 %v6894
    %v7786 = vpop.f32.mrb[0].mxu0
    %v7787 = vadd.f32 0.0, %v7786
    %v7788 = vpop.f32.mrb[0].mxu0
    %v7789 = vadd.f32 0.0, %v7788
    %v7790 = vpop.f32.mrb[0].mxu0
    %v7791 = vadd.f32 0.0, %v7790
    %v7792 = vpop.f32.mrb[0].mxu0
    %v7793 = vadd.f32 0.0, %v7792
    %7794 = vdwg.mxu0
    %7795 = vmatprep.subr.bf16.mxu0 %v7477
    %7796 = vmatpush1.bf16.msra.mxu0 %v7476
    %7797 = vmatprep.subr.bf16.mxu0 %v7481
    %7798 = vmatpush1.bf16.msra.mxu0 %v7480
    %7799 = vmatprep.subr.bf16.mxu0 %v7485
    %7800 = vmatpush1.bf16.msra.mxu0 %v7484
    %7801 = vmatprep.subr.bf16.mxu0 %v7489
    %7802 = vmatpush1.bf16.msra.mxu0 %v7488
    %7803 = vmatprep.subr.bf16.mxu0 %v7493
    %7804 = vmatpush1.bf16.msra.mxu0 %v7492
    %7805 = vmatprep.subr.bf16.mxu0 %v7497
    %7806 = vmatpush1.bf16.msra.mxu0 %v7496
    %7807 = vmatprep.subr.bf16.mxu0 %v7501
    %7808 = vmatpush1.bf16.msra.mxu0 %v7500
    %7809 = vmatprep.subr.bf16.mxu0 %v7505
    %7810 = vmatpush1.bf16.msra.mxu0 %v7504
    %7811 = vmatprep.subr.bf16.mxu0 %v7509
    %7812 = vmatpush1.bf16.msra.mxu0 %v7508
    %7813 = vmatprep.subr.bf16.mxu0 %v7513
    %7814 = vmatpush1.bf16.msra.mxu0 %v7512
    %7815 = vmatprep.subr.bf16.mxu0 %v7517
    %7816 = vmatpush1.bf16.msra.mxu0 %v7516
    %7817 = vmatprep.subr.bf16.mxu0 %v7521
    %7818 = vmatpush1.bf16.msra.mxu0 %v7520
    %7819 = vmatprep.subr.bf16.mxu0 %v7525
    %7820 = vmatpush1.bf16.msra.mxu0 %v7524
    %7821 = vmatprep.subr.bf16.mxu0 %v7529
    %7822 = vmatpush1.bf16.msra.mxu0 %v7528
    %7823 = vmatprep.subr.bf16.mxu0 %v7533
    %7824 = vmatpush1.bf16.msra.mxu0 %v7532
    %7825 = vmatprep.subr.bf16.mxu0 %v7537
    %7826 = vmatpush1.bf16.msra.mxu0 %v7536
    %7827 = vmatprep.mubr.bf16.mxu0 %v6897
    %7828 = vmatmul.mubr.bf16.gmra.mrb[0].mxu0 %v6896
    %v7829 = vpop.f32.mrb[0].mxu0
    %v7830 = vadd.f32 %v7787, %v7829
    %v7831 = vpop.f32.mrb[0].mxu0
    %v7832 = vadd.f32 %v7789, %v7831
    %v7833 = vpop.f32.mrb[0].mxu0
    %v7834 = vadd.f32 %v7791, %v7833
    %v7835 = vpop.f32.mrb[0].mxu0
    %v7836 = vadd.f32 %v7793, %v7835
    %7837 = vdwg.mxu0
    %v7838 = vld [vmem:[#allocation2] sm:$0xff]
    %v7839 = vld [vmem:[#allocation2 + $0x8] sm:$0xff]
    %v7840 = vld [vmem:[#allocation2 + $0x10] sm:$0xff]
    %v7841 = vld [vmem:[#allocation2 + $0x18] sm:$0xff]
    %v7842 = vld [vmem:[#allocation2 + $0x20] sm:$0xff]
    %v7843 = vld [vmem:[#allocation2 + $0x28] sm:$0xff]
    %v7844 = vld [vmem:[#allocation2 + $0x30] sm:$0xff]
    %v7845 = vld [vmem:[#allocation2 + $0x38] sm:$0xff]
    %v7846 = vadd.f32 %v7838, %v7744
    %v7847 = vadd.f32 %v7839, %v7746
    %v7848 = vadd.f32 %v7840, %v7830
    %v7849 = vadd.f32 %v7841, %v7832
    %v7850 = vadd.f32 %v7842, %v7748
    %v7851 = vadd.f32 %v7843, %v7750
    %v7852 = vadd.f32 %v7844, %v7834
    %v7853 = vadd.f32 %v7845, %v7836
    %7854 = vst [vmem:[#allocation2] sm:$0xff] %v7846
    %7855 = vst [vmem:[#allocation2 + $0x8] sm:$0xff] %v7847
    %7856 = vst [vmem:[#allocation2 + $0x10] sm:$0xff] %v7848
    %7857 = vst [vmem:[#allocation2 + $0x18] sm:$0xff] %v7849
    %7858 = vst [vmem:[#allocation2 + $0x20] sm:$0xff] %v7850
    %7859 = vst [vmem:[#allocation2 + $0x28] sm:$0xff] %v7851
    %7860 = vst [vmem:[#allocation2 + $0x30] sm:$0xff] %v7852
    %7861 = vst [vmem:[#allocation2 + $0x38] sm:$0xff] %v7853
    %v7862 = vld [vmem:[#allocation2] sm:$0xff]
    %v7863 = vld [vmem:[#allocation2 + $0x8] sm:$0xff]
    %v7864 = vld [vmem:[#allocation2 + $0x10] sm:$0xff]
    %v7865 = vld [vmem:[#allocation2 + $0x18] sm:$0xff]
    %v7866 = vld [vmem:[#allocation2 + $0x20] sm:$0xff]
    %v7867 = vld [vmem:[#allocation2 + $0x28] sm:$0xff]
    %v7868 = vld [vmem:[#allocation2 + $0x30] sm:$0xff]
    %v7869 = vld [vmem:[#allocation2 + $0x38] sm:$0xff]
    %v7870 = vld [vmem:[#allocation11] sm:$0xf]
    %v7872 = vlaneseq
    %v7873 = vshrl.u32 %v7872, 7
    %v7874 = vsub.s32 0, %v7873
    %v7875 = vrot.slane %v7870, %v7874
    %v7876 = vlaneseq
    %v7877 = vshrl.u32 %v7876, 7
    %v7878 = vsub.s32 1, %v7877
    %v7879 = vrot.slane %v7870, %v7878
    %v7880 = vlaneseq
    %v7881 = vshrl.u32 %v7880, 7
    %v7882 = vsub.s32 2, %v7881
    %v7883 = vrot.slane %v7870, %v7882
    %v7884 = vlaneseq
    %v7885 = vshrl.u32 %v7884, 7
    %v7886 = vsub.s32 3, %v7885
    %v7887 = vrot.slane %v7870, %v7886
    %v7892 = vadd.f32 %v7862, %v7875
    %v7893 = vadd.f32 %v7863, %v7879
    %v7894 = vadd.f32 %v7864, %v7883
    %v7895 = vadd.f32 %v7865, %v7887
    %v7896 = vadd.f32 %v7866, %v7875
    %v7897 = vadd.f32 %v7867, %v7879
    %v7898 = vadd.f32 %v7868, %v7883
    %v7899 = vadd.f32 %v7869, %v7887
    %v7900 = vadd.f32 %v7892, %v114
    %v7901 = vadd.f32 %v7893, %v115
    %v7902 = vadd.f32 %v7894, %v116
    %v7903 = vadd.f32 %v7895, %v117
    %v7904 = vadd.f32 %v7896, %v118
    %v7905 = vadd.f32 %v7897, %v119
    %v7906 = vadd.f32 %v7898, %v120
    %v7907 = vadd.f32 %v7899, %v121
    %v7908 = vadd.f32 %v7900, %v7901
    %v7909 = vadd.f32 %v7908, %v7902
    %v7910 = vadd.f32 %v7909, %v7903
    %7911 = vadd.xlane.f32.xlu0 %v7910
    %v7912 = vpop.xlane.xlu0 %7911
    %v7913 = vadd.f32 %v7904, %v7905
    %v7914 = vadd.f32 %v7913, %v7906
    %v7915 = vadd.f32 %v7914, %v7907
    %7916 = vadd.xlane.f32.xlu0 %v7915
    %v7917 = vpop.xlane.xlu0 %7916
    %v7918 = vrcp.pop 512.0
    %v7919 = vmul.f32 %v7912, %v7918
    %v7920 = vmul.f32 %v7917, %v7918
    %v7921 = vmul.f32 %v7900, %v7900
    %v7922 = vmul.f32 %v7901, %v7901
    %v7923 = vmul.f32 %v7902, %v7902
    %v7924 = vmul.f32 %v7903, %v7903
    %v7925 = vmul.f32 %v7904, %v7904
    %v7926 = vmul.f32 %v7905, %v7905
    %v7927 = vmul.f32 %v7906, %v7906
    %v7928 = vmul.f32 %v7907, %v7907
    %v7929 = vadd.f32 %v7921, %v7922
    %v7930 = vadd.f32 %v7929, %v7923
    %v7931 = vadd.f32 %v7930, %v7924
    %7932 = vadd.xlane.f32.xlu0 %v7931
    %v7933 = vpop.xlane.xlu0 %7932
    %v7934 = vadd.f32 %v7925, %v7926
    %v7935 = vadd.f32 %v7934, %v7927
    %v7936 = vadd.f32 %v7935, %v7928
    %7937 = vadd.xlane.f32.xlu0 %v7936
    %v7938 = vpop.xlane.xlu0 %7937
    %v7939 = vmul.f32 %v7933, %v7918
    %v7940 = vmul.f32 %v7938, %v7918
    %v7941 = vmul.f32 %v7919, %v7919
    %v7942 = vmul.f32 %v7920, %v7920
    %v7943 = vsub.f32 %v7939, %v7941
    %v7944 = vsub.f32 %v7940, %v7942
    %v7945 = vld [vmem:[#allocation12] sm:$0xf]
    %v7946 = vadd.f32 %v7943, 1e-05
    %v7947 = vadd.f32 %v7944, 1e-05
    %v7948 = vrsqrt.pop %v7946
    %v7949 = vrsqrt.pop %v7947
    %v7951 = vlaneseq
    %v7952 = vshrl.u32 %v7951, 7
    %v7953 = vsub.s32 0, %v7952
    %v7954 = vrot.slane %v7945, %v7953
    %v7955 = vlaneseq
    %v7956 = vshrl.u32 %v7955, 7
    %v7957 = vsub.s32 1, %v7956
    %v7958 = vrot.slane %v7945, %v7957
    %v7959 = vlaneseq
    %v7960 = vshrl.u32 %v7959, 7
    %v7961 = vsub.s32 2, %v7960
    %v7962 = vrot.slane %v7945, %v7961
    %v7963 = vlaneseq
    %v7964 = vshrl.u32 %v7963, 7
    %v7965 = vsub.s32 3, %v7964
    %v7966 = vrot.slane %v7945, %v7965
    %v7971 = vmul.f32 %v7954, %v7948
    %v7972 = vmul.f32 %v7958, %v7948
    %v7973 = vmul.f32 %v7962, %v7948
    %v7974 = vmul.f32 %v7966, %v7948
    %v7975 = vmul.f32 %v7954, %v7949
    %v7976 = vmul.f32 %v7958, %v7949
    %v7977 = vmul.f32 %v7962, %v7949
    %v7978 = vmul.f32 %v7966, %v7949
    %v7979 = vsub.f32 %v7900, %v7919
    %v7980 = vsub.f32 %v7901, %v7919
    %v7981 = vsub.f32 %v7902, %v7919
    %v7982 = vsub.f32 %v7903, %v7919
    %v7983 = vsub.f32 %v7904, %v7920
    %v7984 = vsub.f32 %v7905, %v7920
    %v7985 = vsub.f32 %v7906, %v7920
    %v7986 = vsub.f32 %v7907, %v7920
    %v7987 = vmul.f32 %v7979, %v7971
    %v7988 = vmul.f32 %v7980, %v7972
    %v7989 = vmul.f32 %v7981, %v7973
    %v7990 = vmul.f32 %v7982, %v7974
    %v7991 = vmul.f32 %v7983, %v7975
    %v7992 = vmul.f32 %v7984, %v7976
    %v7993 = vmul.f32 %v7985, %v7977
    %v7994 = vmul.f32 %v7986, %v7978
    %v7995 = vld [vmem:[#allocation14] sm:$0xf]
    %v7997 = vlaneseq
    %v7998 = vshrl.u32 %v7997, 7
    %v7999 = vsub.s32 0, %v7998
    %v8000 = vrot.slane %v7995, %v7999
    %v8001 = vlaneseq
    %v8002 = vshrl.u32 %v8001, 7
    %v8003 = vsub.s32 1, %v8002
    %v8004 = vrot.slane %v7995, %v8003
    %v8005 = vlaneseq
    %v8006 = vshrl.u32 %v8005, 7
    %v8007 = vsub.s32 2, %v8006
    %v8008 = vrot.slane %v7995, %v8007
    %v8009 = vlaneseq
    %v8010 = vshrl.u32 %v8009, 7
    %v8011 = vsub.s32 3, %v8010
    %v8012 = vrot.slane %v7995, %v8011
    %v8017 = vadd.f32 %v7987, %v8000
    %v8018 = vadd.f32 %v7988, %v8004
    %v8019 = vadd.f32 %v7989, %v8008
    %v8020 = vadd.f32 %v7990, %v8012
    %v8021 = vadd.f32 %v7991, %v8000
    %v8022 = vadd.f32 %v7992, %v8004
    %v8023 = vadd.f32 %v7993, %v8008
    %v8024 = vadd.f32 %v7994, %v8012
    %8025 = vst [vmem:[#allocation15] sm:$0xff] %v8017
    %8026 = vst [vmem:[#allocation15 + $0x8] sm:$0xff] %v8018
    %8027 = vst [vmem:[#allocation15 + $0x10] sm:$0xff] %v8019
    %8028 = vst [vmem:[#allocation15 + $0x18] sm:$0xff] %v8020
    %8029 = vst [vmem:[#allocation15 + $0x20] sm:$0xff] %v8021
    %8030 = vst [vmem:[#allocation15 + $0x28] sm:$0xff] %v8022
    %8031 = vst [vmem:[#allocation15 + $0x30] sm:$0xff] %v8023
    %8032 = vst [vmem:[#allocation15 + $0x38] sm:$0xff] %v8024
    // Predicated region
    $region58: #{powise_ffn.1} parent=1 // pred_check
      _
    $region59: #{powise_ffn.1} parent=1 // pred_check_branch
      %8034 = sbr.rel (0) target = $region61
    $region60: #{powise_ffn.1} parent=1 // pred_region
      %s8036 = ssub.s32 1024, 1024
      %8037 = vsyncadd [#allocation5], %s8036
      %s8038 = sshll.u32 [#allocation15], 4
      %s8039 = int_to_ptr.vmem [resolvable:$true] %s8038
      %8044 = dma.vmem_to_hbm [thread:$0]  %s8039, 1024, %s7, [#allocation5], 512, 512, 32
    $region61: #{powise_ffn.1} parent=1 // pred_fallthru
      _
    // Predicated region
    $region62: #{powise_ffn.1} parent=1 // pred_check
      _
    $region63: #{powise_ffn.1} parent=1 // pred_check_branch
      %8046 = sbr.rel (0) target = $region65
    $region64: #{powise_ffn.1} parent=1 // pred_region
      %8047 = dma.done [#allocation5], 1024
    $region65: #{powise_ffn.1} parent=1 // pred_fallthru
      _
    %8048 = vsyncpa [#allocation4], 1
    %8049 = vsyncpa [#allocation7], 1
    %8050 = vsyncpa [#allocation10], 1
    %8051 = vsyncpa [#allocation13], 1
    %8052 = vsyncpa [#allocation5], 1

</llo_original>
